<compile_context>
chip_gen: v5e
topology: v5e:2x2
jax: 0.10.0
libtpu: 0.0.40
codegen_flags: <defaults>
</compile_context>

<pallas_src>
import functools

import jax
import jax.numpy as jnp
from jax import lax
from jax.experimental import pallas as pl
from jax.experimental.pallas import tpu as pltpu


# ----------------------------------------------------------------------------
# Fused Pallas kernel: stem conv + residual tower + policy/value heads
# ----------------------------------------------------------------------------
def _dualres_kernel(
    xin_ref,      # (N, H, W, F)       f32  input, channels zero-extended Cin->F
    convw_ref,    # (L, 9*F, F)        bf16 stacked folded conv weights (im2col rows)
    convb_ref,    # (L, 1, F)          f32  stacked folded conv biases
    h1w_ref,      # (F, 3)             f32  fused 1x1 head convs [:, :2]=policy, [:, 2:]=value
    h1b_ref,      # (1, 3)             f32
    wtph_ref,     # (2, N*H*W, 3)      f32  policy FC weight per-row (NCHW flatten folded in)
    phb2_ref,     # (1, 3)             f32
    w2v_ref,      # (N*H*W, F)         f32  value FC1 weight per-row (tiled over batch)
    vhb2_ref,     # (1, F)             f32
    vhw3_ref,     # (F, 1)             f32
    vhb3_ref,     # (1, 1)             f32
    seg_ref,      # (N, N*H*W)         f32  per-sample row indicator (segment sum)
    ph_ref,       # (N, 3)             f32  output: policy
    vh_ref,       # (N, 1)             f32  output: value
    xp_ref,       # (N, H+2, W+2, F)   f32  scratch: padded activation (halo zeroed once)
    pt_ref,       # (N*H*W, 9*F)       bf16 scratch: im2col patch matrix
    res_ref,      # (N*H*W, F)         f32  scratch: residual
    *,
    nblocks, H, W,
):
    N, _, _, F = xin_ref.shape
    NHW = N * H * W

    # One-time halo zeroing; every layer only rewrites the interior.
    xp_ref[...] = jnp.zeros_like(xp_ref)
    xp_ref[:, 1:H + 1, 1:W + 1, :] = xin_ref[...]

    def conv3x3(layer, add_residual):
        # im2col: pack the 9 shifted windows into one (NHW, 9F) bf16 matrix.
        for k in range(9):
            dy, dx = divmod(k, 3)
            win = xp_ref[:, dy:dy + H, dx:dx + W, :].reshape(NHW, F)
            pt_ref[:, k * F:(k + 1) * F] = win.astype(jnp.bfloat16)
        # One MXU matmul per conv, K = 9*F, f32 accumulation.
        acc = jnp.dot(pt_ref[...], convw_ref[layer],
                      preferred_element_type=jnp.float32)
        acc = acc + convb_ref[layer]
        if add_residual:
            acc = acc + res_ref[...]
        acc = jnp.maximum(acc, 0.0)
        xp_ref[:, 1:H + 1, 1:W + 1, :] = acc.reshape(N, H, W, F)

    # Stem: conv3x3 + folded BN + ReLU.
    conv3x3(0, add_residual=False)

    # Residual tower.
    for b in range(nblocks):
        res_ref[...] = xp_ref[:, 1:H + 1, 1:W + 1, :].reshape(NHW, F)
        conv3x3(1 + 2 * b, add_residual=False)
        conv3x3(2 + 2 * b, add_residual=True)

    # --------------------------- heads ---------------------------
    x2d = xp_ref[:, 1:H + 1, 1:W + 1, :].reshape(NHW, F)

    # Fused 1x1 convs (+folded BN) for both heads: (NHW, 3).
    feat = jnp.dot(x2d, h1w_ref[...], preferred_element_type=jnp.float32)
    feat = jnp.maximum(feat + h1b_ref[...], 0.0)

    seg = seg_ref[...]                                                 # (N, NHW)

    # Policy head: Linear(2*H*W -> 3) with the NCHW flatten folded into wtph.
    rowsum = feat[:, 0:1] * wtph_ref[0] + feat[:, 1:2] * wtph_ref[1]   # (NHW, 3)
    ph_logits = jnp.dot(seg, rowsum, preferred_element_type=jnp.float32)
    ph_logits = ph_logits + phb2_ref[...]
    ph_logits = ph_logits - jnp.max(ph_logits, axis=-1, keepdims=True)
    e = jnp.exp(ph_logits)
    ph_ref[...] = e / jnp.sum(e, axis=-1, keepdims=True)

    # Value head: Linear(H*W -> F) + ReLU + Linear(F -> 1).
    vrows = feat[:, 2:3] * w2v_ref[...]                                # (NHW, F)
    vh_hidden = jnp.dot(seg, vrows, preferred_element_type=jnp.float32)
    vh_hidden = jnp.maximum(vh_hidden + vhb2_ref[...], 0.0)            # (N, F)
    vh_ref[...] = jnp.dot(vh_hidden, vhw3_ref[...],
                          preferred_element_type=jnp.float32) + vhb3_ref[...]


# ----------------------------------------------------------------------------
# Wrapper: pack parameters once, build the single pallas_call
# ----------------------------------------------------------------------------
def _full_spec(shape):
    nd = len(shape)
    return pl.BlockSpec(shape, lambda *_, _nd=nd: (0,) * _nd)


def build_dualres_forward(params, N, Cin, F, H, W, nblocks):
    """Pack parameters for the fused kernel; return forward(x_nchw) -> (ph, vh)."""
    assert Cin <= F, "stem packing zero-extends input channels up to num_filters"
    HW, NHW = H * W, N * H * W

    # Stacked conv weights in im2col layout (row index = tap*F + cin), bf16.
    # Layer 0 (stem) gets its input channels zero-extended Cin -> F so all
    # layers share one (9F, F) matmul shape.
    w0 = jnp.zeros((3, 3, F, F), jnp.float32).at[:, :, :Cin, :].set(params["conv0_w"])
    conv_ws = [w0.reshape(9 * F, F)]
    conv_bs = [params["conv0_b"].reshape(1, F)]
    for w1, b1, w2, b2 in params["res"]:
        conv_ws += [w1.reshape(9 * F, F), w2.reshape(9 * F, F)]
        conv_bs += [b1.reshape(1, F), b2.reshape(1, F)]
    conv_w = jnp.stack(conv_ws).astype(jnp.bfloat16)                   # (L, 9F, F)
    conv_b = jnp.stack(conv_bs)                                        # (L, 1, F)

    # Fused 1x1 head convs (policy 2 channels + value 1 channel).
    h1w = jnp.concatenate([params["ph_w1"], params["vh_w1"]], axis=1)  # (F, 3)
    h1b = jnp.concatenate([params["ph_b1"], params["vh_b1"]]).reshape(1, 3)

    # Policy FC: fold PyTorch's NCHW flatten into per-row weights; tile over N.
    # ph_w2 rows are ordered (c, h, w); regroup to [c, n*HW + p, o].
    wtph = jnp.tile(params["ph_w2"].reshape(2, HW, 3), (1, N, 1))      # (2, NHW, 3)
    phb2 = params["ph_b2"].reshape(1, 3)

    # Value FC1: single channel -> NCHW flatten == NHWC flatten; tile over N.
    w2v = jnp.tile(params["vh_w2"], (N, 1))                            # (NHW, F)
    vhb2 = params["vh_b2"].reshape(1, F)
    vhw3 = params["vh_w3"]                                             # (F, 1)
    vhb3 = params["vh_b3"].reshape(1, 1)

    # Per-sample row indicator for the segment-sum matmuls in both heads.
    seg = (jnp.arange(NHW)[None, :] // HW
           == jnp.arange(N)[:, None]).astype(jnp.float32)              # (N, NHW)

    weights = [conv_w, conv_b, h1w, h1b, wtph, phb2, w2v, vhb2, vhw3, vhb3, seg]

    kernel = functools.partial(_dualres_kernel, nblocks=nblocks, H=H, W=W)
    out_shape = (jax.ShapeDtypeStruct((N, 3), jnp.float32),
                 jax.ShapeDtypeStruct((N, 1), jnp.float32))

    def forward(x_nchw):
        x = jnp.transpose(x_nchw, (0, 2, 3, 1))                        # NCHW -> NHWC (once)
        x = jnp.pad(x, ((0, 0), (0, 0), (0, 0), (0, F - Cin)))         # zero-extend channels
        args = [x] + weights
        return pl.pallas_call(
            kernel,
            grid=(1,),
            in_specs=[_full_spec(a.shape) for a in args],
            out_specs=(_full_spec((N, 3)), _full_spec((N, 1))),
            out_shape=out_shape,
            scratch_shapes=[
                pltpu.VMEM((N, H + 2, W + 2, F), jnp.float32),         # padded activation
                pltpu.VMEM((NHW, 9 * F), jnp.bfloat16),                # im2col patches
                pltpu.VMEM((NHW, F), jnp.float32),                     # residual
            ],
        )(*args)

    return forward


# ----------------------------------------------------------------------------
# Pure-JAX reference (PyTorch NCHW semantics); conv operands in bf16 with f32
# accumulation to mirror the kernel's MXU path.
# ----------------------------------------------------------------------------
def dual_res_reference(x_nchw, params):
    N, _, H, W = x_nchw.shape
    F = params["conv0_w"].shape[-1]

    def conv_bn_relu(x, w, b, res=None):
        y = lax.conv_general_dilated(
            x.astype(jnp.bfloat16), w.astype(jnp.bfloat16), (1, 1), "SAME",
            dimension_numbers=("NHWC", "HWIO", "NHWC"),
            preferred_element_type=jnp.float32)
        y = y + b.reshape(1, 1, 1, -1)
        if res is not None:
            y = y + res
        return jnp.maximum(y, 0.0)

    x = jnp.transpose(x_nchw, (0, 2, 3, 1))
    x = conv_bn_relu(x, params["conv0_w"], params["conv0_b"])
    for w1, b1, w2, b2 in params["res"]:
        h = conv_bn_relu(x, w1, b1)
        x = conv_bn_relu(h, w2, b2, x)

    x2d = x.reshape(N * H * W, F)

    ph = jnp.maximum(x2d @ params["ph_w1"] + params["ph_b1"], 0.0)               # (NHW, 2)
    ph = ph.reshape(N, H, W, 2).transpose(0, 3, 1, 2).reshape(N, 2 * H * W)      # NCHW flatten
    ph = jax.nn.softmax(ph @ params["ph_w2"] + params["ph_b2"], axis=-1)

    vh = jnp.maximum(x2d @ params["vh_w1"] + params["vh_b1"], 0.0)               # (NHW, 1)
    vh = vh.reshape(N, H, W, 1).transpose(0, 3, 1, 2).reshape(N, H * W)          # NCHW flatten
    vh = jnp.maximum(vh @ params["vh_w2"] + params["vh_b2"], 0.0)
    vh = vh @ params["vh_w3"] + params["vh_b3"]
    return ph, vh


# ----------------------------------------------------------------------------
# Deterministic parameter construction (BN folded into convs at init)
# ----------------------------------------------------------------------------
def init_params(key, cin, F, H, W, nblocks, eps=1e-5):
    keys = iter(jax.random.split(key, 64 + 10 * nblocks))
    nk = lambda: next(keys)

    def bn_fold(cout):
        gamma = jax.random.uniform(nk(), (cout,), jnp.float32, 0.8, 1.2)
        beta = 0.05 * jax.random.normal(nk(), (cout,), jnp.float32)
        mean = 0.05 * jax.random.normal(nk(), (cout,), jnp.float32)
        var = jax.random.uniform(nk(), (cout,), jnp.float32, 0.8, 1.2)
        s = gamma / jnp.sqrt(var + eps)
        return s, beta - mean * s

    def conv3x3_folded(ci, co):
        w = jax.random.normal(nk(), (3, 3, ci, co), jnp.float32) * (2.0 / (9 * ci)) ** 0.5
        s, t = bn_fold(co)
        return w * s, t                                   # (3,3,ci,co), (co,)

    def conv1x1_folded(ci, co):
        w = jax.random.normal(nk(), (ci, co), jnp.float32) * (2.0 / ci) ** 0.5
        bconv = 0.05 * jax.random.normal(nk(), (co,), jnp.float32)
        s, t = bn_fold(co)
        return w * s, bconv * s + t                       # (ci,co), (co,)

    def linear(fi, fo):
        w = jax.random.normal(nk(), (fi, fo), jnp.float32) * (1.0 / fi) ** 0.5
        b = 0.05 * jax.random.normal(nk(), (fo,), jnp.float32)
        return w, b

    p = {}
    p["conv0_w"], p["conv0_b"] = conv3x3_folded(cin, F)
    p["res"] = []
    for _ in range(nblocks):
        w1, b1 = conv3x3_folded(F, F)
        w2, b2 = conv3x3_folded(F, F)
        p["res"].append((w1, b1, w2, b2))
    p["ph_w1"], p["ph_b1"] = conv1x1_folded(F, 2)
    p["ph_w2"], p["ph_b2"] = linear(2 * H * W, 3)   # TODO(synk): Linear in_features mismatch
    p["vh_w1"], p["vh_b1"] = conv1x1_folded(F, 1)
    p["vh_w2"], p["vh_b2"] = linear(H * W, F)       # TODO(synk): Linear in_features mismatch
    p["vh_w3"], p["vh_b3"] = linear(F, 1)
    return p


# ----------------------------------------------------------------------------
if __name__ == "__main__":
    N, Cin, H, W = 2, 4, 8, 8
    F, NUM_RESBLOCKS = 32, 2

    key = jax.random.PRNGKey(0)
    kx, kp = jax.random.split(key)
    x = jax.random.normal(kx, (N, Cin, H, W), jnp.float32)   # PyTorch NCHW input
    params = init_params(kp, Cin, F, H, W, NUM_RESBLOCKS)

    fwd = jax.jit(build_dualres_forward(params, N, Cin, F, H, W, NUM_RESBLOCKS))
    ph, vh = fwd(x)
    jax.block_until_ready((ph, vh))

    # correctness check against a pure-JAX reference
    ph_ref, vh_ref = dual_res_reference(x, params)
    assert ph.shape == (N, 3) and vh.shape == (N, 1)
    assert jnp.allclose(ph, ph_ref, atol=2e-3, rtol=2e-3), (ph, ph_ref)
    assert jnp.allclose(vh, vh_ref, atol=2e-3, rtol=2e-3), (vh, vh_ref)

    print("KERNEL_OK")
</pallas_src>

<mosaic_0001>
module attributes {stable_mosaic.version = 11 : i64} {
  func.func @_dualres_kernel(%arg0: i32, %arg1: memref<2x8x8x32xf32, #tpu.memory_space<vmem>>, %arg2: memref<5x288x32xbf16, #tpu.memory_space<vmem>>, %arg3: memref<5x1x32xf32, #tpu.memory_space<vmem>>, %arg4: memref<32x3xf32, #tpu.memory_space<vmem>>, %arg5: memref<1x3xf32, #tpu.memory_space<vmem>>, %arg6: memref<2x128x3xf32, #tpu.memory_space<vmem>>, %arg7: memref<1x3xf32, #tpu.memory_space<vmem>>, %arg8: memref<128x32xf32, #tpu.memory_space<vmem>>, %arg9: memref<1x32xf32, #tpu.memory_space<vmem>>, %arg10: memref<32x1xf32, #tpu.memory_space<vmem>>, %arg11: memref<1x1xf32, #tpu.memory_space<vmem>>, %arg12: memref<2x128xf32, #tpu.memory_space<vmem>>, %arg13: memref<2x3xf32, #tpu.memory_space<vmem>>, %arg14: memref<2x1xf32, #tpu.memory_space<vmem>>, %arg15: memref<2x10x10x32xf32, #tpu.memory_space<vmem>>, %arg16: memref<128x288xbf16, #tpu.memory_space<vmem>>, %arg17: memref<128x32xf32, #tpu.memory_space<vmem>>) attributes {dimension_semantics = [#tpu.dimension_semantics<arbitrary>], iteration_bounds = array<i64: 1>, scalar_prefetch = 0 : i64, scratch_operands = 3 : i64, tpu.core_type = #tpu.core_type<tc>, window_params = [{pipeline_mode = #tpu.pipeline_mode<synchronous>, transform_indices = @transform_0, window_bounds = array<i64: 2, 8, 8, 32>}, {pipeline_mode = #tpu.pipeline_mode<synchronous>, transform_indices = @transform_1, window_bounds = array<i64: 5, 288, 32>}, {pipeline_mode = #tpu.pipeline_mode<synchronous>, transform_indices = @transform_2, window_bounds = array<i64: 5, 1, 32>}, {pipeline_mode = #tpu.pipeline_mode<synchronous>, transform_indices = @transform_3, window_bounds = array<i64: 32, 3>}, {pipeline_mode = #tpu.pipeline_mode<synchronous>, transform_indices = @transform_4, window_bounds = array<i64: 1, 3>}, {pipeline_mode = #tpu.pipeline_mode<synchronous>, transform_indices = @transform_5, window_bounds = array<i64: 2, 128, 3>}, {pipeline_mode = #tpu.pipeline_mode<synchronous>, transform_indices = @transform_6, window_bounds = array<i64: 1, 3>}, {pipeline_mode = #tpu.pipeline_mode<synchronous>, transform_indices = @transform_7, window_bounds = array<i64: 128, 32>}, {pipeline_mode = #tpu.pipeline_mode<synchronous>, transform_indices = @transform_8, window_bounds = array<i64: 1, 32>}, {pipeline_mode = #tpu.pipeline_mode<synchronous>, transform_indices = @transform_9, window_bounds = array<i64: 32, 1>}, {pipeline_mode = #tpu.pipeline_mode<synchronous>, transform_indices = @transform_10, window_bounds = array<i64: 1, 1>}, {pipeline_mode = #tpu.pipeline_mode<synchronous>, transform_indices = @transform_11, window_bounds = array<i64: 2, 128>}, {pipeline_mode = #tpu.pipeline_mode<synchronous>, transform_indices = @transform_12, window_bounds = array<i64: 2, 3>}, {pipeline_mode = #tpu.pipeline_mode<synchronous>, transform_indices = @transform_13, window_bounds = array<i64: 2, 1>}]} {
    %cst = arith.constant 0.000000e+00 : f32
    %0 = vector.broadcast %cst : f32 to vector<2x10x10x32xf32>
    %c0 = arith.constant 0 : index
    %c0_0 = arith.constant 0 : index
    %c0_1 = arith.constant 0 : index
    %c0_2 = arith.constant 0 : index
    %1 = vector.load %arg15[%c0, %c0_0, %c0_1, %c0_2] : memref<2x10x10x32xf32, #tpu.memory_space<vmem>>, vector<2x10x10x32xf32>
    tpu.vector_store %arg15[%c0, %c0_0, %c0_1, %c0_2], %0 {strides = array<i32>} : memref<2x10x10x32xf32, #tpu.memory_space<vmem>>, vector<2x10x10x32xf32>,
    %c0_3 = arith.constant 0 : index
    %c0_4 = arith.constant 0 : index
    %c0_5 = arith.constant 0 : index
    %c0_6 = arith.constant 0 : index
    %2 = vector.load %arg1[%c0_3, %c0_4, %c0_5, %c0_6] : memref<2x8x8x32xf32, #tpu.memory_space<vmem>>, vector<2x8x8x32xf32>
    %c0_7 = arith.constant 0 : index
    %c1 = arith.constant 1 : index
    %c1_8 = arith.constant 1 : index
    %c0_9 = arith.constant 0 : index
    %3 = vector.load %arg15[%c0_7, %c1, %c1_8, %c0_9] : memref<2x10x10x32xf32, #tpu.memory_space<vmem>>, vector<2x8x8x32xf32>
    tpu.vector_store %arg15[%c0_7, %c1, %c1_8, %c0_9], %2 {strides = array<i32>} : memref<2x10x10x32xf32, #tpu.memory_space<vmem>>, vector<2x8x8x32xf32>,
    %c0_10 = arith.constant 0 : index
    %c0_11 = arith.constant 0 : index
    %c0_12 = arith.constant 0 : index
    %c0_13 = arith.constant 0 : index
    %4 = vector.load %arg15[%c0_10, %c0_11, %c0_12, %c0_13] : memref<2x10x10x32xf32, #tpu.memory_space<vmem>>, vector<2x8x8x32xf32>
    %5 = vector.shape_cast %4 : vector<2x8x8x32xf32> to vector<128x32xf32>
    %6 = arith.truncf %5 : vector<128x32xf32> to vector<128x32xbf16>
    %c0_14 = arith.constant 0 : index
    %c0_15 = arith.constant 0 : index
    %7 = vector.load %arg16[%c0_14, %c0_15] : memref<128x288xbf16, #tpu.memory_space<vmem>>, vector<128x32xbf16>
    tpu.vector_store %arg16[%c0_14, %c0_15], %6 {strides = array<i32>} : memref<128x288xbf16, #tpu.memory_space<vmem>>, vector<128x32xbf16>,
    %c0_16 = arith.constant 0 : index
    %c0_17 = arith.constant 0 : index
    %c1_18 = arith.constant 1 : index
    %c0_19 = arith.constant 0 : index
    %8 = vector.load %arg15[%c0_16, %c0_17, %c1_18, %c0_19] : memref<2x10x10x32xf32, #tpu.memory_space<vmem>>, vector<2x8x8x32xf32>
    %9 = vector.shape_cast %8 : vector<2x8x8x32xf32> to vector<128x32xf32>
    %10 = arith.truncf %9 : vector<128x32xf32> to vector<128x32xbf16>
    %c0_20 = arith.constant 0 : index
    %c32 = arith.constant 32 : index
    %11 = vector.load %arg16[%c0_20, %c32] : memref<128x288xbf16, #tpu.memory_space<vmem>>, vector<128x32xbf16>
    tpu.vector_store %arg16[%c0_20, %c32], %10 {strides = array<i32>} : memref<128x288xbf16, #tpu.memory_space<vmem>>, vector<128x32xbf16>,
    %c0_21 = arith.constant 0 : index
    %c0_22 = arith.constant 0 : index
    %c2 = arith.constant 2 : index
    %c0_23 = arith.constant 0 : index
    %12 = vector.load %arg15[%c0_21, %c0_22, %c2, %c0_23] : memref<2x10x10x32xf32, #tpu.memory_space<vmem>>, vector<2x8x8x32xf32>
    %13 = vector.shape_cast %12 : vector<2x8x8x32xf32> to vector<128x32xf32>
    %14 = arith.truncf %13 : vector<128x32xf32> to vector<128x32xbf16>
    %c0_24 = arith.constant 0 : index
    %c64 = arith.constant 64 : index
    %15 = vector.load %arg16[%c0_24, %c64] : memref<128x288xbf16, #tpu.memory_space<vmem>>, vector<128x32xbf16>
    tpu.vector_store %arg16[%c0_24, %c64], %14 {strides = array<i32>} : memref<128x288xbf16, #tpu.memory_space<vmem>>, vector<128x32xbf16>,
    %c0_25 = arith.constant 0 : index
    %c1_26 = arith.constant 1 : index
    %c0_27 = arith.constant 0 : index
    %c0_28 = arith.constant 0 : index
    %16 = vector.load %arg15[%c0_25, %c1_26, %c0_27, %c0_28] : memref<2x10x10x32xf32, #tpu.memory_space<vmem>>, vector<2x8x8x32xf32>
    %17 = vector.shape_cast %16 : vector<2x8x8x32xf32> to vector<128x32xf32>
    %18 = arith.truncf %17 : vector<128x32xf32> to vector<128x32xbf16>
    %c0_29 = arith.constant 0 : index
    %c96 = arith.constant 96 : index
    %19 = vector.load %arg16[%c0_29, %c96] : memref<128x288xbf16, #tpu.memory_space<vmem>>, vector<128x32xbf16>
    tpu.vector_store %arg16[%c0_29, %c96], %18 {strides = array<i32>} : memref<128x288xbf16, #tpu.memory_space<vmem>>, vector<128x32xbf16>,
    %c0_30 = arith.constant 0 : index
    %c1_31 = arith.constant 1 : index
    %c1_32 = arith.constant 1 : index
    %c0_33 = arith.constant 0 : index
    %20 = vector.load %arg15[%c0_30, %c1_31, %c1_32, %c0_33] : memref<2x10x10x32xf32, #tpu.memory_space<vmem>>, vector<2x8x8x32xf32>
    %21 = vector.shape_cast %20 : vector<2x8x8x32xf32> to vector<128x32xf32>
    %22 = arith.truncf %21 : vector<128x32xf32> to vector<128x32xbf16>
    %c0_34 = arith.constant 0 : index
    %c128 = arith.constant 128 : index
    %23 = vector.load %arg16[%c0_34, %c128] : memref<128x288xbf16, #tpu.memory_space<vmem>>, vector<128x32xbf16>
    tpu.vector_store %arg16[%c0_34, %c128], %22 {strides = array<i32>} : memref<128x288xbf16, #tpu.memory_space<vmem>>, vector<128x32xbf16>,
    %c0_35 = arith.constant 0 : index
    %c1_36 = arith.constant 1 : index
    %c2_37 = arith.constant 2 : index
    %c0_38 = arith.constant 0 : index
    %24 = vector.load %arg15[%c0_35, %c1_36, %c2_37, %c0_38] : memref<2x10x10x32xf32, #tpu.memory_space<vmem>>, vector<2x8x8x32xf32>
    %25 = vector.shape_cast %24 : vector<2x8x8x32xf32> to vector<128x32xf32>
    %26 = arith.truncf %25 : vector<128x32xf32> to vector<128x32xbf16>
    %c0_39 = arith.constant 0 : index
    %c160 = arith.constant 160 : index
    %27 = vector.load %arg16[%c0_39, %c160] : memref<128x288xbf16, #tpu.memory_space<vmem>>, vector<128x32xbf16>
    tpu.vector_store %arg16[%c0_39, %c160], %26 {strides = array<i32>} : memref<128x288xbf16, #tpu.memory_space<vmem>>, vector<128x32xbf16>,
    %c0_40 = arith.constant 0 : index
    %c2_41 = arith.constant 2 : index
    %c0_42 = arith.constant 0 : index
    %c0_43 = arith.constant 0 : index
    %28 = vector.load %arg15[%c0_40, %c2_41, %c0_42, %c0_43] : memref<2x10x10x32xf32, #tpu.memory_space<vmem>>, vector<2x8x8x32xf32>
    %29 = vector.shape_cast %28 : vector<2x8x8x32xf32> to vector<128x32xf32>
    %30 = arith.truncf %29 : vector<128x32xf32> to vector<128x32xbf16>
    %c0_44 = arith.constant 0 : index
    %c192 = arith.constant 192 : index
    %31 = vector.load %arg16[%c0_44, %c192] : memref<128x288xbf16, #tpu.memory_space<vmem>>, vector<128x32xbf16>
    tpu.vector_store %arg16[%c0_44, %c192], %30 {strides = array<i32>} : memref<128x288xbf16, #tpu.memory_space<vmem>>, vector<128x32xbf16>,
    %c0_45 = arith.constant 0 : index
    %c2_46 = arith.constant 2 : index
    %c1_47 = arith.constant 1 : index
    %c0_48 = arith.constant 0 : index
    %32 = vector.load %arg15[%c0_45, %c2_46, %c1_47, %c0_48] : memref<2x10x10x32xf32, #tpu.memory_space<vmem>>, vector<2x8x8x32xf32>
    %33 = vector.shape_cast %32 : vector<2x8x8x32xf32> to vector<128x32xf32>
    %34 = arith.truncf %33 : vector<128x32xf32> to vector<128x32xbf16>
    %c0_49 = arith.constant 0 : index
    %c224 = arith.constant 224 : index
    %35 = vector.load %arg16[%c0_49, %c224] : memref<128x288xbf16, #tpu.memory_space<vmem>>, vector<128x32xbf16>
    tpu.vector_store %arg16[%c0_49, %c224], %34 {strides = array<i32>} : memref<128x288xbf16, #tpu.memory_space<vmem>>, vector<128x32xbf16>,
    %c0_50 = arith.constant 0 : index
    %c2_51 = arith.constant 2 : index
    %c2_52 = arith.constant 2 : index
    %c0_53 = arith.constant 0 : index
    %36 = vector.load %arg15[%c0_50, %c2_51, %c2_52, %c0_53] : memref<2x10x10x32xf32, #tpu.memory_space<vmem>>, vector<2x8x8x32xf32>
    %37 = vector.shape_cast %36 : vector<2x8x8x32xf32> to vector<128x32xf32>
    %38 = arith.truncf %37 : vector<128x32xf32> to vector<128x32xbf16>
    %c0_54 = arith.constant 0 : index
    %c256 = arith.constant 256 : index
    %39 = vector.load %arg16[%c0_54, %c256] : memref<128x288xbf16, #tpu.memory_space<vmem>>, vector<128x32xbf16>
    tpu.vector_store %arg16[%c0_54, %c256], %38 {strides = array<i32>} : memref<128x288xbf16, #tpu.memory_space<vmem>>, vector<128x32xbf16>,
    %c0_55 = arith.constant 0 : index
    %c0_56 = arith.constant 0 : index
    %40 = vector.load %arg16[%c0_55, %c0_56] : memref<128x288xbf16, #tpu.memory_space<vmem>>, vector<128x288xbf16>
    %c0_57 = arith.constant 0 : index
    %c0_58 = arith.constant 0 : index
    %c0_59 = arith.constant 0 : index
    %41 = vector.load %arg2[%c0_57, %c0_58, %c0_59] : memref<5x288x32xbf16, #tpu.memory_space<vmem>>, vector<1x288x32xbf16>
    %42 = vector.shape_cast %41 : vector<1x288x32xbf16> to vector<288x32xbf16>
    %cst_60 = arith.constant dense<0.000000e+00> : vector<128x32xf32>
    %43 = tpu.matmul %40, %42, %cst_60 {dimension_numbers = #tpu.dot_dimension_numbers<[1], [0], [0], [1], [0, 0, 1, 1], [], []>} : vector<128x288xbf16>, vector<288x32xbf16>, vector<128x32xf32> -> vector<128x32xf32>
    %c0_61 = arith.constant 0 : index
    %c0_62 = arith.constant 0 : index
    %c0_63 = arith.constant 0 : index
    %44 = vector.load %arg3[%c0_61, %c0_62, %c0_63] : memref<5x1x32xf32, #tpu.memory_space<vmem>>, vector<1x1x32xf32>
    %45 = vector.shape_cast %44 : vector<1x1x32xf32> to vector<1x32xf32>
    %46 = vector.broadcast %45 : vector<1x32xf32> to vector<128x32xf32>
    %47 = arith.addf %43, %46 : vector<128x32xf32>
    %cst_64 = arith.constant 0.000000e+00 : f32
    %48 = vector.broadcast %cst_64 : f32 to vector<128x32xf32>
    %49 = arith.maximumf %47, %48 : vector<128x32xf32>
    %50 = vector.shape_cast %49 : vector<128x32xf32> to vector<2x8x8x32xf32>
    %c0_65 = arith.constant 0 : index
    %c1_66 = arith.constant 1 : index
    %c1_67 = arith.constant 1 : index
    %c0_68 = arith.constant 0 : index
    %51 = vector.load %arg15[%c0_65, %c1_66, %c1_67, %c0_68] : memref<2x10x10x32xf32, #tpu.memory_space<vmem>>, vector<2x8x8x32xf32>
    tpu.vector_store %arg15[%c0_65, %c1_66, %c1_67, %c0_68], %50 {strides = array<i32>} : memref<2x10x10x32xf32, #tpu.memory_space<vmem>>, vector<2x8x8x32xf32>,
    %c0_69 = arith.constant 0 : index
    %c1_70 = arith.constant 1 : index
    %c1_71 = arith.constant 1 : index
    %c0_72 = arith.constant 0 : index
    %52 = vector.load %arg15[%c0_69, %c1_70, %c1_71, %c0_72] : memref<2x10x10x32xf32, #tpu.memory_space<vmem>>, vector<2x8x8x32xf32>
    %53 = vector.shape_cast %52 : vector<2x8x8x32xf32> to vector<128x32xf32>
    %c0_73 = arith.constant 0 : index
    %c0_74 = arith.constant 0 : index
    %54 = vector.load %arg17[%c0_73, %c0_74] : memref<128x32xf32, #tpu.memory_space<vmem>>, vector<128x32xf32>
    tpu.vector_store %arg17[%c0_73, %c0_74], %53 {strides = array<i32>} : memref<128x32xf32, #tpu.memory_space<vmem>>, vector<128x32xf32>,
    %c0_75 = arith.constant 0 : index
    %c0_76 = arith.constant 0 : index
    %c0_77 = arith.constant 0 : index
    %c0_78 = arith.constant 0 : index
    %55 = vector.load %arg15[%c0_75, %c0_76, %c0_77, %c0_78] : memref<2x10x10x32xf32, #tpu.memory_space<vmem>>, vector<2x8x8x32xf32>
    %56 = vector.shape_cast %55 : vector<2x8x8x32xf32> to vector<128x32xf32>
    %57 = arith.truncf %56 : vector<128x32xf32> to vector<128x32xbf16>
    %c0_79 = arith.constant 0 : index
    %c0_80 = arith.constant 0 : index
    %58 = vector.load %arg16[%c0_79, %c0_80] : memref<128x288xbf16, #tpu.memory_space<vmem>>, vector<128x32xbf16>
    tpu.vector_store %arg16[%c0_79, %c0_80], %57 {strides = array<i32>} : memref<128x288xbf16, #tpu.memory_space<vmem>>, vector<128x32xbf16>,
    %c0_81 = arith.constant 0 : index
    %c0_82 = arith.constant 0 : index
    %c1_83 = arith.constant 1 : index
    %c0_84 = arith.constant 0 : index
    %59 = vector.load %arg15[%c0_81, %c0_82, %c1_83, %c0_84] : memref<2x10x10x32xf32, #tpu.memory_space<vmem>>, vector<2x8x8x32xf32>
    %60 = vector.shape_cast %59 : vector<2x8x8x32xf32> to vector<128x32xf32>
    %61 = arith.truncf %60 : vector<128x32xf32> to vector<128x32xbf16>
    %c0_85 = arith.constant 0 : index
    %c32_86 = arith.constant 32 : index
    %62 = vector.load %arg16[%c0_85, %c32_86] : memref<128x288xbf16, #tpu.memory_space<vmem>>, vector<128x32xbf16>
    tpu.vector_store %arg16[%c0_85, %c32_86], %61 {strides = array<i32>} : memref<128x288xbf16, #tpu.memory_space<vmem>>, vector<128x32xbf16>,
    %c0_87 = arith.constant 0 : index
    %c0_88 = arith.constant 0 : index
    %c2_89 = arith.constant 2 : index
    %c0_90 = arith.constant 0 : index
    %63 = vector.load %arg15[%c0_87, %c0_88, %c2_89, %c0_90] : memref<2x10x10x32xf32, #tpu.memory_space<vmem>>, vector<2x8x8x32xf32>
    %64 = vector.shape_cast %63 : vector<2x8x8x32xf32> to vector<128x32xf32>
    %65 = arith.truncf %64 : vector<128x32xf32> to vector<128x32xbf16>
    %c0_91 = arith.constant 0 : index
    %c64_92 = arith.constant 64 : index
    %66 = vector.load %arg16[%c0_91, %c64_92] : memref<128x288xbf16, #tpu.memory_space<vmem>>, vector<128x32xbf16>
    tpu.vector_store %arg16[%c0_91, %c64_92], %65 {strides = array<i32>} : memref<128x288xbf16, #tpu.memory_space<vmem>>, vector<128x32xbf16>,
    %c0_93 = arith.constant 0 : index
    %c1_94 = arith.constant 1 : index
    %c0_95 = arith.constant 0 : index
    %c0_96 = arith.constant 0 : index
    %67 = vector.load %arg15[%c0_93, %c1_94, %c0_95, %c0_96] : memref<2x10x10x32xf32, #tpu.memory_space<vmem>>, vector<2x8x8x32xf32>
    %68 = vector.shape_cast %67 : vector<2x8x8x32xf32> to vector<128x32xf32>
    %69 = arith.truncf %68 : vector<128x32xf32> to vector<128x32xbf16>
    %c0_97 = arith.constant 0 : index
    %c96_98 = arith.constant 96 : index
    %70 = vector.load %arg16[%c0_97, %c96_98] : memref<128x288xbf16, #tpu.memory_space<vmem>>, vector<128x32xbf16>
    tpu.vector_store %arg16[%c0_97, %c96_98], %69 {strides = array<i32>} : memref<128x288xbf16, #tpu.memory_space<vmem>>, vector<128x32xbf16>,
    %c0_99 = arith.constant 0 : index
    %c1_100 = arith.constant 1 : index
    %c1_101 = arith.constant 1 : index
    %c0_102 = arith.constant 0 : index
    %71 = vector.load %arg15[%c0_99, %c1_100, %c1_101, %c0_102] : memref<2x10x10x32xf32, #tpu.memory_space<vmem>>, vector<2x8x8x32xf32>
    %72 = vector.shape_cast %71 : vector<2x8x8x32xf32> to vector<128x32xf32>
    %73 = arith.truncf %72 : vector<128x32xf32> to vector<128x32xbf16>
    %c0_103 = arith.constant 0 : index
    %c128_104 = arith.constant 128 : index
    %74 = vector.load %arg16[%c0_103, %c128_104] : memref<128x288xbf16, #tpu.memory_space<vmem>>, vector<128x32xbf16>
    tpu.vector_store %arg16[%c0_103, %c128_104], %73 {strides = array<i32>} : memref<128x288xbf16, #tpu.memory_space<vmem>>, vector<128x32xbf16>,
    %c0_105 = arith.constant 0 : index
    %c1_106 = arith.constant 1 : index
    %c2_107 = arith.constant 2 : index
    %c0_108 = arith.constant 0 : index
    %75 = vector.load %arg15[%c0_105, %c1_106, %c2_107, %c0_108] : memref<2x10x10x32xf32, #tpu.memory_space<vmem>>, vector<2x8x8x32xf32>
    %76 = vector.shape_cast %75 : vector<2x8x8x32xf32> to vector<128x32xf32>
    %77 = arith.truncf %76 : vector<128x32xf32> to vector<128x32xbf16>
    %c0_109 = arith.constant 0 : index
    %c160_110 = arith.constant 160 : index
    %78 = vector.load %arg16[%c0_109, %c160_110] : memref<128x288xbf16, #tpu.memory_space<vmem>>, vector<128x32xbf16>
    tpu.vector_store %arg16[%c0_109, %c160_110], %77 {strides = array<i32>} : memref<128x288xbf16, #tpu.memory_space<vmem>>, vector<128x32xbf16>,
    %c0_111 = arith.constant 0 : index
    %c2_112 = arith.constant 2 : index
    %c0_113 = arith.constant 0 : index
    %c0_114 = arith.constant 0 : index
    %79 = vector.load %arg15[%c0_111, %c2_112, %c0_113, %c0_114] : memref<2x10x10x32xf32, #tpu.memory_space<vmem>>, vector<2x8x8x32xf32>
    %80 = vector.shape_cast %79 : vector<2x8x8x32xf32> to vector<128x32xf32>
    %81 = arith.truncf %80 : vector<128x32xf32> to vector<128x32xbf16>
    %c0_115 = arith.constant 0 : index
    %c192_116 = arith.constant 192 : index
    %82 = vector.load %arg16[%c0_115, %c192_116] : memref<128x288xbf16, #tpu.memory_space<vmem>>, vector<128x32xbf16>
    tpu.vector_store %arg16[%c0_115, %c192_116], %81 {strides = array<i32>} : memref<128x288xbf16, #tpu.memory_space<vmem>>, vector<128x32xbf16>,
    %c0_117 = arith.constant 0 : index
    %c2_118 = arith.constant 2 : index
    %c1_119 = arith.constant 1 : index
    %c0_120 = arith.constant 0 : index
    %83 = vector.load %arg15[%c0_117, %c2_118, %c1_119, %c0_120] : memref<2x10x10x32xf32, #tpu.memory_space<vmem>>, vector<2x8x8x32xf32>
    %84 = vector.shape_cast %83 : vector<2x8x8x32xf32> to vector<128x32xf32>
    %85 = arith.truncf %84 : vector<128x32xf32> to vector<128x32xbf16>
    %c0_121 = arith.constant 0 : index
    %c224_122 = arith.constant 224 : index
    %86 = vector.load %arg16[%c0_121, %c224_122] : memref<128x288xbf16, #tpu.memory_space<vmem>>, vector<128x32xbf16>
    tpu.vector_store %arg16[%c0_121, %c224_122], %85 {strides = array<i32>} : memref<128x288xbf16, #tpu.memory_space<vmem>>, vector<128x32xbf16>,
    %c0_123 = arith.constant 0 : index
    %c2_124 = arith.constant 2 : index
    %c2_125 = arith.constant 2 : index
    %c0_126 = arith.constant 0 : index
    %87 = vector.load %arg15[%c0_123, %c2_124, %c2_125, %c0_126] : memref<2x10x10x32xf32, #tpu.memory_space<vmem>>, vector<2x8x8x32xf32>
    %88 = vector.shape_cast %87 : vector<2x8x8x32xf32> to vector<128x32xf32>
    %89 = arith.truncf %88 : vector<128x32xf32> to vector<128x32xbf16>
    %c0_127 = arith.constant 0 : index
    %c256_128 = arith.constant 256 : index
    %90 = vector.load %arg16[%c0_127, %c256_128] : memref<128x288xbf16, #tpu.memory_space<vmem>>, vector<128x32xbf16>
    tpu.vector_store %arg16[%c0_127, %c256_128], %89 {strides = array<i32>} : memref<128x288xbf16, #tpu.memory_space<vmem>>, vector<128x32xbf16>,
    %c0_129 = arith.constant 0 : index
    %c0_130 = arith.constant 0 : index
    %91 = vector.load %arg16[%c0_129, %c0_130] : memref<128x288xbf16, #tpu.memory_space<vmem>>, vector<128x288xbf16>
    %c1_131 = arith.constant 1 : index
    %c0_132 = arith.constant 0 : index
    %c0_133 = arith.constant 0 : index
    %92 = vector.load %arg2[%c1_131, %c0_132, %c0_133] : memref<5x288x32xbf16, #tpu.memory_space<vmem>>, vector<1x288x32xbf16>
    %93 = vector.shape_cast %92 : vector<1x288x32xbf16> to vector<288x32xbf16>
    %cst_134 = arith.constant dense<0.000000e+00> : vector<128x32xf32>
    %94 = tpu.matmul %91, %93, %cst_134 {dimension_numbers = #tpu.dot_dimension_numbers<[1], [0], [0], [1], [0, 0, 1, 1], [], []>} : vector<128x288xbf16>, vector<288x32xbf16>, vector<128x32xf32> -> vector<128x32xf32>
    %c1_135 = arith.constant 1 : index
    %c0_136 = arith.constant 0 : index
    %c0_137 = arith.constant 0 : index
    %95 = vector.load %arg3[%c1_135, %c0_136, %c0_137] : memref<5x1x32xf32, #tpu.memory_space<vmem>>, vector<1x1x32xf32>
    %96 = vector.shape_cast %95 : vector<1x1x32xf32> to vector<1x32xf32>
    %97 = vector.broadcast %96 : vector<1x32xf32> to vector<128x32xf32>
    %98 = arith.addf %94, %97 : vector<128x32xf32>
    %cst_138 = arith.constant 0.000000e+00 : f32
    %99 = vector.broadcast %cst_138 : f32 to vector<128x32xf32>
    %100 = arith.maximumf %98, %99 : vector<128x32xf32>
    %101 = vector.shape_cast %100 : vector<128x32xf32> to vector<2x8x8x32xf32>
    %c0_139 = arith.constant 0 : index
    %c1_140 = arith.constant 1 : index
    %c1_141 = arith.constant 1 : index
    %c0_142 = arith.constant 0 : index
    %102 = vector.load %arg15[%c0_139, %c1_140, %c1_141, %c0_142] : memref<2x10x10x32xf32, #tpu.memory_space<vmem>>, vector<2x8x8x32xf32>
    tpu.vector_store %arg15[%c0_139, %c1_140, %c1_141, %c0_142], %101 {strides = array<i32>} : memref<2x10x10x32xf32, #tpu.memory_space<vmem>>, vector<2x8x8x32xf32>,
    %c0_143 = arith.constant 0 : index
    %c0_144 = arith.constant 0 : index
    %c0_145 = arith.constant 0 : index
    %c0_146 = arith.constant 0 : index
    %103 = vector.load %arg15[%c0_143, %c0_144, %c0_145, %c0_146] : memref<2x10x10x32xf32, #tpu.memory_space<vmem>>, vector<2x8x8x32xf32>
    %104 = vector.shape_cast %103 : vector<2x8x8x32xf32> to vector<128x32xf32>
    %105 = arith.truncf %104 : vector<128x32xf32> to vector<128x32xbf16>
    %c0_147 = arith.constant 0 : index
    %c0_148 = arith.constant 0 : index
    %106 = vector.load %arg16[%c0_147, %c0_148] : memref<128x288xbf16, #tpu.memory_space<vmem>>, vector<128x32xbf16>
    tpu.vector_store %arg16[%c0_147, %c0_148], %105 {strides = array<i32>} : memref<128x288xbf16, #tpu.memory_space<vmem>>, vector<128x32xbf16>,
    %c0_149 = arith.constant 0 : index
    %c0_150 = arith.constant 0 : index
    %c1_151 = arith.constant 1 : index
    %c0_152 = arith.constant 0 : index
    %107 = vector.load %arg15[%c0_149, %c0_150, %c1_151, %c0_152] : memref<2x10x10x32xf32, #tpu.memory_space<vmem>>, vector<2x8x8x32xf32>
    %108 = vector.shape_cast %107 : vector<2x8x8x32xf32> to vector<128x32xf32>
    %109 = arith.truncf %108 : vector<128x32xf32> to vector<128x32xbf16>
    %c0_153 = arith.constant 0 : index
    %c32_154 = arith.constant 32 : index
    %110 = vector.load %arg16[%c0_153, %c32_154] : memref<128x288xbf16, #tpu.memory_space<vmem>>, vector<128x32xbf16>
    tpu.vector_store %arg16[%c0_153, %c32_154], %109 {strides = array<i32>} : memref<128x288xbf16, #tpu.memory_space<vmem>>, vector<128x32xbf16>,
    %c0_155 = arith.constant 0 : index
    %c0_156 = arith.constant 0 : index
    %c2_157 = arith.constant 2 : index
    %c0_158 = arith.constant 0 : index
    %111 = vector.load %arg15[%c0_155, %c0_156, %c2_157, %c0_158] : memref<2x10x10x32xf32, #tpu.memory_space<vmem>>, vector<2x8x8x32xf32>
    %112 = vector.shape_cast %111 : vector<2x8x8x32xf32> to vector<128x32xf32>
    %113 = arith.truncf %112 : vector<128x32xf32> to vector<128x32xbf16>
    %c0_159 = arith.constant 0 : index
    %c64_160 = arith.constant 64 : index
    %114 = vector.load %arg16[%c0_159, %c64_160] : memref<128x288xbf16, #tpu.memory_space<vmem>>, vector<128x32xbf16>
    tpu.vector_store %arg16[%c0_159, %c64_160], %113 {strides = array<i32>} : memref<128x288xbf16, #tpu.memory_space<vmem>>, vector<128x32xbf16>,
    %c0_161 = arith.constant 0 : index
    %c1_162 = arith.constant 1 : index
    %c0_163 = arith.constant 0 : index
    %c0_164 = arith.constant 0 : index
    %115 = vector.load %arg15[%c0_161, %c1_162, %c0_163, %c0_164] : memref<2x10x10x32xf32, #tpu.memory_space<vmem>>, vector<2x8x8x32xf32>
    %116 = vector.shape_cast %115 : vector<2x8x8x32xf32> to vector<128x32xf32>
    %117 = arith.truncf %116 : vector<128x32xf32> to vector<128x32xbf16>
    %c0_165 = arith.constant 0 : index
    %c96_166 = arith.constant 96 : index
    %118 = vector.load %arg16[%c0_165, %c96_166] : memref<128x288xbf16, #tpu.memory_space<vmem>>, vector<128x32xbf16>
    tpu.vector_store %arg16[%c0_165, %c96_166], %117 {strides = array<i32>} : memref<128x288xbf16, #tpu.memory_space<vmem>>, vector<128x32xbf16>,
    %c0_167 = arith.constant 0 : index
    %c1_168 = arith.constant 1 : index
    %c1_169 = arith.constant 1 : index
    %c0_170 = arith.constant 0 : index
    %119 = vector.load %arg15[%c0_167, %c1_168, %c1_169, %c0_170] : memref<2x10x10x32xf32, #tpu.memory_space<vmem>>, vector<2x8x8x32xf32>
    %120 = vector.shape_cast %119 : vector<2x8x8x32xf32> to vector<128x32xf32>
    %121 = arith.truncf %120 : vector<128x32xf32> to vector<128x32xbf16>
    %c0_171 = arith.constant 0 : index
    %c128_172 = arith.constant 128 : index
    %122 = vector.load %arg16[%c0_171, %c128_172] : memref<128x288xbf16, #tpu.memory_space<vmem>>, vector<128x32xbf16>
    tpu.vector_store %arg16[%c0_171, %c128_172], %121 {strides = array<i32>} : memref<128x288xbf16, #tpu.memory_space<vmem>>, vector<128x32xbf16>,
    %c0_173 = arith.constant 0 : index
    %c1_174 = arith.constant 1 : index
    %c2_175 = arith.constant 2 : index
    %c0_176 = arith.constant 0 : index
    %123 = vector.load %arg15[%c0_173, %c1_174, %c2_175, %c0_176] : memref<2x10x10x32xf32, #tpu.memory_space<vmem>>, vector<2x8x8x32xf32>
    %124 = vector.shape_cast %123 : vector<2x8x8x32xf32> to vector<128x32xf32>
    %125 = arith.truncf %124 : vector<128x32xf32> to vector<128x32xbf16>
    %c0_177 = arith.constant 0 : index
    %c160_178 = arith.constant 160 : index
    %126 = vector.load %arg16[%c0_177, %c160_178] : memref<128x288xbf16, #tpu.memory_space<vmem>>, vector<128x32xbf16>
    tpu.vector_store %arg16[%c0_177, %c160_178], %125 {strides = array<i32>} : memref<128x288xbf16, #tpu.memory_space<vmem>>, vector<128x32xbf16>,
    %c0_179 = arith.constant 0 : index
    %c2_180 = arith.constant 2 : index
    %c0_181 = arith.constant 0 : index
    %c0_182 = arith.constant 0 : index
    %127 = vector.load %arg15[%c0_179, %c2_180, %c0_181, %c0_182] : memref<2x10x10x32xf32, #tpu.memory_space<vmem>>, vector<2x8x8x32xf32>
    %128 = vector.shape_cast %127 : vector<2x8x8x32xf32> to vector<128x32xf32>
    %129 = arith.truncf %128 : vector<128x32xf32> to vector<128x32xbf16>
    %c0_183 = arith.constant 0 : index
    %c192_184 = arith.constant 192 : index
    %130 = vector.load %arg16[%c0_183, %c192_184] : memref<128x288xbf16, #tpu.memory_space<vmem>>, vector<128x32xbf16>
    tpu.vector_store %arg16[%c0_183, %c192_184], %129 {strides = array<i32>} : memref<128x288xbf16, #tpu.memory_space<vmem>>, vector<128x32xbf16>,
    %c0_185 = arith.constant 0 : index
    %c2_186 = arith.constant 2 : index
    %c1_187 = arith.constant 1 : index
    %c0_188 = arith.constant 0 : index
    %131 = vector.load %arg15[%c0_185, %c2_186, %c1_187, %c0_188] : memref<2x10x10x32xf32, #tpu.memory_space<vmem>>, vector<2x8x8x32xf32>
    %132 = vector.shape_cast %131 : vector<2x8x8x32xf32> to vector<128x32xf32>
    %133 = arith.truncf %132 : vector<128x32xf32> to vector<128x32xbf16>
    %c0_189 = arith.constant 0 : index
    %c224_190 = arith.constant 224 : index
    %134 = vector.load %arg16[%c0_189, %c224_190] : memref<128x288xbf16, #tpu.memory_space<vmem>>, vector<128x32xbf16>
    tpu.vector_store %arg16[%c0_189, %c224_190], %133 {strides = array<i32>} : memref<128x288xbf16, #tpu.memory_space<vmem>>, vector<128x32xbf16>,
    %c0_191 = arith.constant 0 : index
    %c2_192 = arith.constant 2 : index
    %c2_193 = arith.constant 2 : index
    %c0_194 = arith.constant 0 : index
    %135 = vector.load %arg15[%c0_191, %c2_192, %c2_193, %c0_194] : memref<2x10x10x32xf32, #tpu.memory_space<vmem>>, vector<2x8x8x32xf32>
    %136 = vector.shape_cast %135 : vector<2x8x8x32xf32> to vector<128x32xf32>
    %137 = arith.truncf %136 : vector<128x32xf32> to vector<128x32xbf16>
    %c0_195 = arith.constant 0 : index
    %c256_196 = arith.constant 256 : index
    %138 = vector.load %arg16[%c0_195, %c256_196] : memref<128x288xbf16, #tpu.memory_space<vmem>>, vector<128x32xbf16>
    tpu.vector_store %arg16[%c0_195, %c256_196], %137 {strides = array<i32>} : memref<128x288xbf16, #tpu.memory_space<vmem>>, vector<128x32xbf16>,
    %c0_197 = arith.constant 0 : index
    %c0_198 = arith.constant 0 : index
    %139 = vector.load %arg16[%c0_197, %c0_198] : memref<128x288xbf16, #tpu.memory_space<vmem>>, vector<128x288xbf16>
    %c2_199 = arith.constant 2 : index
    %c0_200 = arith.constant 0 : index
    %c0_201 = arith.constant 0 : index
    %140 = vector.load %arg2[%c2_199, %c0_200, %c0_201] : memref<5x288x32xbf16, #tpu.memory_space<vmem>>, vector<1x288x32xbf16>
    %141 = vector.shape_cast %140 : vector<1x288x32xbf16> to vector<288x32xbf16>
    %cst_202 = arith.constant dense<0.000000e+00> : vector<128x32xf32>
    %142 = tpu.matmul %139, %141, %cst_202 {dimension_numbers = #tpu.dot_dimension_numbers<[1], [0], [0], [1], [0, 0, 1, 1], [], []>} : vector<128x288xbf16>, vector<288x32xbf16>, vector<128x32xf32> -> vector<128x32xf32>
    %c2_203 = arith.constant 2 : index
    %c0_204 = arith.constant 0 : index
    %c0_205 = arith.constant 0 : index
    %143 = vector.load %arg3[%c2_203, %c0_204, %c0_205] : memref<5x1x32xf32, #tpu.memory_space<vmem>>, vector<1x1x32xf32>
    %144 = vector.shape_cast %143 : vector<1x1x32xf32> to vector<1x32xf32>
    %145 = vector.broadcast %144 : vector<1x32xf32> to vector<128x32xf32>
    %146 = arith.addf %142, %145 : vector<128x32xf32>
    %c0_206 = arith.constant 0 : index
    %c0_207 = arith.constant 0 : index
    %147 = vector.load %arg17[%c0_206, %c0_207] : memref<128x32xf32, #tpu.memory_space<vmem>>, vector<128x32xf32>
    %148 = arith.addf %146, %147 : vector<128x32xf32>
    %cst_208 = arith.constant 0.000000e+00 : f32
    %149 = vector.broadcast %cst_208 : f32 to vector<128x32xf32>
    %150 = arith.maximumf %148, %149 : vector<128x32xf32>
    %151 = vector.shape_cast %150 : vector<128x32xf32> to vector<2x8x8x32xf32>
    %c0_209 = arith.constant 0 : index
    %c1_210 = arith.constant 1 : index
    %c1_211 = arith.constant 1 : index
    %c0_212 = arith.constant 0 : index
    %152 = vector.load %arg15[%c0_209, %c1_210, %c1_211, %c0_212] : memref<2x10x10x32xf32, #tpu.memory_space<vmem>>, vector<2x8x8x32xf32>
    tpu.vector_store %arg15[%c0_209, %c1_210, %c1_211, %c0_212], %151 {strides = array<i32>} : memref<2x10x10x32xf32, #tpu.memory_space<vmem>>, vector<2x8x8x32xf32>,
    %c0_213 = arith.constant 0 : index
    %c1_214 = arith.constant 1 : index
    %c1_215 = arith.constant 1 : index
    %c0_216 = arith.constant 0 : index
    %153 = vector.load %arg15[%c0_213, %c1_214, %c1_215, %c0_216] : memref<2x10x10x32xf32, #tpu.memory_space<vmem>>, vector<2x8x8x32xf32>
    %154 = vector.shape_cast %153 : vector<2x8x8x32xf32> to vector<128x32xf32>
    %c0_217 = arith.constant 0 : index
    %c0_218 = arith.constant 0 : index
    %155 = vector.load %arg17[%c0_217, %c0_218] : memref<128x32xf32, #tpu.memory_space<vmem>>, vector<128x32xf32>
    tpu.vector_store %arg17[%c0_217, %c0_218], %154 {strides = array<i32>} : memref<128x32xf32, #tpu.memory_space<vmem>>, vector<128x32xf32>,
    %c0_219 = arith.constant 0 : index
    %c0_220 = arith.constant 0 : index
    %c0_221 = arith.constant 0 : index
    %c0_222 = arith.constant 0 : index
    %156 = vector.load %arg15[%c0_219, %c0_220, %c0_221, %c0_222] : memref<2x10x10x32xf32, #tpu.memory_space<vmem>>, vector<2x8x8x32xf32>
    %157 = vector.shape_cast %156 : vector<2x8x8x32xf32> to vector<128x32xf32>
    %158 = arith.truncf %157 : vector<128x32xf32> to vector<128x32xbf16>
    %c0_223 = arith.constant 0 : index
    %c0_224 = arith.constant 0 : index
    %159 = vector.load %arg16[%c0_223, %c0_224] : memref<128x288xbf16, #tpu.memory_space<vmem>>, vector<128x32xbf16>
    tpu.vector_store %arg16[%c0_223, %c0_224], %158 {strides = array<i32>} : memref<128x288xbf16, #tpu.memory_space<vmem>>, vector<128x32xbf16>,
    %c0_225 = arith.constant 0 : index
    %c0_226 = arith.constant 0 : index
    %c1_227 = arith.constant 1 : index
    %c0_228 = arith.constant 0 : index
    %160 = vector.load %arg15[%c0_225, %c0_226, %c1_227, %c0_228] : memref<2x10x10x32xf32, #tpu.memory_space<vmem>>, vector<2x8x8x32xf32>
    %161 = vector.shape_cast %160 : vector<2x8x8x32xf32> to vector<128x32xf32>
    %162 = arith.truncf %161 : vector<128x32xf32> to vector<128x32xbf16>
    %c0_229 = arith.constant 0 : index
    %c32_230 = arith.constant 32 : index
    %163 = vector.load %arg16[%c0_229, %c32_230] : memref<128x288xbf16, #tpu.memory_space<vmem>>, vector<128x32xbf16>
    tpu.vector_store %arg16[%c0_229, %c32_230], %162 {strides = array<i32>} : memref<128x288xbf16, #tpu.memory_space<vmem>>, vector<128x32xbf16>,
    %c0_231 = arith.constant 0 : index
    %c0_232 = arith.constant 0 : index
    %c2_233 = arith.constant 2 : index
    %c0_234 = arith.constant 0 : index
    %164 = vector.load %arg15[%c0_231, %c0_232, %c2_233, %c0_234] : memref<2x10x10x32xf32, #tpu.memory_space<vmem>>, vector<2x8x8x32xf32>
    %165 = vector.shape_cast %164 : vector<2x8x8x32xf32> to vector<128x32xf32>
    %166 = arith.truncf %165 : vector<128x32xf32> to vector<128x32xbf16>
    %c0_235 = arith.constant 0 : index
    %c64_236 = arith.constant 64 : index
    %167 = vector.load %arg16[%c0_235, %c64_236] : memref<128x288xbf16, #tpu.memory_space<vmem>>, vector<128x32xbf16>
    tpu.vector_store %arg16[%c0_235, %c64_236], %166 {strides = array<i32>} : memref<128x288xbf16, #tpu.memory_space<vmem>>, vector<128x32xbf16>,
    %c0_237 = arith.constant 0 : index
    %c1_238 = arith.constant 1 : index
    %c0_239 = arith.constant 0 : index
    %c0_240 = arith.constant 0 : index
    %168 = vector.load %arg15[%c0_237, %c1_238, %c0_239, %c0_240] : memref<2x10x10x32xf32, #tpu.memory_space<vmem>>, vector<2x8x8x32xf32>
    %169 = vector.shape_cast %168 : vector<2x8x8x32xf32> to vector<128x32xf32>
    %170 = arith.truncf %169 : vector<128x32xf32> to vector<128x32xbf16>
    %c0_241 = arith.constant 0 : index
    %c96_242 = arith.constant 96 : index
    %171 = vector.load %arg16[%c0_241, %c96_242] : memref<128x288xbf16, #tpu.memory_space<vmem>>, vector<128x32xbf16>
    tpu.vector_store %arg16[%c0_241, %c96_242], %170 {strides = array<i32>} : memref<128x288xbf16, #tpu.memory_space<vmem>>, vector<128x32xbf16>,
    %c0_243 = arith.constant 0 : index
    %c1_244 = arith.constant 1 : index
    %c1_245 = arith.constant 1 : index
    %c0_246 = arith.constant 0 : index
    %172 = vector.load %arg15[%c0_243, %c1_244, %c1_245, %c0_246] : memref<2x10x10x32xf32, #tpu.memory_space<vmem>>, vector<2x8x8x32xf32>
    %173 = vector.shape_cast %172 : vector<2x8x8x32xf32> to vector<128x32xf32>
    %174 = arith.truncf %173 : vector<128x32xf32> to vector<128x32xbf16>
    %c0_247 = arith.constant 0 : index
    %c128_248 = arith.constant 128 : index
    %175 = vector.load %arg16[%c0_247, %c128_248] : memref<128x288xbf16, #tpu.memory_space<vmem>>, vector<128x32xbf16>
    tpu.vector_store %arg16[%c0_247, %c128_248], %174 {strides = array<i32>} : memref<128x288xbf16, #tpu.memory_space<vmem>>, vector<128x32xbf16>,
    %c0_249 = arith.constant 0 : index
    %c1_250 = arith.constant 1 : index
    %c2_251 = arith.constant 2 : index
    %c0_252 = arith.constant 0 : index
    %176 = vector.load %arg15[%c0_249, %c1_250, %c2_251, %c0_252] : memref<2x10x10x32xf32, #tpu.memory_space<vmem>>, vector<2x8x8x32xf32>
    %177 = vector.shape_cast %176 : vector<2x8x8x32xf32> to vector<128x32xf32>
    %178 = arith.truncf %177 : vector<128x32xf32> to vector<128x32xbf16>
    %c0_253 = arith.constant 0 : index
    %c160_254 = arith.constant 160 : index
    %179 = vector.load %arg16[%c0_253, %c160_254] : memref<128x288xbf16, #tpu.memory_space<vmem>>, vector<128x32xbf16>
    tpu.vector_store %arg16[%c0_253, %c160_254], %178 {strides = array<i32>} : memref<128x288xbf16, #tpu.memory_space<vmem>>, vector<128x32xbf16>,
    %c0_255 = arith.constant 0 : index
    %c2_256 = arith.constant 2 : index
    %c0_257 = arith.constant 0 : index
    %c0_258 = arith.constant 0 : index
    %180 = vector.load %arg15[%c0_255, %c2_256, %c0_257, %c0_258] : memref<2x10x10x32xf32, #tpu.memory_space<vmem>>, vector<2x8x8x32xf32>
    %181 = vector.shape_cast %180 : vector<2x8x8x32xf32> to vector<128x32xf32>
    %182 = arith.truncf %181 : vector<128x32xf32> to vector<128x32xbf16>
    %c0_259 = arith.constant 0 : index
    %c192_260 = arith.constant 192 : index
    %183 = vector.load %arg16[%c0_259, %c192_260] : memref<128x288xbf16, #tpu.memory_space<vmem>>, vector<128x32xbf16>
    tpu.vector_store %arg16[%c0_259, %c192_260], %182 {strides = array<i32>} : memref<128x288xbf16, #tpu.memory_space<vmem>>, vector<128x32xbf16>,
    %c0_261 = arith.constant 0 : index
    %c2_262 = arith.constant 2 : index
    %c1_263 = arith.constant 1 : index
    %c0_264 = arith.constant 0 : index
    %184 = vector.load %arg15[%c0_261, %c2_262, %c1_263, %c0_264] : memref<2x10x10x32xf32, #tpu.memory_space<vmem>>, vector<2x8x8x32xf32>
    %185 = vector.shape_cast %184 : vector<2x8x8x32xf32> to vector<128x32xf32>
    %186 = arith.truncf %185 : vector<128x32xf32> to vector<128x32xbf16>
    %c0_265 = arith.constant 0 : index
    %c224_266 = arith.constant 224 : index
    %187 = vector.load %arg16[%c0_265, %c224_266] : memref<128x288xbf16, #tpu.memory_space<vmem>>, vector<128x32xbf16>
    tpu.vector_store %arg16[%c0_265, %c224_266], %186 {strides = array<i32>} : memref<128x288xbf16, #tpu.memory_space<vmem>>, vector<128x32xbf16>,
    %c0_267 = arith.constant 0 : index
    %c2_268 = arith.constant 2 : index
    %c2_269 = arith.constant 2 : index
    %c0_270 = arith.constant 0 : index
    %188 = vector.load %arg15[%c0_267, %c2_268, %c2_269, %c0_270] : memref<2x10x10x32xf32, #tpu.memory_space<vmem>>, vector<2x8x8x32xf32>
    %189 = vector.shape_cast %188 : vector<2x8x8x32xf32> to vector<128x32xf32>
    %190 = arith.truncf %189 : vector<128x32xf32> to vector<128x32xbf16>
    %c0_271 = arith.constant 0 : index
    %c256_272 = arith.constant 256 : index
    %191 = vector.load %arg16[%c0_271, %c256_272] : memref<128x288xbf16, #tpu.memory_space<vmem>>, vector<128x32xbf16>
    tpu.vector_store %arg16[%c0_271, %c256_272], %190 {strides = array<i32>} : memref<128x288xbf16, #tpu.memory_space<vmem>>, vector<128x32xbf16>,
    %c0_273 = arith.constant 0 : index
    %c0_274 = arith.constant 0 : index
    %192 = vector.load %arg16[%c0_273, %c0_274] : memref<128x288xbf16, #tpu.memory_space<vmem>>, vector<128x288xbf16>
    %c3 = arith.constant 3 : index
    %c0_275 = arith.constant 0 : index
    %c0_276 = arith.constant 0 : index
    %193 = vector.load %arg2[%c3, %c0_275, %c0_276] : memref<5x288x32xbf16, #tpu.memory_space<vmem>>, vector<1x288x32xbf16>
    %194 = vector.shape_cast %193 : vector<1x288x32xbf16> to vector<288x32xbf16>
    %cst_277 = arith.constant dense<0.000000e+00> : vector<128x32xf32>
    %195 = tpu.matmul %192, %194, %cst_277 {dimension_numbers = #tpu.dot_dimension_numbers<[1], [0], [0], [1], [0, 0, 1, 1], [], []>} : vector<128x288xbf16>, vector<288x32xbf16>, vector<128x32xf32> -> vector<128x32xf32>
    %c3_278 = arith.constant 3 : index
    %c0_279 = arith.constant 0 : index
    %c0_280 = arith.constant 0 : index
    %196 = vector.load %arg3[%c3_278, %c0_279, %c0_280] : memref<5x1x32xf32, #tpu.memory_space<vmem>>, vector<1x1x32xf32>
    %197 = vector.shape_cast %196 : vector<1x1x32xf32> to vector<1x32xf32>
    %198 = vector.broadcast %197 : vector<1x32xf32> to vector<128x32xf32>
    %199 = arith.addf %195, %198 : vector<128x32xf32>
    %cst_281 = arith.constant 0.000000e+00 : f32
    %200 = vector.broadcast %cst_281 : f32 to vector<128x32xf32>
    %201 = arith.maximumf %199, %200 : vector<128x32xf32>
    %202 = vector.shape_cast %201 : vector<128x32xf32> to vector<2x8x8x32xf32>
    %c0_282 = arith.constant 0 : index
    %c1_283 = arith.constant 1 : index
    %c1_284 = arith.constant 1 : index
    %c0_285 = arith.constant 0 : index
    %203 = vector.load %arg15[%c0_282, %c1_283, %c1_284, %c0_285] : memref<2x10x10x32xf32, #tpu.memory_space<vmem>>, vector<2x8x8x32xf32>
    tpu.vector_store %arg15[%c0_282, %c1_283, %c1_284, %c0_285], %202 {strides = array<i32>} : memref<2x10x10x32xf32, #tpu.memory_space<vmem>>, vector<2x8x8x32xf32>,
    %c0_286 = arith.constant 0 : index
    %c0_287 = arith.constant 0 : index
    %c0_288 = arith.constant 0 : index
    %c0_289 = arith.constant 0 : index
    %204 = vector.load %arg15[%c0_286, %c0_287, %c0_288, %c0_289] : memref<2x10x10x32xf32, #tpu.memory_space<vmem>>, vector<2x8x8x32xf32>
    %205 = vector.shape_cast %204 : vector<2x8x8x32xf32> to vector<128x32xf32>
    %206 = arith.truncf %205 : vector<128x32xf32> to vector<128x32xbf16>
    %c0_290 = arith.constant 0 : index
    %c0_291 = arith.constant 0 : index
    %207 = vector.load %arg16[%c0_290, %c0_291] : memref<128x288xbf16, #tpu.memory_space<vmem>>, vector<128x32xbf16>
    tpu.vector_store %arg16[%c0_290, %c0_291], %206 {strides = array<i32>} : memref<128x288xbf16, #tpu.memory_space<vmem>>, vector<128x32xbf16>,
    %c0_292 = arith.constant 0 : index
    %c0_293 = arith.constant 0 : index
    %c1_294 = arith.constant 1 : index
    %c0_295 = arith.constant 0 : index
    %208 = vector.load %arg15[%c0_292, %c0_293, %c1_294, %c0_295] : memref<2x10x10x32xf32, #tpu.memory_space<vmem>>, vector<2x8x8x32xf32>
    %209 = vector.shape_cast %208 : vector<2x8x8x32xf32> to vector<128x32xf32>
    %210 = arith.truncf %209 : vector<128x32xf32> to vector<128x32xbf16>
    %c0_296 = arith.constant 0 : index
    %c32_297 = arith.constant 32 : index
    %211 = vector.load %arg16[%c0_296, %c32_297] : memref<128x288xbf16, #tpu.memory_space<vmem>>, vector<128x32xbf16>
    tpu.vector_store %arg16[%c0_296, %c32_297], %210 {strides = array<i32>} : memref<128x288xbf16, #tpu.memory_space<vmem>>, vector<128x32xbf16>,
    %c0_298 = arith.constant 0 : index
    %c0_299 = arith.constant 0 : index
    %c2_300 = arith.constant 2 : index
    %c0_301 = arith.constant 0 : index
    %212 = vector.load %arg15[%c0_298, %c0_299, %c2_300, %c0_301] : memref<2x10x10x32xf32, #tpu.memory_space<vmem>>, vector<2x8x8x32xf32>
    %213 = vector.shape_cast %212 : vector<2x8x8x32xf32> to vector<128x32xf32>
    %214 = arith.truncf %213 : vector<128x32xf32> to vector<128x32xbf16>
    %c0_302 = arith.constant 0 : index
    %c64_303 = arith.constant 64 : index
    %215 = vector.load %arg16[%c0_302, %c64_303] : memref<128x288xbf16, #tpu.memory_space<vmem>>, vector<128x32xbf16>
    tpu.vector_store %arg16[%c0_302, %c64_303], %214 {strides = array<i32>} : memref<128x288xbf16, #tpu.memory_space<vmem>>, vector<128x32xbf16>,
    %c0_304 = arith.constant 0 : index
    %c1_305 = arith.constant 1 : index
    %c0_306 = arith.constant 0 : index
    %c0_307 = arith.constant 0 : index
    %216 = vector.load %arg15[%c0_304, %c1_305, %c0_306, %c0_307] : memref<2x10x10x32xf32, #tpu.memory_space<vmem>>, vector<2x8x8x32xf32>
    %217 = vector.shape_cast %216 : vector<2x8x8x32xf32> to vector<128x32xf32>
    %218 = arith.truncf %217 : vector<128x32xf32> to vector<128x32xbf16>
    %c0_308 = arith.constant 0 : index
    %c96_309 = arith.constant 96 : index
    %219 = vector.load %arg16[%c0_308, %c96_309] : memref<128x288xbf16, #tpu.memory_space<vmem>>, vector<128x32xbf16>
    tpu.vector_store %arg16[%c0_308, %c96_309], %218 {strides = array<i32>} : memref<128x288xbf16, #tpu.memory_space<vmem>>, vector<128x32xbf16>,
    %c0_310 = arith.constant 0 : index
    %c1_311 = arith.constant 1 : index
    %c1_312 = arith.constant 1 : index
    %c0_313 = arith.constant 0 : index
    %220 = vector.load %arg15[%c0_310, %c1_311, %c1_312, %c0_313] : memref<2x10x10x32xf32, #tpu.memory_space<vmem>>, vector<2x8x8x32xf32>
    %221 = vector.shape_cast %220 : vector<2x8x8x32xf32> to vector<128x32xf32>
    %222 = arith.truncf %221 : vector<128x32xf32> to vector<128x32xbf16>
    %c0_314 = arith.constant 0 : index
    %c128_315 = arith.constant 128 : index
    %223 = vector.load %arg16[%c0_314, %c128_315] : memref<128x288xbf16, #tpu.memory_space<vmem>>, vector<128x32xbf16>
    tpu.vector_store %arg16[%c0_314, %c128_315], %222 {strides = array<i32>} : memref<128x288xbf16, #tpu.memory_space<vmem>>, vector<128x32xbf16>,
    %c0_316 = arith.constant 0 : index
    %c1_317 = arith.constant 1 : index
    %c2_318 = arith.constant 2 : index
    %c0_319 = arith.constant 0 : index
    %224 = vector.load %arg15[%c0_316, %c1_317, %c2_318, %c0_319] : memref<2x10x10x32xf32, #tpu.memory_space<vmem>>, vector<2x8x8x32xf32>
    %225 = vector.shape_cast %224 : vector<2x8x8x32xf32> to vector<128x32xf32>
    %226 = arith.truncf %225 : vector<128x32xf32> to vector<128x32xbf16>
    %c0_320 = arith.constant 0 : index
    %c160_321 = arith.constant 160 : index
    %227 = vector.load %arg16[%c0_320, %c160_321] : memref<128x288xbf16, #tpu.memory_space<vmem>>, vector<128x32xbf16>
    tpu.vector_store %arg16[%c0_320, %c160_321], %226 {strides = array<i32>} : memref<128x288xbf16, #tpu.memory_space<vmem>>, vector<128x32xbf16>,
    %c0_322 = arith.constant 0 : index
    %c2_323 = arith.constant 2 : index
    %c0_324 = arith.constant 0 : index
    %c0_325 = arith.constant 0 : index
    %228 = vector.load %arg15[%c0_322, %c2_323, %c0_324, %c0_325] : memref<2x10x10x32xf32, #tpu.memory_space<vmem>>, vector<2x8x8x32xf32>
    %229 = vector.shape_cast %228 : vector<2x8x8x32xf32> to vector<128x32xf32>
    %230 = arith.truncf %229 : vector<128x32xf32> to vector<128x32xbf16>
    %c0_326 = arith.constant 0 : index
    %c192_327 = arith.constant 192 : index
    %231 = vector.load %arg16[%c0_326, %c192_327] : memref<128x288xbf16, #tpu.memory_space<vmem>>, vector<128x32xbf16>
    tpu.vector_store %arg16[%c0_326, %c192_327], %230 {strides = array<i32>} : memref<128x288xbf16, #tpu.memory_space<vmem>>, vector<128x32xbf16>,
    %c0_328 = arith.constant 0 : index
    %c2_329 = arith.constant 2 : index
    %c1_330 = arith.constant 1 : index
    %c0_331 = arith.constant 0 : index
    %232 = vector.load %arg15[%c0_328, %c2_329, %c1_330, %c0_331] : memref<2x10x10x32xf32, #tpu.memory_space<vmem>>, vector<2x8x8x32xf32>
    %233 = vector.shape_cast %232 : vector<2x8x8x32xf32> to vector<128x32xf32>
    %234 = arith.truncf %233 : vector<128x32xf32> to vector<128x32xbf16>
    %c0_332 = arith.constant 0 : index
    %c224_333 = arith.constant 224 : index
    %235 = vector.load %arg16[%c0_332, %c224_333] : memref<128x288xbf16, #tpu.memory_space<vmem>>, vector<128x32xbf16>
    tpu.vector_store %arg16[%c0_332, %c224_333], %234 {strides = array<i32>} : memref<128x288xbf16, #tpu.memory_space<vmem>>, vector<128x32xbf16>,
    %c0_334 = arith.constant 0 : index
    %c2_335 = arith.constant 2 : index
    %c2_336 = arith.constant 2 : index
    %c0_337 = arith.constant 0 : index
    %236 = vector.load %arg15[%c0_334, %c2_335, %c2_336, %c0_337] : memref<2x10x10x32xf32, #tpu.memory_space<vmem>>, vector<2x8x8x32xf32>
    %237 = vector.shape_cast %236 : vector<2x8x8x32xf32> to vector<128x32xf32>
    %238 = arith.truncf %237 : vector<128x32xf32> to vector<128x32xbf16>
    %c0_338 = arith.constant 0 : index
    %c256_339 = arith.constant 256 : index
    %239 = vector.load %arg16[%c0_338, %c256_339] : memref<128x288xbf16, #tpu.memory_space<vmem>>, vector<128x32xbf16>
    tpu.vector_store %arg16[%c0_338, %c256_339], %238 {strides = array<i32>} : memref<128x288xbf16, #tpu.memory_space<vmem>>, vector<128x32xbf16>,
    %c0_340 = arith.constant 0 : index
    %c0_341 = arith.constant 0 : index
    %240 = vector.load %arg16[%c0_340, %c0_341] : memref<128x288xbf16, #tpu.memory_space<vmem>>, vector<128x288xbf16>
    %c4 = arith.constant 4 : index
    %c0_342 = arith.constant 0 : index
    %c0_343 = arith.constant 0 : index
    %241 = vector.load %arg2[%c4, %c0_342, %c0_343] : memref<5x288x32xbf16, #tpu.memory_space<vmem>>, vector<1x288x32xbf16>
    %242 = vector.shape_cast %241 : vector<1x288x32xbf16> to vector<288x32xbf16>
    %cst_344 = arith.constant dense<0.000000e+00> : vector<128x32xf32>
    %243 = tpu.matmul %240, %242, %cst_344 {dimension_numbers = #tpu.dot_dimension_numbers<[1], [0], [0], [1], [0, 0, 1, 1], [], []>} : vector<128x288xbf16>, vector<288x32xbf16>, vector<128x32xf32> -> vector<128x32xf32>
    %c4_345 = arith.constant 4 : index
    %c0_346 = arith.constant 0 : index
    %c0_347 = arith.constant 0 : index
    %244 = vector.load %arg3[%c4_345, %c0_346, %c0_347] : memref<5x1x32xf32, #tpu.memory_space<vmem>>, vector<1x1x32xf32>
    %245 = vector.shape_cast %244 : vector<1x1x32xf32> to vector<1x32xf32>
    %246 = vector.broadcast %245 : vector<1x32xf32> to vector<128x32xf32>
    %247 = arith.addf %243, %246 : vector<128x32xf32>
    %c0_348 = arith.constant 0 : index
    %c0_349 = arith.constant 0 : index
    %248 = vector.load %arg17[%c0_348, %c0_349] : memref<128x32xf32, #tpu.memory_space<vmem>>, vector<128x32xf32>
    %249 = arith.addf %247, %248 : vector<128x32xf32>
    %cst_350 = arith.constant 0.000000e+00 : f32
    %250 = vector.broadcast %cst_350 : f32 to vector<128x32xf32>
    %251 = arith.maximumf %249, %250 : vector<128x32xf32>
    %252 = vector.shape_cast %251 : vector<128x32xf32> to vector<2x8x8x32xf32>
    %c0_351 = arith.constant 0 : index
    %c1_352 = arith.constant 1 : index
    %c1_353 = arith.constant 1 : index
    %c0_354 = arith.constant 0 : index
    %253 = vector.load %arg15[%c0_351, %c1_352, %c1_353, %c0_354] : memref<2x10x10x32xf32, #tpu.memory_space<vmem>>, vector<2x8x8x32xf32>
    tpu.vector_store %arg15[%c0_351, %c1_352, %c1_353, %c0_354], %252 {strides = array<i32>} : memref<2x10x10x32xf32, #tpu.memory_space<vmem>>, vector<2x8x8x32xf32>,
    %c0_355 = arith.constant 0 : index
    %c1_356 = arith.constant 1 : index
    %c1_357 = arith.constant 1 : index
    %c0_358 = arith.constant 0 : index
    %254 = vector.load %arg15[%c0_355, %c1_356, %c1_357, %c0_358] : memref<2x10x10x32xf32, #tpu.memory_space<vmem>>, vector<2x8x8x32xf32>
    %255 = vector.shape_cast %254 : vector<2x8x8x32xf32> to vector<128x32xf32>
    %c0_359 = arith.constant 0 : index
    %c0_360 = arith.constant 0 : index
    %256 = vector.load %arg4[%c0_359, %c0_360] : memref<32x3xf32, #tpu.memory_space<vmem>>, vector<32x3xf32>
    %cst_361 = arith.constant dense<0.000000e+00> : vector<128x3xf32>
    %257 = tpu.matmul %255, %256, %cst_361 {dimension_numbers = #tpu.dot_dimension_numbers<[1], [0], [0], [1], [0, 0, 1, 1], [], []>} : vector<128x32xf32>, vector<32x3xf32>, vector<128x3xf32> -> vector<128x3xf32>
    %c0_362 = arith.constant 0 : index
    %c0_363 = arith.constant 0 : index
    %258 = vector.load %arg5[%c0_362, %c0_363] : memref<1x3xf32, #tpu.memory_space<vmem>>, vector<1x3xf32>
    %259 = vector.broadcast %258 : vector<1x3xf32> to vector<128x3xf32>
    %260 = arith.addf %257, %259 : vector<128x3xf32>
    %cst_364 = arith.constant 0.000000e+00 : f32
    %261 = vector.broadcast %cst_364 : f32 to vector<128x3xf32>
    %262 = arith.maximumf %260, %261 : vector<128x3xf32>
    %c0_365 = arith.constant 0 : index
    %c0_366 = arith.constant 0 : index
    %263 = vector.load %arg12[%c0_365, %c0_366] : memref<2x128xf32, #tpu.memory_space<vmem>>, vector<2x128xf32>
    %264 = vector.extract_strided_slice %262 {offsets = [0, 0], sizes = [128, 1], strides = [1, 1]} : vector<128x3xf32> to vector<128x1xf32>
    %c0_367 = arith.constant 0 : index
    %c0_368 = arith.constant 0 : index
    %c0_369 = arith.constant 0 : index
    %265 = vector.load %arg6[%c0_367, %c0_368, %c0_369] : memref<2x128x3xf32, #tpu.memory_space<vmem>>, vector<1x128x3xf32>
    %266 = vector.shape_cast %265 : vector<1x128x3xf32> to vector<128x3xf32>
    %267 = vector.broadcast %264 : vector<128x1xf32> to vector<128x3xf32>
    %268 = arith.mulf %267, %266 : vector<128x3xf32>
    %269 = vector.extract_strided_slice %262 {offsets = [0, 1], sizes = [128, 1], strides = [1, 1]} : vector<128x3xf32> to vector<128x1xf32>
    %c1_370 = arith.constant 1 : index
    %c0_371 = arith.constant 0 : index
    %c0_372 = arith.constant 0 : index
    %270 = vector.load %arg6[%c1_370, %c0_371, %c0_372] : memref<2x128x3xf32, #tpu.memory_space<vmem>>, vector<1x128x3xf32>
    %271 = vector.shape_cast %270 : vector<1x128x3xf32> to vector<128x3xf32>
    %272 = vector.broadcast %269 : vector<128x1xf32> to vector<128x3xf32>
    %273 = arith.mulf %272, %271 : vector<128x3xf32>
    %274 = arith.addf %268, %273 : vector<128x3xf32>
    %cst_373 = arith.constant dense<0.000000e+00> : vector<2x3xf32>
    %275 = tpu.matmul %263, %274, %cst_373 {dimension_numbers = #tpu.dot_dimension_numbers<[1], [0], [0], [1], [0, 0, 1, 1], [], []>} : vector<2x128xf32>, vector<128x3xf32>, vector<2x3xf32> -> vector<2x3xf32>
    %c0_374 = arith.constant 0 : index
    %c0_375 = arith.constant 0 : index
    %276 = vector.load %arg7[%c0_374, %c0_375] : memref<1x3xf32, #tpu.memory_space<vmem>>, vector<1x3xf32>
    %277 = vector.broadcast %276 : vector<1x3xf32> to vector<2x3xf32>
    %278 = arith.addf %275, %277 : vector<2x3xf32>
    %cst_376 = arith.constant dense<0xFF800000> : vector<2xf32>
    %279 = vector.multi_reduction <maximumf>, %278, %cst_376 [1] : vector<2x3xf32> to vector<2xf32>
    %280 = vector.shape_cast %279 : vector<2xf32> to vector<2x1xf32>
    %281 = vector.broadcast %280 : vector<2x1xf32> to vector<2x3xf32>
    %282 = arith.subf %278, %281 : vector<2x3xf32>
    %283 = math.exp %282 : vector<2x3xf32>
    %cst_377 = arith.constant dense<0.000000e+00> : vector<2xf32>
    %284 = vector.multi_reduction <add>, %283, %cst_377 [1] : vector<2x3xf32> to vector<2xf32>
    %285 = vector.shape_cast %284 : vector<2xf32> to vector<2x1xf32>
    %286 = vector.broadcast %285 : vector<2x1xf32> to vector<2x3xf32>
    %287 = arith.divf %283, %286 : vector<2x3xf32>
    %c0_378 = arith.constant 0 : index
    %c0_379 = arith.constant 0 : index
    %288 = vector.load %arg13[%c0_378, %c0_379] : memref<2x3xf32, #tpu.memory_space<vmem>>, vector<2x3xf32>
    tpu.vector_store %arg13[%c0_378, %c0_379], %287 {strides = array<i32>} : memref<2x3xf32, #tpu.memory_space<vmem>>, vector<2x3xf32>,
    %289 = vector.extract_strided_slice %262 {offsets = [0, 2], sizes = [128, 1], strides = [1, 1]} : vector<128x3xf32> to vector<128x1xf32>
    %c0_380 = arith.constant 0 : index
    %c0_381 = arith.constant 0 : index
    %290 = vector.load %arg8[%c0_380, %c0_381] : memref<128x32xf32, #tpu.memory_space<vmem>>, vector<128x32xf32>
    %291 = vector.broadcast %289 : vector<128x1xf32> to vector<128x32xf32>
    %292 = arith.mulf %291, %290 : vector<128x32xf32>
    %cst_382 = arith.constant dense<0.000000e+00> : vector<2x32xf32>
    %293 = tpu.matmul %263, %292, %cst_382 {dimension_numbers = #tpu.dot_dimension_numbers<[1], [0], [0], [1], [0, 0, 1, 1], [], []>} : vector<2x128xf32>, vector<128x32xf32>, vector<2x32xf32> -> vector<2x32xf32>
    %c0_383 = arith.constant 0 : index
    %c0_384 = arith.constant 0 : index
    %294 = vector.load %arg9[%c0_383, %c0_384] : memref<1x32xf32, #tpu.memory_space<vmem>>, vector<1x32xf32>
    %295 = vector.broadcast %294 : vector<1x32xf32> to vector<2x32xf32>
    %296 = arith.addf %293, %295 : vector<2x32xf32>
    %cst_385 = arith.constant 0.000000e+00 : f32
    %297 = vector.broadcast %cst_385 : f32 to vector<2x32xf32>
    %298 = arith.maximumf %296, %297 : vector<2x32xf32>
    %c0_386 = arith.constant 0 : index
    %c0_387 = arith.constant 0 : index
    %299 = vector.load %arg10[%c0_386, %c0_387] : memref<32x1xf32, #tpu.memory_space<vmem>>, vector<32x1xf32>
    %cst_388 = arith.constant dense<0.000000e+00> : vector<2x1xf32>
    %300 = tpu.matmul %298, %299, %cst_388 {dimension_numbers = #tpu.dot_dimension_numbers<[1], [0], [0], [1], [0, 0, 1, 1], [], []>} : vector<2x32xf32>, vector<32x1xf32>, vector<2x1xf32> -> vector<2x1xf32>
    %c0_389 = arith.constant 0 : index
    %c0_390 = arith.constant 0 : index
    %301 = vector.load %arg11[%c0_389, %c0_390] : memref<1x1xf32, #tpu.memory_space<vmem>>, vector<1x1xf32>
    %302 = vector.broadcast %301 : vector<1x1xf32> to vector<2x1xf32>
    %303 = arith.addf %300, %302 : vector<2x1xf32>
    %c0_391 = arith.constant 0 : index
    %c0_392 = arith.constant 0 : index
    %304 = vector.load %arg14[%c0_391, %c0_392] : memref<2x1xf32, #tpu.memory_space<vmem>>, vector<2x1xf32>
    tpu.vector_store %arg14[%c0_391, %c0_392], %303 {strides = array<i32>} : memref<2x1xf32, #tpu.memory_space<vmem>>, vector<2x1xf32>,
    return
  }
  func.func @transform_0(%arg0: i32) -> (i32, i32, i32, i32) {
    %c0_i32 = arith.constant 0 : i32
    %c0_i32_0 = arith.constant 0 : i32
    %c0_i32_1 = arith.constant 0 : i32
    %c0_i32_2 = arith.constant 0 : i32
    %c0_i32_3 = arith.constant 0 : i32
    return %c0_i32, %c0_i32_0, %c0_i32_1, %c0_i32_2 : i32, i32, i32, i32
  }
  func.func @transform_1(%arg0: i32) -> (i32, i32, i32) {
    %c0_i32 = arith.constant 0 : i32
    %c0_i32_0 = arith.constant 0 : i32
    %c0_i32_1 = arith.constant 0 : i32
    %c0_i32_2 = arith.constant 0 : i32
    return %c0_i32, %c0_i32_0, %c0_i32_1 : i32, i32, i32
  }
  func.func @transform_2(%arg0: i32) -> (i32, i32, i32) {
    %c0_i32 = arith.constant 0 : i32
    %c0_i32_0 = arith.constant 0 : i32
    %c0_i32_1 = arith.constant 0 : i32
    %c0_i32_2 = arith.constant 0 : i32
    return %c0_i32, %c0_i32_0, %c0_i32_1 : i32, i32, i32
  }
  func.func @transform_3(%arg0: i32) -> (i32, i32) {
    %c0_i32 = arith.constant 0 : i32
    %c0_i32_0 = arith.constant 0 : i32
    %c0_i32_1 = arith.constant 0 : i32
    return %c0_i32, %c0_i32_0 : i32, i32
  }
  func.func @transform_4(%arg0: i32) -> (i32, i32) {
    %c0_i32 = arith.constant 0 : i32
    %c0_i32_0 = arith.constant 0 : i32
    %c0_i32_1 = arith.constant 0 : i32
    return %c0_i32, %c0_i32_0 : i32, i32
  }
  func.func @transform_5(%arg0: i32) -> (i32, i32, i32) {
    %c0_i32 = arith.constant 0 : i32
    %c0_i32_0 = arith.constant 0 : i32
    %c0_i32_1 = arith.constant 0 : i32
    %c0_i32_2 = arith.constant 0 : i32
    return %c0_i32, %c0_i32_0, %c0_i32_1 : i32, i32, i32
  }
  func.func @transform_6(%arg0: i32) -> (i32, i32) {
    %c0_i32 = arith.constant 0 : i32
    %c0_i32_0 = arith.constant 0 : i32
    %c0_i32_1 = arith.constant 0 : i32
    return %c0_i32, %c0_i32_0 : i32, i32
  }
  func.func @transform_7(%arg0: i32) -> (i32, i32) {
    %c0_i32 = arith.constant 0 : i32
    %c0_i32_0 = arith.constant 0 : i32
    %c0_i32_1 = arith.constant 0 : i32
    return %c0_i32, %c0_i32_0 : i32, i32
  }
  func.func @transform_8(%arg0: i32) -> (i32, i32) {
    %c0_i32 = arith.constant 0 : i32
    %c0_i32_0 = arith.constant 0 : i32
    %c0_i32_1 = arith.constant 0 : i32
    return %c0_i32, %c0_i32_0 : i32, i32
  }
  func.func @transform_9(%arg0: i32) -> (i32, i32) {
    %c0_i32 = arith.constant 0 : i32
    %c0_i32_0 = arith.constant 0 : i32
    %c0_i32_1 = arith.constant 0 : i32
    return %c0_i32, %c0_i32_0 : i32, i32
  }
  func.func @transform_10(%arg0: i32) -> (i32, i32) {
    %c0_i32 = arith.constant 0 : i32
    %c0_i32_0 = arith.constant 0 : i32
    %c0_i32_1 = arith.constant 0 : i32
    return %c0_i32, %c0_i32_0 : i32, i32
  }
  func.func @transform_11(%arg0: i32) -> (i32, i32) {
    %c0_i32 = arith.constant 0 : i32
    %c0_i32_0 = arith.constant 0 : i32
    %c0_i32_1 = arith.constant 0 : i32
    return %c0_i32, %c0_i32_0 : i32, i32
  }
  func.func @transform_12(%arg0: i32) -> (i32, i32) {
    %c0_i32 = arith.constant 0 : i32
    %c0_i32_0 = arith.constant 0 : i32
    %c0_i32_1 = arith.constant 0 : i32
    return %c0_i32, %c0_i32_0 : i32, i32
  }
  func.func @transform_13(%arg0: i32) -> (i32, i32) {
    %c0_i32 = arith.constant 0 : i32
    %c0_i32_0 = arith.constant 0 : i32
    %c0_i32_1 = arith.constant 0 : i32
    return %c0_i32, %c0_i32_0 : i32, i32
  }
}

</mosaic_0001>

<llo_original>
// kernel: forward.1
$region0: #{forward.1}
  #allocation0 [shape = 'u32[]', space=smem, size = 0x4, offset = 0x4, fixed_abs, tag = 'smem constant byte address 0x4 - core index']
  #allocation1 [shape = 'u32[72,128]{1,0:T(1,128)}', space=vmem, size = 0x9000, scoped, tag = 'internal scratch']
  #allocation2 [shape = 'f32[2,10,10,32]{3,2,1,0:T(8,128)}', space=vmem, size = 0x28000, scoped, tag = 'scratch operand']
  #allocation3 [shape = 'bf16[128,288]{1,0:T(8,128)(2,1)}', space=vmem, size = 0x18000, scoped, tag = 'scratch operand']
  #allocation4 [shape = 'f32[128,32]{1,0:T(8,128)}', space=vmem, size = 0x10000, scoped, tag = 'scratch operand']
  #allocation5 [shape = 'f32[1,1]{1,0:T(1,128)S(1)}', space=vmem, size = 0x200, scoped, tag = 'scoped memory for forward.1']
  %s0 = inlined_call_operand.vmem [shape: f32[2,8,8,32], index: 0, kind: input, shape index: {}]
  %s1 = inlined_call_operand.hbm [shape: bf16[5,288,32], index: 1, kind: input, shape index: {}]
  %s2 = inlined_call_operand.vmem [shape: f32[5,1,32], index: 2, kind: input, shape index: {}]
  %s3 = inlined_call_operand.vmem [shape: f32[32,3], index: 3, kind: input, shape index: {}]
  %s4 = inlined_call_operand.hbm [shape: f32[1,3], index: 4, kind: input, shape index: {}]
  %s5 = inlined_call_operand.vmem [shape: f32[2,128,3], index: 5, kind: input, shape index: {}]
  %s6 = inlined_call_operand.hbm [shape: f32[1,3], index: 6, kind: input, shape index: {}]
  %s7 = inlined_call_operand.vmem [shape: f32[128,32], index: 7, kind: input, shape index: {}]
  %s8 = inlined_call_operand.vmem [shape: f32[1,32], index: 8, kind: input, shape index: {}]
  %s9 = inlined_call_operand.vmem [shape: f32[32,1], index: 9, kind: input, shape index: {}]
  %s10 = inlined_call_operand.<no memory space> [shape: f32[1,1], index: 10, kind: input, shape index: {}]
  %s11 = inlined_call_operand.vmem [shape: f32[2,128], index: 11, kind: input, shape index: {}]
  %s12 = inlined_call_operand.hbm [shape: f32[2,3], index: 12, kind: output, shape index: {0}]
  %s13 = inlined_call_operand.vmem [shape: f32[2,1], index: 13, kind: output, shape index: {1}]
  %14 = xla_tuple %s12, %s13
  %s15 = sld [smem:[#allocation0]]
  $region78: #{forward.1} parent=0
    _
  %s17 = ssub.s32 1, %s15
  %s18 = scalar_select 0, %s17, %s15
  %v19 = vstv %s10
  %20 = vst [vmem:[#allocation5] sm:$0x1] %v19
  $region1: #{forward.1} parent=0
    #allocation6 [shape = 'u8[368640]{0}', space=vmem, size = 0x5a000, scoped, tag = 'input window, operand 1, single buffered']
    #allocation7 [shape = 's32[1]{0}', space=sflag, size = 0x4, scoped, tag = 'scoped memory for forward.1']
    #allocation8 [shape = 's32[1]{0}', space=sflag, size = 0x4, scoped, tag = 'scoped memory for forward.1']
    #allocation9 [shape = 'u8[512]{0}', space=vmem, size = 0x400, scoped, tag = 'input window, operand 4, single buffered']
    #allocation10 [shape = 's32[1]{0}', space=sflag, size = 0x4, scoped, tag = 'scoped memory for forward.1']
    #allocation11 [shape = 'u8[512]{0}', space=vmem, size = 0x400, scoped, tag = 'input window, operand 6, single buffered']
    #allocation12 [shape = 'u8[1024]{0}', space=vmem, size = 0x400, scoped, tag = 'output window, operand 0, single buffered']
    %21 = vsyncpa [#allocation7], 0
    %22 = vsyncpa [#allocation10], 0
    %23 = vsyncpa [#allocation8], 0
    // Predicated region
    $region2: #{forward.1} parent=1 // pred_check
      _
    $region3: #{forward.1} parent=1 // pred_check_branch
      %25 = sbr.rel (0) target = $region5
    $region4: #{forward.1} parent=1 // pred_region
      _
    $region5: #{forward.1} parent=1 // pred_fallthru
      _
    // Predicated region
    $region6: #{forward.1} parent=1 // pred_check
      _
    $region7: #{forward.1} parent=1 // pred_check_branch
      %27 = sbr.rel (0) target = $region9
    $region8: #{forward.1} parent=1 // pred_region
      %29 = vsyncadd [#allocation7], 0
      %s30 = sshll.u32 %s1, 4
      %s31 = int_to_ptr.hbm [resolvable:$true] %s30
      %s32 = sshll.u32 [#allocation6], 4
      %s33 = int_to_ptr.vmem [resolvable:$true] %s32
      %38 = dma.hbm_to_vmem [thread:$0]  %s31, 11520, %s33, [#allocation7], 64, 64, 4
    $region9: #{forward.1} parent=1 // pred_fallthru
      _
    // Predicated region
    $region10: #{forward.1} parent=1 // pred_check
      _
    $region11: #{forward.1} parent=1 // pred_check_branch
      %40 = sbr.rel (0) target = $region13
    $region12: #{forward.1} parent=1 // pred_region
      _
    $region13: #{forward.1} parent=1 // pred_fallthru
      _
    // Predicated region
    $region14: #{forward.1} parent=1 // pred_check
      _
    $region15: #{forward.1} parent=1 // pred_check_branch
      %42 = sbr.rel (0) target = $region17
    $region16: #{forward.1} parent=1 // pred_region
      _
    $region17: #{forward.1} parent=1 // pred_fallthru
      _
    // Predicated region
    $region18: #{forward.1} parent=1 // pred_check
      _
    $region19: #{forward.1} parent=1 // pred_check_branch
      %44 = sbr.rel (0) target = $region21
    $region20: #{forward.1} parent=1 // pred_region
      %46 = vsyncadd [#allocation10], 0
      %s48 = sshll.u32 %s4, 4
      %s49 = int_to_ptr.hbm [resolvable:$true] %s48
      %s50 = sshll.u32 [#allocation9], 4
      %s51 = int_to_ptr.vmem [resolvable:$true] %s50
      %53 = dma.hbm_to_vmem [thread:$0]  %s49, 16, %s51, [#allocation10]
    $region21: #{forward.1} parent=1 // pred_fallthru
      _
    // Predicated region
    $region22: #{forward.1} parent=1 // pred_check
      _
    $region23: #{forward.1} parent=1 // pred_check_branch
      %55 = sbr.rel (0) target = $region25
    $region24: #{forward.1} parent=1 // pred_region
      _
    $region25: #{forward.1} parent=1 // pred_fallthru
      _
    // Predicated region
    $region26: #{forward.1} parent=1 // pred_check
      _
    $region27: #{forward.1} parent=1 // pred_check_branch
      %57 = sbr.rel (0) target = $region29
    $region28: #{forward.1} parent=1 // pred_region
      %59 = vsyncadd [#allocation10], 0
      %s61 = sshll.u32 %s6, 4
      %s62 = int_to_ptr.hbm [resolvable:$true] %s61
      %s63 = sshll.u32 [#allocation11], 4
      %s64 = int_to_ptr.vmem [resolvable:$true] %s63
      %66 = dma.hbm_to_vmem [thread:$0]  %s62, 16, %s64, [#allocation10]
    $region29: #{forward.1} parent=1 // pred_fallthru
      _
    // Predicated region
    $region30: #{forward.1} parent=1 // pred_check
      _
    $region31: #{forward.1} parent=1 // pred_check_branch
      %68 = sbr.rel (0) target = $region33
    $region32: #{forward.1} parent=1 // pred_region
      _
    $region33: #{forward.1} parent=1 // pred_fallthru
      _
    // Predicated region
    $region34: #{forward.1} parent=1 // pred_check
      _
    $region35: #{forward.1} parent=1 // pred_check_branch
      %70 = sbr.rel (0) target = $region37
    $region36: #{forward.1} parent=1 // pred_region
      _
    $region37: #{forward.1} parent=1 // pred_fallthru
      _
    // Predicated region
    $region38: #{forward.1} parent=1 // pred_check
      _
    $region39: #{forward.1} parent=1 // pred_check_branch
      %72 = sbr.rel (0) target = $region41
    $region40: #{forward.1} parent=1 // pred_region
      _
    $region41: #{forward.1} parent=1 // pred_fallthru
      _
    // Predicated region
    $region42: #{forward.1} parent=1 // pred_check
      _
    $region43: #{forward.1} parent=1 // pred_check_branch
      %74 = sbr.rel (0) target = $region45
    $region44: #{forward.1} parent=1 // pred_region
      _
    $region45: #{forward.1} parent=1 // pred_fallthru
      _
    // Predicated region
    $region46: #{forward.1} parent=1 // pred_check
      _
    $region47: #{forward.1} parent=1 // pred_check_branch
      %76 = sbr.rel (0) target = $region49
    $region48: #{forward.1} parent=1 // pred_region
      _
    $region49: #{forward.1} parent=1 // pred_fallthru
      _
    // Predicated region
    $region50: #{forward.1} parent=1 // pred_check
      _
    $region51: #{forward.1} parent=1 // pred_check_branch
      %78 = sbr.rel (0) target = $region53
    $region52: #{forward.1} parent=1 // pred_region
      %80 = dma.done [#allocation7], 11520
    $region53: #{forward.1} parent=1 // pred_fallthru
      _
    // Predicated region
    $region54: #{forward.1} parent=1 // pred_check
      _
    $region55: #{forward.1} parent=1 // pred_check_branch
      %82 = sbr.rel (0) target = $region57
    $region56: #{forward.1} parent=1 // pred_region
      %84 = dma.done [#allocation10], 16
    $region57: #{forward.1} parent=1 // pred_fallthru
      _
    // Predicated region
    $region58: #{forward.1} parent=1 // pred_check
      _
    $region59: #{forward.1} parent=1 // pred_check_branch
      %86 = sbr.rel (0) target = $region61
    $region60: #{forward.1} parent=1 // pred_region
      %88 = dma.done [#allocation10], 16
    $region61: #{forward.1} parent=1 // pred_fallthru
      _
    %vm90 = vcmask 261120
    %91 = vst.msk [vmem:[#allocation2] sm:$0xff] %vm90, 0.0
    %vm92 = vcmask 254976
    %93 = vst.msk [vmem:[#allocation2 + $0x8] sm:$0x3] %vm92, 0.0
    %94 = vst.msk [vmem:[#allocation2 + $0x10] sm:$0xff] %vm90, 0.0
    %95 = vst.msk [vmem:[#allocation2 + $0x18] sm:$0x3] %vm92, 0.0
    %96 = vst.msk [vmem:[#allocation2 + $0x20] sm:$0xff] %vm90, 0.0
    %97 = vst.msk [vmem:[#allocation2 + $0x28] sm:$0x3] %vm92, 0.0
    %98 = vst.msk [vmem:[#allocation2 + $0x30] sm:$0xff] %vm90, 0.0
    %99 = vst.msk [vmem:[#allocation2 + $0x38] sm:$0x3] %vm92, 0.0
    %100 = vst.msk [vmem:[#allocation2 + $0x40] sm:$0xff] %vm90, 0.0
    %101 = vst.msk [vmem:[#allocation2 + $0x48] sm:$0x3] %vm92, 0.0
    %102 = vst.msk [vmem:[#allocation2 + $0x50] sm:$0xff] %vm90, 0.0
    %103 = vst.msk [vmem:[#allocation2 + $0x58] sm:$0x3] %vm92, 0.0
    %104 = vst.msk [vmem:[#allocation2 + $0x60] sm:$0xff] %vm90, 0.0
    %105 = vst.msk [vmem:[#allocation2 + $0x68] sm:$0x3] %vm92, 0.0
    %106 = vst.msk [vmem:[#allocation2 + $0x70] sm:$0xff] %vm90, 0.0
    %107 = vst.msk [vmem:[#allocation2 + $0x78] sm:$0x3] %vm92, 0.0
    %108 = vst.msk [vmem:[#allocation2 + $0x80] sm:$0xff] %vm90, 0.0
    %109 = vst.msk [vmem:[#allocation2 + $0x88] sm:$0x3] %vm92, 0.0
    %110 = vst.msk [vmem:[#allocation2 + $0x90] sm:$0xff] %vm90, 0.0
    %111 = vst.msk [vmem:[#allocation2 + $0x98] sm:$0x3] %vm92, 0.0
    %112 = vst.msk [vmem:[#allocation2 + $0xa0] sm:$0xff] %vm90, 0.0
    %113 = vst.msk [vmem:[#allocation2 + $0xa8] sm:$0x3] %vm92, 0.0
    %114 = vst.msk [vmem:[#allocation2 + $0xb0] sm:$0xff] %vm90, 0.0
    %115 = vst.msk [vmem:[#allocation2 + $0xb8] sm:$0x3] %vm92, 0.0
    %116 = vst.msk [vmem:[#allocation2 + $0xc0] sm:$0xff] %vm90, 0.0
    %117 = vst.msk [vmem:[#allocation2 + $0xc8] sm:$0x3] %vm92, 0.0
    %118 = vst.msk [vmem:[#allocation2 + $0xd0] sm:$0xff] %vm90, 0.0
    %119 = vst.msk [vmem:[#allocation2 + $0xd8] sm:$0x3] %vm92, 0.0
    %120 = vst.msk [vmem:[#allocation2 + $0xe0] sm:$0xff] %vm90, 0.0
    %121 = vst.msk [vmem:[#allocation2 + $0xe8] sm:$0x3] %vm92, 0.0
    %122 = vst.msk [vmem:[#allocation2 + $0xf0] sm:$0xff] %vm90, 0.0
    %123 = vst.msk [vmem:[#allocation2 + $0xf8] sm:$0x3] %vm92, 0.0
    %124 = vst.msk [vmem:[#allocation2 + $0x100] sm:$0xff] %vm90, 0.0
    %125 = vst.msk [vmem:[#allocation2 + $0x108] sm:$0x3] %vm92, 0.0
    %126 = vst.msk [vmem:[#allocation2 + $0x110] sm:$0xff] %vm90, 0.0
    %127 = vst.msk [vmem:[#allocation2 + $0x118] sm:$0x3] %vm92, 0.0
    %128 = vst.msk [vmem:[#allocation2 + $0x120] sm:$0xff] %vm90, 0.0
    %129 = vst.msk [vmem:[#allocation2 + $0x128] sm:$0x3] %vm92, 0.0
    %130 = vst.msk [vmem:[#allocation2 + $0x130] sm:$0xff] %vm90, 0.0
    %131 = vst.msk [vmem:[#allocation2 + $0x138] sm:$0x3] %vm92, 0.0
    %v132 = vld [vmem:[%s0] sm:$0xff]
    %v133 = vld [vmem:[%s0 + $0x8] sm:$0xff]
    %v134 = vld [vmem:[%s0 + $0x10] sm:$0xff]
    %v135 = vld [vmem:[%s0 + $0x18] sm:$0xff]
    %v136 = vld [vmem:[%s0 + $0x20] sm:$0xff]
    %v137 = vld [vmem:[%s0 + $0x28] sm:$0xff]
    %v138 = vld [vmem:[%s0 + $0x30] sm:$0xff]
    %v139 = vld [vmem:[%s0 + $0x38] sm:$0xff]
    %v140 = vld [vmem:[%s0 + $0x40] sm:$0xff]
    %v141 = vld [vmem:[%s0 + $0x48] sm:$0xff]
    %v142 = vld [vmem:[%s0 + $0x50] sm:$0xff]
    %v143 = vld [vmem:[%s0 + $0x58] sm:$0xff]
    %v144 = vld [vmem:[%s0 + $0x60] sm:$0xff]
    %v145 = vld [vmem:[%s0 + $0x68] sm:$0xff]
    %v146 = vld [vmem:[%s0 + $0x70] sm:$0xff]
    %v147 = vld [vmem:[%s0 + $0x78] sm:$0xff]
    %s148 = scalar_lea.vmem [#allocation2], 16
    %149 = vst.msk [vmem:[%s148 + $0x1] sm:$0xff] %vm90, %v132
    %150 = vst.msk [vmem:[%s148 + $0x11] sm:$0xff] %vm90, %v133
    %151 = vst.msk [vmem:[%s148 + $0x21] sm:$0xff] %vm90, %v134
    %152 = vst.msk [vmem:[%s148 + $0x31] sm:$0xff] %vm90, %v135
    %153 = vst.msk [vmem:[%s148 + $0x41] sm:$0xff] %vm90, %v136
    %154 = vst.msk [vmem:[%s148 + $0x51] sm:$0xff] %vm90, %v137
    %155 = vst.msk [vmem:[%s148 + $0x61] sm:$0xff] %vm90, %v138
    %156 = vst.msk [vmem:[%s148 + $0x71] sm:$0xff] %vm90, %v139
    %157 = vst.msk [vmem:[%s148 + $0xa1] sm:$0xff] %vm90, %v140
    %158 = vst.msk [vmem:[%s148 + $0xb1] sm:$0xff] %vm90, %v141
    %159 = vst.msk [vmem:[%s148 + $0xc1] sm:$0xff] %vm90, %v142
    %160 = vst.msk [vmem:[%s148 + $0xd1] sm:$0xff] %vm90, %v143
    %161 = vst.msk [vmem:[%s148 + $0xe1] sm:$0xff] %vm90, %v144
    %162 = vst.msk [vmem:[%s148 + $0xf1] sm:$0xff] %vm90, %v145
    %163 = vst.msk [vmem:[%s148 + $0x101] sm:$0xff] %vm90, %v146
    %164 = vst.msk [vmem:[%s148 + $0x111] sm:$0xff] %vm90, %v147
    %v165 = vld [vmem:[#allocation2] sm:$0xff]
    %v166 = vld [vmem:[#allocation2 + $0x10] sm:$0xff]
    %v167 = vld [vmem:[#allocation2 + $0x20] sm:$0xff]
    %v168 = vld [vmem:[#allocation2 + $0x30] sm:$0xff]
    %v169 = vld [vmem:[#allocation2 + $0x40] sm:$0xff]
    %v170 = vld [vmem:[#allocation2 + $0x50] sm:$0xff]
    %v171 = vld [vmem:[#allocation2 + $0x60] sm:$0xff]
    %v172 = vld [vmem:[#allocation2 + $0x70] sm:$0xff]
    %v173 = vld [vmem:[#allocation2 + $0xa0] sm:$0xff]
    %v174 = vld [vmem:[#allocation2 + $0xb0] sm:$0xff]
    %v175 = vld [vmem:[#allocation2 + $0xc0] sm:$0xff]
    %v176 = vld [vmem:[#allocation2 + $0xd0] sm:$0xff]
    %v177 = vld [vmem:[#allocation2 + $0xe0] sm:$0xff]
    %v178 = vld [vmem:[#allocation2 + $0xf0] sm:$0xff]
    %v179 = vld [vmem:[#allocation2 + $0x100] sm:$0xff]
    %v180 = vld [vmem:[#allocation2 + $0x110] sm:$0xff]
    %v181 = vpack.c.bf16 %v165, %v165
    %v182 = vpack.c.bf16 %v166, %v166
    %v183 = vpack.c.bf16 %v167, %v167
    %v184 = vpack.c.bf16 %v168, %v168
    %v185 = vpack.c.bf16 %v169, %v169
    %v186 = vpack.c.bf16 %v170, %v170
    %v187 = vpack.c.bf16 %v171, %v171
    %v188 = vpack.c.bf16 %v172, %v172
    %v189 = vpack.c.bf16 %v173, %v173
    %v190 = vpack.c.bf16 %v174, %v174
    %v191 = vpack.c.bf16 %v175, %v175
    %v192 = vpack.c.bf16 %v176, %v176
    %v193 = vpack.c.bf16 %v177, %v177
    %v194 = vpack.c.bf16 %v178, %v178
    %v195 = vpack.c.bf16 %v179, %v179
    %v196 = vpack.c.bf16 %v180, %v180
    %vm197 = vcmask 257024
    %198 = vst.msk [vmem:[#allocation3] sm:$0xf] %vm197, %v181
    %199 = vst.msk [vmem:[#allocation3 + $0xc] sm:$0xf] %vm197, %v182
    %200 = vst.msk [vmem:[#allocation3 + $0x18] sm:$0xf] %vm197, %v183
    %201 = vst.msk [vmem:[#allocation3 + $0x24] sm:$0xf] %vm197, %v184
    %202 = vst.msk [vmem:[#allocation3 + $0x30] sm:$0xf] %vm197, %v185
    %203 = vst.msk [vmem:[#allocation3 + $0x3c] sm:$0xf] %vm197, %v186
    %204 = vst.msk [vmem:[#allocation3 + $0x48] sm:$0xf] %vm197, %v187
    %205 = vst.msk [vmem:[#allocation3 + $0x54] sm:$0xf] %vm197, %v188
    %206 = vst.msk [vmem:[#allocation3 + $0x60] sm:$0xf] %vm197, %v189
    %207 = vst.msk [vmem:[#allocation3 + $0x6c] sm:$0xf] %vm197, %v190
    %208 = vst.msk [vmem:[#allocation3 + $0x78] sm:$0xf] %vm197, %v191
    %209 = vst.msk [vmem:[#allocation3 + $0x84] sm:$0xf] %vm197, %v192
    %210 = vst.msk [vmem:[#allocation3 + $0x90] sm:$0xf] %vm197, %v193
    %211 = vst.msk [vmem:[#allocation3 + $0x9c] sm:$0xf] %vm197, %v194
    %212 = vst.msk [vmem:[#allocation3 + $0xa8] sm:$0xf] %vm197, %v195
    %213 = vst.msk [vmem:[#allocation3 + $0xb4] sm:$0xf] %vm197, %v196
    %v214 = vld [vmem:[#allocation2 + $0x1] sm:$0xff]
    %v215 = vld [vmem:[#allocation2 + $0x11] sm:$0xff]
    %v216 = vld [vmem:[#allocation2 + $0x21] sm:$0xff]
    %v217 = vld [vmem:[#allocation2 + $0x31] sm:$0xff]
    %v218 = vld [vmem:[#allocation2 + $0x41] sm:$0xff]
    %v219 = vld [vmem:[#allocation2 + $0x51] sm:$0xff]
    %v220 = vld [vmem:[#allocation2 + $0x61] sm:$0xff]
    %v221 = vld [vmem:[#allocation2 + $0x71] sm:$0xff]
    %v222 = vld [vmem:[#allocation2 + $0xa1] sm:$0xff]
    %v223 = vld [vmem:[#allocation2 + $0xb1] sm:$0xff]
    %v224 = vld [vmem:[#allocation2 + $0xc1] sm:$0xff]
    %v225 = vld [vmem:[#allocation2 + $0xd1] sm:$0xff]
    %v226 = vld [vmem:[#allocation2 + $0xe1] sm:$0xff]
    %v227 = vld [vmem:[#allocation2 + $0xf1] sm:$0xff]
    %v228 = vld [vmem:[#allocation2 + $0x101] sm:$0xff]
    %v229 = vld [vmem:[#allocation2 + $0x111] sm:$0xff]
    %v230 = vpack.c.bf16 %v214, %v214
    %v231 = vpack.c.bf16 %v215, %v215
    %v232 = vpack.c.bf16 %v216, %v216
    %v233 = vpack.c.bf16 %v217, %v217
    %v234 = vpack.c.bf16 %v218, %v218
    %v235 = vpack.c.bf16 %v219, %v219
    %v236 = vpack.c.bf16 %v220, %v220
    %v237 = vpack.c.bf16 %v221, %v221
    %v238 = vpack.c.bf16 %v222, %v222
    %v239 = vpack.c.bf16 %v223, %v223
    %v240 = vpack.c.bf16 %v224, %v224
    %v241 = vpack.c.bf16 %v225, %v225
    %v242 = vpack.c.bf16 %v226, %v226
    %v243 = vpack.c.bf16 %v227, %v227
    %v244 = vpack.c.bf16 %v228, %v228
    %v245 = vpack.c.bf16 %v229, %v229
    %262 = vrot.lane.b32.xlu0 %v230, 32
    %v263 = vpop.permute.xlu0 %262
    %264 = vrot.lane.b32.xlu0 %v231, 32
    %v265 = vpop.permute.xlu0 %264
    %266 = vrot.lane.b32.xlu0 %v232, 32
    %v267 = vpop.permute.xlu0 %266
    %268 = vrot.lane.b32.xlu0 %v233, 32
    %v269 = vpop.permute.xlu0 %268
    %270 = vrot.lane.b32.xlu0 %v234, 32
    %v271 = vpop.permute.xlu0 %270
    %272 = vrot.lane.b32.xlu0 %v235, 32
    %v273 = vpop.permute.xlu0 %272
    %274 = vrot.lane.b32.xlu0 %v236, 32
    %v275 = vpop.permute.xlu0 %274
    %276 = vrot.lane.b32.xlu0 %v237, 32
    %v277 = vpop.permute.xlu0 %276
    %278 = vrot.lane.b32.xlu0 %v238, 32
    %v279 = vpop.permute.xlu0 %278
    %280 = vrot.lane.b32.xlu0 %v239, 32
    %v281 = vpop.permute.xlu0 %280
    %282 = vrot.lane.b32.xlu0 %v240, 32
    %v283 = vpop.permute.xlu0 %282
    %284 = vrot.lane.b32.xlu0 %v241, 32
    %v285 = vpop.permute.xlu0 %284
    %286 = vrot.lane.b32.xlu0 %v242, 32
    %v287 = vpop.permute.xlu0 %286
    %288 = vrot.lane.b32.xlu0 %v243, 32
    %v289 = vpop.permute.xlu0 %288
    %290 = vrot.lane.b32.xlu0 %v244, 32
    %v291 = vpop.permute.xlu0 %290
    %292 = vrot.lane.b32.xlu0 %v245, 32
    %v293 = vpop.permute.xlu0 %292
    %vm310 = vcmask 519424
    %311 = vst.msk [vmem:[#allocation3] sm:$0xf] %vm310, %v263
    %312 = vst.msk [vmem:[#allocation3 + $0xc] sm:$0xf] %vm310, %v265
    %313 = vst.msk [vmem:[#allocation3 + $0x18] sm:$0xf] %vm310, %v267
    %314 = vst.msk [vmem:[#allocation3 + $0x24] sm:$0xf] %vm310, %v269
    %315 = vst.msk [vmem:[#allocation3 + $0x30] sm:$0xf] %vm310, %v271
    %316 = vst.msk [vmem:[#allocation3 + $0x3c] sm:$0xf] %vm310, %v273
    %317 = vst.msk [vmem:[#allocation3 + $0x48] sm:$0xf] %vm310, %v275
    %318 = vst.msk [vmem:[#allocation3 + $0x54] sm:$0xf] %vm310, %v277
    %319 = vst.msk [vmem:[#allocation3 + $0x60] sm:$0xf] %vm310, %v279
    %320 = vst.msk [vmem:[#allocation3 + $0x6c] sm:$0xf] %vm310, %v281
    %321 = vst.msk [vmem:[#allocation3 + $0x78] sm:$0xf] %vm310, %v283
    %322 = vst.msk [vmem:[#allocation3 + $0x84] sm:$0xf] %vm310, %v285
    %323 = vst.msk [vmem:[#allocation3 + $0x90] sm:$0xf] %vm310, %v287
    %324 = vst.msk [vmem:[#allocation3 + $0x9c] sm:$0xf] %vm310, %v289
    %325 = vst.msk [vmem:[#allocation3 + $0xa8] sm:$0xf] %vm310, %v291
    %326 = vst.msk [vmem:[#allocation3 + $0xb4] sm:$0xf] %vm310, %v293
    %v327 = vld [vmem:[#allocation2 + $0x2] sm:$0xff]
    %v328 = vld [vmem:[#allocation2 + $0x12] sm:$0xff]
    %v329 = vld [vmem:[#allocation2 + $0x22] sm:$0xff]
    %v330 = vld [vmem:[#allocation2 + $0x32] sm:$0xff]
    %v331 = vld [vmem:[#allocation2 + $0x42] sm:$0xff]
    %v332 = vld [vmem:[#allocation2 + $0x52] sm:$0xff]
    %v333 = vld [vmem:[#allocation2 + $0x62] sm:$0xff]
    %v334 = vld [vmem:[#allocation2 + $0x72] sm:$0xff]
    %v335 = vld [vmem:[#allocation2 + $0xa2] sm:$0xff]
    %v336 = vld [vmem:[#allocation2 + $0xb2] sm:$0xff]
    %v337 = vld [vmem:[#allocation2 + $0xc2] sm:$0xff]
    %v338 = vld [vmem:[#allocation2 + $0xd2] sm:$0xff]
    %v339 = vld [vmem:[#allocation2 + $0xe2] sm:$0xff]
    %v340 = vld [vmem:[#allocation2 + $0xf2] sm:$0xff]
    %v341 = vld [vmem:[#allocation2 + $0x102] sm:$0xff]
    %v342 = vld [vmem:[#allocation2 + $0x112] sm:$0xff]
    %v343 = vpack.c.bf16 %v327, %v327
    %v344 = vpack.c.bf16 %v328, %v328
    %v345 = vpack.c.bf16 %v329, %v329
    %v346 = vpack.c.bf16 %v330, %v330
    %v347 = vpack.c.bf16 %v331, %v331
    %v348 = vpack.c.bf16 %v332, %v332
    %v349 = vpack.c.bf16 %v333, %v333
    %v350 = vpack.c.bf16 %v334, %v334
    %v351 = vpack.c.bf16 %v335, %v335
    %v352 = vpack.c.bf16 %v336, %v336
    %v353 = vpack.c.bf16 %v337, %v337
    %v354 = vpack.c.bf16 %v338, %v338
    %v355 = vpack.c.bf16 %v339, %v339
    %v356 = vpack.c.bf16 %v340, %v340
    %v357 = vpack.c.bf16 %v341, %v341
    %v358 = vpack.c.bf16 %v342, %v342
    %375 = vrot.lane.b32.xlu0 %v343, 64
    %v376 = vpop.permute.xlu0 %375
    %377 = vrot.lane.b32.xlu0 %v344, 64
    %v378 = vpop.permute.xlu0 %377
    %379 = vrot.lane.b32.xlu0 %v345, 64
    %v380 = vpop.permute.xlu0 %379
    %381 = vrot.lane.b32.xlu0 %v346, 64
    %v382 = vpop.permute.xlu0 %381
    %383 = vrot.lane.b32.xlu0 %v347, 64
    %v384 = vpop.permute.xlu0 %383
    %385 = vrot.lane.b32.xlu0 %v348, 64
    %v386 = vpop.permute.xlu0 %385
    %387 = vrot.lane.b32.xlu0 %v349, 64
    %v388 = vpop.permute.xlu0 %387
    %389 = vrot.lane.b32.xlu0 %v350, 64
    %v390 = vpop.permute.xlu0 %389
    %391 = vrot.lane.b32.xlu0 %v351, 64
    %v392 = vpop.permute.xlu0 %391
    %393 = vrot.lane.b32.xlu0 %v352, 64
    %v394 = vpop.permute.xlu0 %393
    %395 = vrot.lane.b32.xlu0 %v353, 64
    %v396 = vpop.permute.xlu0 %395
    %397 = vrot.lane.b32.xlu0 %v354, 64
    %v398 = vpop.permute.xlu0 %397
    %399 = vrot.lane.b32.xlu0 %v355, 64
    %v400 = vpop.permute.xlu0 %399
    %401 = vrot.lane.b32.xlu0 %v356, 64
    %v402 = vpop.permute.xlu0 %401
    %403 = vrot.lane.b32.xlu0 %v357, 64
    %v404 = vpop.permute.xlu0 %403
    %405 = vrot.lane.b32.xlu0 %v358, 64
    %v406 = vpop.permute.xlu0 %405
    %vm423 = vcmask 781824
    %424 = vst.msk [vmem:[#allocation3] sm:$0xf] %vm423, %v376
    %425 = vst.msk [vmem:[#allocation3 + $0xc] sm:$0xf] %vm423, %v378
    %426 = vst.msk [vmem:[#allocation3 + $0x18] sm:$0xf] %vm423, %v380
    %427 = vst.msk [vmem:[#allocation3 + $0x24] sm:$0xf] %vm423, %v382
    %428 = vst.msk [vmem:[#allocation3 + $0x30] sm:$0xf] %vm423, %v384
    %429 = vst.msk [vmem:[#allocation3 + $0x3c] sm:$0xf] %vm423, %v386
    %430 = vst.msk [vmem:[#allocation3 + $0x48] sm:$0xf] %vm423, %v388
    %431 = vst.msk [vmem:[#allocation3 + $0x54] sm:$0xf] %vm423, %v390
    %432 = vst.msk [vmem:[#allocation3 + $0x60] sm:$0xf] %vm423, %v392
    %433 = vst.msk [vmem:[#allocation3 + $0x6c] sm:$0xf] %vm423, %v394
    %434 = vst.msk [vmem:[#allocation3 + $0x78] sm:$0xf] %vm423, %v396
    %435 = vst.msk [vmem:[#allocation3 + $0x84] sm:$0xf] %vm423, %v398
    %436 = vst.msk [vmem:[#allocation3 + $0x90] sm:$0xf] %vm423, %v400
    %437 = vst.msk [vmem:[#allocation3 + $0x9c] sm:$0xf] %vm423, %v402
    %438 = vst.msk [vmem:[#allocation3 + $0xa8] sm:$0xf] %vm423, %v404
    %439 = vst.msk [vmem:[#allocation3 + $0xb4] sm:$0xf] %vm423, %v406
    %v440 = vld [vmem:[%s148] sm:$0xff]
    %v441 = vld [vmem:[%s148 + $0x10] sm:$0xff]
    %v442 = vld [vmem:[%s148 + $0x20] sm:$0xff]
    %v443 = vld [vmem:[%s148 + $0x30] sm:$0xff]
    %v444 = vld [vmem:[%s148 + $0x40] sm:$0xff]
    %v445 = vld [vmem:[%s148 + $0x50] sm:$0xff]
    %v446 = vld [vmem:[%s148 + $0x60] sm:$0xff]
    %v447 = vld [vmem:[%s148 + $0x70] sm:$0xff]
    %v448 = vld [vmem:[%s148 + $0xa0] sm:$0xff]
    %v449 = vld [vmem:[%s148 + $0xb0] sm:$0xff]
    %v450 = vld [vmem:[%s148 + $0xc0] sm:$0xff]
    %v451 = vld [vmem:[%s148 + $0xd0] sm:$0xff]
    %v452 = vld [vmem:[%s148 + $0xe0] sm:$0xff]
    %v453 = vld [vmem:[%s148 + $0xf0] sm:$0xff]
    %v454 = vld [vmem:[%s148 + $0x100] sm:$0xff]
    %v455 = vld [vmem:[%s148 + $0x110] sm:$0xff]
    %v456 = vpack.c.bf16 %v440, %v440
    %v457 = vpack.c.bf16 %v441, %v441
    %v458 = vpack.c.bf16 %v442, %v442
    %v459 = vpack.c.bf16 %v443, %v443
    %v460 = vpack.c.bf16 %v444, %v444
    %v461 = vpack.c.bf16 %v445, %v445
    %v462 = vpack.c.bf16 %v446, %v446
    %v463 = vpack.c.bf16 %v447, %v447
    %v464 = vpack.c.bf16 %v448, %v448
    %v465 = vpack.c.bf16 %v449, %v449
    %v466 = vpack.c.bf16 %v450, %v450
    %v467 = vpack.c.bf16 %v451, %v451
    %v468 = vpack.c.bf16 %v452, %v452
    %v469 = vpack.c.bf16 %v453, %v453
    %v470 = vpack.c.bf16 %v454, %v454
    %v471 = vpack.c.bf16 %v455, %v455
    %488 = vrot.lane.b32.xlu0 %v456, 96
    %v489 = vpop.permute.xlu0 %488
    %490 = vrot.lane.b32.xlu0 %v457, 96
    %v491 = vpop.permute.xlu0 %490
    %492 = vrot.lane.b32.xlu0 %v458, 96
    %v493 = vpop.permute.xlu0 %492
    %494 = vrot.lane.b32.xlu0 %v459, 96
    %v495 = vpop.permute.xlu0 %494
    %496 = vrot.lane.b32.xlu0 %v460, 96
    %v497 = vpop.permute.xlu0 %496
    %498 = vrot.lane.b32.xlu0 %v461, 96
    %v499 = vpop.permute.xlu0 %498
    %500 = vrot.lane.b32.xlu0 %v462, 96
    %v501 = vpop.permute.xlu0 %500
    %502 = vrot.lane.b32.xlu0 %v463, 96
    %v503 = vpop.permute.xlu0 %502
    %504 = vrot.lane.b32.xlu0 %v464, 96
    %v505 = vpop.permute.xlu0 %504
    %506 = vrot.lane.b32.xlu0 %v465, 96
    %v507 = vpop.permute.xlu0 %506
    %508 = vrot.lane.b32.xlu0 %v466, 96
    %v509 = vpop.permute.xlu0 %508
    %510 = vrot.lane.b32.xlu0 %v467, 96
    %v511 = vpop.permute.xlu0 %510
    %512 = vrot.lane.b32.xlu0 %v468, 96
    %v513 = vpop.permute.xlu0 %512
    %514 = vrot.lane.b32.xlu0 %v469, 96
    %v515 = vpop.permute.xlu0 %514
    %516 = vrot.lane.b32.xlu0 %v470, 96
    %v517 = vpop.permute.xlu0 %516
    %518 = vrot.lane.b32.xlu0 %v471, 96
    %v519 = vpop.permute.xlu0 %518
    %vm536 = vcmask 1044224
    %537 = vst.msk [vmem:[#allocation3] sm:$0xf] %vm536, %v489
    %538 = vst.msk [vmem:[#allocation3 + $0xc] sm:$0xf] %vm536, %v491
    %539 = vst.msk [vmem:[#allocation3 + $0x18] sm:$0xf] %vm536, %v493
    %540 = vst.msk [vmem:[#allocation3 + $0x24] sm:$0xf] %vm536, %v495
    %541 = vst.msk [vmem:[#allocation3 + $0x30] sm:$0xf] %vm536, %v497
    %542 = vst.msk [vmem:[#allocation3 + $0x3c] sm:$0xf] %vm536, %v499
    %543 = vst.msk [vmem:[#allocation3 + $0x48] sm:$0xf] %vm536, %v501
    %544 = vst.msk [vmem:[#allocation3 + $0x54] sm:$0xf] %vm536, %v503
    %545 = vst.msk [vmem:[#allocation3 + $0x60] sm:$0xf] %vm536, %v505
    %546 = vst.msk [vmem:[#allocation3 + $0x6c] sm:$0xf] %vm536, %v507
    %547 = vst.msk [vmem:[#allocation3 + $0x78] sm:$0xf] %vm536, %v509
    %548 = vst.msk [vmem:[#allocation3 + $0x84] sm:$0xf] %vm536, %v511
    %549 = vst.msk [vmem:[#allocation3 + $0x90] sm:$0xf] %vm536, %v513
    %550 = vst.msk [vmem:[#allocation3 + $0x9c] sm:$0xf] %vm536, %v515
    %551 = vst.msk [vmem:[#allocation3 + $0xa8] sm:$0xf] %vm536, %v517
    %552 = vst.msk [vmem:[#allocation3 + $0xb4] sm:$0xf] %vm536, %v519
    %v553 = vld [vmem:[%s148 + $0x1] sm:$0xff]
    %v554 = vld [vmem:[%s148 + $0x11] sm:$0xff]
    %v555 = vld [vmem:[%s148 + $0x21] sm:$0xff]
    %v556 = vld [vmem:[%s148 + $0x31] sm:$0xff]
    %v557 = vld [vmem:[%s148 + $0x41] sm:$0xff]
    %v558 = vld [vmem:[%s148 + $0x51] sm:$0xff]
    %v559 = vld [vmem:[%s148 + $0x61] sm:$0xff]
    %v560 = vld [vmem:[%s148 + $0x71] sm:$0xff]
    %v561 = vld [vmem:[%s148 + $0xa1] sm:$0xff]
    %v562 = vld [vmem:[%s148 + $0xb1] sm:$0xff]
    %v563 = vld [vmem:[%s148 + $0xc1] sm:$0xff]
    %v564 = vld [vmem:[%s148 + $0xd1] sm:$0xff]
    %v565 = vld [vmem:[%s148 + $0xe1] sm:$0xff]
    %v566 = vld [vmem:[%s148 + $0xf1] sm:$0xff]
    %v567 = vld [vmem:[%s148 + $0x101] sm:$0xff]
    %v568 = vld [vmem:[%s148 + $0x111] sm:$0xff]
    %v569 = vpack.c.bf16 %v553, %v553
    %v570 = vpack.c.bf16 %v554, %v554
    %v571 = vpack.c.bf16 %v555, %v555
    %v572 = vpack.c.bf16 %v556, %v556
    %v573 = vpack.c.bf16 %v557, %v557
    %v574 = vpack.c.bf16 %v558, %v558
    %v575 = vpack.c.bf16 %v559, %v559
    %v576 = vpack.c.bf16 %v560, %v560
    %v577 = vpack.c.bf16 %v561, %v561
    %v578 = vpack.c.bf16 %v562, %v562
    %v579 = vpack.c.bf16 %v563, %v563
    %v580 = vpack.c.bf16 %v564, %v564
    %v581 = vpack.c.bf16 %v565, %v565
    %v582 = vpack.c.bf16 %v566, %v566
    %v583 = vpack.c.bf16 %v567, %v567
    %v584 = vpack.c.bf16 %v568, %v568
    %585 = vst.msk [vmem:[#allocation3 + $0x4] sm:$0xf] %vm197, %v569
    %586 = vst.msk [vmem:[#allocation3 + $0x10] sm:$0xf] %vm197, %v570
    %587 = vst.msk [vmem:[#allocation3 + $0x1c] sm:$0xf] %vm197, %v571
    %588 = vst.msk [vmem:[#allocation3 + $0x28] sm:$0xf] %vm197, %v572
    %589 = vst.msk [vmem:[#allocation3 + $0x34] sm:$0xf] %vm197, %v573
    %590 = vst.msk [vmem:[#allocation3 + $0x40] sm:$0xf] %vm197, %v574
    %591 = vst.msk [vmem:[#allocation3 + $0x4c] sm:$0xf] %vm197, %v575
    %592 = vst.msk [vmem:[#allocation3 + $0x58] sm:$0xf] %vm197, %v576
    %593 = vst.msk [vmem:[#allocation3 + $0x64] sm:$0xf] %vm197, %v577
    %594 = vst.msk [vmem:[#allocation3 + $0x70] sm:$0xf] %vm197, %v578
    %595 = vst.msk [vmem:[#allocation3 + $0x7c] sm:$0xf] %vm197, %v579
    %596 = vst.msk [vmem:[#allocation3 + $0x88] sm:$0xf] %vm197, %v580
    %597 = vst.msk [vmem:[#allocation3 + $0x94] sm:$0xf] %vm197, %v581
    %598 = vst.msk [vmem:[#allocation3 + $0xa0] sm:$0xf] %vm197, %v582
    %599 = vst.msk [vmem:[#allocation3 + $0xac] sm:$0xf] %vm197, %v583
    %600 = vst.msk [vmem:[#allocation3 + $0xb8] sm:$0xf] %vm197, %v584
    %v601 = vld [vmem:[%s148 + $0x2] sm:$0xff]
    %v602 = vld [vmem:[%s148 + $0x12] sm:$0xff]
    %v603 = vld [vmem:[%s148 + $0x22] sm:$0xff]
    %v604 = vld [vmem:[%s148 + $0x32] sm:$0xff]
    %v605 = vld [vmem:[%s148 + $0x42] sm:$0xff]
    %v606 = vld [vmem:[%s148 + $0x52] sm:$0xff]
    %v607 = vld [vmem:[%s148 + $0x62] sm:$0xff]
    %v608 = vld [vmem:[%s148 + $0x72] sm:$0xff]
    %v609 = vld [vmem:[%s148 + $0xa2] sm:$0xff]
    %v610 = vld [vmem:[%s148 + $0xb2] sm:$0xff]
    %v611 = vld [vmem:[%s148 + $0xc2] sm:$0xff]
    %v612 = vld [vmem:[%s148 + $0xd2] sm:$0xff]
    %v613 = vld [vmem:[%s148 + $0xe2] sm:$0xff]
    %v614 = vld [vmem:[%s148 + $0xf2] sm:$0xff]
    %v615 = vld [vmem:[%s148 + $0x102] sm:$0xff]
    %v616 = vld [vmem:[%s148 + $0x112] sm:$0xff]
    %v617 = vpack.c.bf16 %v601, %v601
    %v618 = vpack.c.bf16 %v602, %v602
    %v619 = vpack.c.bf16 %v603, %v603
    %v620 = vpack.c.bf16 %v604, %v604
    %v621 = vpack.c.bf16 %v605, %v605
    %v622 = vpack.c.bf16 %v606, %v606
    %v623 = vpack.c.bf16 %v607, %v607
    %v624 = vpack.c.bf16 %v608, %v608
    %v625 = vpack.c.bf16 %v609, %v609
    %v626 = vpack.c.bf16 %v610, %v610
    %v627 = vpack.c.bf16 %v611, %v611
    %v628 = vpack.c.bf16 %v612, %v612
    %v629 = vpack.c.bf16 %v613, %v613
    %v630 = vpack.c.bf16 %v614, %v614
    %v631 = vpack.c.bf16 %v615, %v615
    %v632 = vpack.c.bf16 %v616, %v616
    %649 = vrot.lane.b32.xlu0 %v617, 32
    %v650 = vpop.permute.xlu0 %649
    %651 = vrot.lane.b32.xlu0 %v618, 32
    %v652 = vpop.permute.xlu0 %651
    %653 = vrot.lane.b32.xlu0 %v619, 32
    %v654 = vpop.permute.xlu0 %653
    %655 = vrot.lane.b32.xlu0 %v620, 32
    %v656 = vpop.permute.xlu0 %655
    %657 = vrot.lane.b32.xlu0 %v621, 32
    %v658 = vpop.permute.xlu0 %657
    %659 = vrot.lane.b32.xlu0 %v622, 32
    %v660 = vpop.permute.xlu0 %659
    %661 = vrot.lane.b32.xlu0 %v623, 32
    %v662 = vpop.permute.xlu0 %661
    %663 = vrot.lane.b32.xlu0 %v624, 32
    %v664 = vpop.permute.xlu0 %663
    %665 = vrot.lane.b32.xlu0 %v625, 32
    %v666 = vpop.permute.xlu0 %665
    %667 = vrot.lane.b32.xlu0 %v626, 32
    %v668 = vpop.permute.xlu0 %667
    %669 = vrot.lane.b32.xlu0 %v627, 32
    %v670 = vpop.permute.xlu0 %669
    %671 = vrot.lane.b32.xlu0 %v628, 32
    %v672 = vpop.permute.xlu0 %671
    %673 = vrot.lane.b32.xlu0 %v629, 32
    %v674 = vpop.permute.xlu0 %673
    %675 = vrot.lane.b32.xlu0 %v630, 32
    %v676 = vpop.permute.xlu0 %675
    %677 = vrot.lane.b32.xlu0 %v631, 32
    %v678 = vpop.permute.xlu0 %677
    %679 = vrot.lane.b32.xlu0 %v632, 32
    %v680 = vpop.permute.xlu0 %679
    %697 = vst.msk [vmem:[#allocation3 + $0x4] sm:$0xf] %vm310, %v650
    %698 = vst.msk [vmem:[#allocation3 + $0x10] sm:$0xf] %vm310, %v652
    %699 = vst.msk [vmem:[#allocation3 + $0x1c] sm:$0xf] %vm310, %v654
    %700 = vst.msk [vmem:[#allocation3 + $0x28] sm:$0xf] %vm310, %v656
    %701 = vst.msk [vmem:[#allocation3 + $0x34] sm:$0xf] %vm310, %v658
    %702 = vst.msk [vmem:[#allocation3 + $0x40] sm:$0xf] %vm310, %v660
    %703 = vst.msk [vmem:[#allocation3 + $0x4c] sm:$0xf] %vm310, %v662
    %704 = vst.msk [vmem:[#allocation3 + $0x58] sm:$0xf] %vm310, %v664
    %705 = vst.msk [vmem:[#allocation3 + $0x64] sm:$0xf] %vm310, %v666
    %706 = vst.msk [vmem:[#allocation3 + $0x70] sm:$0xf] %vm310, %v668
    %707 = vst.msk [vmem:[#allocation3 + $0x7c] sm:$0xf] %vm310, %v670
    %708 = vst.msk [vmem:[#allocation3 + $0x88] sm:$0xf] %vm310, %v672
    %709 = vst.msk [vmem:[#allocation3 + $0x94] sm:$0xf] %vm310, %v674
    %710 = vst.msk [vmem:[#allocation3 + $0xa0] sm:$0xf] %vm310, %v676
    %711 = vst.msk [vmem:[#allocation3 + $0xac] sm:$0xf] %vm310, %v678
    %712 = vst.msk [vmem:[#allocation3 + $0xb8] sm:$0xf] %vm310, %v680
    %s713 = scalar_lea.vmem [#allocation2], 32
    %v714 = vld [vmem:[%s713] sm:$0xff]
    %v715 = vld [vmem:[%s713 + $0x10] sm:$0xff]
    %v716 = vld [vmem:[%s713 + $0x20] sm:$0xff]
    %v717 = vld [vmem:[%s713 + $0x30] sm:$0xff]
    %v718 = vld [vmem:[%s713 + $0x40] sm:$0xff]
    %v719 = vld [vmem:[%s713 + $0x50] sm:$0xff]
    %v720 = vld [vmem:[%s713 + $0x60] sm:$0xff]
    %v721 = vld [vmem:[%s713 + $0x70] sm:$0xff]
    %v722 = vld [vmem:[%s713 + $0xa0] sm:$0xff]
    %v723 = vld [vmem:[%s713 + $0xb0] sm:$0xff]
    %v724 = vld [vmem:[%s713 + $0xc0] sm:$0xff]
    %v725 = vld [vmem:[%s713 + $0xd0] sm:$0xff]
    %v726 = vld [vmem:[%s713 + $0xe0] sm:$0xff]
    %v727 = vld [vmem:[%s713 + $0xf0] sm:$0xff]
    %v728 = vld [vmem:[%s713 + $0x100] sm:$0xff]
    %v729 = vld [vmem:[%s713 + $0x110] sm:$0xff]
    %v730 = vpack.c.bf16 %v714, %v714
    %v731 = vpack.c.bf16 %v715, %v715
    %v732 = vpack.c.bf16 %v716, %v716
    %v733 = vpack.c.bf16 %v717, %v717
    %v734 = vpack.c.bf16 %v718, %v718
    %v735 = vpack.c.bf16 %v719, %v719
    %v736 = vpack.c.bf16 %v720, %v720
    %v737 = vpack.c.bf16 %v721, %v721
    %v738 = vpack.c.bf16 %v722, %v722
    %v739 = vpack.c.bf16 %v723, %v723
    %v740 = vpack.c.bf16 %v724, %v724
    %v741 = vpack.c.bf16 %v725, %v725
    %v742 = vpack.c.bf16 %v726, %v726
    %v743 = vpack.c.bf16 %v727, %v727
    %v744 = vpack.c.bf16 %v728, %v728
    %v745 = vpack.c.bf16 %v729, %v729
    %762 = vrot.lane.b32.xlu0 %v730, 64
    %v763 = vpop.permute.xlu0 %762
    %764 = vrot.lane.b32.xlu0 %v731, 64
    %v765 = vpop.permute.xlu0 %764
    %766 = vrot.lane.b32.xlu0 %v732, 64
    %v767 = vpop.permute.xlu0 %766
    %768 = vrot.lane.b32.xlu0 %v733, 64
    %v769 = vpop.permute.xlu0 %768
    %770 = vrot.lane.b32.xlu0 %v734, 64
    %v771 = vpop.permute.xlu0 %770
    %772 = vrot.lane.b32.xlu0 %v735, 64
    %v773 = vpop.permute.xlu0 %772
    %774 = vrot.lane.b32.xlu0 %v736, 64
    %v775 = vpop.permute.xlu0 %774
    %776 = vrot.lane.b32.xlu0 %v737, 64
    %v777 = vpop.permute.xlu0 %776
    %778 = vrot.lane.b32.xlu0 %v738, 64
    %v779 = vpop.permute.xlu0 %778
    %780 = vrot.lane.b32.xlu0 %v739, 64
    %v781 = vpop.permute.xlu0 %780
    %782 = vrot.lane.b32.xlu0 %v740, 64
    %v783 = vpop.permute.xlu0 %782
    %784 = vrot.lane.b32.xlu0 %v741, 64
    %v785 = vpop.permute.xlu0 %784
    %786 = vrot.lane.b32.xlu0 %v742, 64
    %v787 = vpop.permute.xlu0 %786
    %788 = vrot.lane.b32.xlu0 %v743, 64
    %v789 = vpop.permute.xlu0 %788
    %790 = vrot.lane.b32.xlu0 %v744, 64
    %v791 = vpop.permute.xlu0 %790
    %792 = vrot.lane.b32.xlu0 %v745, 64
    %v793 = vpop.permute.xlu0 %792
    %810 = vst.msk [vmem:[#allocation3 + $0x4] sm:$0xf] %vm423, %v763
    %811 = vst.msk [vmem:[#allocation3 + $0x10] sm:$0xf] %vm423, %v765
    %812 = vst.msk [vmem:[#allocation3 + $0x1c] sm:$0xf] %vm423, %v767
    %813 = vst.msk [vmem:[#allocation3 + $0x28] sm:$0xf] %vm423, %v769
    %814 = vst.msk [vmem:[#allocation3 + $0x34] sm:$0xf] %vm423, %v771
    %815 = vst.msk [vmem:[#allocation3 + $0x40] sm:$0xf] %vm423, %v773
    %816 = vst.msk [vmem:[#allocation3 + $0x4c] sm:$0xf] %vm423, %v775
    %817 = vst.msk [vmem:[#allocation3 + $0x58] sm:$0xf] %vm423, %v777
    %818 = vst.msk [vmem:[#allocation3 + $0x64] sm:$0xf] %vm423, %v779
    %819 = vst.msk [vmem:[#allocation3 + $0x70] sm:$0xf] %vm423, %v781
    %820 = vst.msk [vmem:[#allocation3 + $0x7c] sm:$0xf] %vm423, %v783
    %821 = vst.msk [vmem:[#allocation3 + $0x88] sm:$0xf] %vm423, %v785
    %822 = vst.msk [vmem:[#allocation3 + $0x94] sm:$0xf] %vm423, %v787
    %823 = vst.msk [vmem:[#allocation3 + $0xa0] sm:$0xf] %vm423, %v789
    %824 = vst.msk [vmem:[#allocation3 + $0xac] sm:$0xf] %vm423, %v791
    %825 = vst.msk [vmem:[#allocation3 + $0xb8] sm:$0xf] %vm423, %v793
    %v826 = vld [vmem:[%s713 + $0x1] sm:$0xff]
    %v827 = vld [vmem:[%s713 + $0x11] sm:$0xff]
    %v828 = vld [vmem:[%s713 + $0x21] sm:$0xff]
    %v829 = vld [vmem:[%s713 + $0x31] sm:$0xff]
    %v830 = vld [vmem:[%s713 + $0x41] sm:$0xff]
    %v831 = vld [vmem:[%s713 + $0x51] sm:$0xff]
    %v832 = vld [vmem:[%s713 + $0x61] sm:$0xff]
    %v833 = vld [vmem:[%s713 + $0x71] sm:$0xff]
    %v834 = vld [vmem:[%s713 + $0xa1] sm:$0xff]
    %v835 = vld [vmem:[%s713 + $0xb1] sm:$0xff]
    %v836 = vld [vmem:[%s713 + $0xc1] sm:$0xff]
    %v837 = vld [vmem:[%s713 + $0xd1] sm:$0xff]
    %v838 = vld [vmem:[%s713 + $0xe1] sm:$0xff]
    %v839 = vld [vmem:[%s713 + $0xf1] sm:$0xff]
    %v840 = vld [vmem:[%s713 + $0x101] sm:$0xff]
    %v841 = vld [vmem:[%s713 + $0x111] sm:$0xff]
    %v842 = vpack.c.bf16 %v826, %v826
    %v843 = vpack.c.bf16 %v827, %v827
    %v844 = vpack.c.bf16 %v828, %v828
    %v845 = vpack.c.bf16 %v829, %v829
    %v846 = vpack.c.bf16 %v830, %v830
    %v847 = vpack.c.bf16 %v831, %v831
    %v848 = vpack.c.bf16 %v832, %v832
    %v849 = vpack.c.bf16 %v833, %v833
    %v850 = vpack.c.bf16 %v834, %v834
    %v851 = vpack.c.bf16 %v835, %v835
    %v852 = vpack.c.bf16 %v836, %v836
    %v853 = vpack.c.bf16 %v837, %v837
    %v854 = vpack.c.bf16 %v838, %v838
    %v855 = vpack.c.bf16 %v839, %v839
    %v856 = vpack.c.bf16 %v840, %v840
    %v857 = vpack.c.bf16 %v841, %v841
    %874 = vrot.lane.b32.xlu0 %v842, 96
    %v875 = vpop.permute.xlu0 %874
    %876 = vrot.lane.b32.xlu0 %v843, 96
    %v877 = vpop.permute.xlu0 %876
    %878 = vrot.lane.b32.xlu0 %v844, 96
    %v879 = vpop.permute.xlu0 %878
    %880 = vrot.lane.b32.xlu0 %v845, 96
    %v881 = vpop.permute.xlu0 %880
    %882 = vrot.lane.b32.xlu0 %v846, 96
    %v883 = vpop.permute.xlu0 %882
    %884 = vrot.lane.b32.xlu0 %v847, 96
    %v885 = vpop.permute.xlu0 %884
    %886 = vrot.lane.b32.xlu0 %v848, 96
    %v887 = vpop.permute.xlu0 %886
    %888 = vrot.lane.b32.xlu0 %v849, 96
    %v889 = vpop.permute.xlu0 %888
    %890 = vrot.lane.b32.xlu0 %v850, 96
    %v891 = vpop.permute.xlu0 %890
    %892 = vrot.lane.b32.xlu0 %v851, 96
    %v893 = vpop.permute.xlu0 %892
    %894 = vrot.lane.b32.xlu0 %v852, 96
    %v895 = vpop.permute.xlu0 %894
    %896 = vrot.lane.b32.xlu0 %v853, 96
    %v897 = vpop.permute.xlu0 %896
    %898 = vrot.lane.b32.xlu0 %v854, 96
    %v899 = vpop.permute.xlu0 %898
    %900 = vrot.lane.b32.xlu0 %v855, 96
    %v901 = vpop.permute.xlu0 %900
    %902 = vrot.lane.b32.xlu0 %v856, 96
    %v903 = vpop.permute.xlu0 %902
    %904 = vrot.lane.b32.xlu0 %v857, 96
    %v905 = vpop.permute.xlu0 %904
    %922 = vst.msk [vmem:[#allocation3 + $0x4] sm:$0xf] %vm536, %v875
    %923 = vst.msk [vmem:[#allocation3 + $0x10] sm:$0xf] %vm536, %v877
    %924 = vst.msk [vmem:[#allocation3 + $0x1c] sm:$0xf] %vm536, %v879
    %925 = vst.msk [vmem:[#allocation3 + $0x28] sm:$0xf] %vm536, %v881
    %926 = vst.msk [vmem:[#allocation3 + $0x34] sm:$0xf] %vm536, %v883
    %927 = vst.msk [vmem:[#allocation3 + $0x40] sm:$0xf] %vm536, %v885
    %928 = vst.msk [vmem:[#allocation3 + $0x4c] sm:$0xf] %vm536, %v887
    %929 = vst.msk [vmem:[#allocation3 + $0x58] sm:$0xf] %vm536, %v889
    %930 = vst.msk [vmem:[#allocation3 + $0x64] sm:$0xf] %vm536, %v891
    %931 = vst.msk [vmem:[#allocation3 + $0x70] sm:$0xf] %vm536, %v893
    %932 = vst.msk [vmem:[#allocation3 + $0x7c] sm:$0xf] %vm536, %v895
    %933 = vst.msk [vmem:[#allocation3 + $0x88] sm:$0xf] %vm536, %v897
    %934 = vst.msk [vmem:[#allocation3 + $0x94] sm:$0xf] %vm536, %v899
    %935 = vst.msk [vmem:[#allocation3 + $0xa0] sm:$0xf] %vm536, %v901
    %936 = vst.msk [vmem:[#allocation3 + $0xac] sm:$0xf] %vm536, %v903
    %937 = vst.msk [vmem:[#allocation3 + $0xb8] sm:$0xf] %vm536, %v905
    %v938 = vld [vmem:[%s713 + $0x2] sm:$0xff]
    %v939 = vld [vmem:[%s713 + $0x12] sm:$0xff]
    %v940 = vld [vmem:[%s713 + $0x22] sm:$0xff]
    %v941 = vld [vmem:[%s713 + $0x32] sm:$0xff]
    %v942 = vld [vmem:[%s713 + $0x42] sm:$0xff]
    %v943 = vld [vmem:[%s713 + $0x52] sm:$0xff]
    %v944 = vld [vmem:[%s713 + $0x62] sm:$0xff]
    %v945 = vld [vmem:[%s713 + $0x72] sm:$0xff]
    %v946 = vld [vmem:[%s713 + $0xa2] sm:$0xff]
    %v947 = vld [vmem:[%s713 + $0xb2] sm:$0xff]
    %v948 = vld [vmem:[%s713 + $0xc2] sm:$0xff]
    %v949 = vld [vmem:[%s713 + $0xd2] sm:$0xff]
    %v950 = vld [vmem:[%s713 + $0xe2] sm:$0xff]
    %v951 = vld [vmem:[%s713 + $0xf2] sm:$0xff]
    %v952 = vld [vmem:[%s713 + $0x102] sm:$0xff]
    %v953 = vld [vmem:[%s713 + $0x112] sm:$0xff]
    %v954 = vpack.c.bf16 %v938, %v938
    %v955 = vpack.c.bf16 %v939, %v939
    %v956 = vpack.c.bf16 %v940, %v940
    %v957 = vpack.c.bf16 %v941, %v941
    %v958 = vpack.c.bf16 %v942, %v942
    %v959 = vpack.c.bf16 %v943, %v943
    %v960 = vpack.c.bf16 %v944, %v944
    %v961 = vpack.c.bf16 %v945, %v945
    %v962 = vpack.c.bf16 %v946, %v946
    %v963 = vpack.c.bf16 %v947, %v947
    %v964 = vpack.c.bf16 %v948, %v948
    %v965 = vpack.c.bf16 %v949, %v949
    %v966 = vpack.c.bf16 %v950, %v950
    %v967 = vpack.c.bf16 %v951, %v951
    %v968 = vpack.c.bf16 %v952, %v952
    %v969 = vpack.c.bf16 %v953, %v953
    %970 = vst.msk [vmem:[#allocation3 + $0x8] sm:$0xf] %vm197, %v954
    %971 = vst.msk [vmem:[#allocation3 + $0x14] sm:$0xf] %vm197, %v955
    %972 = vst.msk [vmem:[#allocation3 + $0x20] sm:$0xf] %vm197, %v956
    %973 = vst.msk [vmem:[#allocation3 + $0x2c] sm:$0xf] %vm197, %v957
    %974 = vst.msk [vmem:[#allocation3 + $0x38] sm:$0xf] %vm197, %v958
    %975 = vst.msk [vmem:[#allocation3 + $0x44] sm:$0xf] %vm197, %v959
    %976 = vst.msk [vmem:[#allocation3 + $0x50] sm:$0xf] %vm197, %v960
    %977 = vst.msk [vmem:[#allocation3 + $0x5c] sm:$0xf] %vm197, %v961
    %978 = vst.msk [vmem:[#allocation3 + $0x68] sm:$0xf] %vm197, %v962
    %979 = vst.msk [vmem:[#allocation3 + $0x74] sm:$0xf] %vm197, %v963
    %980 = vst.msk [vmem:[#allocation3 + $0x80] sm:$0xf] %vm197, %v964
    %981 = vst.msk [vmem:[#allocation3 + $0x8c] sm:$0xf] %vm197, %v965
    %982 = vst.msk [vmem:[#allocation3 + $0x98] sm:$0xf] %vm197, %v966
    %983 = vst.msk [vmem:[#allocation3 + $0xa4] sm:$0xf] %vm197, %v967
    %984 = vst.msk [vmem:[#allocation3 + $0xb0] sm:$0xf] %vm197, %v968
    %985 = vst.msk [vmem:[#allocation3 + $0xbc] sm:$0xf] %vm197, %v969
    %v986 = vld [vmem:[#allocation3] sm:$0xff]
    %v987 = vld [vmem:[#allocation3 + $0x8] sm:$0xf]
    %v988 = vld [vmem:[#allocation3 + $0xc] sm:$0xff]
    %v989 = vld [vmem:[#allocation3 + $0x14] sm:$0xf]
    %v990 = vld [vmem:[#allocation3 + $0x18] sm:$0xff]
    %v991 = vld [vmem:[#allocation3 + $0x20] sm:$0xf]
    %v992 = vld [vmem:[#allocation3 + $0x24] sm:$0xff]
    %v993 = vld [vmem:[#allocation3 + $0x2c] sm:$0xf]
    %v994 = vld [vmem:[#allocation3 + $0x30] sm:$0xff]
    %v995 = vld [vmem:[#allocation3 + $0x38] sm:$0xf]
    %v996 = vld [vmem:[#allocation3 + $0x3c] sm:$0xff]
    %v997 = vld [vmem:[#allocation3 + $0x44] sm:$0xf]
    %v998 = vld [vmem:[#allocation3 + $0x48] sm:$0xff]
    %v999 = vld [vmem:[#allocation3 + $0x50] sm:$0xf]
    %v1000 = vld [vmem:[#allocation3 + $0x54] sm:$0xff]
    %v1001 = vld [vmem:[#allocation3 + $0x5c] sm:$0xf]
    %v1002 = vld [vmem:[#allocation3 + $0x60] sm:$0xff]
    %v1003 = vld [vmem:[#allocation3 + $0x68] sm:$0xf]
    %v1004 = vld [vmem:[#allocation3 + $0x6c] sm:$0xff]
    %v1005 = vld [vmem:[#allocation3 + $0x74] sm:$0xf]
    %v1006 = vld [vmem:[#allocation3 + $0x78] sm:$0xff]
    %v1007 = vld [vmem:[#allocation3 + $0x80] sm:$0xf]
    %v1008 = vld [vmem:[#allocation3 + $0x84] sm:$0xff]
    %v1009 = vld [vmem:[#allocation3 + $0x8c] sm:$0xf]
    %v1010 = vld [vmem:[#allocation3 + $0x90] sm:$0xff]
    %v1011 = vld [vmem:[#allocation3 + $0x98] sm:$0xf]
    %v1012 = vld [vmem:[#allocation3 + $0x9c] sm:$0xff]
    %v1013 = vld [vmem:[#allocation3 + $0xa4] sm:$0xf]
    %v1014 = vld [vmem:[#allocation3 + $0xa8] sm:$0xff]
    %v1015 = vld [vmem:[#allocation3 + $0xb0] sm:$0xf]
    %v1016 = vld [vmem:[#allocation3 + $0xb4] sm:$0xff]
    %v1017 = vld [vmem:[#allocation3 + $0xbc] sm:$0xf]
    %v1018 = vld [vmem:[#allocation6] sm:$0xf]
    %v1019 = vld [vmem:[#allocation6 + $0x4] sm:$0xf]
    %v1020 = vld [vmem:[#allocation6 + $0x8] sm:$0xf]
    %v1021 = vld [vmem:[#allocation6 + $0xc] sm:$0xf]
    %v1022 = vld [vmem:[#allocation6 + $0x10] sm:$0xf]
    %v1023 = vld [vmem:[#allocation6 + $0x14] sm:$0xf]
    %v1024 = vld [vmem:[#allocation6 + $0x18] sm:$0xf]
    %v1025 = vld [vmem:[#allocation6 + $0x1c] sm:$0xf]
    %v1026 = vld [vmem:[#allocation6 + $0x20] sm:$0xf]
    %v1027 = vld [vmem:[#allocation6 + $0x24] sm:$0xf]
    %v1028 = vld [vmem:[#allocation6 + $0x28] sm:$0xf]
    %v1029 = vld [vmem:[#allocation6 + $0x2c] sm:$0xf]
    %v1030 = vld [vmem:[#allocation6 + $0x30] sm:$0xf]
    %v1031 = vld [vmem:[#allocation6 + $0x34] sm:$0xf]
    %v1032 = vld [vmem:[#allocation6 + $0x38] sm:$0xf]
    %v1033 = vld [vmem:[#allocation6 + $0x3c] sm:$0xf]
    %v1034 = vld [vmem:[#allocation6 + $0x40] sm:$0xf]
    %v1035 = vld [vmem:[#allocation6 + $0x44] sm:$0xf]
    %v1036 = vld [vmem:[#allocation6 + $0x48] sm:$0xf]
    %v1037 = vld [vmem:[#allocation6 + $0x4c] sm:$0xf]
    %v1038 = vld [vmem:[#allocation6 + $0x50] sm:$0xf]
    %v1039 = vld [vmem:[#allocation6 + $0x54] sm:$0xf]
    %v1040 = vld [vmem:[#allocation6 + $0x58] sm:$0xf]
    %v1041 = vld [vmem:[#allocation6 + $0x5c] sm:$0xf]
    %v1042 = vld [vmem:[#allocation6 + $0x60] sm:$0xf]
    %v1043 = vld [vmem:[#allocation6 + $0x64] sm:$0xf]
    %v1044 = vld [vmem:[#allocation6 + $0x68] sm:$0xf]
    %v1045 = vld [vmem:[#allocation6 + $0x6c] sm:$0xf]
    %v1046 = vld [vmem:[#allocation6 + $0x70] sm:$0xf]
    %v1047 = vld [vmem:[#allocation6 + $0x74] sm:$0xf]
    %v1048 = vld [vmem:[#allocation6 + $0x78] sm:$0xf]
    %v1049 = vld [vmem:[#allocation6 + $0x7c] sm:$0xf]
    %v1050 = vld [vmem:[#allocation6 + $0x80] sm:$0xf]
    %v1051 = vld [vmem:[#allocation6 + $0x84] sm:$0xf]
    %v1052 = vld [vmem:[#allocation6 + $0x88] sm:$0xf]
    %v1053 = vld [vmem:[#allocation6 + $0x8c] sm:$0xf]
    %v1054 = vld [vmem:[%s2] sm:$0x1]
    %v1056 = vperm.slane %v1054, 0
    %v1090 = vunpack.c.l.b16 %v986
    %v1091 = vunpack.c.h.b16 %v986
    %v1092 = vunpack.c.l.b16 %v987
    %v1093 = vunpack.c.l.b16 %v988
    %v1094 = vunpack.c.h.b16 %v988
    %v1095 = vunpack.c.l.b16 %v989
    %v1096 = vunpack.c.l.b16 %v990
    %v1097 = vunpack.c.h.b16 %v990
    %v1098 = vunpack.c.l.b16 %v991
    %v1099 = vunpack.c.l.b16 %v992
    %v1100 = vunpack.c.h.b16 %v992
    %v1101 = vunpack.c.l.b16 %v993
    %v1102 = vunpack.c.l.b16 %v994
    %v1103 = vunpack.c.h.b16 %v994
    %v1104 = vunpack.c.l.b16 %v995
    %v1105 = vunpack.c.l.b16 %v996
    %v1106 = vunpack.c.h.b16 %v996
    %v1107 = vunpack.c.l.b16 %v997
    %v1108 = vunpack.c.l.b16 %v998
    %v1109 = vunpack.c.h.b16 %v998
    %v1110 = vunpack.c.l.b16 %v999
    %v1111 = vunpack.c.l.b16 %v1000
    %v1112 = vunpack.c.h.b16 %v1000
    %v1113 = vunpack.c.l.b16 %v1001
    %v1114 = vunpack.c.l.b16 %v1002
    %v1115 = vunpack.c.h.b16 %v1002
    %v1116 = vunpack.c.l.b16 %v1003
    %v1117 = vunpack.c.l.b16 %v1004
    %v1118 = vunpack.c.h.b16 %v1004
    %v1119 = vunpack.c.l.b16 %v1005
    %v1120 = vunpack.c.l.b16 %v1006
    %v1121 = vunpack.c.h.b16 %v1006
    %v1122 = vunpack.c.l.b16 %v1007
    %v1123 = vunpack.c.l.b16 %v1008
    %v1124 = vunpack.c.h.b16 %v1008
    %v1125 = vunpack.c.l.b16 %v1009
    %v1126 = vunpack.c.l.b16 %v1010
    %v1127 = vunpack.c.h.b16 %v1010
    %v1128 = vunpack.c.l.b16 %v1011
    %v1129 = vunpack.c.l.b16 %v1012
    %v1130 = vunpack.c.h.b16 %v1012
    %v1131 = vunpack.c.l.b16 %v1013
    %v1132 = vunpack.c.l.b16 %v1014
    %v1133 = vunpack.c.h.b16 %v1014
    %v1134 = vunpack.c.l.b16 %v1015
    %v1135 = vunpack.c.l.b16 %v1016
    %v1136 = vunpack.c.h.b16 %v1016
    %v1137 = vunpack.c.l.b16 %v1017
    %v1138 = vpack.c.b16 %v1093, %v1090
    %v1139 = vpack.c.b16 %v1094, %v1091
    %v1140 = vpack.c.b16 %v1095, %v1092
    %v1141 = vpack.c.b16 %v1099, %v1096
    %v1142 = vpack.c.b16 %v1100, %v1097
    %v1143 = vpack.c.b16 %v1101, %v1098
    %v1144 = vpack.c.b16 %v1105, %v1102
    %v1145 = vpack.c.b16 %v1106, %v1103
    %v1146 = vpack.c.b16 %v1107, %v1104
    %v1147 = vpack.c.b16 %v1111, %v1108
    %v1148 = vpack.c.b16 %v1112, %v1109
    %v1149 = vpack.c.b16 %v1113, %v1110
    %v1150 = vpack.c.b16 %v1117, %v1114
    %v1151 = vpack.c.b16 %v1118, %v1115
    %v1152 = vpack.c.b16 %v1119, %v1116
    %v1153 = vpack.c.b16 %v1123, %v1120
    %v1154 = vpack.c.b16 %v1124, %v1121
    %v1155 = vpack.c.b16 %v1125, %v1122
    %v1156 = vpack.c.b16 %v1129, %v1126
    %v1157 = vpack.c.b16 %v1130, %v1127
    %v1158 = vpack.c.b16 %v1131, %v1128
    %v1159 = vpack.c.b16 %v1135, %v1132
    %v1160 = vpack.c.b16 %v1136, %v1133
    %v1161 = vpack.c.b16 %v1137, %v1134
    %v1214 = vunpack.c.l.b16 %v1018
    %v1215 = vunpack.c.l.b16 %v1019
    %v1216 = vunpack.c.l.b16 %v1020
    %v1217 = vunpack.c.l.b16 %v1021
    %v1218 = vunpack.c.l.b16 %v1022
    %v1219 = vunpack.c.l.b16 %v1023
    %v1220 = vunpack.c.l.b16 %v1024
    %v1221 = vunpack.c.l.b16 %v1025
    %v1222 = vunpack.c.l.b16 %v1026
    %v1223 = vunpack.c.l.b16 %v1027
    %v1224 = vunpack.c.l.b16 %v1028
    %v1225 = vunpack.c.l.b16 %v1029
    %v1226 = vunpack.c.l.b16 %v1030
    %v1227 = vunpack.c.l.b16 %v1031
    %v1228 = vunpack.c.l.b16 %v1032
    %v1229 = vunpack.c.l.b16 %v1033
    %v1230 = vunpack.c.l.b16 %v1034
    %v1231 = vunpack.c.l.b16 %v1035
    %v1232 = vunpack.c.l.b16 %v1036
    %v1233 = vunpack.c.l.b16 %v1037
    %v1234 = vunpack.c.l.b16 %v1038
    %v1235 = vunpack.c.l.b16 %v1039
    %v1236 = vunpack.c.l.b16 %v1040
    %v1237 = vunpack.c.l.b16 %v1041
    %v1238 = vunpack.c.l.b16 %v1042
    %v1239 = vunpack.c.l.b16 %v1043
    %v1240 = vunpack.c.l.b16 %v1044
    %v1241 = vunpack.c.l.b16 %v1045
    %v1242 = vunpack.c.l.b16 %v1046
    %v1243 = vunpack.c.l.b16 %v1047
    %v1244 = vunpack.c.l.b16 %v1048
    %v1245 = vunpack.c.l.b16 %v1049
    %v1246 = vunpack.c.l.b16 %v1050
    %v1247 = vunpack.c.l.b16 %v1051
    %v1248 = vunpack.c.l.b16 %v1052
    %v1249 = vunpack.c.l.b16 %v1053
    %v1250 = vpack.c.b16 %v1215, %v1214
    %v1251 = vpack.c.b16 %v1217, %v1216
    %v1252 = vpack.c.b16 %v1219, %v1218
    %v1253 = vpack.c.b16 %v1221, %v1220
    %v1254 = vpack.c.b16 %v1223, %v1222
    %v1255 = vpack.c.b16 %v1225, %v1224
    %v1256 = vpack.c.b16 %v1227, %v1226
    %v1257 = vpack.c.b16 %v1229, %v1228
    %v1258 = vpack.c.b16 %v1231, %v1230
    %v1259 = vpack.c.b16 %v1233, %v1232
    %v1260 = vpack.c.b16 %v1235, %v1234
    %v1261 = vpack.c.b16 %v1237, %v1236
    %v1262 = vpack.c.b16 %v1239, %v1238
    %v1263 = vpack.c.b16 %v1241, %v1240
    %v1264 = vpack.c.b16 %v1243, %v1242
    %v1265 = vpack.c.b16 %v1245, %v1244
    %v1266 = vpack.c.b16 %v1247, %v1246
    %v1267 = vpack.c.b16 %v1249, %v1248
    %v1287 = vsel %vm90, %v1140, 0
    %v1290 = vsel %vm90, %v1143, 0
    %v1293 = vsel %vm90, %v1146, 0
    %v1296 = vsel %vm90, %v1149, 0
    %v1299 = vsel %vm90, %v1152, 0
    %v1302 = vsel %vm90, %v1155, 0
    %v1305 = vsel %vm90, %v1158, 0
    %v1308 = vsel %vm90, %v1161, 0
    %1310 = vmatpush.bf16.msra.mxu0 %v1257
    %1311 = vmatpush.bf16.msra.mxu0 %v1256
    %1312 = vmatpush.bf16.msra.mxu0 %v1255
    %1313 = vmatpush.bf16.msra.mxu0 %v1254
    %1314 = vmatpush.bf16.msra.mxu0 %v1253
    %1315 = vmatpush.bf16.msra.mxu0 %v1252
    %1316 = vmatpush.bf16.msra.mxu0 %v1251
    %1317 = vmatpush.bf16.msra.mxu0 %v1250
    %1318 = vmatmul.bf16.gmra.mxu0 %v1138
    %v1319 = vpop.f32.mrf.mxu0
    %v1320 = vadd.f32 %v1056, %v1319
    %v1321 = vpop.f32.mrf.mxu0
    %v1322 = vadd.f32 %v1056, %v1321
    %1323 = vmatmul.bf16.gmra.mxu0 %v1141
    %v1324 = vpop.f32.mrf.mxu0
    %v1325 = vadd.f32 %v1056, %v1324
    %v1326 = vpop.f32.mrf.mxu0
    %v1327 = vadd.f32 %v1056, %v1326
    %1328 = vmatmul.bf16.gmra.mxu0 %v1144
    %v1329 = vpop.f32.mrf.mxu0
    %v1330 = vadd.f32 %v1056, %v1329
    %v1331 = vpop.f32.mrf.mxu0
    %v1332 = vadd.f32 %v1056, %v1331
    %1333 = vmatmul.bf16.gmra.mxu0 %v1147
    %v1334 = vpop.f32.mrf.mxu0
    %v1335 = vadd.f32 %v1056, %v1334
    %v1336 = vpop.f32.mrf.mxu0
    %v1337 = vadd.f32 %v1056, %v1336
    %1338 = vmatmul.bf16.gmra.mxu0 %v1150
    %v1339 = vpop.f32.mrf.mxu0
    %v1340 = vadd.f32 %v1056, %v1339
    %v1341 = vpop.f32.mrf.mxu0
    %v1342 = vadd.f32 %v1056, %v1341
    %1343 = vmatmul.bf16.gmra.mxu0 %v1153
    %v1344 = vpop.f32.mrf.mxu0
    %v1345 = vadd.f32 %v1056, %v1344
    %v1346 = vpop.f32.mrf.mxu0
    %v1347 = vadd.f32 %v1056, %v1346
    %1348 = vmatmul.bf16.gmra.mxu0 %v1156
    %v1349 = vpop.f32.mrf.mxu0
    %v1350 = vadd.f32 %v1056, %v1349
    %v1351 = vpop.f32.mrf.mxu0
    %v1352 = vadd.f32 %v1056, %v1351
    %1353 = vmatmul.bf16.gmra.mxu0 %v1159
    %v1354 = vpop.f32.mrf.mxu0
    %v1355 = vadd.f32 %v1056, %v1354
    %v1356 = vpop.f32.mrf.mxu0
    %v1357 = vadd.f32 %v1056, %v1356
    %1358 = vdwg.mxu0
    %1359 = vmatpush.bf16.msra.mxu0 %v1265
    %1360 = vmatpush.bf16.msra.mxu0 %v1264
    %1361 = vmatpush.bf16.msra.mxu0 %v1263
    %1362 = vmatpush.bf16.msra.mxu0 %v1262
    %1363 = vmatpush.bf16.msra.mxu0 %v1261
    %1364 = vmatpush.bf16.msra.mxu0 %v1260
    %1365 = vmatpush.bf16.msra.mxu0 %v1259
    %1366 = vmatpush.bf16.msra.mxu0 %v1258
    %1367 = vmatmul.bf16.gmra.mxu0 %v1139
    %v1368 = vpop.f32.mrf.mxu0
    %v1369 = vadd.f32 %v1320, %v1368
    %v1370 = vpop.f32.mrf.mxu0
    %v1371 = vadd.f32 %v1322, %v1370
    %1372 = vmatmul.bf16.gmra.mxu0 %v1142
    %v1373 = vpop.f32.mrf.mxu0
    %v1374 = vadd.f32 %v1325, %v1373
    %v1375 = vpop.f32.mrf.mxu0
    %v1376 = vadd.f32 %v1327, %v1375
    %1377 = vmatmul.bf16.gmra.mxu0 %v1145
    %v1378 = vpop.f32.mrf.mxu0
    %v1379 = vadd.f32 %v1330, %v1378
    %v1380 = vpop.f32.mrf.mxu0
    %v1381 = vadd.f32 %v1332, %v1380
    %1382 = vmatmul.bf16.gmra.mxu0 %v1148
    %v1383 = vpop.f32.mrf.mxu0
    %v1384 = vadd.f32 %v1335, %v1383
    %v1385 = vpop.f32.mrf.mxu0
    %v1386 = vadd.f32 %v1337, %v1385
    %1387 = vmatmul.bf16.gmra.mxu0 %v1151
    %v1388 = vpop.f32.mrf.mxu0
    %v1389 = vadd.f32 %v1340, %v1388
    %v1390 = vpop.f32.mrf.mxu0
    %v1391 = vadd.f32 %v1342, %v1390
    %1392 = vmatmul.bf16.gmra.mxu0 %v1154
    %v1393 = vpop.f32.mrf.mxu0
    %v1394 = vadd.f32 %v1345, %v1393
    %v1395 = vpop.f32.mrf.mxu0
    %v1396 = vadd.f32 %v1347, %v1395
    %1397 = vmatmul.bf16.gmra.mxu0 %v1157
    %v1398 = vpop.f32.mrf.mxu0
    %v1399 = vadd.f32 %v1350, %v1398
    %v1400 = vpop.f32.mrf.mxu0
    %v1401 = vadd.f32 %v1352, %v1400
    %1402 = vmatmul.bf16.gmra.mxu0 %v1160
    %v1403 = vpop.f32.mrf.mxu0
    %v1404 = vadd.f32 %v1355, %v1403
    %v1405 = vpop.f32.mrf.mxu0
    %v1406 = vadd.f32 %v1357, %v1405
    %1407 = vdwg.mxu0
    %1408 = vmatpush.bf16.msra.mxu0 0
    %1409 = vmatpush.bf16.msra.mxu0 0
    %1410 = vmatpush.bf16.msra.mxu0 0
    %1411 = vmatpush.bf16.msra.mxu0 0
    %1412 = vmatpush.bf16.msra.mxu0 0
    %1413 = vmatpush.bf16.msra.mxu0 0
    %1414 = vmatpush.bf16.msra.mxu0 %v1267
    %1415 = vmatpush.bf16.msra.mxu0 %v1266
    %1416 = vmatmul.bf16.gmra.mxu0 %v1287
    %v1417 = vpop.f32.mrf.mxu0
    %v1418 = vadd.f32 %v1369, %v1417
    %v1419 = vpop.f32.mrf.mxu0
    %v1420 = vadd.f32 %v1371, %v1419
    %1421 = vmatmul.bf16.gmra.mxu0 %v1290
    %v1422 = vpop.f32.mrf.mxu0
    %v1423 = vadd.f32 %v1374, %v1422
    %v1424 = vpop.f32.mrf.mxu0
    %v1425 = vadd.f32 %v1376, %v1424
    %1426 = vmatmul.bf16.gmra.mxu0 %v1293
    %v1427 = vpop.f32.mrf.mxu0
    %v1428 = vadd.f32 %v1379, %v1427
    %v1429 = vpop.f32.mrf.mxu0
    %v1430 = vadd.f32 %v1381, %v1429
    %1431 = vmatmul.bf16.gmra.mxu0 %v1296
    %v1432 = vpop.f32.mrf.mxu0
    %v1433 = vadd.f32 %v1384, %v1432
    %v1434 = vpop.f32.mrf.mxu0
    %v1435 = vadd.f32 %v1386, %v1434
    %1436 = vmatmul.bf16.gmra.mxu0 %v1299
    %v1437 = vpop.f32.mrf.mxu0
    %v1438 = vadd.f32 %v1389, %v1437
    %v1439 = vpop.f32.mrf.mxu0
    %v1440 = vadd.f32 %v1391, %v1439
    %1441 = vmatmul.bf16.gmra.mxu0 %v1302
    %v1442 = vpop.f32.mrf.mxu0
    %v1443 = vadd.f32 %v1394, %v1442
    %v1444 = vpop.f32.mrf.mxu0
    %v1445 = vadd.f32 %v1396, %v1444
    %1446 = vmatmul.bf16.gmra.mxu0 %v1305
    %v1447 = vpop.f32.mrf.mxu0
    %v1448 = vadd.f32 %v1399, %v1447
    %v1449 = vpop.f32.mrf.mxu0
    %v1450 = vadd.f32 %v1401, %v1449
    %1451 = vmatmul.bf16.gmra.mxu0 %v1308
    %v1452 = vpop.f32.mrf.mxu0
    %v1453 = vadd.f32 %v1404, %v1452
    %v1454 = vpop.f32.mrf.mxu0
    %v1455 = vadd.f32 %v1406, %v1454
    %1456 = vdwg.mxu0
    %v1457 = vmax.f32 %v1418, 0.0
    %v1458 = vmax.f32 %v1420, 0.0
    %v1459 = vmax.f32 %v1423, 0.0
    %v1460 = vmax.f32 %v1425, 0.0
    %v1461 = vmax.f32 %v1428, 0.0
    %v1462 = vmax.f32 %v1430, 0.0
    %v1463 = vmax.f32 %v1433, 0.0
    %v1464 = vmax.f32 %v1435, 0.0
    %v1465 = vmax.f32 %v1438, 0.0
    %v1466 = vmax.f32 %v1440, 0.0
    %v1467 = vmax.f32 %v1443, 0.0
    %v1468 = vmax.f32 %v1445, 0.0
    %v1469 = vmax.f32 %v1448, 0.0
    %v1470 = vmax.f32 %v1450, 0.0
    %v1471 = vmax.f32 %v1453, 0.0
    %v1472 = vmax.f32 %v1455, 0.0
    %1473 = vst.msk [vmem:[%s148 + $0x1] sm:$0xff] %vm90, %v1457
    %1474 = vst.msk [vmem:[%s148 + $0x11] sm:$0xff] %vm90, %v1458
    %1475 = vst.msk [vmem:[%s148 + $0x21] sm:$0xff] %vm90, %v1459
    %1476 = vst.msk [vmem:[%s148 + $0x31] sm:$0xff] %vm90, %v1460
    %1477 = vst.msk [vmem:[%s148 + $0x41] sm:$0xff] %vm90, %v1461
    %1478 = vst.msk [vmem:[%s148 + $0x51] sm:$0xff] %vm90, %v1462
    %1479 = vst.msk [vmem:[%s148 + $0x61] sm:$0xff] %vm90, %v1463
    %1480 = vst.msk [vmem:[%s148 + $0x71] sm:$0xff] %vm90, %v1464
    %1481 = vst.msk [vmem:[%s148 + $0xa1] sm:$0xff] %vm90, %v1465
    %1482 = vst.msk [vmem:[%s148 + $0xb1] sm:$0xff] %vm90, %v1466
    %1483 = vst.msk [vmem:[%s148 + $0xc1] sm:$0xff] %vm90, %v1467
    %1484 = vst.msk [vmem:[%s148 + $0xd1] sm:$0xff] %vm90, %v1468
    %1485 = vst.msk [vmem:[%s148 + $0xe1] sm:$0xff] %vm90, %v1469
    %1486 = vst.msk [vmem:[%s148 + $0xf1] sm:$0xff] %vm90, %v1470
    %1487 = vst.msk [vmem:[%s148 + $0x101] sm:$0xff] %vm90, %v1471
    %1488 = vst.msk [vmem:[%s148 + $0x111] sm:$0xff] %vm90, %v1472
    %v1489 = vld [vmem:[%s148 + $0x1] sm:$0xff]
    %v1490 = vld [vmem:[%s148 + $0x11] sm:$0xff]
    %v1491 = vld [vmem:[%s148 + $0x21] sm:$0xff]
    %v1492 = vld [vmem:[%s148 + $0x31] sm:$0xff]
    %v1493 = vld [vmem:[%s148 + $0x41] sm:$0xff]
    %v1494 = vld [vmem:[%s148 + $0x51] sm:$0xff]
    %v1495 = vld [vmem:[%s148 + $0x61] sm:$0xff]
    %v1496 = vld [vmem:[%s148 + $0x71] sm:$0xff]
    %v1497 = vld [vmem:[%s148 + $0xa1] sm:$0xff]
    %v1498 = vld [vmem:[%s148 + $0xb1] sm:$0xff]
    %v1499 = vld [vmem:[%s148 + $0xc1] sm:$0xff]
    %v1500 = vld [vmem:[%s148 + $0xd1] sm:$0xff]
    %v1501 = vld [vmem:[%s148 + $0xe1] sm:$0xff]
    %v1502 = vld [vmem:[%s148 + $0xf1] sm:$0xff]
    %v1503 = vld [vmem:[%s148 + $0x101] sm:$0xff]
    %v1504 = vld [vmem:[%s148 + $0x111] sm:$0xff]
    %1505 = vst.msk [vmem:[#allocation4] sm:$0xff] %vm90, %v1489
    %1506 = vst.msk [vmem:[#allocation4 + $0x8] sm:$0xff] %vm90, %v1490
    %1507 = vst.msk [vmem:[#allocation4 + $0x10] sm:$0xff] %vm90, %v1491
    %1508 = vst.msk [vmem:[#allocation4 + $0x18] sm:$0xff] %vm90, %v1492
    %1509 = vst.msk [vmem:[#allocation4 + $0x20] sm:$0xff] %vm90, %v1493
    %1510 = vst.msk [vmem:[#allocation4 + $0x28] sm:$0xff] %vm90, %v1494
    %1511 = vst.msk [vmem:[#allocation4 + $0x30] sm:$0xff] %vm90, %v1495
    %1512 = vst.msk [vmem:[#allocation4 + $0x38] sm:$0xff] %vm90, %v1496
    %1513 = vst.msk [vmem:[#allocation4 + $0x40] sm:$0xff] %vm90, %v1497
    %1514 = vst.msk [vmem:[#allocation4 + $0x48] sm:$0xff] %vm90, %v1498
    %1515 = vst.msk [vmem:[#allocation4 + $0x50] sm:$0xff] %vm90, %v1499
    %1516 = vst.msk [vmem:[#allocation4 + $0x58] sm:$0xff] %vm90, %v1500
    %1517 = vst.msk [vmem:[#allocation4 + $0x60] sm:$0xff] %vm90, %v1501
    %1518 = vst.msk [vmem:[#allocation4 + $0x68] sm:$0xff] %vm90, %v1502
    %1519 = vst.msk [vmem:[#allocation4 + $0x70] sm:$0xff] %vm90, %v1503
    %1520 = vst.msk [vmem:[#allocation4 + $0x78] sm:$0xff] %vm90, %v1504
    %v1521 = vld [vmem:[#allocation2] sm:$0xff]
    %v1522 = vld [vmem:[#allocation2 + $0x10] sm:$0xff]
    %v1523 = vld [vmem:[#allocation2 + $0x20] sm:$0xff]
    %v1524 = vld [vmem:[#allocation2 + $0x30] sm:$0xff]
    %v1525 = vld [vmem:[#allocation2 + $0x40] sm:$0xff]
    %v1526 = vld [vmem:[#allocation2 + $0x50] sm:$0xff]
    %v1527 = vld [vmem:[#allocation2 + $0x60] sm:$0xff]
    %v1528 = vld [vmem:[#allocation2 + $0x70] sm:$0xff]
    %v1529 = vld [vmem:[#allocation2 + $0xa0] sm:$0xff]
    %v1530 = vld [vmem:[#allocation2 + $0xb0] sm:$0xff]
    %v1531 = vld [vmem:[#allocation2 + $0xc0] sm:$0xff]
    %v1532 = vld [vmem:[#allocation2 + $0xd0] sm:$0xff]
    %v1533 = vld [vmem:[#allocation2 + $0xe0] sm:$0xff]
    %v1534 = vld [vmem:[#allocation2 + $0xf0] sm:$0xff]
    %v1535 = vld [vmem:[#allocation2 + $0x100] sm:$0xff]
    %v1536 = vld [vmem:[#allocation2 + $0x110] sm:$0xff]
    %v1537 = vpack.c.bf16 %v1521, %v1521
    %v1538 = vpack.c.bf16 %v1522, %v1522
    %v1539 = vpack.c.bf16 %v1523, %v1523
    %v1540 = vpack.c.bf16 %v1524, %v1524
    %v1541 = vpack.c.bf16 %v1525, %v1525
    %v1542 = vpack.c.bf16 %v1526, %v1526
    %v1543 = vpack.c.bf16 %v1527, %v1527
    %v1544 = vpack.c.bf16 %v1528, %v1528
    %v1545 = vpack.c.bf16 %v1529, %v1529
    %v1546 = vpack.c.bf16 %v1530, %v1530
    %v1547 = vpack.c.bf16 %v1531, %v1531
    %v1548 = vpack.c.bf16 %v1532, %v1532
    %v1549 = vpack.c.bf16 %v1533, %v1533
    %v1550 = vpack.c.bf16 %v1534, %v1534
    %v1551 = vpack.c.bf16 %v1535, %v1535
    %v1552 = vpack.c.bf16 %v1536, %v1536
    %1553 = vst.msk [vmem:[#allocation3] sm:$0xf] %vm197, %v1537
    %1554 = vst.msk [vmem:[#allocation3 + $0xc] sm:$0xf] %vm197, %v1538
    %1555 = vst.msk [vmem:[#allocation3 + $0x18] sm:$0xf] %vm197, %v1539
    %1556 = vst.msk [vmem:[#allocation3 + $0x24] sm:$0xf] %vm197, %v1540
    %1557 = vst.msk [vmem:[#allocation3 + $0x30] sm:$0xf] %vm197, %v1541
    %1558 = vst.msk [vmem:[#allocation3 + $0x3c] sm:$0xf] %vm197, %v1542
    %1559 = vst.msk [vmem:[#allocation3 + $0x48] sm:$0xf] %vm197, %v1543
    %1560 = vst.msk [vmem:[#allocation3 + $0x54] sm:$0xf] %vm197, %v1544
    %1561 = vst.msk [vmem:[#allocation3 + $0x60] sm:$0xf] %vm197, %v1545
    %1562 = vst.msk [vmem:[#allocation3 + $0x6c] sm:$0xf] %vm197, %v1546
    %1563 = vst.msk [vmem:[#allocation3 + $0x78] sm:$0xf] %vm197, %v1547
    %1564 = vst.msk [vmem:[#allocation3 + $0x84] sm:$0xf] %vm197, %v1548
    %1565 = vst.msk [vmem:[#allocation3 + $0x90] sm:$0xf] %vm197, %v1549
    %1566 = vst.msk [vmem:[#allocation3 + $0x9c] sm:$0xf] %vm197, %v1550
    %1567 = vst.msk [vmem:[#allocation3 + $0xa8] sm:$0xf] %vm197, %v1551
    %1568 = vst.msk [vmem:[#allocation3 + $0xb4] sm:$0xf] %vm197, %v1552
    %v1569 = vld [vmem:[#allocation2 + $0x1] sm:$0xff]
    %v1570 = vld [vmem:[#allocation2 + $0x11] sm:$0xff]
    %v1571 = vld [vmem:[#allocation2 + $0x21] sm:$0xff]
    %v1572 = vld [vmem:[#allocation2 + $0x31] sm:$0xff]
    %v1573 = vld [vmem:[#allocation2 + $0x41] sm:$0xff]
    %v1574 = vld [vmem:[#allocation2 + $0x51] sm:$0xff]
    %v1575 = vld [vmem:[#allocation2 + $0x61] sm:$0xff]
    %v1576 = vld [vmem:[#allocation2 + $0x71] sm:$0xff]
    %v1577 = vld [vmem:[#allocation2 + $0xa1] sm:$0xff]
    %v1578 = vld [vmem:[#allocation2 + $0xb1] sm:$0xff]
    %v1579 = vld [vmem:[#allocation2 + $0xc1] sm:$0xff]
    %v1580 = vld [vmem:[#allocation2 + $0xd1] sm:$0xff]
    %v1581 = vld [vmem:[#allocation2 + $0xe1] sm:$0xff]
    %v1582 = vld [vmem:[#allocation2 + $0xf1] sm:$0xff]
    %v1583 = vld [vmem:[#allocation2 + $0x101] sm:$0xff]
    %v1584 = vld [vmem:[#allocation2 + $0x111] sm:$0xff]
    %v1585 = vpack.c.bf16 %v1569, %v1569
    %v1586 = vpack.c.bf16 %v1570, %v1570
    %v1587 = vpack.c.bf16 %v1571, %v1571
    %v1588 = vpack.c.bf16 %v1572, %v1572
    %v1589 = vpack.c.bf16 %v1573, %v1573
    %v1590 = vpack.c.bf16 %v1574, %v1574
    %v1591 = vpack.c.bf16 %v1575, %v1575
    %v1592 = vpack.c.bf16 %v1576, %v1576
    %v1593 = vpack.c.bf16 %v1577, %v1577
    %v1594 = vpack.c.bf16 %v1578, %v1578
    %v1595 = vpack.c.bf16 %v1579, %v1579
    %v1596 = vpack.c.bf16 %v1580, %v1580
    %v1597 = vpack.c.bf16 %v1581, %v1581
    %v1598 = vpack.c.bf16 %v1582, %v1582
    %v1599 = vpack.c.bf16 %v1583, %v1583
    %v1600 = vpack.c.bf16 %v1584, %v1584
    %1617 = vrot.lane.b32.xlu0 %v1585, 32
    %v1618 = vpop.permute.xlu0 %1617
    %1619 = vrot.lane.b32.xlu0 %v1586, 32
    %v1620 = vpop.permute.xlu0 %1619
    %1621 = vrot.lane.b32.xlu0 %v1587, 32
    %v1622 = vpop.permute.xlu0 %1621
    %1623 = vrot.lane.b32.xlu0 %v1588, 32
    %v1624 = vpop.permute.xlu0 %1623
    %1625 = vrot.lane.b32.xlu0 %v1589, 32
    %v1626 = vpop.permute.xlu0 %1625
    %1627 = vrot.lane.b32.xlu0 %v1590, 32
    %v1628 = vpop.permute.xlu0 %1627
    %1629 = vrot.lane.b32.xlu0 %v1591, 32
    %v1630 = vpop.permute.xlu0 %1629
    %1631 = vrot.lane.b32.xlu0 %v1592, 32
    %v1632 = vpop.permute.xlu0 %1631
    %1633 = vrot.lane.b32.xlu0 %v1593, 32
    %v1634 = vpop.permute.xlu0 %1633
    %1635 = vrot.lane.b32.xlu0 %v1594, 32
    %v1636 = vpop.permute.xlu0 %1635
    %1637 = vrot.lane.b32.xlu0 %v1595, 32
    %v1638 = vpop.permute.xlu0 %1637
    %1639 = vrot.lane.b32.xlu0 %v1596, 32
    %v1640 = vpop.permute.xlu0 %1639
    %1641 = vrot.lane.b32.xlu0 %v1597, 32
    %v1642 = vpop.permute.xlu0 %1641
    %1643 = vrot.lane.b32.xlu0 %v1598, 32
    %v1644 = vpop.permute.xlu0 %1643
    %1645 = vrot.lane.b32.xlu0 %v1599, 32
    %v1646 = vpop.permute.xlu0 %1645
    %1647 = vrot.lane.b32.xlu0 %v1600, 32
    %v1648 = vpop.permute.xlu0 %1647
    %1665 = vst.msk [vmem:[#allocation3] sm:$0xf] %vm310, %v1618
    %1666 = vst.msk [vmem:[#allocation3 + $0xc] sm:$0xf] %vm310, %v1620
    %1667 = vst.msk [vmem:[#allocation3 + $0x18] sm:$0xf] %vm310, %v1622
    %1668 = vst.msk [vmem:[#allocation3 + $0x24] sm:$0xf] %vm310, %v1624
    %1669 = vst.msk [vmem:[#allocation3 + $0x30] sm:$0xf] %vm310, %v1626
    %1670 = vst.msk [vmem:[#allocation3 + $0x3c] sm:$0xf] %vm310, %v1628
    %1671 = vst.msk [vmem:[#allocation3 + $0x48] sm:$0xf] %vm310, %v1630
    %1672 = vst.msk [vmem:[#allocation3 + $0x54] sm:$0xf] %vm310, %v1632
    %1673 = vst.msk [vmem:[#allocation3 + $0x60] sm:$0xf] %vm310, %v1634
    %1674 = vst.msk [vmem:[#allocation3 + $0x6c] sm:$0xf] %vm310, %v1636
    %1675 = vst.msk [vmem:[#allocation3 + $0x78] sm:$0xf] %vm310, %v1638
    %1676 = vst.msk [vmem:[#allocation3 + $0x84] sm:$0xf] %vm310, %v1640
    %1677 = vst.msk [vmem:[#allocation3 + $0x90] sm:$0xf] %vm310, %v1642
    %1678 = vst.msk [vmem:[#allocation3 + $0x9c] sm:$0xf] %vm310, %v1644
    %1679 = vst.msk [vmem:[#allocation3 + $0xa8] sm:$0xf] %vm310, %v1646
    %1680 = vst.msk [vmem:[#allocation3 + $0xb4] sm:$0xf] %vm310, %v1648
    %v1681 = vld [vmem:[#allocation2 + $0x2] sm:$0xff]
    %v1682 = vld [vmem:[#allocation2 + $0x12] sm:$0xff]
    %v1683 = vld [vmem:[#allocation2 + $0x22] sm:$0xff]
    %v1684 = vld [vmem:[#allocation2 + $0x32] sm:$0xff]
    %v1685 = vld [vmem:[#allocation2 + $0x42] sm:$0xff]
    %v1686 = vld [vmem:[#allocation2 + $0x52] sm:$0xff]
    %v1687 = vld [vmem:[#allocation2 + $0x62] sm:$0xff]
    %v1688 = vld [vmem:[#allocation2 + $0x72] sm:$0xff]
    %v1689 = vld [vmem:[#allocation2 + $0xa2] sm:$0xff]
    %v1690 = vld [vmem:[#allocation2 + $0xb2] sm:$0xff]
    %v1691 = vld [vmem:[#allocation2 + $0xc2] sm:$0xff]
    %v1692 = vld [vmem:[#allocation2 + $0xd2] sm:$0xff]
    %v1693 = vld [vmem:[#allocation2 + $0xe2] sm:$0xff]
    %v1694 = vld [vmem:[#allocation2 + $0xf2] sm:$0xff]
    %v1695 = vld [vmem:[#allocation2 + $0x102] sm:$0xff]
    %v1696 = vld [vmem:[#allocation2 + $0x112] sm:$0xff]
    %v1697 = vpack.c.bf16 %v1681, %v1681
    %v1698 = vpack.c.bf16 %v1682, %v1682
    %v1699 = vpack.c.bf16 %v1683, %v1683
    %v1700 = vpack.c.bf16 %v1684, %v1684
    %v1701 = vpack.c.bf16 %v1685, %v1685
    %v1702 = vpack.c.bf16 %v1686, %v1686
    %v1703 = vpack.c.bf16 %v1687, %v1687
    %v1704 = vpack.c.bf16 %v1688, %v1688
    %v1705 = vpack.c.bf16 %v1689, %v1689
    %v1706 = vpack.c.bf16 %v1690, %v1690
    %v1707 = vpack.c.bf16 %v1691, %v1691
    %v1708 = vpack.c.bf16 %v1692, %v1692
    %v1709 = vpack.c.bf16 %v1693, %v1693
    %v1710 = vpack.c.bf16 %v1694, %v1694
    %v1711 = vpack.c.bf16 %v1695, %v1695
    %v1712 = vpack.c.bf16 %v1696, %v1696
    %1729 = vrot.lane.b32.xlu0 %v1697, 64
    %v1730 = vpop.permute.xlu0 %1729
    %1731 = vrot.lane.b32.xlu0 %v1698, 64
    %v1732 = vpop.permute.xlu0 %1731
    %1733 = vrot.lane.b32.xlu0 %v1699, 64
    %v1734 = vpop.permute.xlu0 %1733
    %1735 = vrot.lane.b32.xlu0 %v1700, 64
    %v1736 = vpop.permute.xlu0 %1735
    %1737 = vrot.lane.b32.xlu0 %v1701, 64
    %v1738 = vpop.permute.xlu0 %1737
    %1739 = vrot.lane.b32.xlu0 %v1702, 64
    %v1740 = vpop.permute.xlu0 %1739
    %1741 = vrot.lane.b32.xlu0 %v1703, 64
    %v1742 = vpop.permute.xlu0 %1741
    %1743 = vrot.lane.b32.xlu0 %v1704, 64
    %v1744 = vpop.permute.xlu0 %1743
    %1745 = vrot.lane.b32.xlu0 %v1705, 64
    %v1746 = vpop.permute.xlu0 %1745
    %1747 = vrot.lane.b32.xlu0 %v1706, 64
    %v1748 = vpop.permute.xlu0 %1747
    %1749 = vrot.lane.b32.xlu0 %v1707, 64
    %v1750 = vpop.permute.xlu0 %1749
    %1751 = vrot.lane.b32.xlu0 %v1708, 64
    %v1752 = vpop.permute.xlu0 %1751
    %1753 = vrot.lane.b32.xlu0 %v1709, 64
    %v1754 = vpop.permute.xlu0 %1753
    %1755 = vrot.lane.b32.xlu0 %v1710, 64
    %v1756 = vpop.permute.xlu0 %1755
    %1757 = vrot.lane.b32.xlu0 %v1711, 64
    %v1758 = vpop.permute.xlu0 %1757
    %1759 = vrot.lane.b32.xlu0 %v1712, 64
    %v1760 = vpop.permute.xlu0 %1759
    %1777 = vst.msk [vmem:[#allocation3] sm:$0xf] %vm423, %v1730
    %1778 = vst.msk [vmem:[#allocation3 + $0xc] sm:$0xf] %vm423, %v1732
    %1779 = vst.msk [vmem:[#allocation3 + $0x18] sm:$0xf] %vm423, %v1734
    %1780 = vst.msk [vmem:[#allocation3 + $0x24] sm:$0xf] %vm423, %v1736
    %1781 = vst.msk [vmem:[#allocation3 + $0x30] sm:$0xf] %vm423, %v1738
    %1782 = vst.msk [vmem:[#allocation3 + $0x3c] sm:$0xf] %vm423, %v1740
    %1783 = vst.msk [vmem:[#allocation3 + $0x48] sm:$0xf] %vm423, %v1742
    %1784 = vst.msk [vmem:[#allocation3 + $0x54] sm:$0xf] %vm423, %v1744
    %1785 = vst.msk [vmem:[#allocation3 + $0x60] sm:$0xf] %vm423, %v1746
    %1786 = vst.msk [vmem:[#allocation3 + $0x6c] sm:$0xf] %vm423, %v1748
    %1787 = vst.msk [vmem:[#allocation3 + $0x78] sm:$0xf] %vm423, %v1750
    %1788 = vst.msk [vmem:[#allocation3 + $0x84] sm:$0xf] %vm423, %v1752
    %1789 = vst.msk [vmem:[#allocation3 + $0x90] sm:$0xf] %vm423, %v1754
    %1790 = vst.msk [vmem:[#allocation3 + $0x9c] sm:$0xf] %vm423, %v1756
    %1791 = vst.msk [vmem:[#allocation3 + $0xa8] sm:$0xf] %vm423, %v1758
    %1792 = vst.msk [vmem:[#allocation3 + $0xb4] sm:$0xf] %vm423, %v1760
    %v1793 = vld [vmem:[%s148] sm:$0xff]
    %v1794 = vld [vmem:[%s148 + $0x10] sm:$0xff]
    %v1795 = vld [vmem:[%s148 + $0x20] sm:$0xff]
    %v1796 = vld [vmem:[%s148 + $0x30] sm:$0xff]
    %v1797 = vld [vmem:[%s148 + $0x40] sm:$0xff]
    %v1798 = vld [vmem:[%s148 + $0x50] sm:$0xff]
    %v1799 = vld [vmem:[%s148 + $0x60] sm:$0xff]
    %v1800 = vld [vmem:[%s148 + $0x70] sm:$0xff]
    %v1801 = vld [vmem:[%s148 + $0xa0] sm:$0xff]
    %v1802 = vld [vmem:[%s148 + $0xb0] sm:$0xff]
    %v1803 = vld [vmem:[%s148 + $0xc0] sm:$0xff]
    %v1804 = vld [vmem:[%s148 + $0xd0] sm:$0xff]
    %v1805 = vld [vmem:[%s148 + $0xe0] sm:$0xff]
    %v1806 = vld [vmem:[%s148 + $0xf0] sm:$0xff]
    %v1807 = vld [vmem:[%s148 + $0x100] sm:$0xff]
    %v1808 = vld [vmem:[%s148 + $0x110] sm:$0xff]
    %v1809 = vpack.c.bf16 %v1793, %v1793
    %v1810 = vpack.c.bf16 %v1794, %v1794
    %v1811 = vpack.c.bf16 %v1795, %v1795
    %v1812 = vpack.c.bf16 %v1796, %v1796
    %v1813 = vpack.c.bf16 %v1797, %v1797
    %v1814 = vpack.c.bf16 %v1798, %v1798
    %v1815 = vpack.c.bf16 %v1799, %v1799
    %v1816 = vpack.c.bf16 %v1800, %v1800
    %v1817 = vpack.c.bf16 %v1801, %v1801
    %v1818 = vpack.c.bf16 %v1802, %v1802
    %v1819 = vpack.c.bf16 %v1803, %v1803
    %v1820 = vpack.c.bf16 %v1804, %v1804
    %v1821 = vpack.c.bf16 %v1805, %v1805
    %v1822 = vpack.c.bf16 %v1806, %v1806
    %v1823 = vpack.c.bf16 %v1807, %v1807
    %v1824 = vpack.c.bf16 %v1808, %v1808
    %1841 = vrot.lane.b32.xlu0 %v1809, 96
    %v1842 = vpop.permute.xlu0 %1841
    %1843 = vrot.lane.b32.xlu0 %v1810, 96
    %v1844 = vpop.permute.xlu0 %1843
    %1845 = vrot.lane.b32.xlu0 %v1811, 96
    %v1846 = vpop.permute.xlu0 %1845
    %1847 = vrot.lane.b32.xlu0 %v1812, 96
    %v1848 = vpop.permute.xlu0 %1847
    %1849 = vrot.lane.b32.xlu0 %v1813, 96
    %v1850 = vpop.permute.xlu0 %1849
    %1851 = vrot.lane.b32.xlu0 %v1814, 96
    %v1852 = vpop.permute.xlu0 %1851
    %1853 = vrot.lane.b32.xlu0 %v1815, 96
    %v1854 = vpop.permute.xlu0 %1853
    %1855 = vrot.lane.b32.xlu0 %v1816, 96
    %v1856 = vpop.permute.xlu0 %1855
    %1857 = vrot.lane.b32.xlu0 %v1817, 96
    %v1858 = vpop.permute.xlu0 %1857
    %1859 = vrot.lane.b32.xlu0 %v1818, 96
    %v1860 = vpop.permute.xlu0 %1859
    %1861 = vrot.lane.b32.xlu0 %v1819, 96
    %v1862 = vpop.permute.xlu0 %1861
    %1863 = vrot.lane.b32.xlu0 %v1820, 96
    %v1864 = vpop.permute.xlu0 %1863
    %1865 = vrot.lane.b32.xlu0 %v1821, 96
    %v1866 = vpop.permute.xlu0 %1865
    %1867 = vrot.lane.b32.xlu0 %v1822, 96
    %v1868 = vpop.permute.xlu0 %1867
    %1869 = vrot.lane.b32.xlu0 %v1823, 96
    %v1870 = vpop.permute.xlu0 %1869
    %1871 = vrot.lane.b32.xlu0 %v1824, 96
    %v1872 = vpop.permute.xlu0 %1871
    %1889 = vst.msk [vmem:[#allocation3] sm:$0xf] %vm536, %v1842
    %1890 = vst.msk [vmem:[#allocation3 + $0xc] sm:$0xf] %vm536, %v1844
    %1891 = vst.msk [vmem:[#allocation3 + $0x18] sm:$0xf] %vm536, %v1846
    %1892 = vst.msk [vmem:[#allocation3 + $0x24] sm:$0xf] %vm536, %v1848
    %1893 = vst.msk [vmem:[#allocation3 + $0x30] sm:$0xf] %vm536, %v1850
    %1894 = vst.msk [vmem:[#allocation3 + $0x3c] sm:$0xf] %vm536, %v1852
    %1895 = vst.msk [vmem:[#allocation3 + $0x48] sm:$0xf] %vm536, %v1854
    %1896 = vst.msk [vmem:[#allocation3 + $0x54] sm:$0xf] %vm536, %v1856
    %1897 = vst.msk [vmem:[#allocation3 + $0x60] sm:$0xf] %vm536, %v1858
    %1898 = vst.msk [vmem:[#allocation3 + $0x6c] sm:$0xf] %vm536, %v1860
    %1899 = vst.msk [vmem:[#allocation3 + $0x78] sm:$0xf] %vm536, %v1862
    %1900 = vst.msk [vmem:[#allocation3 + $0x84] sm:$0xf] %vm536, %v1864
    %1901 = vst.msk [vmem:[#allocation3 + $0x90] sm:$0xf] %vm536, %v1866
    %1902 = vst.msk [vmem:[#allocation3 + $0x9c] sm:$0xf] %vm536, %v1868
    %1903 = vst.msk [vmem:[#allocation3 + $0xa8] sm:$0xf] %vm536, %v1870
    %1904 = vst.msk [vmem:[#allocation3 + $0xb4] sm:$0xf] %vm536, %v1872
    %v1905 = vld [vmem:[%s148 + $0x1] sm:$0xff]
    %v1906 = vld [vmem:[%s148 + $0x11] sm:$0xff]
    %v1907 = vld [vmem:[%s148 + $0x21] sm:$0xff]
    %v1908 = vld [vmem:[%s148 + $0x31] sm:$0xff]
    %v1909 = vld [vmem:[%s148 + $0x41] sm:$0xff]
    %v1910 = vld [vmem:[%s148 + $0x51] sm:$0xff]
    %v1911 = vld [vmem:[%s148 + $0x61] sm:$0xff]
    %v1912 = vld [vmem:[%s148 + $0x71] sm:$0xff]
    %v1913 = vld [vmem:[%s148 + $0xa1] sm:$0xff]
    %v1914 = vld [vmem:[%s148 + $0xb1] sm:$0xff]
    %v1915 = vld [vmem:[%s148 + $0xc1] sm:$0xff]
    %v1916 = vld [vmem:[%s148 + $0xd1] sm:$0xff]
    %v1917 = vld [vmem:[%s148 + $0xe1] sm:$0xff]
    %v1918 = vld [vmem:[%s148 + $0xf1] sm:$0xff]
    %v1919 = vld [vmem:[%s148 + $0x101] sm:$0xff]
    %v1920 = vld [vmem:[%s148 + $0x111] sm:$0xff]
    %v1921 = vpack.c.bf16 %v1905, %v1905
    %v1922 = vpack.c.bf16 %v1906, %v1906
    %v1923 = vpack.c.bf16 %v1907, %v1907
    %v1924 = vpack.c.bf16 %v1908, %v1908
    %v1925 = vpack.c.bf16 %v1909, %v1909
    %v1926 = vpack.c.bf16 %v1910, %v1910
    %v1927 = vpack.c.bf16 %v1911, %v1911
    %v1928 = vpack.c.bf16 %v1912, %v1912
    %v1929 = vpack.c.bf16 %v1913, %v1913
    %v1930 = vpack.c.bf16 %v1914, %v1914
    %v1931 = vpack.c.bf16 %v1915, %v1915
    %v1932 = vpack.c.bf16 %v1916, %v1916
    %v1933 = vpack.c.bf16 %v1917, %v1917
    %v1934 = vpack.c.bf16 %v1918, %v1918
    %v1935 = vpack.c.bf16 %v1919, %v1919
    %v1936 = vpack.c.bf16 %v1920, %v1920
    %1937 = vst.msk [vmem:[#allocation3 + $0x4] sm:$0xf] %vm197, %v1921
    %1938 = vst.msk [vmem:[#allocation3 + $0x10] sm:$0xf] %vm197, %v1922
    %1939 = vst.msk [vmem:[#allocation3 + $0x1c] sm:$0xf] %vm197, %v1923
    %1940 = vst.msk [vmem:[#allocation3 + $0x28] sm:$0xf] %vm197, %v1924
    %1941 = vst.msk [vmem:[#allocation3 + $0x34] sm:$0xf] %vm197, %v1925
    %1942 = vst.msk [vmem:[#allocation3 + $0x40] sm:$0xf] %vm197, %v1926
    %1943 = vst.msk [vmem:[#allocation3 + $0x4c] sm:$0xf] %vm197, %v1927
    %1944 = vst.msk [vmem:[#allocation3 + $0x58] sm:$0xf] %vm197, %v1928
    %1945 = vst.msk [vmem:[#allocation3 + $0x64] sm:$0xf] %vm197, %v1929
    %1946 = vst.msk [vmem:[#allocation3 + $0x70] sm:$0xf] %vm197, %v1930
    %1947 = vst.msk [vmem:[#allocation3 + $0x7c] sm:$0xf] %vm197, %v1931
    %1948 = vst.msk [vmem:[#allocation3 + $0x88] sm:$0xf] %vm197, %v1932
    %1949 = vst.msk [vmem:[#allocation3 + $0x94] sm:$0xf] %vm197, %v1933
    %1950 = vst.msk [vmem:[#allocation3 + $0xa0] sm:$0xf] %vm197, %v1934
    %1951 = vst.msk [vmem:[#allocation3 + $0xac] sm:$0xf] %vm197, %v1935
    %1952 = vst.msk [vmem:[#allocation3 + $0xb8] sm:$0xf] %vm197, %v1936
    %v1953 = vld [vmem:[%s148 + $0x2] sm:$0xff]
    %v1954 = vld [vmem:[%s148 + $0x12] sm:$0xff]
    %v1955 = vld [vmem:[%s148 + $0x22] sm:$0xff]
    %v1956 = vld [vmem:[%s148 + $0x32] sm:$0xff]
    %v1957 = vld [vmem:[%s148 + $0x42] sm:$0xff]
    %v1958 = vld [vmem:[%s148 + $0x52] sm:$0xff]
    %v1959 = vld [vmem:[%s148 + $0x62] sm:$0xff]
    %v1960 = vld [vmem:[%s148 + $0x72] sm:$0xff]
    %v1961 = vld [vmem:[%s148 + $0xa2] sm:$0xff]
    %v1962 = vld [vmem:[%s148 + $0xb2] sm:$0xff]
    %v1963 = vld [vmem:[%s148 + $0xc2] sm:$0xff]
    %v1964 = vld [vmem:[%s148 + $0xd2] sm:$0xff]
    %v1965 = vld [vmem:[%s148 + $0xe2] sm:$0xff]
    %v1966 = vld [vmem:[%s148 + $0xf2] sm:$0xff]
    %v1967 = vld [vmem:[%s148 + $0x102] sm:$0xff]
    %v1968 = vld [vmem:[%s148 + $0x112] sm:$0xff]
    %v1969 = vpack.c.bf16 %v1953, %v1953
    %v1970 = vpack.c.bf16 %v1954, %v1954
    %v1971 = vpack.c.bf16 %v1955, %v1955
    %v1972 = vpack.c.bf16 %v1956, %v1956
    %v1973 = vpack.c.bf16 %v1957, %v1957
    %v1974 = vpack.c.bf16 %v1958, %v1958
    %v1975 = vpack.c.bf16 %v1959, %v1959
    %v1976 = vpack.c.bf16 %v1960, %v1960
    %v1977 = vpack.c.bf16 %v1961, %v1961
    %v1978 = vpack.c.bf16 %v1962, %v1962
    %v1979 = vpack.c.bf16 %v1963, %v1963
    %v1980 = vpack.c.bf16 %v1964, %v1964
    %v1981 = vpack.c.bf16 %v1965, %v1965
    %v1982 = vpack.c.bf16 %v1966, %v1966
    %v1983 = vpack.c.bf16 %v1967, %v1967
    %v1984 = vpack.c.bf16 %v1968, %v1968
    %2001 = vrot.lane.b32.xlu0 %v1969, 32
    %v2002 = vpop.permute.xlu0 %2001
    %2003 = vrot.lane.b32.xlu0 %v1970, 32
    %v2004 = vpop.permute.xlu0 %2003
    %2005 = vrot.lane.b32.xlu0 %v1971, 32
    %v2006 = vpop.permute.xlu0 %2005
    %2007 = vrot.lane.b32.xlu0 %v1972, 32
    %v2008 = vpop.permute.xlu0 %2007
    %2009 = vrot.lane.b32.xlu0 %v1973, 32
    %v2010 = vpop.permute.xlu0 %2009
    %2011 = vrot.lane.b32.xlu0 %v1974, 32
    %v2012 = vpop.permute.xlu0 %2011
    %2013 = vrot.lane.b32.xlu0 %v1975, 32
    %v2014 = vpop.permute.xlu0 %2013
    %2015 = vrot.lane.b32.xlu0 %v1976, 32
    %v2016 = vpop.permute.xlu0 %2015
    %2017 = vrot.lane.b32.xlu0 %v1977, 32
    %v2018 = vpop.permute.xlu0 %2017
    %2019 = vrot.lane.b32.xlu0 %v1978, 32
    %v2020 = vpop.permute.xlu0 %2019
    %2021 = vrot.lane.b32.xlu0 %v1979, 32
    %v2022 = vpop.permute.xlu0 %2021
    %2023 = vrot.lane.b32.xlu0 %v1980, 32
    %v2024 = vpop.permute.xlu0 %2023
    %2025 = vrot.lane.b32.xlu0 %v1981, 32
    %v2026 = vpop.permute.xlu0 %2025
    %2027 = vrot.lane.b32.xlu0 %v1982, 32
    %v2028 = vpop.permute.xlu0 %2027
    %2029 = vrot.lane.b32.xlu0 %v1983, 32
    %v2030 = vpop.permute.xlu0 %2029
    %2031 = vrot.lane.b32.xlu0 %v1984, 32
    %v2032 = vpop.permute.xlu0 %2031
    %2049 = vst.msk [vmem:[#allocation3 + $0x4] sm:$0xf] %vm310, %v2002
    %2050 = vst.msk [vmem:[#allocation3 + $0x10] sm:$0xf] %vm310, %v2004
    %2051 = vst.msk [vmem:[#allocation3 + $0x1c] sm:$0xf] %vm310, %v2006
    %2052 = vst.msk [vmem:[#allocation3 + $0x28] sm:$0xf] %vm310, %v2008
    %2053 = vst.msk [vmem:[#allocation3 + $0x34] sm:$0xf] %vm310, %v2010
    %2054 = vst.msk [vmem:[#allocation3 + $0x40] sm:$0xf] %vm310, %v2012
    %2055 = vst.msk [vmem:[#allocation3 + $0x4c] sm:$0xf] %vm310, %v2014
    %2056 = vst.msk [vmem:[#allocation3 + $0x58] sm:$0xf] %vm310, %v2016
    %2057 = vst.msk [vmem:[#allocation3 + $0x64] sm:$0xf] %vm310, %v2018
    %2058 = vst.msk [vmem:[#allocation3 + $0x70] sm:$0xf] %vm310, %v2020
    %2059 = vst.msk [vmem:[#allocation3 + $0x7c] sm:$0xf] %vm310, %v2022
    %2060 = vst.msk [vmem:[#allocation3 + $0x88] sm:$0xf] %vm310, %v2024
    %2061 = vst.msk [vmem:[#allocation3 + $0x94] sm:$0xf] %vm310, %v2026
    %2062 = vst.msk [vmem:[#allocation3 + $0xa0] sm:$0xf] %vm310, %v2028
    %2063 = vst.msk [vmem:[#allocation3 + $0xac] sm:$0xf] %vm310, %v2030
    %2064 = vst.msk [vmem:[#allocation3 + $0xb8] sm:$0xf] %vm310, %v2032
    %v2065 = vld [vmem:[%s713] sm:$0xff]
    %v2066 = vld [vmem:[%s713 + $0x10] sm:$0xff]
    %v2067 = vld [vmem:[%s713 + $0x20] sm:$0xff]
    %v2068 = vld [vmem:[%s713 + $0x30] sm:$0xff]
    %v2069 = vld [vmem:[%s713 + $0x40] sm:$0xff]
    %v2070 = vld [vmem:[%s713 + $0x50] sm:$0xff]
    %v2071 = vld [vmem:[%s713 + $0x60] sm:$0xff]
    %v2072 = vld [vmem:[%s713 + $0x70] sm:$0xff]
    %v2073 = vld [vmem:[%s713 + $0xa0] sm:$0xff]
    %v2074 = vld [vmem:[%s713 + $0xb0] sm:$0xff]
    %v2075 = vld [vmem:[%s713 + $0xc0] sm:$0xff]
    %v2076 = vld [vmem:[%s713 + $0xd0] sm:$0xff]
    %v2077 = vld [vmem:[%s713 + $0xe0] sm:$0xff]
    %v2078 = vld [vmem:[%s713 + $0xf0] sm:$0xff]
    %v2079 = vld [vmem:[%s713 + $0x100] sm:$0xff]
    %v2080 = vld [vmem:[%s713 + $0x110] sm:$0xff]
    %v2081 = vpack.c.bf16 %v2065, %v2065
    %v2082 = vpack.c.bf16 %v2066, %v2066
    %v2083 = vpack.c.bf16 %v2067, %v2067
    %v2084 = vpack.c.bf16 %v2068, %v2068
    %v2085 = vpack.c.bf16 %v2069, %v2069
    %v2086 = vpack.c.bf16 %v2070, %v2070
    %v2087 = vpack.c.bf16 %v2071, %v2071
    %v2088 = vpack.c.bf16 %v2072, %v2072
    %v2089 = vpack.c.bf16 %v2073, %v2073
    %v2090 = vpack.c.bf16 %v2074, %v2074
    %v2091 = vpack.c.bf16 %v2075, %v2075
    %v2092 = vpack.c.bf16 %v2076, %v2076
    %v2093 = vpack.c.bf16 %v2077, %v2077
    %v2094 = vpack.c.bf16 %v2078, %v2078
    %v2095 = vpack.c.bf16 %v2079, %v2079
    %v2096 = vpack.c.bf16 %v2080, %v2080
    %2113 = vrot.lane.b32.xlu0 %v2081, 64
    %v2114 = vpop.permute.xlu0 %2113
    %2115 = vrot.lane.b32.xlu0 %v2082, 64
    %v2116 = vpop.permute.xlu0 %2115
    %2117 = vrot.lane.b32.xlu0 %v2083, 64
    %v2118 = vpop.permute.xlu0 %2117
    %2119 = vrot.lane.b32.xlu0 %v2084, 64
    %v2120 = vpop.permute.xlu0 %2119
    %2121 = vrot.lane.b32.xlu0 %v2085, 64
    %v2122 = vpop.permute.xlu0 %2121
    %2123 = vrot.lane.b32.xlu0 %v2086, 64
    %v2124 = vpop.permute.xlu0 %2123
    %2125 = vrot.lane.b32.xlu0 %v2087, 64
    %v2126 = vpop.permute.xlu0 %2125
    %2127 = vrot.lane.b32.xlu0 %v2088, 64
    %v2128 = vpop.permute.xlu0 %2127
    %2129 = vrot.lane.b32.xlu0 %v2089, 64
    %v2130 = vpop.permute.xlu0 %2129
    %2131 = vrot.lane.b32.xlu0 %v2090, 64
    %v2132 = vpop.permute.xlu0 %2131
    %2133 = vrot.lane.b32.xlu0 %v2091, 64
    %v2134 = vpop.permute.xlu0 %2133
    %2135 = vrot.lane.b32.xlu0 %v2092, 64
    %v2136 = vpop.permute.xlu0 %2135
    %2137 = vrot.lane.b32.xlu0 %v2093, 64
    %v2138 = vpop.permute.xlu0 %2137
    %2139 = vrot.lane.b32.xlu0 %v2094, 64
    %v2140 = vpop.permute.xlu0 %2139
    %2141 = vrot.lane.b32.xlu0 %v2095, 64
    %v2142 = vpop.permute.xlu0 %2141
    %2143 = vrot.lane.b32.xlu0 %v2096, 64
    %v2144 = vpop.permute.xlu0 %2143
    %2161 = vst.msk [vmem:[#allocation3 + $0x4] sm:$0xf] %vm423, %v2114
    %2162 = vst.msk [vmem:[#allocation3 + $0x10] sm:$0xf] %vm423, %v2116
    %2163 = vst.msk [vmem:[#allocation3 + $0x1c] sm:$0xf] %vm423, %v2118
    %2164 = vst.msk [vmem:[#allocation3 + $0x28] sm:$0xf] %vm423, %v2120
    %2165 = vst.msk [vmem:[#allocation3 + $0x34] sm:$0xf] %vm423, %v2122
    %2166 = vst.msk [vmem:[#allocation3 + $0x40] sm:$0xf] %vm423, %v2124
    %2167 = vst.msk [vmem:[#allocation3 + $0x4c] sm:$0xf] %vm423, %v2126
    %2168 = vst.msk [vmem:[#allocation3 + $0x58] sm:$0xf] %vm423, %v2128
    %2169 = vst.msk [vmem:[#allocation3 + $0x64] sm:$0xf] %vm423, %v2130
    %2170 = vst.msk [vmem:[#allocation3 + $0x70] sm:$0xf] %vm423, %v2132
    %2171 = vst.msk [vmem:[#allocation3 + $0x7c] sm:$0xf] %vm423, %v2134
    %2172 = vst.msk [vmem:[#allocation3 + $0x88] sm:$0xf] %vm423, %v2136
    %2173 = vst.msk [vmem:[#allocation3 + $0x94] sm:$0xf] %vm423, %v2138
    %2174 = vst.msk [vmem:[#allocation3 + $0xa0] sm:$0xf] %vm423, %v2140
    %2175 = vst.msk [vmem:[#allocation3 + $0xac] sm:$0xf] %vm423, %v2142
    %2176 = vst.msk [vmem:[#allocation3 + $0xb8] sm:$0xf] %vm423, %v2144
    %v2177 = vld [vmem:[%s713 + $0x1] sm:$0xff]
    %v2178 = vld [vmem:[%s713 + $0x11] sm:$0xff]
    %v2179 = vld [vmem:[%s713 + $0x21] sm:$0xff]
    %v2180 = vld [vmem:[%s713 + $0x31] sm:$0xff]
    %v2181 = vld [vmem:[%s713 + $0x41] sm:$0xff]
    %v2182 = vld [vmem:[%s713 + $0x51] sm:$0xff]
    %v2183 = vld [vmem:[%s713 + $0x61] sm:$0xff]
    %v2184 = vld [vmem:[%s713 + $0x71] sm:$0xff]
    %v2185 = vld [vmem:[%s713 + $0xa1] sm:$0xff]
    %v2186 = vld [vmem:[%s713 + $0xb1] sm:$0xff]
    %v2187 = vld [vmem:[%s713 + $0xc1] sm:$0xff]
    %v2188 = vld [vmem:[%s713 + $0xd1] sm:$0xff]
    %v2189 = vld [vmem:[%s713 + $0xe1] sm:$0xff]
    %v2190 = vld [vmem:[%s713 + $0xf1] sm:$0xff]
    %v2191 = vld [vmem:[%s713 + $0x101] sm:$0xff]
    %v2192 = vld [vmem:[%s713 + $0x111] sm:$0xff]
    %v2193 = vpack.c.bf16 %v2177, %v2177
    %v2194 = vpack.c.bf16 %v2178, %v2178
    %v2195 = vpack.c.bf16 %v2179, %v2179
    %v2196 = vpack.c.bf16 %v2180, %v2180
    %v2197 = vpack.c.bf16 %v2181, %v2181
    %v2198 = vpack.c.bf16 %v2182, %v2182
    %v2199 = vpack.c.bf16 %v2183, %v2183
    %v2200 = vpack.c.bf16 %v2184, %v2184
    %v2201 = vpack.c.bf16 %v2185, %v2185
    %v2202 = vpack.c.bf16 %v2186, %v2186
    %v2203 = vpack.c.bf16 %v2187, %v2187
    %v2204 = vpack.c.bf16 %v2188, %v2188
    %v2205 = vpack.c.bf16 %v2189, %v2189
    %v2206 = vpack.c.bf16 %v2190, %v2190
    %v2207 = vpack.c.bf16 %v2191, %v2191
    %v2208 = vpack.c.bf16 %v2192, %v2192
    %2225 = vrot.lane.b32.xlu0 %v2193, 96
    %v2226 = vpop.permute.xlu0 %2225
    %2227 = vrot.lane.b32.xlu0 %v2194, 96
    %v2228 = vpop.permute.xlu0 %2227
    %2229 = vrot.lane.b32.xlu0 %v2195, 96
    %v2230 = vpop.permute.xlu0 %2229
    %2231 = vrot.lane.b32.xlu0 %v2196, 96
    %v2232 = vpop.permute.xlu0 %2231
    %2233 = vrot.lane.b32.xlu0 %v2197, 96
    %v2234 = vpop.permute.xlu0 %2233
    %2235 = vrot.lane.b32.xlu0 %v2198, 96
    %v2236 = vpop.permute.xlu0 %2235
    %2237 = vrot.lane.b32.xlu0 %v2199, 96
    %v2238 = vpop.permute.xlu0 %2237
    %2239 = vrot.lane.b32.xlu0 %v2200, 96
    %v2240 = vpop.permute.xlu0 %2239
    %2241 = vrot.lane.b32.xlu0 %v2201, 96
    %v2242 = vpop.permute.xlu0 %2241
    %2243 = vrot.lane.b32.xlu0 %v2202, 96
    %v2244 = vpop.permute.xlu0 %2243
    %2245 = vrot.lane.b32.xlu0 %v2203, 96
    %v2246 = vpop.permute.xlu0 %2245
    %2247 = vrot.lane.b32.xlu0 %v2204, 96
    %v2248 = vpop.permute.xlu0 %2247
    %2249 = vrot.lane.b32.xlu0 %v2205, 96
    %v2250 = vpop.permute.xlu0 %2249
    %2251 = vrot.lane.b32.xlu0 %v2206, 96
    %v2252 = vpop.permute.xlu0 %2251
    %2253 = vrot.lane.b32.xlu0 %v2207, 96
    %v2254 = vpop.permute.xlu0 %2253
    %2255 = vrot.lane.b32.xlu0 %v2208, 96
    %v2256 = vpop.permute.xlu0 %2255
    %2273 = vst.msk [vmem:[#allocation3 + $0x4] sm:$0xf] %vm536, %v2226
    %2274 = vst.msk [vmem:[#allocation3 + $0x10] sm:$0xf] %vm536, %v2228
    %2275 = vst.msk [vmem:[#allocation3 + $0x1c] sm:$0xf] %vm536, %v2230
    %2276 = vst.msk [vmem:[#allocation3 + $0x28] sm:$0xf] %vm536, %v2232
    %2277 = vst.msk [vmem:[#allocation3 + $0x34] sm:$0xf] %vm536, %v2234
    %2278 = vst.msk [vmem:[#allocation3 + $0x40] sm:$0xf] %vm536, %v2236
    %2279 = vst.msk [vmem:[#allocation3 + $0x4c] sm:$0xf] %vm536, %v2238
    %2280 = vst.msk [vmem:[#allocation3 + $0x58] sm:$0xf] %vm536, %v2240
    %2281 = vst.msk [vmem:[#allocation3 + $0x64] sm:$0xf] %vm536, %v2242
    %2282 = vst.msk [vmem:[#allocation3 + $0x70] sm:$0xf] %vm536, %v2244
    %2283 = vst.msk [vmem:[#allocation3 + $0x7c] sm:$0xf] %vm536, %v2246
    %2284 = vst.msk [vmem:[#allocation3 + $0x88] sm:$0xf] %vm536, %v2248
    %2285 = vst.msk [vmem:[#allocation3 + $0x94] sm:$0xf] %vm536, %v2250
    %2286 = vst.msk [vmem:[#allocation3 + $0xa0] sm:$0xf] %vm536, %v2252
    %2287 = vst.msk [vmem:[#allocation3 + $0xac] sm:$0xf] %vm536, %v2254
    %2288 = vst.msk [vmem:[#allocation3 + $0xb8] sm:$0xf] %vm536, %v2256
    %v2289 = vld [vmem:[%s713 + $0x2] sm:$0xff]
    %v2290 = vld [vmem:[%s713 + $0x12] sm:$0xff]
    %v2291 = vld [vmem:[%s713 + $0x22] sm:$0xff]
    %v2292 = vld [vmem:[%s713 + $0x32] sm:$0xff]
    %v2293 = vld [vmem:[%s713 + $0x42] sm:$0xff]
    %v2294 = vld [vmem:[%s713 + $0x52] sm:$0xff]
    %v2295 = vld [vmem:[%s713 + $0x62] sm:$0xff]
    %v2296 = vld [vmem:[%s713 + $0x72] sm:$0xff]
    %v2297 = vld [vmem:[%s713 + $0xa2] sm:$0xff]
    %v2298 = vld [vmem:[%s713 + $0xb2] sm:$0xff]
    %v2299 = vld [vmem:[%s713 + $0xc2] sm:$0xff]
    %v2300 = vld [vmem:[%s713 + $0xd2] sm:$0xff]
    %v2301 = vld [vmem:[%s713 + $0xe2] sm:$0xff]
    %v2302 = vld [vmem:[%s713 + $0xf2] sm:$0xff]
    %v2303 = vld [vmem:[%s713 + $0x102] sm:$0xff]
    %v2304 = vld [vmem:[%s713 + $0x112] sm:$0xff]
    %v2305 = vpack.c.bf16 %v2289, %v2289
    %v2306 = vpack.c.bf16 %v2290, %v2290
    %v2307 = vpack.c.bf16 %v2291, %v2291
    %v2308 = vpack.c.bf16 %v2292, %v2292
    %v2309 = vpack.c.bf16 %v2293, %v2293
    %v2310 = vpack.c.bf16 %v2294, %v2294
    %v2311 = vpack.c.bf16 %v2295, %v2295
    %v2312 = vpack.c.bf16 %v2296, %v2296
    %v2313 = vpack.c.bf16 %v2297, %v2297
    %v2314 = vpack.c.bf16 %v2298, %v2298
    %v2315 = vpack.c.bf16 %v2299, %v2299
    %v2316 = vpack.c.bf16 %v2300, %v2300
    %v2317 = vpack.c.bf16 %v2301, %v2301
    %v2318 = vpack.c.bf16 %v2302, %v2302
    %v2319 = vpack.c.bf16 %v2303, %v2303
    %v2320 = vpack.c.bf16 %v2304, %v2304
    %2321 = vst.msk [vmem:[#allocation3 + $0x8] sm:$0xf] %vm197, %v2305
    %2322 = vst.msk [vmem:[#allocation3 + $0x14] sm:$0xf] %vm197, %v2306
    %2323 = vst.msk [vmem:[#allocation3 + $0x20] sm:$0xf] %vm197, %v2307
    %2324 = vst.msk [vmem:[#allocation3 + $0x2c] sm:$0xf] %vm197, %v2308
    %2325 = vst.msk [vmem:[#allocation3 + $0x38] sm:$0xf] %vm197, %v2309
    %2326 = vst.msk [vmem:[#allocation3 + $0x44] sm:$0xf] %vm197, %v2310
    %2327 = vst.msk [vmem:[#allocation3 + $0x50] sm:$0xf] %vm197, %v2311
    %2328 = vst.msk [vmem:[#allocation3 + $0x5c] sm:$0xf] %vm197, %v2312
    %2329 = vst.msk [vmem:[#allocation3 + $0x68] sm:$0xf] %vm197, %v2313
    %2330 = vst.msk [vmem:[#allocation3 + $0x74] sm:$0xf] %vm197, %v2314
    %2331 = vst.msk [vmem:[#allocation3 + $0x80] sm:$0xf] %vm197, %v2315
    %2332 = vst.msk [vmem:[#allocation3 + $0x8c] sm:$0xf] %vm197, %v2316
    %2333 = vst.msk [vmem:[#allocation3 + $0x98] sm:$0xf] %vm197, %v2317
    %2334 = vst.msk [vmem:[#allocation3 + $0xa4] sm:$0xf] %vm197, %v2318
    %2335 = vst.msk [vmem:[#allocation3 + $0xb0] sm:$0xf] %vm197, %v2319
    %2336 = vst.msk [vmem:[#allocation3 + $0xbc] sm:$0xf] %vm197, %v2320
    %v2337 = vld [vmem:[#allocation3] sm:$0xff]
    %v2338 = vld [vmem:[#allocation3 + $0x8] sm:$0xf]
    %v2339 = vld [vmem:[#allocation3 + $0xc] sm:$0xff]
    %v2340 = vld [vmem:[#allocation3 + $0x14] sm:$0xf]
    %v2341 = vld [vmem:[#allocation3 + $0x18] sm:$0xff]
    %v2342 = vld [vmem:[#allocation3 + $0x20] sm:$0xf]
    %v2343 = vld [vmem:[#allocation3 + $0x24] sm:$0xff]
    %v2344 = vld [vmem:[#allocation3 + $0x2c] sm:$0xf]
    %v2345 = vld [vmem:[#allocation3 + $0x30] sm:$0xff]
    %v2346 = vld [vmem:[#allocation3 + $0x38] sm:$0xf]
    %v2347 = vld [vmem:[#allocation3 + $0x3c] sm:$0xff]
    %v2348 = vld [vmem:[#allocation3 + $0x44] sm:$0xf]
    %v2349 = vld [vmem:[#allocation3 + $0x48] sm:$0xff]
    %v2350 = vld [vmem:[#allocation3 + $0x50] sm:$0xf]
    %v2351 = vld [vmem:[#allocation3 + $0x54] sm:$0xff]
    %v2352 = vld [vmem:[#allocation3 + $0x5c] sm:$0xf]
    %v2353 = vld [vmem:[#allocation3 + $0x60] sm:$0xff]
    %v2354 = vld [vmem:[#allocation3 + $0x68] sm:$0xf]
    %v2355 = vld [vmem:[#allocation3 + $0x6c] sm:$0xff]
    %v2356 = vld [vmem:[#allocation3 + $0x74] sm:$0xf]
    %v2357 = vld [vmem:[#allocation3 + $0x78] sm:$0xff]
    %v2358 = vld [vmem:[#allocation3 + $0x80] sm:$0xf]
    %v2359 = vld [vmem:[#allocation3 + $0x84] sm:$0xff]
    %v2360 = vld [vmem:[#allocation3 + $0x8c] sm:$0xf]
    %v2361 = vld [vmem:[#allocation3 + $0x90] sm:$0xff]
    %v2362 = vld [vmem:[#allocation3 + $0x98] sm:$0xf]
    %v2363 = vld [vmem:[#allocation3 + $0x9c] sm:$0xff]
    %v2364 = vld [vmem:[#allocation3 + $0xa4] sm:$0xf]
    %v2365 = vld [vmem:[#allocation3 + $0xa8] sm:$0xff]
    %v2366 = vld [vmem:[#allocation3 + $0xb0] sm:$0xf]
    %v2367 = vld [vmem:[#allocation3 + $0xb4] sm:$0xff]
    %v2368 = vld [vmem:[#allocation3 + $0xbc] sm:$0xf]
    %s2369 = scalar_lea.vmem [#allocation6], 144
    %v2370 = vld [vmem:[%s2369] sm:$0xf]
    %v2371 = vld [vmem:[%s2369 + $0x4] sm:$0xf]
    %v2372 = vld [vmem:[%s2369 + $0x8] sm:$0xf]
    %v2373 = vld [vmem:[%s2369 + $0xc] sm:$0xf]
    %v2374 = vld [vmem:[%s2369 + $0x10] sm:$0xf]
    %v2375 = vld [vmem:[%s2369 + $0x14] sm:$0xf]
    %v2376 = vld [vmem:[%s2369 + $0x18] sm:$0xf]
    %v2377 = vld [vmem:[%s2369 + $0x1c] sm:$0xf]
    %v2378 = vld [vmem:[%s2369 + $0x20] sm:$0xf]
    %v2379 = vld [vmem:[%s2369 + $0x24] sm:$0xf]
    %v2380 = vld [vmem:[%s2369 + $0x28] sm:$0xf]
    %v2381 = vld [vmem:[%s2369 + $0x2c] sm:$0xf]
    %v2382 = vld [vmem:[%s2369 + $0x30] sm:$0xf]
    %v2383 = vld [vmem:[%s2369 + $0x34] sm:$0xf]
    %v2384 = vld [vmem:[%s2369 + $0x38] sm:$0xf]
    %v2385 = vld [vmem:[%s2369 + $0x3c] sm:$0xf]
    %v2386 = vld [vmem:[%s2369 + $0x40] sm:$0xf]
    %v2387 = vld [vmem:[%s2369 + $0x44] sm:$0xf]
    %v2388 = vld [vmem:[%s2369 + $0x48] sm:$0xf]
    %v2389 = vld [vmem:[%s2369 + $0x4c] sm:$0xf]
    %v2390 = vld [vmem:[%s2369 + $0x50] sm:$0xf]
    %v2391 = vld [vmem:[%s2369 + $0x54] sm:$0xf]
    %v2392 = vld [vmem:[%s2369 + $0x58] sm:$0xf]
    %v2393 = vld [vmem:[%s2369 + $0x5c] sm:$0xf]
    %v2394 = vld [vmem:[%s2369 + $0x60] sm:$0xf]
    %v2395 = vld [vmem:[%s2369 + $0x64] sm:$0xf]
    %v2396 = vld [vmem:[%s2369 + $0x68] sm:$0xf]
    %v2397 = vld [vmem:[%s2369 + $0x6c] sm:$0xf]
    %v2398 = vld [vmem:[%s2369 + $0x70] sm:$0xf]
    %v2399 = vld [vmem:[%s2369 + $0x74] sm:$0xf]
    %v2400 = vld [vmem:[%s2369 + $0x78] sm:$0xf]
    %v2401 = vld [vmem:[%s2369 + $0x7c] sm:$0xf]
    %v2402 = vld [vmem:[%s2369 + $0x80] sm:$0xf]
    %v2403 = vld [vmem:[%s2369 + $0x84] sm:$0xf]
    %v2404 = vld [vmem:[%s2369 + $0x88] sm:$0xf]
    %v2405 = vld [vmem:[%s2369 + $0x8c] sm:$0xf]
    %s2406 = scalar_lea.vmem %s2, 1
    %v2407 = vld [vmem:[%s2406] sm:$0x1]
    %v2409 = vperm.slane %v2407, 0
    %v2443 = vunpack.c.l.b16 %v2337
    %v2444 = vunpack.c.h.b16 %v2337
    %v2445 = vunpack.c.l.b16 %v2338
    %v2446 = vunpack.c.l.b16 %v2339
    %v2447 = vunpack.c.h.b16 %v2339
    %v2448 = vunpack.c.l.b16 %v2340
    %v2449 = vunpack.c.l.b16 %v2341
    %v2450 = vunpack.c.h.b16 %v2341
    %v2451 = vunpack.c.l.b16 %v2342
    %v2452 = vunpack.c.l.b16 %v2343
    %v2453 = vunpack.c.h.b16 %v2343
    %v2454 = vunpack.c.l.b16 %v2344
    %v2455 = vunpack.c.l.b16 %v2345
    %v2456 = vunpack.c.h.b16 %v2345
    %v2457 = vunpack.c.l.b16 %v2346
    %v2458 = vunpack.c.l.b16 %v2347
    %v2459 = vunpack.c.h.b16 %v2347
    %v2460 = vunpack.c.l.b16 %v2348
    %v2461 = vunpack.c.l.b16 %v2349
    %v2462 = vunpack.c.h.b16 %v2349
    %v2463 = vunpack.c.l.b16 %v2350
    %v2464 = vunpack.c.l.b16 %v2351
    %v2465 = vunpack.c.h.b16 %v2351
    %v2466 = vunpack.c.l.b16 %v2352
    %v2467 = vunpack.c.l.b16 %v2353
    %v2468 = vunpack.c.h.b16 %v2353
    %v2469 = vunpack.c.l.b16 %v2354
    %v2470 = vunpack.c.l.b16 %v2355
    %v2471 = vunpack.c.h.b16 %v2355
    %v2472 = vunpack.c.l.b16 %v2356
    %v2473 = vunpack.c.l.b16 %v2357
    %v2474 = vunpack.c.h.b16 %v2357
    %v2475 = vunpack.c.l.b16 %v2358
    %v2476 = vunpack.c.l.b16 %v2359
    %v2477 = vunpack.c.h.b16 %v2359
    %v2478 = vunpack.c.l.b16 %v2360
    %v2479 = vunpack.c.l.b16 %v2361
    %v2480 = vunpack.c.h.b16 %v2361
    %v2481 = vunpack.c.l.b16 %v2362
    %v2482 = vunpack.c.l.b16 %v2363
    %v2483 = vunpack.c.h.b16 %v2363
    %v2484 = vunpack.c.l.b16 %v2364
    %v2485 = vunpack.c.l.b16 %v2365
    %v2486 = vunpack.c.h.b16 %v2365
    %v2487 = vunpack.c.l.b16 %v2366
    %v2488 = vunpack.c.l.b16 %v2367
    %v2489 = vunpack.c.h.b16 %v2367
    %v2490 = vunpack.c.l.b16 %v2368
    %v2491 = vpack.c.b16 %v2446, %v2443
    %v2492 = vpack.c.b16 %v2447, %v2444
    %v2493 = vpack.c.b16 %v2448, %v2445
    %v2494 = vpack.c.b16 %v2452, %v2449
    %v2495 = vpack.c.b16 %v2453, %v2450
    %v2496 = vpack.c.b16 %v2454, %v2451
    %v2497 = vpack.c.b16 %v2458, %v2455
    %v2498 = vpack.c.b16 %v2459, %v2456
    %v2499 = vpack.c.b16 %v2460, %v2457
    %v2500 = vpack.c.b16 %v2464, %v2461
    %v2501 = vpack.c.b16 %v2465, %v2462
    %v2502 = vpack.c.b16 %v2466, %v2463
    %v2503 = vpack.c.b16 %v2470, %v2467
    %v2504 = vpack.c.b16 %v2471, %v2468
    %v2505 = vpack.c.b16 %v2472, %v2469
    %v2506 = vpack.c.b16 %v2476, %v2473
    %v2507 = vpack.c.b16 %v2477, %v2474
    %v2508 = vpack.c.b16 %v2478, %v2475
    %v2509 = vpack.c.b16 %v2482, %v2479
    %v2510 = vpack.c.b16 %v2483, %v2480
    %v2511 = vpack.c.b16 %v2484, %v2481
    %v2512 = vpack.c.b16 %v2488, %v2485
    %v2513 = vpack.c.b16 %v2489, %v2486
    %v2514 = vpack.c.b16 %v2490, %v2487
    %v2567 = vunpack.c.l.b16 %v2370
    %v2568 = vunpack.c.l.b16 %v2371
    %v2569 = vunpack.c.l.b16 %v2372
    %v2570 = vunpack.c.l.b16 %v2373
    %v2571 = vunpack.c.l.b16 %v2374
    %v2572 = vunpack.c.l.b16 %v2375
    %v2573 = vunpack.c.l.b16 %v2376
    %v2574 = vunpack.c.l.b16 %v2377
    %v2575 = vunpack.c.l.b16 %v2378
    %v2576 = vunpack.c.l.b16 %v2379
    %v2577 = vunpack.c.l.b16 %v2380
    %v2578 = vunpack.c.l.b16 %v2381
    %v2579 = vunpack.c.l.b16 %v2382
    %v2580 = vunpack.c.l.b16 %v2383
    %v2581 = vunpack.c.l.b16 %v2384
    %v2582 = vunpack.c.l.b16 %v2385
    %v2583 = vunpack.c.l.b16 %v2386
    %v2584 = vunpack.c.l.b16 %v2387
    %v2585 = vunpack.c.l.b16 %v2388
    %v2586 = vunpack.c.l.b16 %v2389
    %v2587 = vunpack.c.l.b16 %v2390
    %v2588 = vunpack.c.l.b16 %v2391
    %v2589 = vunpack.c.l.b16 %v2392
    %v2590 = vunpack.c.l.b16 %v2393
    %v2591 = vunpack.c.l.b16 %v2394
    %v2592 = vunpack.c.l.b16 %v2395
    %v2593 = vunpack.c.l.b16 %v2396
    %v2594 = vunpack.c.l.b16 %v2397
    %v2595 = vunpack.c.l.b16 %v2398
    %v2596 = vunpack.c.l.b16 %v2399
    %v2597 = vunpack.c.l.b16 %v2400
    %v2598 = vunpack.c.l.b16 %v2401
    %v2599 = vunpack.c.l.b16 %v2402
    %v2600 = vunpack.c.l.b16 %v2403
    %v2601 = vunpack.c.l.b16 %v2404
    %v2602 = vunpack.c.l.b16 %v2405
    %v2603 = vpack.c.b16 %v2568, %v2567
    %v2604 = vpack.c.b16 %v2570, %v2569
    %v2605 = vpack.c.b16 %v2572, %v2571
    %v2606 = vpack.c.b16 %v2574, %v2573
    %v2607 = vpack.c.b16 %v2576, %v2575
    %v2608 = vpack.c.b16 %v2578, %v2577
    %v2609 = vpack.c.b16 %v2580, %v2579
    %v2610 = vpack.c.b16 %v2582, %v2581
    %v2611 = vpack.c.b16 %v2584, %v2583
    %v2612 = vpack.c.b16 %v2586, %v2585
    %v2613 = vpack.c.b16 %v2588, %v2587
    %v2614 = vpack.c.b16 %v2590, %v2589
    %v2615 = vpack.c.b16 %v2592, %v2591
    %v2616 = vpack.c.b16 %v2594, %v2593
    %v2617 = vpack.c.b16 %v2596, %v2595
    %v2618 = vpack.c.b16 %v2598, %v2597
    %v2619 = vpack.c.b16 %v2600, %v2599
    %v2620 = vpack.c.b16 %v2602, %v2601
    %v2640 = vsel %vm90, %v2493, 0
    %v2643 = vsel %vm90, %v2496, 0
    %v2646 = vsel %vm90, %v2499, 0
    %v2649 = vsel %vm90, %v2502, 0
    %v2652 = vsel %vm90, %v2505, 0
    %v2655 = vsel %vm90, %v2508, 0
    %v2658 = vsel %vm90, %v2511, 0
    %v2661 = vsel %vm90, %v2514, 0
    %2663 = vmatpush.bf16.msra.mxu0 %v2610
    %2664 = vmatpush.bf16.msra.mxu0 %v2609
    %2665 = vmatpush.bf16.msra.mxu0 %v2608
    %2666 = vmatpush.bf16.msra.mxu0 %v2607
    %2667 = vmatpush.bf16.msra.mxu0 %v2606
    %2668 = vmatpush.bf16.msra.mxu0 %v2605
    %2669 = vmatpush.bf16.msra.mxu0 %v2604
    %2670 = vmatpush.bf16.msra.mxu0 %v2603
    %2671 = vmatmul.bf16.gmra.mxu0 %v2491
    %v2672 = vpop.f32.mrf.mxu0
    %v2673 = vadd.f32 %v2409, %v2672
    %v2674 = vpop.f32.mrf.mxu0
    %v2675 = vadd.f32 %v2409, %v2674
    %2676 = vmatmul.bf16.gmra.mxu0 %v2494
    %v2677 = vpop.f32.mrf.mxu0
    %v2678 = vadd.f32 %v2409, %v2677
    %v2679 = vpop.f32.mrf.mxu0
    %v2680 = vadd.f32 %v2409, %v2679
    %2681 = vmatmul.bf16.gmra.mxu0 %v2497
    %v2682 = vpop.f32.mrf.mxu0
    %v2683 = vadd.f32 %v2409, %v2682
    %v2684 = vpop.f32.mrf.mxu0
    %v2685 = vadd.f32 %v2409, %v2684
    %2686 = vmatmul.bf16.gmra.mxu0 %v2500
    %v2687 = vpop.f32.mrf.mxu0
    %v2688 = vadd.f32 %v2409, %v2687
    %v2689 = vpop.f32.mrf.mxu0
    %v2690 = vadd.f32 %v2409, %v2689
    %2691 = vmatmul.bf16.gmra.mxu0 %v2503
    %v2692 = vpop.f32.mrf.mxu0
    %v2693 = vadd.f32 %v2409, %v2692
    %v2694 = vpop.f32.mrf.mxu0
    %v2695 = vadd.f32 %v2409, %v2694
    %2696 = vmatmul.bf16.gmra.mxu0 %v2506
    %v2697 = vpop.f32.mrf.mxu0
    %v2698 = vadd.f32 %v2409, %v2697
    %v2699 = vpop.f32.mrf.mxu0
    %v2700 = vadd.f32 %v2409, %v2699
    %2701 = vmatmul.bf16.gmra.mxu0 %v2509
    %v2702 = vpop.f32.mrf.mxu0
    %v2703 = vadd.f32 %v2409, %v2702
    %v2704 = vpop.f32.mrf.mxu0
    %v2705 = vadd.f32 %v2409, %v2704
    %2706 = vmatmul.bf16.gmra.mxu0 %v2512
    %v2707 = vpop.f32.mrf.mxu0
    %v2708 = vadd.f32 %v2409, %v2707
    %v2709 = vpop.f32.mrf.mxu0
    %v2710 = vadd.f32 %v2409, %v2709
    %2711 = vdwg.mxu0
    %2712 = vmatpush.bf16.msra.mxu0 %v2618
    %2713 = vmatpush.bf16.msra.mxu0 %v2617
    %2714 = vmatpush.bf16.msra.mxu0 %v2616
    %2715 = vmatpush.bf16.msra.mxu0 %v2615
    %2716 = vmatpush.bf16.msra.mxu0 %v2614
    %2717 = vmatpush.bf16.msra.mxu0 %v2613
    %2718 = vmatpush.bf16.msra.mxu0 %v2612
    %2719 = vmatpush.bf16.msra.mxu0 %v2611
    %2720 = vmatmul.bf16.gmra.mxu0 %v2492
    %v2721 = vpop.f32.mrf.mxu0
    %v2722 = vadd.f32 %v2673, %v2721
    %v2723 = vpop.f32.mrf.mxu0
    %v2724 = vadd.f32 %v2675, %v2723
    %2725 = vmatmul.bf16.gmra.mxu0 %v2495
    %v2726 = vpop.f32.mrf.mxu0
    %v2727 = vadd.f32 %v2678, %v2726
    %v2728 = vpop.f32.mrf.mxu0
    %v2729 = vadd.f32 %v2680, %v2728
    %2730 = vmatmul.bf16.gmra.mxu0 %v2498
    %v2731 = vpop.f32.mrf.mxu0
    %v2732 = vadd.f32 %v2683, %v2731
    %v2733 = vpop.f32.mrf.mxu0
    %v2734 = vadd.f32 %v2685, %v2733
    %2735 = vmatmul.bf16.gmra.mxu0 %v2501
    %v2736 = vpop.f32.mrf.mxu0
    %v2737 = vadd.f32 %v2688, %v2736
    %v2738 = vpop.f32.mrf.mxu0
    %v2739 = vadd.f32 %v2690, %v2738
    %2740 = vmatmul.bf16.gmra.mxu0 %v2504
    %v2741 = vpop.f32.mrf.mxu0
    %v2742 = vadd.f32 %v2693, %v2741
    %v2743 = vpop.f32.mrf.mxu0
    %v2744 = vadd.f32 %v2695, %v2743
    %2745 = vmatmul.bf16.gmra.mxu0 %v2507
    %v2746 = vpop.f32.mrf.mxu0
    %v2747 = vadd.f32 %v2698, %v2746
    %v2748 = vpop.f32.mrf.mxu0
    %v2749 = vadd.f32 %v2700, %v2748
    %2750 = vmatmul.bf16.gmra.mxu0 %v2510
    %v2751 = vpop.f32.mrf.mxu0
    %v2752 = vadd.f32 %v2703, %v2751
    %v2753 = vpop.f32.mrf.mxu0
    %v2754 = vadd.f32 %v2705, %v2753
    %2755 = vmatmul.bf16.gmra.mxu0 %v2513
    %v2756 = vpop.f32.mrf.mxu0
    %v2757 = vadd.f32 %v2708, %v2756
    %v2758 = vpop.f32.mrf.mxu0
    %v2759 = vadd.f32 %v2710, %v2758
    %2760 = vdwg.mxu0
    %2761 = vmatpush.bf16.msra.mxu0 0
    %2762 = vmatpush.bf16.msra.mxu0 0
    %2763 = vmatpush.bf16.msra.mxu0 0
    %2764 = vmatpush.bf16.msra.mxu0 0
    %2765 = vmatpush.bf16.msra.mxu0 0
    %2766 = vmatpush.bf16.msra.mxu0 0
    %2767 = vmatpush.bf16.msra.mxu0 %v2620
    %2768 = vmatpush.bf16.msra.mxu0 %v2619
    %2769 = vmatmul.bf16.gmra.mxu0 %v2640
    %v2770 = vpop.f32.mrf.mxu0
    %v2771 = vadd.f32 %v2722, %v2770
    %v2772 = vpop.f32.mrf.mxu0
    %v2773 = vadd.f32 %v2724, %v2772
    %2774 = vmatmul.bf16.gmra.mxu0 %v2643
    %v2775 = vpop.f32.mrf.mxu0
    %v2776 = vadd.f32 %v2727, %v2775
    %v2777 = vpop.f32.mrf.mxu0
    %v2778 = vadd.f32 %v2729, %v2777
    %2779 = vmatmul.bf16.gmra.mxu0 %v2646
    %v2780 = vpop.f32.mrf.mxu0
    %v2781 = vadd.f32 %v2732, %v2780
    %v2782 = vpop.f32.mrf.mxu0
    %v2783 = vadd.f32 %v2734, %v2782
    %2784 = vmatmul.bf16.gmra.mxu0 %v2649
    %v2785 = vpop.f32.mrf.mxu0
    %v2786 = vadd.f32 %v2737, %v2785
    %v2787 = vpop.f32.mrf.mxu0
    %v2788 = vadd.f32 %v2739, %v2787
    %2789 = vmatmul.bf16.gmra.mxu0 %v2652
    %v2790 = vpop.f32.mrf.mxu0
    %v2791 = vadd.f32 %v2742, %v2790
    %v2792 = vpop.f32.mrf.mxu0
    %v2793 = vadd.f32 %v2744, %v2792
    %2794 = vmatmul.bf16.gmra.mxu0 %v2655
    %v2795 = vpop.f32.mrf.mxu0
    %v2796 = vadd.f32 %v2747, %v2795
    %v2797 = vpop.f32.mrf.mxu0
    %v2798 = vadd.f32 %v2749, %v2797
    %2799 = vmatmul.bf16.gmra.mxu0 %v2658
    %v2800 = vpop.f32.mrf.mxu0
    %v2801 = vadd.f32 %v2752, %v2800
    %v2802 = vpop.f32.mrf.mxu0
    %v2803 = vadd.f32 %v2754, %v2802
    %2804 = vmatmul.bf16.gmra.mxu0 %v2661
    %v2805 = vpop.f32.mrf.mxu0
    %v2806 = vadd.f32 %v2757, %v2805
    %v2807 = vpop.f32.mrf.mxu0
    %v2808 = vadd.f32 %v2759, %v2807
    %2809 = vdwg.mxu0
    %v2810 = vmax.f32 %v2771, 0.0
    %v2811 = vmax.f32 %v2773, 0.0
    %v2812 = vmax.f32 %v2776, 0.0
    %v2813 = vmax.f32 %v2778, 0.0
    %v2814 = vmax.f32 %v2781, 0.0
    %v2815 = vmax.f32 %v2783, 0.0
    %v2816 = vmax.f32 %v2786, 0.0
    %v2817 = vmax.f32 %v2788, 0.0
    %v2818 = vmax.f32 %v2791, 0.0
    %v2819 = vmax.f32 %v2793, 0.0
    %v2820 = vmax.f32 %v2796, 0.0
    %v2821 = vmax.f32 %v2798, 0.0
    %v2822 = vmax.f32 %v2801, 0.0
    %v2823 = vmax.f32 %v2803, 0.0
    %v2824 = vmax.f32 %v2806, 0.0
    %v2825 = vmax.f32 %v2808, 0.0
    %2826 = vst.msk [vmem:[%s148 + $0x1] sm:$0xff] %vm90, %v2810
    %2827 = vst.msk [vmem:[%s148 + $0x11] sm:$0xff] %vm90, %v2811
    %2828 = vst.msk [vmem:[%s148 + $0x21] sm:$0xff] %vm90, %v2812
    %2829 = vst.msk [vmem:[%s148 + $0x31] sm:$0xff] %vm90, %v2813
    %2830 = vst.msk [vmem:[%s148 + $0x41] sm:$0xff] %vm90, %v2814
    %2831 = vst.msk [vmem:[%s148 + $0x51] sm:$0xff] %vm90, %v2815
    %2832 = vst.msk [vmem:[%s148 + $0x61] sm:$0xff] %vm90, %v2816
    %2833 = vst.msk [vmem:[%s148 + $0x71] sm:$0xff] %vm90, %v2817
    %2834 = vst.msk [vmem:[%s148 + $0xa1] sm:$0xff] %vm90, %v2818
    %2835 = vst.msk [vmem:[%s148 + $0xb1] sm:$0xff] %vm90, %v2819
    %2836 = vst.msk [vmem:[%s148 + $0xc1] sm:$0xff] %vm90, %v2820
    %2837 = vst.msk [vmem:[%s148 + $0xd1] sm:$0xff] %vm90, %v2821
    %2838 = vst.msk [vmem:[%s148 + $0xe1] sm:$0xff] %vm90, %v2822
    %2839 = vst.msk [vmem:[%s148 + $0xf1] sm:$0xff] %vm90, %v2823
    %2840 = vst.msk [vmem:[%s148 + $0x101] sm:$0xff] %vm90, %v2824
    %2841 = vst.msk [vmem:[%s148 + $0x111] sm:$0xff] %vm90, %v2825
    %v2842 = vld [vmem:[#allocation2] sm:$0xff]
    %v2843 = vld [vmem:[#allocation2 + $0x10] sm:$0xff]
    %v2844 = vld [vmem:[#allocation2 + $0x20] sm:$0xff]
    %v2845 = vld [vmem:[#allocation2 + $0x30] sm:$0xff]
    %v2846 = vld [vmem:[#allocation2 + $0x40] sm:$0xff]
    %v2847 = vld [vmem:[#allocation2 + $0x50] sm:$0xff]
    %v2848 = vld [vmem:[#allocation2 + $0x60] sm:$0xff]
    %v2849 = vld [vmem:[#allocation2 + $0x70] sm:$0xff]
    %v2850 = vld [vmem:[#allocation2 + $0xa0] sm:$0xff]
    %v2851 = vld [vmem:[#allocation2 + $0xb0] sm:$0xff]
    %v2852 = vld [vmem:[#allocation2 + $0xc0] sm:$0xff]
    %v2853 = vld [vmem:[#allocation2 + $0xd0] sm:$0xff]
    %v2854 = vld [vmem:[#allocation2 + $0xe0] sm:$0xff]
    %v2855 = vld [vmem:[#allocation2 + $0xf0] sm:$0xff]
    %v2856 = vld [vmem:[#allocation2 + $0x100] sm:$0xff]
    %v2857 = vld [vmem:[#allocation2 + $0x110] sm:$0xff]
    %v2858 = vpack.c.bf16 %v2842, %v2842
    %v2859 = vpack.c.bf16 %v2843, %v2843
    %v2860 = vpack.c.bf16 %v2844, %v2844
    %v2861 = vpack.c.bf16 %v2845, %v2845
    %v2862 = vpack.c.bf16 %v2846, %v2846
    %v2863 = vpack.c.bf16 %v2847, %v2847
    %v2864 = vpack.c.bf16 %v2848, %v2848
    %v2865 = vpack.c.bf16 %v2849, %v2849
    %v2866 = vpack.c.bf16 %v2850, %v2850
    %v2867 = vpack.c.bf16 %v2851, %v2851
    %v2868 = vpack.c.bf16 %v2852, %v2852
    %v2869 = vpack.c.bf16 %v2853, %v2853
    %v2870 = vpack.c.bf16 %v2854, %v2854
    %v2871 = vpack.c.bf16 %v2855, %v2855
    %v2872 = vpack.c.bf16 %v2856, %v2856
    %v2873 = vpack.c.bf16 %v2857, %v2857
    %2874 = vst.msk [vmem:[#allocation3] sm:$0xf] %vm197, %v2858
    %2875 = vst.msk [vmem:[#allocation3 + $0xc] sm:$0xf] %vm197, %v2859
    %2876 = vst.msk [vmem:[#allocation3 + $0x18] sm:$0xf] %vm197, %v2860
    %2877 = vst.msk [vmem:[#allocation3 + $0x24] sm:$0xf] %vm197, %v2861
    %2878 = vst.msk [vmem:[#allocation3 + $0x30] sm:$0xf] %vm197, %v2862
    %2879 = vst.msk [vmem:[#allocation3 + $0x3c] sm:$0xf] %vm197, %v2863
    %2880 = vst.msk [vmem:[#allocation3 + $0x48] sm:$0xf] %vm197, %v2864
    %2881 = vst.msk [vmem:[#allocation3 + $0x54] sm:$0xf] %vm197, %v2865
    %2882 = vst.msk [vmem:[#allocation3 + $0x60] sm:$0xf] %vm197, %v2866
    %2883 = vst.msk [vmem:[#allocation3 + $0x6c] sm:$0xf] %vm197, %v2867
    %2884 = vst.msk [vmem:[#allocation3 + $0x78] sm:$0xf] %vm197, %v2868
    %2885 = vst.msk [vmem:[#allocation3 + $0x84] sm:$0xf] %vm197, %v2869
    %2886 = vst.msk [vmem:[#allocation3 + $0x90] sm:$0xf] %vm197, %v2870
    %2887 = vst.msk [vmem:[#allocation3 + $0x9c] sm:$0xf] %vm197, %v2871
    %2888 = vst.msk [vmem:[#allocation3 + $0xa8] sm:$0xf] %vm197, %v2872
    %2889 = vst.msk [vmem:[#allocation3 + $0xb4] sm:$0xf] %vm197, %v2873
    %v2890 = vld [vmem:[#allocation2 + $0x1] sm:$0xff]
    %v2891 = vld [vmem:[#allocation2 + $0x11] sm:$0xff]
    %v2892 = vld [vmem:[#allocation2 + $0x21] sm:$0xff]
    %v2893 = vld [vmem:[#allocation2 + $0x31] sm:$0xff]
    %v2894 = vld [vmem:[#allocation2 + $0x41] sm:$0xff]
    %v2895 = vld [vmem:[#allocation2 + $0x51] sm:$0xff]
    %v2896 = vld [vmem:[#allocation2 + $0x61] sm:$0xff]
    %v2897 = vld [vmem:[#allocation2 + $0x71] sm:$0xff]
    %v2898 = vld [vmem:[#allocation2 + $0xa1] sm:$0xff]
    %v2899 = vld [vmem:[#allocation2 + $0xb1] sm:$0xff]
    %v2900 = vld [vmem:[#allocation2 + $0xc1] sm:$0xff]
    %v2901 = vld [vmem:[#allocation2 + $0xd1] sm:$0xff]
    %v2902 = vld [vmem:[#allocation2 + $0xe1] sm:$0xff]
    %v2903 = vld [vmem:[#allocation2 + $0xf1] sm:$0xff]
    %v2904 = vld [vmem:[#allocation2 + $0x101] sm:$0xff]
    %v2905 = vld [vmem:[#allocation2 + $0x111] sm:$0xff]
    %v2906 = vpack.c.bf16 %v2890, %v2890
    %v2907 = vpack.c.bf16 %v2891, %v2891
    %v2908 = vpack.c.bf16 %v2892, %v2892
    %v2909 = vpack.c.bf16 %v2893, %v2893
    %v2910 = vpack.c.bf16 %v2894, %v2894
    %v2911 = vpack.c.bf16 %v2895, %v2895
    %v2912 = vpack.c.bf16 %v2896, %v2896
    %v2913 = vpack.c.bf16 %v2897, %v2897
    %v2914 = vpack.c.bf16 %v2898, %v2898
    %v2915 = vpack.c.bf16 %v2899, %v2899
    %v2916 = vpack.c.bf16 %v2900, %v2900
    %v2917 = vpack.c.bf16 %v2901, %v2901
    %v2918 = vpack.c.bf16 %v2902, %v2902
    %v2919 = vpack.c.bf16 %v2903, %v2903
    %v2920 = vpack.c.bf16 %v2904, %v2904
    %v2921 = vpack.c.bf16 %v2905, %v2905
    %2938 = vrot.lane.b32.xlu0 %v2906, 32
    %v2939 = vpop.permute.xlu0 %2938
    %2940 = vrot.lane.b32.xlu0 %v2907, 32
    %v2941 = vpop.permute.xlu0 %2940
    %2942 = vrot.lane.b32.xlu0 %v2908, 32
    %v2943 = vpop.permute.xlu0 %2942
    %2944 = vrot.lane.b32.xlu0 %v2909, 32
    %v2945 = vpop.permute.xlu0 %2944
    %2946 = vrot.lane.b32.xlu0 %v2910, 32
    %v2947 = vpop.permute.xlu0 %2946
    %2948 = vrot.lane.b32.xlu0 %v2911, 32
    %v2949 = vpop.permute.xlu0 %2948
    %2950 = vrot.lane.b32.xlu0 %v2912, 32
    %v2951 = vpop.permute.xlu0 %2950
    %2952 = vrot.lane.b32.xlu0 %v2913, 32
    %v2953 = vpop.permute.xlu0 %2952
    %2954 = vrot.lane.b32.xlu0 %v2914, 32
    %v2955 = vpop.permute.xlu0 %2954
    %2956 = vrot.lane.b32.xlu0 %v2915, 32
    %v2957 = vpop.permute.xlu0 %2956
    %2958 = vrot.lane.b32.xlu0 %v2916, 32
    %v2959 = vpop.permute.xlu0 %2958
    %2960 = vrot.lane.b32.xlu0 %v2917, 32
    %v2961 = vpop.permute.xlu0 %2960
    %2962 = vrot.lane.b32.xlu0 %v2918, 32
    %v2963 = vpop.permute.xlu0 %2962
    %2964 = vrot.lane.b32.xlu0 %v2919, 32
    %v2965 = vpop.permute.xlu0 %2964
    %2966 = vrot.lane.b32.xlu0 %v2920, 32
    %v2967 = vpop.permute.xlu0 %2966
    %2968 = vrot.lane.b32.xlu0 %v2921, 32
    %v2969 = vpop.permute.xlu0 %2968
    %2986 = vst.msk [vmem:[#allocation3] sm:$0xf] %vm310, %v2939
    %2987 = vst.msk [vmem:[#allocation3 + $0xc] sm:$0xf] %vm310, %v2941
    %2988 = vst.msk [vmem:[#allocation3 + $0x18] sm:$0xf] %vm310, %v2943
    %2989 = vst.msk [vmem:[#allocation3 + $0x24] sm:$0xf] %vm310, %v2945
    %2990 = vst.msk [vmem:[#allocation3 + $0x30] sm:$0xf] %vm310, %v2947
    %2991 = vst.msk [vmem:[#allocation3 + $0x3c] sm:$0xf] %vm310, %v2949
    %2992 = vst.msk [vmem:[#allocation3 + $0x48] sm:$0xf] %vm310, %v2951
    %2993 = vst.msk [vmem:[#allocation3 + $0x54] sm:$0xf] %vm310, %v2953
    %2994 = vst.msk [vmem:[#allocation3 + $0x60] sm:$0xf] %vm310, %v2955
    %2995 = vst.msk [vmem:[#allocation3 + $0x6c] sm:$0xf] %vm310, %v2957
    %2996 = vst.msk [vmem:[#allocation3 + $0x78] sm:$0xf] %vm310, %v2959
    %2997 = vst.msk [vmem:[#allocation3 + $0x84] sm:$0xf] %vm310, %v2961
    %2998 = vst.msk [vmem:[#allocation3 + $0x90] sm:$0xf] %vm310, %v2963
    %2999 = vst.msk [vmem:[#allocation3 + $0x9c] sm:$0xf] %vm310, %v2965
    %3000 = vst.msk [vmem:[#allocation3 + $0xa8] sm:$0xf] %vm310, %v2967
    %3001 = vst.msk [vmem:[#allocation3 + $0xb4] sm:$0xf] %vm310, %v2969
    %v3002 = vld [vmem:[#allocation2 + $0x2] sm:$0xff]
    %v3003 = vld [vmem:[#allocation2 + $0x12] sm:$0xff]
    %v3004 = vld [vmem:[#allocation2 + $0x22] sm:$0xff]
    %v3005 = vld [vmem:[#allocation2 + $0x32] sm:$0xff]
    %v3006 = vld [vmem:[#allocation2 + $0x42] sm:$0xff]
    %v3007 = vld [vmem:[#allocation2 + $0x52] sm:$0xff]
    %v3008 = vld [vmem:[#allocation2 + $0x62] sm:$0xff]
    %v3009 = vld [vmem:[#allocation2 + $0x72] sm:$0xff]
    %v3010 = vld [vmem:[#allocation2 + $0xa2] sm:$0xff]
    %v3011 = vld [vmem:[#allocation2 + $0xb2] sm:$0xff]
    %v3012 = vld [vmem:[#allocation2 + $0xc2] sm:$0xff]
    %v3013 = vld [vmem:[#allocation2 + $0xd2] sm:$0xff]
    %v3014 = vld [vmem:[#allocation2 + $0xe2] sm:$0xff]
    %v3015 = vld [vmem:[#allocation2 + $0xf2] sm:$0xff]
    %v3016 = vld [vmem:[#allocation2 + $0x102] sm:$0xff]
    %v3017 = vld [vmem:[#allocation2 + $0x112] sm:$0xff]
    %v3018 = vpack.c.bf16 %v3002, %v3002
    %v3019 = vpack.c.bf16 %v3003, %v3003
    %v3020 = vpack.c.bf16 %v3004, %v3004
    %v3021 = vpack.c.bf16 %v3005, %v3005
    %v3022 = vpack.c.bf16 %v3006, %v3006
    %v3023 = vpack.c.bf16 %v3007, %v3007
    %v3024 = vpack.c.bf16 %v3008, %v3008
    %v3025 = vpack.c.bf16 %v3009, %v3009
    %v3026 = vpack.c.bf16 %v3010, %v3010
    %v3027 = vpack.c.bf16 %v3011, %v3011
    %v3028 = vpack.c.bf16 %v3012, %v3012
    %v3029 = vpack.c.bf16 %v3013, %v3013
    %v3030 = vpack.c.bf16 %v3014, %v3014
    %v3031 = vpack.c.bf16 %v3015, %v3015
    %v3032 = vpack.c.bf16 %v3016, %v3016
    %v3033 = vpack.c.bf16 %v3017, %v3017
    %3050 = vrot.lane.b32.xlu0 %v3018, 64
    %v3051 = vpop.permute.xlu0 %3050
    %3052 = vrot.lane.b32.xlu0 %v3019, 64
    %v3053 = vpop.permute.xlu0 %3052
    %3054 = vrot.lane.b32.xlu0 %v3020, 64
    %v3055 = vpop.permute.xlu0 %3054
    %3056 = vrot.lane.b32.xlu0 %v3021, 64
    %v3057 = vpop.permute.xlu0 %3056
    %3058 = vrot.lane.b32.xlu0 %v3022, 64
    %v3059 = vpop.permute.xlu0 %3058
    %3060 = vrot.lane.b32.xlu0 %v3023, 64
    %v3061 = vpop.permute.xlu0 %3060
    %3062 = vrot.lane.b32.xlu0 %v3024, 64
    %v3063 = vpop.permute.xlu0 %3062
    %3064 = vrot.lane.b32.xlu0 %v3025, 64
    %v3065 = vpop.permute.xlu0 %3064
    %3066 = vrot.lane.b32.xlu0 %v3026, 64
    %v3067 = vpop.permute.xlu0 %3066
    %3068 = vrot.lane.b32.xlu0 %v3027, 64
    %v3069 = vpop.permute.xlu0 %3068
    %3070 = vrot.lane.b32.xlu0 %v3028, 64
    %v3071 = vpop.permute.xlu0 %3070
    %3072 = vrot.lane.b32.xlu0 %v3029, 64
    %v3073 = vpop.permute.xlu0 %3072
    %3074 = vrot.lane.b32.xlu0 %v3030, 64
    %v3075 = vpop.permute.xlu0 %3074
    %3076 = vrot.lane.b32.xlu0 %v3031, 64
    %v3077 = vpop.permute.xlu0 %3076
    %3078 = vrot.lane.b32.xlu0 %v3032, 64
    %v3079 = vpop.permute.xlu0 %3078
    %3080 = vrot.lane.b32.xlu0 %v3033, 64
    %v3081 = vpop.permute.xlu0 %3080
    %3098 = vst.msk [vmem:[#allocation3] sm:$0xf] %vm423, %v3051
    %3099 = vst.msk [vmem:[#allocation3 + $0xc] sm:$0xf] %vm423, %v3053
    %3100 = vst.msk [vmem:[#allocation3 + $0x18] sm:$0xf] %vm423, %v3055
    %3101 = vst.msk [vmem:[#allocation3 + $0x24] sm:$0xf] %vm423, %v3057
    %3102 = vst.msk [vmem:[#allocation3 + $0x30] sm:$0xf] %vm423, %v3059
    %3103 = vst.msk [vmem:[#allocation3 + $0x3c] sm:$0xf] %vm423, %v3061
    %3104 = vst.msk [vmem:[#allocation3 + $0x48] sm:$0xf] %vm423, %v3063
    %3105 = vst.msk [vmem:[#allocation3 + $0x54] sm:$0xf] %vm423, %v3065
    %3106 = vst.msk [vmem:[#allocation3 + $0x60] sm:$0xf] %vm423, %v3067
    %3107 = vst.msk [vmem:[#allocation3 + $0x6c] sm:$0xf] %vm423, %v3069
    %3108 = vst.msk [vmem:[#allocation3 + $0x78] sm:$0xf] %vm423, %v3071
    %3109 = vst.msk [vmem:[#allocation3 + $0x84] sm:$0xf] %vm423, %v3073
    %3110 = vst.msk [vmem:[#allocation3 + $0x90] sm:$0xf] %vm423, %v3075
    %3111 = vst.msk [vmem:[#allocation3 + $0x9c] sm:$0xf] %vm423, %v3077
    %3112 = vst.msk [vmem:[#allocation3 + $0xa8] sm:$0xf] %vm423, %v3079
    %3113 = vst.msk [vmem:[#allocation3 + $0xb4] sm:$0xf] %vm423, %v3081
    %v3114 = vld [vmem:[%s148] sm:$0xff]
    %v3115 = vld [vmem:[%s148 + $0x10] sm:$0xff]
    %v3116 = vld [vmem:[%s148 + $0x20] sm:$0xff]
    %v3117 = vld [vmem:[%s148 + $0x30] sm:$0xff]
    %v3118 = vld [vmem:[%s148 + $0x40] sm:$0xff]
    %v3119 = vld [vmem:[%s148 + $0x50] sm:$0xff]
    %v3120 = vld [vmem:[%s148 + $0x60] sm:$0xff]
    %v3121 = vld [vmem:[%s148 + $0x70] sm:$0xff]
    %v3122 = vld [vmem:[%s148 + $0xa0] sm:$0xff]
    %v3123 = vld [vmem:[%s148 + $0xb0] sm:$0xff]
    %v3124 = vld [vmem:[%s148 + $0xc0] sm:$0xff]
    %v3125 = vld [vmem:[%s148 + $0xd0] sm:$0xff]
    %v3126 = vld [vmem:[%s148 + $0xe0] sm:$0xff]
    %v3127 = vld [vmem:[%s148 + $0xf0] sm:$0xff]
    %v3128 = vld [vmem:[%s148 + $0x100] sm:$0xff]
    %v3129 = vld [vmem:[%s148 + $0x110] sm:$0xff]
    %v3130 = vpack.c.bf16 %v3114, %v3114
    %v3131 = vpack.c.bf16 %v3115, %v3115
    %v3132 = vpack.c.bf16 %v3116, %v3116
    %v3133 = vpack.c.bf16 %v3117, %v3117
    %v3134 = vpack.c.bf16 %v3118, %v3118
    %v3135 = vpack.c.bf16 %v3119, %v3119
    %v3136 = vpack.c.bf16 %v3120, %v3120
    %v3137 = vpack.c.bf16 %v3121, %v3121
    %v3138 = vpack.c.bf16 %v3122, %v3122
    %v3139 = vpack.c.bf16 %v3123, %v3123
    %v3140 = vpack.c.bf16 %v3124, %v3124
    %v3141 = vpack.c.bf16 %v3125, %v3125
    %v3142 = vpack.c.bf16 %v3126, %v3126
    %v3143 = vpack.c.bf16 %v3127, %v3127
    %v3144 = vpack.c.bf16 %v3128, %v3128
    %v3145 = vpack.c.bf16 %v3129, %v3129
    %3162 = vrot.lane.b32.xlu0 %v3130, 96
    %v3163 = vpop.permute.xlu0 %3162
    %3164 = vrot.lane.b32.xlu0 %v3131, 96
    %v3165 = vpop.permute.xlu0 %3164
    %3166 = vrot.lane.b32.xlu0 %v3132, 96
    %v3167 = vpop.permute.xlu0 %3166
    %3168 = vrot.lane.b32.xlu0 %v3133, 96
    %v3169 = vpop.permute.xlu0 %3168
    %3170 = vrot.lane.b32.xlu0 %v3134, 96
    %v3171 = vpop.permute.xlu0 %3170
    %3172 = vrot.lane.b32.xlu0 %v3135, 96
    %v3173 = vpop.permute.xlu0 %3172
    %3174 = vrot.lane.b32.xlu0 %v3136, 96
    %v3175 = vpop.permute.xlu0 %3174
    %3176 = vrot.lane.b32.xlu0 %v3137, 96
    %v3177 = vpop.permute.xlu0 %3176
    %3178 = vrot.lane.b32.xlu0 %v3138, 96
    %v3179 = vpop.permute.xlu0 %3178
    %3180 = vrot.lane.b32.xlu0 %v3139, 96
    %v3181 = vpop.permute.xlu0 %3180
    %3182 = vrot.lane.b32.xlu0 %v3140, 96
    %v3183 = vpop.permute.xlu0 %3182
    %3184 = vrot.lane.b32.xlu0 %v3141, 96
    %v3185 = vpop.permute.xlu0 %3184
    %3186 = vrot.lane.b32.xlu0 %v3142, 96
    %v3187 = vpop.permute.xlu0 %3186
    %3188 = vrot.lane.b32.xlu0 %v3143, 96
    %v3189 = vpop.permute.xlu0 %3188
    %3190 = vrot.lane.b32.xlu0 %v3144, 96
    %v3191 = vpop.permute.xlu0 %3190
    %3192 = vrot.lane.b32.xlu0 %v3145, 96
    %v3193 = vpop.permute.xlu0 %3192
    %3210 = vst.msk [vmem:[#allocation3] sm:$0xf] %vm536, %v3163
    %3211 = vst.msk [vmem:[#allocation3 + $0xc] sm:$0xf] %vm536, %v3165
    %3212 = vst.msk [vmem:[#allocation3 + $0x18] sm:$0xf] %vm536, %v3167
    %3213 = vst.msk [vmem:[#allocation3 + $0x24] sm:$0xf] %vm536, %v3169
    %3214 = vst.msk [vmem:[#allocation3 + $0x30] sm:$0xf] %vm536, %v3171
    %3215 = vst.msk [vmem:[#allocation3 + $0x3c] sm:$0xf] %vm536, %v3173
    %3216 = vst.msk [vmem:[#allocation3 + $0x48] sm:$0xf] %vm536, %v3175
    %3217 = vst.msk [vmem:[#allocation3 + $0x54] sm:$0xf] %vm536, %v3177
    %3218 = vst.msk [vmem:[#allocation3 + $0x60] sm:$0xf] %vm536, %v3179
    %3219 = vst.msk [vmem:[#allocation3 + $0x6c] sm:$0xf] %vm536, %v3181
    %3220 = vst.msk [vmem:[#allocation3 + $0x78] sm:$0xf] %vm536, %v3183
    %3221 = vst.msk [vmem:[#allocation3 + $0x84] sm:$0xf] %vm536, %v3185
    %3222 = vst.msk [vmem:[#allocation3 + $0x90] sm:$0xf] %vm536, %v3187
    %3223 = vst.msk [vmem:[#allocation3 + $0x9c] sm:$0xf] %vm536, %v3189
    %3224 = vst.msk [vmem:[#allocation3 + $0xa8] sm:$0xf] %vm536, %v3191
    %3225 = vst.msk [vmem:[#allocation3 + $0xb4] sm:$0xf] %vm536, %v3193
    %v3226 = vld [vmem:[%s148 + $0x1] sm:$0xff]
    %v3227 = vld [vmem:[%s148 + $0x11] sm:$0xff]
    %v3228 = vld [vmem:[%s148 + $0x21] sm:$0xff]
    %v3229 = vld [vmem:[%s148 + $0x31] sm:$0xff]
    %v3230 = vld [vmem:[%s148 + $0x41] sm:$0xff]
    %v3231 = vld [vmem:[%s148 + $0x51] sm:$0xff]
    %v3232 = vld [vmem:[%s148 + $0x61] sm:$0xff]
    %v3233 = vld [vmem:[%s148 + $0x71] sm:$0xff]
    %v3234 = vld [vmem:[%s148 + $0xa1] sm:$0xff]
    %v3235 = vld [vmem:[%s148 + $0xb1] sm:$0xff]
    %v3236 = vld [vmem:[%s148 + $0xc1] sm:$0xff]
    %v3237 = vld [vmem:[%s148 + $0xd1] sm:$0xff]
    %v3238 = vld [vmem:[%s148 + $0xe1] sm:$0xff]
    %v3239 = vld [vmem:[%s148 + $0xf1] sm:$0xff]
    %v3240 = vld [vmem:[%s148 + $0x101] sm:$0xff]
    %v3241 = vld [vmem:[%s148 + $0x111] sm:$0xff]
    %v3242 = vpack.c.bf16 %v3226, %v3226
    %v3243 = vpack.c.bf16 %v3227, %v3227
    %v3244 = vpack.c.bf16 %v3228, %v3228
    %v3245 = vpack.c.bf16 %v3229, %v3229
    %v3246 = vpack.c.bf16 %v3230, %v3230
    %v3247 = vpack.c.bf16 %v3231, %v3231
    %v3248 = vpack.c.bf16 %v3232, %v3232
    %v3249 = vpack.c.bf16 %v3233, %v3233
    %v3250 = vpack.c.bf16 %v3234, %v3234
    %v3251 = vpack.c.bf16 %v3235, %v3235
    %v3252 = vpack.c.bf16 %v3236, %v3236
    %v3253 = vpack.c.bf16 %v3237, %v3237
    %v3254 = vpack.c.bf16 %v3238, %v3238
    %v3255 = vpack.c.bf16 %v3239, %v3239
    %v3256 = vpack.c.bf16 %v3240, %v3240
    %v3257 = vpack.c.bf16 %v3241, %v3241
    %3258 = vst.msk [vmem:[#allocation3 + $0x4] sm:$0xf] %vm197, %v3242
    %3259 = vst.msk [vmem:[#allocation3 + $0x10] sm:$0xf] %vm197, %v3243
    %3260 = vst.msk [vmem:[#allocation3 + $0x1c] sm:$0xf] %vm197, %v3244
    %3261 = vst.msk [vmem:[#allocation3 + $0x28] sm:$0xf] %vm197, %v3245
    %3262 = vst.msk [vmem:[#allocation3 + $0x34] sm:$0xf] %vm197, %v3246
    %3263 = vst.msk [vmem:[#allocation3 + $0x40] sm:$0xf] %vm197, %v3247
    %3264 = vst.msk [vmem:[#allocation3 + $0x4c] sm:$0xf] %vm197, %v3248
    %3265 = vst.msk [vmem:[#allocation3 + $0x58] sm:$0xf] %vm197, %v3249
    %3266 = vst.msk [vmem:[#allocation3 + $0x64] sm:$0xf] %vm197, %v3250
    %3267 = vst.msk [vmem:[#allocation3 + $0x70] sm:$0xf] %vm197, %v3251
    %3268 = vst.msk [vmem:[#allocation3 + $0x7c] sm:$0xf] %vm197, %v3252
    %3269 = vst.msk [vmem:[#allocation3 + $0x88] sm:$0xf] %vm197, %v3253
    %3270 = vst.msk [vmem:[#allocation3 + $0x94] sm:$0xf] %vm197, %v3254
    %3271 = vst.msk [vmem:[#allocation3 + $0xa0] sm:$0xf] %vm197, %v3255
    %3272 = vst.msk [vmem:[#allocation3 + $0xac] sm:$0xf] %vm197, %v3256
    %3273 = vst.msk [vmem:[#allocation3 + $0xb8] sm:$0xf] %vm197, %v3257
    %v3274 = vld [vmem:[%s148 + $0x2] sm:$0xff]
    %v3275 = vld [vmem:[%s148 + $0x12] sm:$0xff]
    %v3276 = vld [vmem:[%s148 + $0x22] sm:$0xff]
    %v3277 = vld [vmem:[%s148 + $0x32] sm:$0xff]
    %v3278 = vld [vmem:[%s148 + $0x42] sm:$0xff]
    %v3279 = vld [vmem:[%s148 + $0x52] sm:$0xff]
    %v3280 = vld [vmem:[%s148 + $0x62] sm:$0xff]
    %v3281 = vld [vmem:[%s148 + $0x72] sm:$0xff]
    %v3282 = vld [vmem:[%s148 + $0xa2] sm:$0xff]
    %v3283 = vld [vmem:[%s148 + $0xb2] sm:$0xff]
    %v3284 = vld [vmem:[%s148 + $0xc2] sm:$0xff]
    %v3285 = vld [vmem:[%s148 + $0xd2] sm:$0xff]
    %v3286 = vld [vmem:[%s148 + $0xe2] sm:$0xff]
    %v3287 = vld [vmem:[%s148 + $0xf2] sm:$0xff]
    %v3288 = vld [vmem:[%s148 + $0x102] sm:$0xff]
    %v3289 = vld [vmem:[%s148 + $0x112] sm:$0xff]
    %v3290 = vpack.c.bf16 %v3274, %v3274
    %v3291 = vpack.c.bf16 %v3275, %v3275
    %v3292 = vpack.c.bf16 %v3276, %v3276
    %v3293 = vpack.c.bf16 %v3277, %v3277
    %v3294 = vpack.c.bf16 %v3278, %v3278
    %v3295 = vpack.c.bf16 %v3279, %v3279
    %v3296 = vpack.c.bf16 %v3280, %v3280
    %v3297 = vpack.c.bf16 %v3281, %v3281
    %v3298 = vpack.c.bf16 %v3282, %v3282
    %v3299 = vpack.c.bf16 %v3283, %v3283
    %v3300 = vpack.c.bf16 %v3284, %v3284
    %v3301 = vpack.c.bf16 %v3285, %v3285
    %v3302 = vpack.c.bf16 %v3286, %v3286
    %v3303 = vpack.c.bf16 %v3287, %v3287
    %v3304 = vpack.c.bf16 %v3288, %v3288
    %v3305 = vpack.c.bf16 %v3289, %v3289
    %3322 = vrot.lane.b32.xlu0 %v3290, 32
    %v3323 = vpop.permute.xlu0 %3322
    %3324 = vrot.lane.b32.xlu0 %v3291, 32
    %v3325 = vpop.permute.xlu0 %3324
    %3326 = vrot.lane.b32.xlu0 %v3292, 32
    %v3327 = vpop.permute.xlu0 %3326
    %3328 = vrot.lane.b32.xlu0 %v3293, 32
    %v3329 = vpop.permute.xlu0 %3328
    %3330 = vrot.lane.b32.xlu0 %v3294, 32
    %v3331 = vpop.permute.xlu0 %3330
    %3332 = vrot.lane.b32.xlu0 %v3295, 32
    %v3333 = vpop.permute.xlu0 %3332
    %3334 = vrot.lane.b32.xlu0 %v3296, 32
    %v3335 = vpop.permute.xlu0 %3334
    %3336 = vrot.lane.b32.xlu0 %v3297, 32
    %v3337 = vpop.permute.xlu0 %3336
    %3338 = vrot.lane.b32.xlu0 %v3298, 32
    %v3339 = vpop.permute.xlu0 %3338
    %3340 = vrot.lane.b32.xlu0 %v3299, 32
    %v3341 = vpop.permute.xlu0 %3340
    %3342 = vrot.lane.b32.xlu0 %v3300, 32
    %v3343 = vpop.permute.xlu0 %3342
    %3344 = vrot.lane.b32.xlu0 %v3301, 32
    %v3345 = vpop.permute.xlu0 %3344
    %3346 = vrot.lane.b32.xlu0 %v3302, 32
    %v3347 = vpop.permute.xlu0 %3346
    %3348 = vrot.lane.b32.xlu0 %v3303, 32
    %v3349 = vpop.permute.xlu0 %3348
    %3350 = vrot.lane.b32.xlu0 %v3304, 32
    %v3351 = vpop.permute.xlu0 %3350
    %3352 = vrot.lane.b32.xlu0 %v3305, 32
    %v3353 = vpop.permute.xlu0 %3352
    %3370 = vst.msk [vmem:[#allocation3 + $0x4] sm:$0xf] %vm310, %v3323
    %3371 = vst.msk [vmem:[#allocation3 + $0x10] sm:$0xf] %vm310, %v3325
    %3372 = vst.msk [vmem:[#allocation3 + $0x1c] sm:$0xf] %vm310, %v3327
    %3373 = vst.msk [vmem:[#allocation3 + $0x28] sm:$0xf] %vm310, %v3329
    %3374 = vst.msk [vmem:[#allocation3 + $0x34] sm:$0xf] %vm310, %v3331
    %3375 = vst.msk [vmem:[#allocation3 + $0x40] sm:$0xf] %vm310, %v3333
    %3376 = vst.msk [vmem:[#allocation3 + $0x4c] sm:$0xf] %vm310, %v3335
    %3377 = vst.msk [vmem:[#allocation3 + $0x58] sm:$0xf] %vm310, %v3337
    %3378 = vst.msk [vmem:[#allocation3 + $0x64] sm:$0xf] %vm310, %v3339
    %3379 = vst.msk [vmem:[#allocation3 + $0x70] sm:$0xf] %vm310, %v3341
    %3380 = vst.msk [vmem:[#allocation3 + $0x7c] sm:$0xf] %vm310, %v3343
    %3381 = vst.msk [vmem:[#allocation3 + $0x88] sm:$0xf] %vm310, %v3345
    %3382 = vst.msk [vmem:[#allocation3 + $0x94] sm:$0xf] %vm310, %v3347
    %3383 = vst.msk [vmem:[#allocation3 + $0xa0] sm:$0xf] %vm310, %v3349
    %3384 = vst.msk [vmem:[#allocation3 + $0xac] sm:$0xf] %vm310, %v3351
    %3385 = vst.msk [vmem:[#allocation3 + $0xb8] sm:$0xf] %vm310, %v3353
    %v3386 = vld [vmem:[%s713] sm:$0xff]
    %v3387 = vld [vmem:[%s713 + $0x10] sm:$0xff]
    %v3388 = vld [vmem:[%s713 + $0x20] sm:$0xff]
    %v3389 = vld [vmem:[%s713 + $0x30] sm:$0xff]
    %v3390 = vld [vmem:[%s713 + $0x40] sm:$0xff]
    %v3391 = vld [vmem:[%s713 + $0x50] sm:$0xff]
    %v3392 = vld [vmem:[%s713 + $0x60] sm:$0xff]
    %v3393 = vld [vmem:[%s713 + $0x70] sm:$0xff]
    %v3394 = vld [vmem:[%s713 + $0xa0] sm:$0xff]
    %v3395 = vld [vmem:[%s713 + $0xb0] sm:$0xff]
    %v3396 = vld [vmem:[%s713 + $0xc0] sm:$0xff]
    %v3397 = vld [vmem:[%s713 + $0xd0] sm:$0xff]
    %v3398 = vld [vmem:[%s713 + $0xe0] sm:$0xff]
    %v3399 = vld [vmem:[%s713 + $0xf0] sm:$0xff]
    %v3400 = vld [vmem:[%s713 + $0x100] sm:$0xff]
    %v3401 = vld [vmem:[%s713 + $0x110] sm:$0xff]
    %v3402 = vpack.c.bf16 %v3386, %v3386
    %v3403 = vpack.c.bf16 %v3387, %v3387
    %v3404 = vpack.c.bf16 %v3388, %v3388
    %v3405 = vpack.c.bf16 %v3389, %v3389
    %v3406 = vpack.c.bf16 %v3390, %v3390
    %v3407 = vpack.c.bf16 %v3391, %v3391
    %v3408 = vpack.c.bf16 %v3392, %v3392
    %v3409 = vpack.c.bf16 %v3393, %v3393
    %v3410 = vpack.c.bf16 %v3394, %v3394
    %v3411 = vpack.c.bf16 %v3395, %v3395
    %v3412 = vpack.c.bf16 %v3396, %v3396
    %v3413 = vpack.c.bf16 %v3397, %v3397
    %v3414 = vpack.c.bf16 %v3398, %v3398
    %v3415 = vpack.c.bf16 %v3399, %v3399
    %v3416 = vpack.c.bf16 %v3400, %v3400
    %v3417 = vpack.c.bf16 %v3401, %v3401
    %3434 = vrot.lane.b32.xlu0 %v3402, 64
    %v3435 = vpop.permute.xlu0 %3434
    %3436 = vrot.lane.b32.xlu0 %v3403, 64
    %v3437 = vpop.permute.xlu0 %3436
    %3438 = vrot.lane.b32.xlu0 %v3404, 64
    %v3439 = vpop.permute.xlu0 %3438
    %3440 = vrot.lane.b32.xlu0 %v3405, 64
    %v3441 = vpop.permute.xlu0 %3440
    %3442 = vrot.lane.b32.xlu0 %v3406, 64
    %v3443 = vpop.permute.xlu0 %3442
    %3444 = vrot.lane.b32.xlu0 %v3407, 64
    %v3445 = vpop.permute.xlu0 %3444
    %3446 = vrot.lane.b32.xlu0 %v3408, 64
    %v3447 = vpop.permute.xlu0 %3446
    %3448 = vrot.lane.b32.xlu0 %v3409, 64
    %v3449 = vpop.permute.xlu0 %3448
    %3450 = vrot.lane.b32.xlu0 %v3410, 64
    %v3451 = vpop.permute.xlu0 %3450
    %3452 = vrot.lane.b32.xlu0 %v3411, 64
    %v3453 = vpop.permute.xlu0 %3452
    %3454 = vrot.lane.b32.xlu0 %v3412, 64
    %v3455 = vpop.permute.xlu0 %3454
    %3456 = vrot.lane.b32.xlu0 %v3413, 64
    %v3457 = vpop.permute.xlu0 %3456
    %3458 = vrot.lane.b32.xlu0 %v3414, 64
    %v3459 = vpop.permute.xlu0 %3458
    %3460 = vrot.lane.b32.xlu0 %v3415, 64
    %v3461 = vpop.permute.xlu0 %3460
    %3462 = vrot.lane.b32.xlu0 %v3416, 64
    %v3463 = vpop.permute.xlu0 %3462
    %3464 = vrot.lane.b32.xlu0 %v3417, 64
    %v3465 = vpop.permute.xlu0 %3464
    %3482 = vst.msk [vmem:[#allocation3 + $0x4] sm:$0xf] %vm423, %v3435
    %3483 = vst.msk [vmem:[#allocation3 + $0x10] sm:$0xf] %vm423, %v3437
    %3484 = vst.msk [vmem:[#allocation3 + $0x1c] sm:$0xf] %vm423, %v3439
    %3485 = vst.msk [vmem:[#allocation3 + $0x28] sm:$0xf] %vm423, %v3441
    %3486 = vst.msk [vmem:[#allocation3 + $0x34] sm:$0xf] %vm423, %v3443
    %3487 = vst.msk [vmem:[#allocation3 + $0x40] sm:$0xf] %vm423, %v3445
    %3488 = vst.msk [vmem:[#allocation3 + $0x4c] sm:$0xf] %vm423, %v3447
    %3489 = vst.msk [vmem:[#allocation3 + $0x58] sm:$0xf] %vm423, %v3449
    %3490 = vst.msk [vmem:[#allocation3 + $0x64] sm:$0xf] %vm423, %v3451
    %3491 = vst.msk [vmem:[#allocation3 + $0x70] sm:$0xf] %vm423, %v3453
    %3492 = vst.msk [vmem:[#allocation3 + $0x7c] sm:$0xf] %vm423, %v3455
    %3493 = vst.msk [vmem:[#allocation3 + $0x88] sm:$0xf] %vm423, %v3457
    %3494 = vst.msk [vmem:[#allocation3 + $0x94] sm:$0xf] %vm423, %v3459
    %3495 = vst.msk [vmem:[#allocation3 + $0xa0] sm:$0xf] %vm423, %v3461
    %3496 = vst.msk [vmem:[#allocation3 + $0xac] sm:$0xf] %vm423, %v3463
    %3497 = vst.msk [vmem:[#allocation3 + $0xb8] sm:$0xf] %vm423, %v3465
    %v3498 = vld [vmem:[%s713 + $0x1] sm:$0xff]
    %v3499 = vld [vmem:[%s713 + $0x11] sm:$0xff]
    %v3500 = vld [vmem:[%s713 + $0x21] sm:$0xff]
    %v3501 = vld [vmem:[%s713 + $0x31] sm:$0xff]
    %v3502 = vld [vmem:[%s713 + $0x41] sm:$0xff]
    %v3503 = vld [vmem:[%s713 + $0x51] sm:$0xff]
    %v3504 = vld [vmem:[%s713 + $0x61] sm:$0xff]
    %v3505 = vld [vmem:[%s713 + $0x71] sm:$0xff]
    %v3506 = vld [vmem:[%s713 + $0xa1] sm:$0xff]
    %v3507 = vld [vmem:[%s713 + $0xb1] sm:$0xff]
    %v3508 = vld [vmem:[%s713 + $0xc1] sm:$0xff]
    %v3509 = vld [vmem:[%s713 + $0xd1] sm:$0xff]
    %v3510 = vld [vmem:[%s713 + $0xe1] sm:$0xff]
    %v3511 = vld [vmem:[%s713 + $0xf1] sm:$0xff]
    %v3512 = vld [vmem:[%s713 + $0x101] sm:$0xff]
    %v3513 = vld [vmem:[%s713 + $0x111] sm:$0xff]
    %v3514 = vpack.c.bf16 %v3498, %v3498
    %v3515 = vpack.c.bf16 %v3499, %v3499
    %v3516 = vpack.c.bf16 %v3500, %v3500
    %v3517 = vpack.c.bf16 %v3501, %v3501
    %v3518 = vpack.c.bf16 %v3502, %v3502
    %v3519 = vpack.c.bf16 %v3503, %v3503
    %v3520 = vpack.c.bf16 %v3504, %v3504
    %v3521 = vpack.c.bf16 %v3505, %v3505
    %v3522 = vpack.c.bf16 %v3506, %v3506
    %v3523 = vpack.c.bf16 %v3507, %v3507
    %v3524 = vpack.c.bf16 %v3508, %v3508
    %v3525 = vpack.c.bf16 %v3509, %v3509
    %v3526 = vpack.c.bf16 %v3510, %v3510
    %v3527 = vpack.c.bf16 %v3511, %v3511
    %v3528 = vpack.c.bf16 %v3512, %v3512
    %v3529 = vpack.c.bf16 %v3513, %v3513
    %3546 = vrot.lane.b32.xlu0 %v3514, 96
    %v3547 = vpop.permute.xlu0 %3546
    %3548 = vrot.lane.b32.xlu0 %v3515, 96
    %v3549 = vpop.permute.xlu0 %3548
    %3550 = vrot.lane.b32.xlu0 %v3516, 96
    %v3551 = vpop.permute.xlu0 %3550
    %3552 = vrot.lane.b32.xlu0 %v3517, 96
    %v3553 = vpop.permute.xlu0 %3552
    %3554 = vrot.lane.b32.xlu0 %v3518, 96
    %v3555 = vpop.permute.xlu0 %3554
    %3556 = vrot.lane.b32.xlu0 %v3519, 96
    %v3557 = vpop.permute.xlu0 %3556
    %3558 = vrot.lane.b32.xlu0 %v3520, 96
    %v3559 = vpop.permute.xlu0 %3558
    %3560 = vrot.lane.b32.xlu0 %v3521, 96
    %v3561 = vpop.permute.xlu0 %3560
    %3562 = vrot.lane.b32.xlu0 %v3522, 96
    %v3563 = vpop.permute.xlu0 %3562
    %3564 = vrot.lane.b32.xlu0 %v3523, 96
    %v3565 = vpop.permute.xlu0 %3564
    %3566 = vrot.lane.b32.xlu0 %v3524, 96
    %v3567 = vpop.permute.xlu0 %3566
    %3568 = vrot.lane.b32.xlu0 %v3525, 96
    %v3569 = vpop.permute.xlu0 %3568
    %3570 = vrot.lane.b32.xlu0 %v3526, 96
    %v3571 = vpop.permute.xlu0 %3570
    %3572 = vrot.lane.b32.xlu0 %v3527, 96
    %v3573 = vpop.permute.xlu0 %3572
    %3574 = vrot.lane.b32.xlu0 %v3528, 96
    %v3575 = vpop.permute.xlu0 %3574
    %3576 = vrot.lane.b32.xlu0 %v3529, 96
    %v3577 = vpop.permute.xlu0 %3576
    %3594 = vst.msk [vmem:[#allocation3 + $0x4] sm:$0xf] %vm536, %v3547
    %3595 = vst.msk [vmem:[#allocation3 + $0x10] sm:$0xf] %vm536, %v3549
    %3596 = vst.msk [vmem:[#allocation3 + $0x1c] sm:$0xf] %vm536, %v3551
    %3597 = vst.msk [vmem:[#allocation3 + $0x28] sm:$0xf] %vm536, %v3553
    %3598 = vst.msk [vmem:[#allocation3 + $0x34] sm:$0xf] %vm536, %v3555
    %3599 = vst.msk [vmem:[#allocation3 + $0x40] sm:$0xf] %vm536, %v3557
    %3600 = vst.msk [vmem:[#allocation3 + $0x4c] sm:$0xf] %vm536, %v3559
    %3601 = vst.msk [vmem:[#allocation3 + $0x58] sm:$0xf] %vm536, %v3561
    %3602 = vst.msk [vmem:[#allocation3 + $0x64] sm:$0xf] %vm536, %v3563
    %3603 = vst.msk [vmem:[#allocation3 + $0x70] sm:$0xf] %vm536, %v3565
    %3604 = vst.msk [vmem:[#allocation3 + $0x7c] sm:$0xf] %vm536, %v3567
    %3605 = vst.msk [vmem:[#allocation3 + $0x88] sm:$0xf] %vm536, %v3569
    %3606 = vst.msk [vmem:[#allocation3 + $0x94] sm:$0xf] %vm536, %v3571
    %3607 = vst.msk [vmem:[#allocation3 + $0xa0] sm:$0xf] %vm536, %v3573
    %3608 = vst.msk [vmem:[#allocation3 + $0xac] sm:$0xf] %vm536, %v3575
    %3609 = vst.msk [vmem:[#allocation3 + $0xb8] sm:$0xf] %vm536, %v3577
    %v3610 = vld [vmem:[%s713 + $0x2] sm:$0xff]
    %v3611 = vld [vmem:[%s713 + $0x12] sm:$0xff]
    %v3612 = vld [vmem:[%s713 + $0x22] sm:$0xff]
    %v3613 = vld [vmem:[%s713 + $0x32] sm:$0xff]
    %v3614 = vld [vmem:[%s713 + $0x42] sm:$0xff]
    %v3615 = vld [vmem:[%s713 + $0x52] sm:$0xff]
    %v3616 = vld [vmem:[%s713 + $0x62] sm:$0xff]
    %v3617 = vld [vmem:[%s713 + $0x72] sm:$0xff]
    %v3618 = vld [vmem:[%s713 + $0xa2] sm:$0xff]
    %v3619 = vld [vmem:[%s713 + $0xb2] sm:$0xff]
    %v3620 = vld [vmem:[%s713 + $0xc2] sm:$0xff]
    %v3621 = vld [vmem:[%s713 + $0xd2] sm:$0xff]
    %v3622 = vld [vmem:[%s713 + $0xe2] sm:$0xff]
    %v3623 = vld [vmem:[%s713 + $0xf2] sm:$0xff]
    %v3624 = vld [vmem:[%s713 + $0x102] sm:$0xff]
    %v3625 = vld [vmem:[%s713 + $0x112] sm:$0xff]
    %v3626 = vpack.c.bf16 %v3610, %v3610
    %v3627 = vpack.c.bf16 %v3611, %v3611
    %v3628 = vpack.c.bf16 %v3612, %v3612
    %v3629 = vpack.c.bf16 %v3613, %v3613
    %v3630 = vpack.c.bf16 %v3614, %v3614
    %v3631 = vpack.c.bf16 %v3615, %v3615
    %v3632 = vpack.c.bf16 %v3616, %v3616
    %v3633 = vpack.c.bf16 %v3617, %v3617
    %v3634 = vpack.c.bf16 %v3618, %v3618
    %v3635 = vpack.c.bf16 %v3619, %v3619
    %v3636 = vpack.c.bf16 %v3620, %v3620
    %v3637 = vpack.c.bf16 %v3621, %v3621
    %v3638 = vpack.c.bf16 %v3622, %v3622
    %v3639 = vpack.c.bf16 %v3623, %v3623
    %v3640 = vpack.c.bf16 %v3624, %v3624
    %v3641 = vpack.c.bf16 %v3625, %v3625
    %3642 = vst.msk [vmem:[#allocation3 + $0x8] sm:$0xf] %vm197, %v3626
    %3643 = vst.msk [vmem:[#allocation3 + $0x14] sm:$0xf] %vm197, %v3627
    %3644 = vst.msk [vmem:[#allocation3 + $0x20] sm:$0xf] %vm197, %v3628
    %3645 = vst.msk [vmem:[#allocation3 + $0x2c] sm:$0xf] %vm197, %v3629
    %3646 = vst.msk [vmem:[#allocation3 + $0x38] sm:$0xf] %vm197, %v3630
    %3647 = vst.msk [vmem:[#allocation3 + $0x44] sm:$0xf] %vm197, %v3631
    %3648 = vst.msk [vmem:[#allocation3 + $0x50] sm:$0xf] %vm197, %v3632
    %3649 = vst.msk [vmem:[#allocation3 + $0x5c] sm:$0xf] %vm197, %v3633
    %3650 = vst.msk [vmem:[#allocation3 + $0x68] sm:$0xf] %vm197, %v3634
    %3651 = vst.msk [vmem:[#allocation3 + $0x74] sm:$0xf] %vm197, %v3635
    %3652 = vst.msk [vmem:[#allocation3 + $0x80] sm:$0xf] %vm197, %v3636
    %3653 = vst.msk [vmem:[#allocation3 + $0x8c] sm:$0xf] %vm197, %v3637
    %3654 = vst.msk [vmem:[#allocation3 + $0x98] sm:$0xf] %vm197, %v3638
    %3655 = vst.msk [vmem:[#allocation3 + $0xa4] sm:$0xf] %vm197, %v3639
    %3656 = vst.msk [vmem:[#allocation3 + $0xb0] sm:$0xf] %vm197, %v3640
    %3657 = vst.msk [vmem:[#allocation3 + $0xbc] sm:$0xf] %vm197, %v3641
    %v3658 = vld [vmem:[#allocation3] sm:$0xff]
    %v3659 = vld [vmem:[#allocation3 + $0x8] sm:$0xf]
    %v3660 = vld [vmem:[#allocation3 + $0xc] sm:$0xff]
    %v3661 = vld [vmem:[#allocation3 + $0x14] sm:$0xf]
    %v3662 = vld [vmem:[#allocation3 + $0x18] sm:$0xff]
    %v3663 = vld [vmem:[#allocation3 + $0x20] sm:$0xf]
    %v3664 = vld [vmem:[#allocation3 + $0x24] sm:$0xff]
    %v3665 = vld [vmem:[#allocation3 + $0x2c] sm:$0xf]
    %v3666 = vld [vmem:[#allocation3 + $0x30] sm:$0xff]
    %v3667 = vld [vmem:[#allocation3 + $0x38] sm:$0xf]
    %v3668 = vld [vmem:[#allocation3 + $0x3c] sm:$0xff]
    %v3669 = vld [vmem:[#allocation3 + $0x44] sm:$0xf]
    %v3670 = vld [vmem:[#allocation3 + $0x48] sm:$0xff]
    %v3671 = vld [vmem:[#allocation3 + $0x50] sm:$0xf]
    %v3672 = vld [vmem:[#allocation3 + $0x54] sm:$0xff]
    %v3673 = vld [vmem:[#allocation3 + $0x5c] sm:$0xf]
    %v3674 = vld [vmem:[#allocation3 + $0x60] sm:$0xff]
    %v3675 = vld [vmem:[#allocation3 + $0x68] sm:$0xf]
    %v3676 = vld [vmem:[#allocation3 + $0x6c] sm:$0xff]
    %v3677 = vld [vmem:[#allocation3 + $0x74] sm:$0xf]
    %v3678 = vld [vmem:[#allocation3 + $0x78] sm:$0xff]
    %v3679 = vld [vmem:[#allocation3 + $0x80] sm:$0xf]
    %v3680 = vld [vmem:[#allocation3 + $0x84] sm:$0xff]
    %v3681 = vld [vmem:[#allocation3 + $0x8c] sm:$0xf]
    %v3682 = vld [vmem:[#allocation3 + $0x90] sm:$0xff]
    %v3683 = vld [vmem:[#allocation3 + $0x98] sm:$0xf]
    %v3684 = vld [vmem:[#allocation3 + $0x9c] sm:$0xff]
    %v3685 = vld [vmem:[#allocation3 + $0xa4] sm:$0xf]
    %v3686 = vld [vmem:[#allocation3 + $0xa8] sm:$0xff]
    %v3687 = vld [vmem:[#allocation3 + $0xb0] sm:$0xf]
    %v3688 = vld [vmem:[#allocation3 + $0xb4] sm:$0xff]
    %v3689 = vld [vmem:[#allocation3 + $0xbc] sm:$0xf]
    %s3690 = scalar_lea.vmem [#allocation6], 288
    %v3691 = vld [vmem:[%s3690] sm:$0xf]
    %v3692 = vld [vmem:[%s3690 + $0x4] sm:$0xf]
    %v3693 = vld [vmem:[%s3690 + $0x8] sm:$0xf]
    %v3694 = vld [vmem:[%s3690 + $0xc] sm:$0xf]
    %v3695 = vld [vmem:[%s3690 + $0x10] sm:$0xf]
    %v3696 = vld [vmem:[%s3690 + $0x14] sm:$0xf]
    %v3697 = vld [vmem:[%s3690 + $0x18] sm:$0xf]
    %v3698 = vld [vmem:[%s3690 + $0x1c] sm:$0xf]
    %v3699 = vld [vmem:[%s3690 + $0x20] sm:$0xf]
    %v3700 = vld [vmem:[%s3690 + $0x24] sm:$0xf]
    %v3701 = vld [vmem:[%s3690 + $0x28] sm:$0xf]
    %v3702 = vld [vmem:[%s3690 + $0x2c] sm:$0xf]
    %v3703 = vld [vmem:[%s3690 + $0x30] sm:$0xf]
    %v3704 = vld [vmem:[%s3690 + $0x34] sm:$0xf]
    %v3705 = vld [vmem:[%s3690 + $0x38] sm:$0xf]
    %v3706 = vld [vmem:[%s3690 + $0x3c] sm:$0xf]
    %v3707 = vld [vmem:[%s3690 + $0x40] sm:$0xf]
    %v3708 = vld [vmem:[%s3690 + $0x44] sm:$0xf]
    %v3709 = vld [vmem:[%s3690 + $0x48] sm:$0xf]
    %v3710 = vld [vmem:[%s3690 + $0x4c] sm:$0xf]
    %v3711 = vld [vmem:[%s3690 + $0x50] sm:$0xf]
    %v3712 = vld [vmem:[%s3690 + $0x54] sm:$0xf]
    %v3713 = vld [vmem:[%s3690 + $0x58] sm:$0xf]
    %v3714 = vld [vmem:[%s3690 + $0x5c] sm:$0xf]
    %v3715 = vld [vmem:[%s3690 + $0x60] sm:$0xf]
    %v3716 = vld [vmem:[%s3690 + $0x64] sm:$0xf]
    %v3717 = vld [vmem:[%s3690 + $0x68] sm:$0xf]
    %v3718 = vld [vmem:[%s3690 + $0x6c] sm:$0xf]
    %v3719 = vld [vmem:[%s3690 + $0x70] sm:$0xf]
    %v3720 = vld [vmem:[%s3690 + $0x74] sm:$0xf]
    %v3721 = vld [vmem:[%s3690 + $0x78] sm:$0xf]
    %v3722 = vld [vmem:[%s3690 + $0x7c] sm:$0xf]
    %v3723 = vld [vmem:[%s3690 + $0x80] sm:$0xf]
    %v3724 = vld [vmem:[%s3690 + $0x84] sm:$0xf]
    %v3725 = vld [vmem:[%s3690 + $0x88] sm:$0xf]
    %v3726 = vld [vmem:[%s3690 + $0x8c] sm:$0xf]
    %s3727 = scalar_lea.vmem %s2, 2
    %v3728 = vld [vmem:[%s3727] sm:$0x1]
    %v3730 = vperm.slane %v3728, 0
    %v3764 = vunpack.c.l.b16 %v3658
    %v3765 = vunpack.c.h.b16 %v3658
    %v3766 = vunpack.c.l.b16 %v3659
    %v3767 = vunpack.c.l.b16 %v3660
    %v3768 = vunpack.c.h.b16 %v3660
    %v3769 = vunpack.c.l.b16 %v3661
    %v3770 = vunpack.c.l.b16 %v3662
    %v3771 = vunpack.c.h.b16 %v3662
    %v3772 = vunpack.c.l.b16 %v3663
    %v3773 = vunpack.c.l.b16 %v3664
    %v3774 = vunpack.c.h.b16 %v3664
    %v3775 = vunpack.c.l.b16 %v3665
    %v3776 = vunpack.c.l.b16 %v3666
    %v3777 = vunpack.c.h.b16 %v3666
    %v3778 = vunpack.c.l.b16 %v3667
    %v3779 = vunpack.c.l.b16 %v3668
    %v3780 = vunpack.c.h.b16 %v3668
    %v3781 = vunpack.c.l.b16 %v3669
    %v3782 = vunpack.c.l.b16 %v3670
    %v3783 = vunpack.c.h.b16 %v3670
    %v3784 = vunpack.c.l.b16 %v3671
    %v3785 = vunpack.c.l.b16 %v3672
    %v3786 = vunpack.c.h.b16 %v3672
    %v3787 = vunpack.c.l.b16 %v3673
    %v3788 = vunpack.c.l.b16 %v3674
    %v3789 = vunpack.c.h.b16 %v3674
    %v3790 = vunpack.c.l.b16 %v3675
    %v3791 = vunpack.c.l.b16 %v3676
    %v3792 = vunpack.c.h.b16 %v3676
    %v3793 = vunpack.c.l.b16 %v3677
    %v3794 = vunpack.c.l.b16 %v3678
    %v3795 = vunpack.c.h.b16 %v3678
    %v3796 = vunpack.c.l.b16 %v3679
    %v3797 = vunpack.c.l.b16 %v3680
    %v3798 = vunpack.c.h.b16 %v3680
    %v3799 = vunpack.c.l.b16 %v3681
    %v3800 = vunpack.c.l.b16 %v3682
    %v3801 = vunpack.c.h.b16 %v3682
    %v3802 = vunpack.c.l.b16 %v3683
    %v3803 = vunpack.c.l.b16 %v3684
    %v3804 = vunpack.c.h.b16 %v3684
    %v3805 = vunpack.c.l.b16 %v3685
    %v3806 = vunpack.c.l.b16 %v3686
    %v3807 = vunpack.c.h.b16 %v3686
    %v3808 = vunpack.c.l.b16 %v3687
    %v3809 = vunpack.c.l.b16 %v3688
    %v3810 = vunpack.c.h.b16 %v3688
    %v3811 = vunpack.c.l.b16 %v3689
    %v3812 = vpack.c.b16 %v3767, %v3764
    %v3813 = vpack.c.b16 %v3768, %v3765
    %v3814 = vpack.c.b16 %v3769, %v3766
    %v3815 = vpack.c.b16 %v3773, %v3770
    %v3816 = vpack.c.b16 %v3774, %v3771
    %v3817 = vpack.c.b16 %v3775, %v3772
    %v3818 = vpack.c.b16 %v3779, %v3776
    %v3819 = vpack.c.b16 %v3780, %v3777
    %v3820 = vpack.c.b16 %v3781, %v3778
    %v3821 = vpack.c.b16 %v3785, %v3782
    %v3822 = vpack.c.b16 %v3786, %v3783
    %v3823 = vpack.c.b16 %v3787, %v3784
    %v3824 = vpack.c.b16 %v3791, %v3788
    %v3825 = vpack.c.b16 %v3792, %v3789
    %v3826 = vpack.c.b16 %v3793, %v3790
    %v3827 = vpack.c.b16 %v3797, %v3794
    %v3828 = vpack.c.b16 %v3798, %v3795
    %v3829 = vpack.c.b16 %v3799, %v3796
    %v3830 = vpack.c.b16 %v3803, %v3800
    %v3831 = vpack.c.b16 %v3804, %v3801
    %v3832 = vpack.c.b16 %v3805, %v3802
    %v3833 = vpack.c.b16 %v3809, %v3806
    %v3834 = vpack.c.b16 %v3810, %v3807
    %v3835 = vpack.c.b16 %v3811, %v3808
    %v3888 = vunpack.c.l.b16 %v3691
    %v3889 = vunpack.c.l.b16 %v3692
    %v3890 = vunpack.c.l.b16 %v3693
    %v3891 = vunpack.c.l.b16 %v3694
    %v3892 = vunpack.c.l.b16 %v3695
    %v3893 = vunpack.c.l.b16 %v3696
    %v3894 = vunpack.c.l.b16 %v3697
    %v3895 = vunpack.c.l.b16 %v3698
    %v3896 = vunpack.c.l.b16 %v3699
    %v3897 = vunpack.c.l.b16 %v3700
    %v3898 = vunpack.c.l.b16 %v3701
    %v3899 = vunpack.c.l.b16 %v3702
    %v3900 = vunpack.c.l.b16 %v3703
    %v3901 = vunpack.c.l.b16 %v3704
    %v3902 = vunpack.c.l.b16 %v3705
    %v3903 = vunpack.c.l.b16 %v3706
    %v3904 = vunpack.c.l.b16 %v3707
    %v3905 = vunpack.c.l.b16 %v3708
    %v3906 = vunpack.c.l.b16 %v3709
    %v3907 = vunpack.c.l.b16 %v3710
    %v3908 = vunpack.c.l.b16 %v3711
    %v3909 = vunpack.c.l.b16 %v3712
    %v3910 = vunpack.c.l.b16 %v3713
    %v3911 = vunpack.c.l.b16 %v3714
    %v3912 = vunpack.c.l.b16 %v3715
    %v3913 = vunpack.c.l.b16 %v3716
    %v3914 = vunpack.c.l.b16 %v3717
    %v3915 = vunpack.c.l.b16 %v3718
    %v3916 = vunpack.c.l.b16 %v3719
    %v3917 = vunpack.c.l.b16 %v3720
    %v3918 = vunpack.c.l.b16 %v3721
    %v3919 = vunpack.c.l.b16 %v3722
    %v3920 = vunpack.c.l.b16 %v3723
    %v3921 = vunpack.c.l.b16 %v3724
    %v3922 = vunpack.c.l.b16 %v3725
    %v3923 = vunpack.c.l.b16 %v3726
    %v3924 = vpack.c.b16 %v3889, %v3888
    %v3925 = vpack.c.b16 %v3891, %v3890
    %v3926 = vpack.c.b16 %v3893, %v3892
    %v3927 = vpack.c.b16 %v3895, %v3894
    %v3928 = vpack.c.b16 %v3897, %v3896
    %v3929 = vpack.c.b16 %v3899, %v3898
    %v3930 = vpack.c.b16 %v3901, %v3900
    %v3931 = vpack.c.b16 %v3903, %v3902
    %v3932 = vpack.c.b16 %v3905, %v3904
    %v3933 = vpack.c.b16 %v3907, %v3906
    %v3934 = vpack.c.b16 %v3909, %v3908
    %v3935 = vpack.c.b16 %v3911, %v3910
    %v3936 = vpack.c.b16 %v3913, %v3912
    %v3937 = vpack.c.b16 %v3915, %v3914
    %v3938 = vpack.c.b16 %v3917, %v3916
    %v3939 = vpack.c.b16 %v3919, %v3918
    %v3940 = vpack.c.b16 %v3921, %v3920
    %v3941 = vpack.c.b16 %v3923, %v3922
    %v3961 = vsel %vm90, %v3814, 0
    %v3964 = vsel %vm90, %v3817, 0
    %v3967 = vsel %vm90, %v3820, 0
    %v3970 = vsel %vm90, %v3823, 0
    %v3973 = vsel %vm90, %v3826, 0
    %v3976 = vsel %vm90, %v3829, 0
    %v3979 = vsel %vm90, %v3832, 0
    %v3982 = vsel %vm90, %v3835, 0
    %3984 = vmatpush.bf16.msra.mxu0 %v3931
    %3985 = vmatpush.bf16.msra.mxu0 %v3930
    %3986 = vmatpush.bf16.msra.mxu0 %v3929
    %3987 = vmatpush.bf16.msra.mxu0 %v3928
    %3988 = vmatpush.bf16.msra.mxu0 %v3927
    %3989 = vmatpush.bf16.msra.mxu0 %v3926
    %3990 = vmatpush.bf16.msra.mxu0 %v3925
    %3991 = vmatpush.bf16.msra.mxu0 %v3924
    %3992 = vmatmul.bf16.gmra.mxu0 %v3812
    %v3993 = vpop.f32.mrf.mxu0
    %v3994 = vadd.f32 %v3730, %v3993
    %v3995 = vpop.f32.mrf.mxu0
    %v3996 = vadd.f32 %v3730, %v3995
    %3997 = vmatmul.bf16.gmra.mxu0 %v3815
    %v3998 = vpop.f32.mrf.mxu0
    %v3999 = vadd.f32 %v3730, %v3998
    %v4000 = vpop.f32.mrf.mxu0
    %v4001 = vadd.f32 %v3730, %v4000
    %4002 = vmatmul.bf16.gmra.mxu0 %v3818
    %v4003 = vpop.f32.mrf.mxu0
    %v4004 = vadd.f32 %v3730, %v4003
    %v4005 = vpop.f32.mrf.mxu0
    %v4006 = vadd.f32 %v3730, %v4005
    %4007 = vmatmul.bf16.gmra.mxu0 %v3821
    %v4008 = vpop.f32.mrf.mxu0
    %v4009 = vadd.f32 %v3730, %v4008
    %v4010 = vpop.f32.mrf.mxu0
    %v4011 = vadd.f32 %v3730, %v4010
    %4012 = vmatmul.bf16.gmra.mxu0 %v3824
    %v4013 = vpop.f32.mrf.mxu0
    %v4014 = vadd.f32 %v3730, %v4013
    %v4015 = vpop.f32.mrf.mxu0
    %v4016 = vadd.f32 %v3730, %v4015
    %4017 = vmatmul.bf16.gmra.mxu0 %v3827
    %v4018 = vpop.f32.mrf.mxu0
    %v4019 = vadd.f32 %v3730, %v4018
    %v4020 = vpop.f32.mrf.mxu0
    %v4021 = vadd.f32 %v3730, %v4020
    %4022 = vmatmul.bf16.gmra.mxu0 %v3830
    %v4023 = vpop.f32.mrf.mxu0
    %v4024 = vadd.f32 %v3730, %v4023
    %v4025 = vpop.f32.mrf.mxu0
    %v4026 = vadd.f32 %v3730, %v4025
    %4027 = vmatmul.bf16.gmra.mxu0 %v3833
    %v4028 = vpop.f32.mrf.mxu0
    %v4029 = vadd.f32 %v3730, %v4028
    %v4030 = vpop.f32.mrf.mxu0
    %v4031 = vadd.f32 %v3730, %v4030
    %4032 = vdwg.mxu0
    %4033 = vmatpush.bf16.msra.mxu0 %v3939
    %4034 = vmatpush.bf16.msra.mxu0 %v3938
    %4035 = vmatpush.bf16.msra.mxu0 %v3937
    %4036 = vmatpush.bf16.msra.mxu0 %v3936
    %4037 = vmatpush.bf16.msra.mxu0 %v3935
    %4038 = vmatpush.bf16.msra.mxu0 %v3934
    %4039 = vmatpush.bf16.msra.mxu0 %v3933
    %4040 = vmatpush.bf16.msra.mxu0 %v3932
    %4041 = vmatmul.bf16.gmra.mxu0 %v3813
    %v4042 = vpop.f32.mrf.mxu0
    %v4043 = vadd.f32 %v3994, %v4042
    %v4044 = vpop.f32.mrf.mxu0
    %v4045 = vadd.f32 %v3996, %v4044
    %4046 = vmatmul.bf16.gmra.mxu0 %v3816
    %v4047 = vpop.f32.mrf.mxu0
    %v4048 = vadd.f32 %v3999, %v4047
    %v4049 = vpop.f32.mrf.mxu0
    %v4050 = vadd.f32 %v4001, %v4049
    %4051 = vmatmul.bf16.gmra.mxu0 %v3819
    %v4052 = vpop.f32.mrf.mxu0
    %v4053 = vadd.f32 %v4004, %v4052
    %v4054 = vpop.f32.mrf.mxu0
    %v4055 = vadd.f32 %v4006, %v4054
    %4056 = vmatmul.bf16.gmra.mxu0 %v3822
    %v4057 = vpop.f32.mrf.mxu0
    %v4058 = vadd.f32 %v4009, %v4057
    %v4059 = vpop.f32.mrf.mxu0
    %v4060 = vadd.f32 %v4011, %v4059
    %4061 = vmatmul.bf16.gmra.mxu0 %v3825
    %v4062 = vpop.f32.mrf.mxu0
    %v4063 = vadd.f32 %v4014, %v4062
    %v4064 = vpop.f32.mrf.mxu0
    %v4065 = vadd.f32 %v4016, %v4064
    %4066 = vmatmul.bf16.gmra.mxu0 %v3828
    %v4067 = vpop.f32.mrf.mxu0
    %v4068 = vadd.f32 %v4019, %v4067
    %v4069 = vpop.f32.mrf.mxu0
    %v4070 = vadd.f32 %v4021, %v4069
    %4071 = vmatmul.bf16.gmra.mxu0 %v3831
    %v4072 = vpop.f32.mrf.mxu0
    %v4073 = vadd.f32 %v4024, %v4072
    %v4074 = vpop.f32.mrf.mxu0
    %v4075 = vadd.f32 %v4026, %v4074
    %4076 = vmatmul.bf16.gmra.mxu0 %v3834
    %v4077 = vpop.f32.mrf.mxu0
    %v4078 = vadd.f32 %v4029, %v4077
    %v4079 = vpop.f32.mrf.mxu0
    %v4080 = vadd.f32 %v4031, %v4079
    %4081 = vdwg.mxu0
    %4082 = vmatpush.bf16.msra.mxu0 0
    %4083 = vmatpush.bf16.msra.mxu0 0
    %4084 = vmatpush.bf16.msra.mxu0 0
    %4085 = vmatpush.bf16.msra.mxu0 0
    %4086 = vmatpush.bf16.msra.mxu0 0
    %4087 = vmatpush.bf16.msra.mxu0 0
    %4088 = vmatpush.bf16.msra.mxu0 %v3941
    %4089 = vmatpush.bf16.msra.mxu0 %v3940
    %4090 = vmatmul.bf16.gmra.mxu0 %v3961
    %v4091 = vpop.f32.mrf.mxu0
    %v4092 = vadd.f32 %v4043, %v4091
    %v4093 = vpop.f32.mrf.mxu0
    %v4094 = vadd.f32 %v4045, %v4093
    %4095 = vmatmul.bf16.gmra.mxu0 %v3964
    %v4096 = vpop.f32.mrf.mxu0
    %v4097 = vadd.f32 %v4048, %v4096
    %v4098 = vpop.f32.mrf.mxu0
    %v4099 = vadd.f32 %v4050, %v4098
    %4100 = vmatmul.bf16.gmra.mxu0 %v3967
    %v4101 = vpop.f32.mrf.mxu0
    %v4102 = vadd.f32 %v4053, %v4101
    %v4103 = vpop.f32.mrf.mxu0
    %v4104 = vadd.f32 %v4055, %v4103
    %4105 = vmatmul.bf16.gmra.mxu0 %v3970
    %v4106 = vpop.f32.mrf.mxu0
    %v4107 = vadd.f32 %v4058, %v4106
    %v4108 = vpop.f32.mrf.mxu0
    %v4109 = vadd.f32 %v4060, %v4108
    %4110 = vmatmul.bf16.gmra.mxu0 %v3973
    %v4111 = vpop.f32.mrf.mxu0
    %v4112 = vadd.f32 %v4063, %v4111
    %v4113 = vpop.f32.mrf.mxu0
    %v4114 = vadd.f32 %v4065, %v4113
    %4115 = vmatmul.bf16.gmra.mxu0 %v3976
    %v4116 = vpop.f32.mrf.mxu0
    %v4117 = vadd.f32 %v4068, %v4116
    %v4118 = vpop.f32.mrf.mxu0
    %v4119 = vadd.f32 %v4070, %v4118
    %4120 = vmatmul.bf16.gmra.mxu0 %v3979
    %v4121 = vpop.f32.mrf.mxu0
    %v4122 = vadd.f32 %v4073, %v4121
    %v4123 = vpop.f32.mrf.mxu0
    %v4124 = vadd.f32 %v4075, %v4123
    %4125 = vmatmul.bf16.gmra.mxu0 %v3982
    %v4126 = vpop.f32.mrf.mxu0
    %v4127 = vadd.f32 %v4078, %v4126
    %v4128 = vpop.f32.mrf.mxu0
    %v4129 = vadd.f32 %v4080, %v4128
    %4130 = vdwg.mxu0
    %v4131 = vld [vmem:[#allocation4] sm:$0xff]
    %v4132 = vld [vmem:[#allocation4 + $0x8] sm:$0xff]
    %v4133 = vld [vmem:[#allocation4 + $0x10] sm:$0xff]
    %v4134 = vld [vmem:[#allocation4 + $0x18] sm:$0xff]
    %v4135 = vld [vmem:[#allocation4 + $0x20] sm:$0xff]
    %v4136 = vld [vmem:[#allocation4 + $0x28] sm:$0xff]
    %v4137 = vld [vmem:[#allocation4 + $0x30] sm:$0xff]
    %v4138 = vld [vmem:[#allocation4 + $0x38] sm:$0xff]
    %v4139 = vld [vmem:[#allocation4 + $0x40] sm:$0xff]
    %v4140 = vld [vmem:[#allocation4 + $0x48] sm:$0xff]
    %v4141 = vld [vmem:[#allocation4 + $0x50] sm:$0xff]
    %v4142 = vld [vmem:[#allocation4 + $0x58] sm:$0xff]
    %v4143 = vld [vmem:[#allocation4 + $0x60] sm:$0xff]
    %v4144 = vld [vmem:[#allocation4 + $0x68] sm:$0xff]
    %v4145 = vld [vmem:[#allocation4 + $0x70] sm:$0xff]
    %v4146 = vld [vmem:[#allocation4 + $0x78] sm:$0xff]
    %v4147 = vadd.f32 %v4092, %v4131
    %v4148 = vadd.f32 %v4094, %v4132
    %v4149 = vadd.f32 %v4097, %v4133
    %v4150 = vadd.f32 %v4099, %v4134
    %v4151 = vadd.f32 %v4102, %v4135
    %v4152 = vadd.f32 %v4104, %v4136
    %v4153 = vadd.f32 %v4107, %v4137
    %v4154 = vadd.f32 %v4109, %v4138
    %v4155 = vadd.f32 %v4112, %v4139
    %v4156 = vadd.f32 %v4114, %v4140
    %v4157 = vadd.f32 %v4117, %v4141
    %v4158 = vadd.f32 %v4119, %v4142
    %v4159 = vadd.f32 %v4122, %v4143
    %v4160 = vadd.f32 %v4124, %v4144
    %v4161 = vadd.f32 %v4127, %v4145
    %v4162 = vadd.f32 %v4129, %v4146
    %v4163 = vmax.f32 %v4147, 0.0
    %v4164 = vmax.f32 %v4148, 0.0
    %v4165 = vmax.f32 %v4149, 0.0
    %v4166 = vmax.f32 %v4150, 0.0
    %v4167 = vmax.f32 %v4151, 0.0
    %v4168 = vmax.f32 %v4152, 0.0
    %v4169 = vmax.f32 %v4153, 0.0
    %v4170 = vmax.f32 %v4154, 0.0
    %v4171 = vmax.f32 %v4155, 0.0
    %v4172 = vmax.f32 %v4156, 0.0
    %v4173 = vmax.f32 %v4157, 0.0
    %v4174 = vmax.f32 %v4158, 0.0
    %v4175 = vmax.f32 %v4159, 0.0
    %v4176 = vmax.f32 %v4160, 0.0
    %v4177 = vmax.f32 %v4161, 0.0
    %v4178 = vmax.f32 %v4162, 0.0
    %4179 = vst.msk [vmem:[%s148 + $0x1] sm:$0xff] %vm90, %v4163
    %4180 = vst.msk [vmem:[%s148 + $0x11] sm:$0xff] %vm90, %v4164
    %4181 = vst.msk [vmem:[%s148 + $0x21] sm:$0xff] %vm90, %v4165
    %4182 = vst.msk [vmem:[%s148 + $0x31] sm:$0xff] %vm90, %v4166
    %4183 = vst.msk [vmem:[%s148 + $0x41] sm:$0xff] %vm90, %v4167
    %4184 = vst.msk [vmem:[%s148 + $0x51] sm:$0xff] %vm90, %v4168
    %4185 = vst.msk [vmem:[%s148 + $0x61] sm:$0xff] %vm90, %v4169
    %4186 = vst.msk [vmem:[%s148 + $0x71] sm:$0xff] %vm90, %v4170
    %4187 = vst.msk [vmem:[%s148 + $0xa1] sm:$0xff] %vm90, %v4171
    %4188 = vst.msk [vmem:[%s148 + $0xb1] sm:$0xff] %vm90, %v4172
    %4189 = vst.msk [vmem:[%s148 + $0xc1] sm:$0xff] %vm90, %v4173
    %4190 = vst.msk [vmem:[%s148 + $0xd1] sm:$0xff] %vm90, %v4174
    %4191 = vst.msk [vmem:[%s148 + $0xe1] sm:$0xff] %vm90, %v4175
    %4192 = vst.msk [vmem:[%s148 + $0xf1] sm:$0xff] %vm90, %v4176
    %4193 = vst.msk [vmem:[%s148 + $0x101] sm:$0xff] %vm90, %v4177
    %4194 = vst.msk [vmem:[%s148 + $0x111] sm:$0xff] %vm90, %v4178
    %v4195 = vld [vmem:[%s148 + $0x1] sm:$0xff]
    %v4196 = vld [vmem:[%s148 + $0x11] sm:$0xff]
    %v4197 = vld [vmem:[%s148 + $0x21] sm:$0xff]
    %v4198 = vld [vmem:[%s148 + $0x31] sm:$0xff]
    %v4199 = vld [vmem:[%s148 + $0x41] sm:$0xff]
    %v4200 = vld [vmem:[%s148 + $0x51] sm:$0xff]
    %v4201 = vld [vmem:[%s148 + $0x61] sm:$0xff]
    %v4202 = vld [vmem:[%s148 + $0x71] sm:$0xff]
    %v4203 = vld [vmem:[%s148 + $0xa1] sm:$0xff]
    %v4204 = vld [vmem:[%s148 + $0xb1] sm:$0xff]
    %v4205 = vld [vmem:[%s148 + $0xc1] sm:$0xff]
    %v4206 = vld [vmem:[%s148 + $0xd1] sm:$0xff]
    %v4207 = vld [vmem:[%s148 + $0xe1] sm:$0xff]
    %v4208 = vld [vmem:[%s148 + $0xf1] sm:$0xff]
    %v4209 = vld [vmem:[%s148 + $0x101] sm:$0xff]
    %v4210 = vld [vmem:[%s148 + $0x111] sm:$0xff]
    %4211 = vst.msk [vmem:[#allocation4] sm:$0xff] %vm90, %v4195
    %4212 = vst.msk [vmem:[#allocation4 + $0x8] sm:$0xff] %vm90, %v4196
    %4213 = vst.msk [vmem:[#allocation4 + $0x10] sm:$0xff] %vm90, %v4197
    %4214 = vst.msk [vmem:[#allocation4 + $0x18] sm:$0xff] %vm90, %v4198
    %4215 = vst.msk [vmem:[#allocation4 + $0x20] sm:$0xff] %vm90, %v4199
    %4216 = vst.msk [vmem:[#allocation4 + $0x28] sm:$0xff] %vm90, %v4200
    %4217 = vst.msk [vmem:[#allocation4 + $0x30] sm:$0xff] %vm90, %v4201
    %4218 = vst.msk [vmem:[#allocation4 + $0x38] sm:$0xff] %vm90, %v4202
    %4219 = vst.msk [vmem:[#allocation4 + $0x40] sm:$0xff] %vm90, %v4203
    %4220 = vst.msk [vmem:[#allocation4 + $0x48] sm:$0xff] %vm90, %v4204
    %4221 = vst.msk [vmem:[#allocation4 + $0x50] sm:$0xff] %vm90, %v4205
    %4222 = vst.msk [vmem:[#allocation4 + $0x58] sm:$0xff] %vm90, %v4206
    %4223 = vst.msk [vmem:[#allocation4 + $0x60] sm:$0xff] %vm90, %v4207
    %4224 = vst.msk [vmem:[#allocation4 + $0x68] sm:$0xff] %vm90, %v4208
    %4225 = vst.msk [vmem:[#allocation4 + $0x70] sm:$0xff] %vm90, %v4209
    %4226 = vst.msk [vmem:[#allocation4 + $0x78] sm:$0xff] %vm90, %v4210
    %v4227 = vld [vmem:[#allocation2] sm:$0xff]
    %v4228 = vld [vmem:[#allocation2 + $0x10] sm:$0xff]
    %v4229 = vld [vmem:[#allocation2 + $0x20] sm:$0xff]
    %v4230 = vld [vmem:[#allocation2 + $0x30] sm:$0xff]
    %v4231 = vld [vmem:[#allocation2 + $0x40] sm:$0xff]
    %v4232 = vld [vmem:[#allocation2 + $0x50] sm:$0xff]
    %v4233 = vld [vmem:[#allocation2 + $0x60] sm:$0xff]
    %v4234 = vld [vmem:[#allocation2 + $0x70] sm:$0xff]
    %v4235 = vld [vmem:[#allocation2 + $0xa0] sm:$0xff]
    %v4236 = vld [vmem:[#allocation2 + $0xb0] sm:$0xff]
    %v4237 = vld [vmem:[#allocation2 + $0xc0] sm:$0xff]
    %v4238 = vld [vmem:[#allocation2 + $0xd0] sm:$0xff]
    %v4239 = vld [vmem:[#allocation2 + $0xe0] sm:$0xff]
    %v4240 = vld [vmem:[#allocation2 + $0xf0] sm:$0xff]
    %v4241 = vld [vmem:[#allocation2 + $0x100] sm:$0xff]
    %v4242 = vld [vmem:[#allocation2 + $0x110] sm:$0xff]
    %v4243 = vpack.c.bf16 %v4227, %v4227
    %v4244 = vpack.c.bf16 %v4228, %v4228
    %v4245 = vpack.c.bf16 %v4229, %v4229
    %v4246 = vpack.c.bf16 %v4230, %v4230
    %v4247 = vpack.c.bf16 %v4231, %v4231
    %v4248 = vpack.c.bf16 %v4232, %v4232
    %v4249 = vpack.c.bf16 %v4233, %v4233
    %v4250 = vpack.c.bf16 %v4234, %v4234
    %v4251 = vpack.c.bf16 %v4235, %v4235
    %v4252 = vpack.c.bf16 %v4236, %v4236
    %v4253 = vpack.c.bf16 %v4237, %v4237
    %v4254 = vpack.c.bf16 %v4238, %v4238
    %v4255 = vpack.c.bf16 %v4239, %v4239
    %v4256 = vpack.c.bf16 %v4240, %v4240
    %v4257 = vpack.c.bf16 %v4241, %v4241
    %v4258 = vpack.c.bf16 %v4242, %v4242
    %4259 = vst.msk [vmem:[#allocation3] sm:$0xf] %vm197, %v4243
    %4260 = vst.msk [vmem:[#allocation3 + $0xc] sm:$0xf] %vm197, %v4244
    %4261 = vst.msk [vmem:[#allocation3 + $0x18] sm:$0xf] %vm197, %v4245
    %4262 = vst.msk [vmem:[#allocation3 + $0x24] sm:$0xf] %vm197, %v4246
    %4263 = vst.msk [vmem:[#allocation3 + $0x30] sm:$0xf] %vm197, %v4247
    %4264 = vst.msk [vmem:[#allocation3 + $0x3c] sm:$0xf] %vm197, %v4248
    %4265 = vst.msk [vmem:[#allocation3 + $0x48] sm:$0xf] %vm197, %v4249
    %4266 = vst.msk [vmem:[#allocation3 + $0x54] sm:$0xf] %vm197, %v4250
    %4267 = vst.msk [vmem:[#allocation3 + $0x60] sm:$0xf] %vm197, %v4251
    %4268 = vst.msk [vmem:[#allocation3 + $0x6c] sm:$0xf] %vm197, %v4252
    %4269 = vst.msk [vmem:[#allocation3 + $0x78] sm:$0xf] %vm197, %v4253
    %4270 = vst.msk [vmem:[#allocation3 + $0x84] sm:$0xf] %vm197, %v4254
    %4271 = vst.msk [vmem:[#allocation3 + $0x90] sm:$0xf] %vm197, %v4255
    %4272 = vst.msk [vmem:[#allocation3 + $0x9c] sm:$0xf] %vm197, %v4256
    %4273 = vst.msk [vmem:[#allocation3 + $0xa8] sm:$0xf] %vm197, %v4257
    %4274 = vst.msk [vmem:[#allocation3 + $0xb4] sm:$0xf] %vm197, %v4258
    %v4275 = vld [vmem:[#allocation2 + $0x1] sm:$0xff]
    %v4276 = vld [vmem:[#allocation2 + $0x11] sm:$0xff]
    %v4277 = vld [vmem:[#allocation2 + $0x21] sm:$0xff]
    %v4278 = vld [vmem:[#allocation2 + $0x31] sm:$0xff]
    %v4279 = vld [vmem:[#allocation2 + $0x41] sm:$0xff]
    %v4280 = vld [vmem:[#allocation2 + $0x51] sm:$0xff]
    %v4281 = vld [vmem:[#allocation2 + $0x61] sm:$0xff]
    %v4282 = vld [vmem:[#allocation2 + $0x71] sm:$0xff]
    %v4283 = vld [vmem:[#allocation2 + $0xa1] sm:$0xff]
    %v4284 = vld [vmem:[#allocation2 + $0xb1] sm:$0xff]
    %v4285 = vld [vmem:[#allocation2 + $0xc1] sm:$0xff]
    %v4286 = vld [vmem:[#allocation2 + $0xd1] sm:$0xff]
    %v4287 = vld [vmem:[#allocation2 + $0xe1] sm:$0xff]
    %v4288 = vld [vmem:[#allocation2 + $0xf1] sm:$0xff]
    %v4289 = vld [vmem:[#allocation2 + $0x101] sm:$0xff]
    %v4290 = vld [vmem:[#allocation2 + $0x111] sm:$0xff]
    %v4291 = vpack.c.bf16 %v4275, %v4275
    %v4292 = vpack.c.bf16 %v4276, %v4276
    %v4293 = vpack.c.bf16 %v4277, %v4277
    %v4294 = vpack.c.bf16 %v4278, %v4278
    %v4295 = vpack.c.bf16 %v4279, %v4279
    %v4296 = vpack.c.bf16 %v4280, %v4280
    %v4297 = vpack.c.bf16 %v4281, %v4281
    %v4298 = vpack.c.bf16 %v4282, %v4282
    %v4299 = vpack.c.bf16 %v4283, %v4283
    %v4300 = vpack.c.bf16 %v4284, %v4284
    %v4301 = vpack.c.bf16 %v4285, %v4285
    %v4302 = vpack.c.bf16 %v4286, %v4286
    %v4303 = vpack.c.bf16 %v4287, %v4287
    %v4304 = vpack.c.bf16 %v4288, %v4288
    %v4305 = vpack.c.bf16 %v4289, %v4289
    %v4306 = vpack.c.bf16 %v4290, %v4290
    %4323 = vrot.lane.b32.xlu0 %v4291, 32
    %v4324 = vpop.permute.xlu0 %4323
    %4325 = vrot.lane.b32.xlu0 %v4292, 32
    %v4326 = vpop.permute.xlu0 %4325
    %4327 = vrot.lane.b32.xlu0 %v4293, 32
    %v4328 = vpop.permute.xlu0 %4327
    %4329 = vrot.lane.b32.xlu0 %v4294, 32
    %v4330 = vpop.permute.xlu0 %4329
    %4331 = vrot.lane.b32.xlu0 %v4295, 32
    %v4332 = vpop.permute.xlu0 %4331
    %4333 = vrot.lane.b32.xlu0 %v4296, 32
    %v4334 = vpop.permute.xlu0 %4333
    %4335 = vrot.lane.b32.xlu0 %v4297, 32
    %v4336 = vpop.permute.xlu0 %4335
    %4337 = vrot.lane.b32.xlu0 %v4298, 32
    %v4338 = vpop.permute.xlu0 %4337
    %4339 = vrot.lane.b32.xlu0 %v4299, 32
    %v4340 = vpop.permute.xlu0 %4339
    %4341 = vrot.lane.b32.xlu0 %v4300, 32
    %v4342 = vpop.permute.xlu0 %4341
    %4343 = vrot.lane.b32.xlu0 %v4301, 32
    %v4344 = vpop.permute.xlu0 %4343
    %4345 = vrot.lane.b32.xlu0 %v4302, 32
    %v4346 = vpop.permute.xlu0 %4345
    %4347 = vrot.lane.b32.xlu0 %v4303, 32
    %v4348 = vpop.permute.xlu0 %4347
    %4349 = vrot.lane.b32.xlu0 %v4304, 32
    %v4350 = vpop.permute.xlu0 %4349
    %4351 = vrot.lane.b32.xlu0 %v4305, 32
    %v4352 = vpop.permute.xlu0 %4351
    %4353 = vrot.lane.b32.xlu0 %v4306, 32
    %v4354 = vpop.permute.xlu0 %4353
    %4371 = vst.msk [vmem:[#allocation3] sm:$0xf] %vm310, %v4324
    %4372 = vst.msk [vmem:[#allocation3 + $0xc] sm:$0xf] %vm310, %v4326
    %4373 = vst.msk [vmem:[#allocation3 + $0x18] sm:$0xf] %vm310, %v4328
    %4374 = vst.msk [vmem:[#allocation3 + $0x24] sm:$0xf] %vm310, %v4330
    %4375 = vst.msk [vmem:[#allocation3 + $0x30] sm:$0xf] %vm310, %v4332
    %4376 = vst.msk [vmem:[#allocation3 + $0x3c] sm:$0xf] %vm310, %v4334
    %4377 = vst.msk [vmem:[#allocation3 + $0x48] sm:$0xf] %vm310, %v4336
    %4378 = vst.msk [vmem:[#allocation3 + $0x54] sm:$0xf] %vm310, %v4338
    %4379 = vst.msk [vmem:[#allocation3 + $0x60] sm:$0xf] %vm310, %v4340
    %4380 = vst.msk [vmem:[#allocation3 + $0x6c] sm:$0xf] %vm310, %v4342
    %4381 = vst.msk [vmem:[#allocation3 + $0x78] sm:$0xf] %vm310, %v4344
    %4382 = vst.msk [vmem:[#allocation3 + $0x84] sm:$0xf] %vm310, %v4346
    %4383 = vst.msk [vmem:[#allocation3 + $0x90] sm:$0xf] %vm310, %v4348
    %4384 = vst.msk [vmem:[#allocation3 + $0x9c] sm:$0xf] %vm310, %v4350
    %4385 = vst.msk [vmem:[#allocation3 + $0xa8] sm:$0xf] %vm310, %v4352
    %4386 = vst.msk [vmem:[#allocation3 + $0xb4] sm:$0xf] %vm310, %v4354
    %v4387 = vld [vmem:[#allocation2 + $0x2] sm:$0xff]
    %v4388 = vld [vmem:[#allocation2 + $0x12] sm:$0xff]
    %v4389 = vld [vmem:[#allocation2 + $0x22] sm:$0xff]
    %v4390 = vld [vmem:[#allocation2 + $0x32] sm:$0xff]
    %v4391 = vld [vmem:[#allocation2 + $0x42] sm:$0xff]
    %v4392 = vld [vmem:[#allocation2 + $0x52] sm:$0xff]
    %v4393 = vld [vmem:[#allocation2 + $0x62] sm:$0xff]
    %v4394 = vld [vmem:[#allocation2 + $0x72] sm:$0xff]
    %v4395 = vld [vmem:[#allocation2 + $0xa2] sm:$0xff]
    %v4396 = vld [vmem:[#allocation2 + $0xb2] sm:$0xff]
    %v4397 = vld [vmem:[#allocation2 + $0xc2] sm:$0xff]
    %v4398 = vld [vmem:[#allocation2 + $0xd2] sm:$0xff]
    %v4399 = vld [vmem:[#allocation2 + $0xe2] sm:$0xff]
    %v4400 = vld [vmem:[#allocation2 + $0xf2] sm:$0xff]
    %v4401 = vld [vmem:[#allocation2 + $0x102] sm:$0xff]
    %v4402 = vld [vmem:[#allocation2 + $0x112] sm:$0xff]
    %v4403 = vpack.c.bf16 %v4387, %v4387
    %v4404 = vpack.c.bf16 %v4388, %v4388
    %v4405 = vpack.c.bf16 %v4389, %v4389
    %v4406 = vpack.c.bf16 %v4390, %v4390
    %v4407 = vpack.c.bf16 %v4391, %v4391
    %v4408 = vpack.c.bf16 %v4392, %v4392
    %v4409 = vpack.c.bf16 %v4393, %v4393
    %v4410 = vpack.c.bf16 %v4394, %v4394
    %v4411 = vpack.c.bf16 %v4395, %v4395
    %v4412 = vpack.c.bf16 %v4396, %v4396
    %v4413 = vpack.c.bf16 %v4397, %v4397
    %v4414 = vpack.c.bf16 %v4398, %v4398
    %v4415 = vpack.c.bf16 %v4399, %v4399
    %v4416 = vpack.c.bf16 %v4400, %v4400
    %v4417 = vpack.c.bf16 %v4401, %v4401
    %v4418 = vpack.c.bf16 %v4402, %v4402
    %4435 = vrot.lane.b32.xlu0 %v4403, 64
    %v4436 = vpop.permute.xlu0 %4435
    %4437 = vrot.lane.b32.xlu0 %v4404, 64
    %v4438 = vpop.permute.xlu0 %4437
    %4439 = vrot.lane.b32.xlu0 %v4405, 64
    %v4440 = vpop.permute.xlu0 %4439
    %4441 = vrot.lane.b32.xlu0 %v4406, 64
    %v4442 = vpop.permute.xlu0 %4441
    %4443 = vrot.lane.b32.xlu0 %v4407, 64
    %v4444 = vpop.permute.xlu0 %4443
    %4445 = vrot.lane.b32.xlu0 %v4408, 64
    %v4446 = vpop.permute.xlu0 %4445
    %4447 = vrot.lane.b32.xlu0 %v4409, 64
    %v4448 = vpop.permute.xlu0 %4447
    %4449 = vrot.lane.b32.xlu0 %v4410, 64
    %v4450 = vpop.permute.xlu0 %4449
    %4451 = vrot.lane.b32.xlu0 %v4411, 64
    %v4452 = vpop.permute.xlu0 %4451
    %4453 = vrot.lane.b32.xlu0 %v4412, 64
    %v4454 = vpop.permute.xlu0 %4453
    %4455 = vrot.lane.b32.xlu0 %v4413, 64
    %v4456 = vpop.permute.xlu0 %4455
    %4457 = vrot.lane.b32.xlu0 %v4414, 64
    %v4458 = vpop.permute.xlu0 %4457
    %4459 = vrot.lane.b32.xlu0 %v4415, 64
    %v4460 = vpop.permute.xlu0 %4459
    %4461 = vrot.lane.b32.xlu0 %v4416, 64
    %v4462 = vpop.permute.xlu0 %4461
    %4463 = vrot.lane.b32.xlu0 %v4417, 64
    %v4464 = vpop.permute.xlu0 %4463
    %4465 = vrot.lane.b32.xlu0 %v4418, 64
    %v4466 = vpop.permute.xlu0 %4465
    %4483 = vst.msk [vmem:[#allocation3] sm:$0xf] %vm423, %v4436
    %4484 = vst.msk [vmem:[#allocation3 + $0xc] sm:$0xf] %vm423, %v4438
    %4485 = vst.msk [vmem:[#allocation3 + $0x18] sm:$0xf] %vm423, %v4440
    %4486 = vst.msk [vmem:[#allocation3 + $0x24] sm:$0xf] %vm423, %v4442
    %4487 = vst.msk [vmem:[#allocation3 + $0x30] sm:$0xf] %vm423, %v4444
    %4488 = vst.msk [vmem:[#allocation3 + $0x3c] sm:$0xf] %vm423, %v4446
    %4489 = vst.msk [vmem:[#allocation3 + $0x48] sm:$0xf] %vm423, %v4448
    %4490 = vst.msk [vmem:[#allocation3 + $0x54] sm:$0xf] %vm423, %v4450
    %4491 = vst.msk [vmem:[#allocation3 + $0x60] sm:$0xf] %vm423, %v4452
    %4492 = vst.msk [vmem:[#allocation3 + $0x6c] sm:$0xf] %vm423, %v4454
    %4493 = vst.msk [vmem:[#allocation3 + $0x78] sm:$0xf] %vm423, %v4456
    %4494 = vst.msk [vmem:[#allocation3 + $0x84] sm:$0xf] %vm423, %v4458
    %4495 = vst.msk [vmem:[#allocation3 + $0x90] sm:$0xf] %vm423, %v4460
    %4496 = vst.msk [vmem:[#allocation3 + $0x9c] sm:$0xf] %vm423, %v4462
    %4497 = vst.msk [vmem:[#allocation3 + $0xa8] sm:$0xf] %vm423, %v4464
    %4498 = vst.msk [vmem:[#allocation3 + $0xb4] sm:$0xf] %vm423, %v4466
    %v4499 = vld [vmem:[%s148] sm:$0xff]
    %v4500 = vld [vmem:[%s148 + $0x10] sm:$0xff]
    %v4501 = vld [vmem:[%s148 + $0x20] sm:$0xff]
    %v4502 = vld [vmem:[%s148 + $0x30] sm:$0xff]
    %v4503 = vld [vmem:[%s148 + $0x40] sm:$0xff]
    %v4504 = vld [vmem:[%s148 + $0x50] sm:$0xff]
    %v4505 = vld [vmem:[%s148 + $0x60] sm:$0xff]
    %v4506 = vld [vmem:[%s148 + $0x70] sm:$0xff]
    %v4507 = vld [vmem:[%s148 + $0xa0] sm:$0xff]
    %v4508 = vld [vmem:[%s148 + $0xb0] sm:$0xff]
    %v4509 = vld [vmem:[%s148 + $0xc0] sm:$0xff]
    %v4510 = vld [vmem:[%s148 + $0xd0] sm:$0xff]
    %v4511 = vld [vmem:[%s148 + $0xe0] sm:$0xff]
    %v4512 = vld [vmem:[%s148 + $0xf0] sm:$0xff]
    %v4513 = vld [vmem:[%s148 + $0x100] sm:$0xff]
    %v4514 = vld [vmem:[%s148 + $0x110] sm:$0xff]
    %v4515 = vpack.c.bf16 %v4499, %v4499
    %v4516 = vpack.c.bf16 %v4500, %v4500
    %v4517 = vpack.c.bf16 %v4501, %v4501
    %v4518 = vpack.c.bf16 %v4502, %v4502
    %v4519 = vpack.c.bf16 %v4503, %v4503
    %v4520 = vpack.c.bf16 %v4504, %v4504
    %v4521 = vpack.c.bf16 %v4505, %v4505
    %v4522 = vpack.c.bf16 %v4506, %v4506
    %v4523 = vpack.c.bf16 %v4507, %v4507
    %v4524 = vpack.c.bf16 %v4508, %v4508
    %v4525 = vpack.c.bf16 %v4509, %v4509
    %v4526 = vpack.c.bf16 %v4510, %v4510
    %v4527 = vpack.c.bf16 %v4511, %v4511
    %v4528 = vpack.c.bf16 %v4512, %v4512
    %v4529 = vpack.c.bf16 %v4513, %v4513
    %v4530 = vpack.c.bf16 %v4514, %v4514
    %4547 = vrot.lane.b32.xlu0 %v4515, 96
    %v4548 = vpop.permute.xlu0 %4547
    %4549 = vrot.lane.b32.xlu0 %v4516, 96
    %v4550 = vpop.permute.xlu0 %4549
    %4551 = vrot.lane.b32.xlu0 %v4517, 96
    %v4552 = vpop.permute.xlu0 %4551
    %4553 = vrot.lane.b32.xlu0 %v4518, 96
    %v4554 = vpop.permute.xlu0 %4553
    %4555 = vrot.lane.b32.xlu0 %v4519, 96
    %v4556 = vpop.permute.xlu0 %4555
    %4557 = vrot.lane.b32.xlu0 %v4520, 96
    %v4558 = vpop.permute.xlu0 %4557
    %4559 = vrot.lane.b32.xlu0 %v4521, 96
    %v4560 = vpop.permute.xlu0 %4559
    %4561 = vrot.lane.b32.xlu0 %v4522, 96
    %v4562 = vpop.permute.xlu0 %4561
    %4563 = vrot.lane.b32.xlu0 %v4523, 96
    %v4564 = vpop.permute.xlu0 %4563
    %4565 = vrot.lane.b32.xlu0 %v4524, 96
    %v4566 = vpop.permute.xlu0 %4565
    %4567 = vrot.lane.b32.xlu0 %v4525, 96
    %v4568 = vpop.permute.xlu0 %4567
    %4569 = vrot.lane.b32.xlu0 %v4526, 96
    %v4570 = vpop.permute.xlu0 %4569
    %4571 = vrot.lane.b32.xlu0 %v4527, 96
    %v4572 = vpop.permute.xlu0 %4571
    %4573 = vrot.lane.b32.xlu0 %v4528, 96
    %v4574 = vpop.permute.xlu0 %4573
    %4575 = vrot.lane.b32.xlu0 %v4529, 96
    %v4576 = vpop.permute.xlu0 %4575
    %4577 = vrot.lane.b32.xlu0 %v4530, 96
    %v4578 = vpop.permute.xlu0 %4577
    %4595 = vst.msk [vmem:[#allocation3] sm:$0xf] %vm536, %v4548
    %4596 = vst.msk [vmem:[#allocation3 + $0xc] sm:$0xf] %vm536, %v4550
    %4597 = vst.msk [vmem:[#allocation3 + $0x18] sm:$0xf] %vm536, %v4552
    %4598 = vst.msk [vmem:[#allocation3 + $0x24] sm:$0xf] %vm536, %v4554
    %4599 = vst.msk [vmem:[#allocation3 + $0x30] sm:$0xf] %vm536, %v4556
    %4600 = vst.msk [vmem:[#allocation3 + $0x3c] sm:$0xf] %vm536, %v4558
    %4601 = vst.msk [vmem:[#allocation3 + $0x48] sm:$0xf] %vm536, %v4560
    %4602 = vst.msk [vmem:[#allocation3 + $0x54] sm:$0xf] %vm536, %v4562
    %4603 = vst.msk [vmem:[#allocation3 + $0x60] sm:$0xf] %vm536, %v4564
    %4604 = vst.msk [vmem:[#allocation3 + $0x6c] sm:$0xf] %vm536, %v4566
    %4605 = vst.msk [vmem:[#allocation3 + $0x78] sm:$0xf] %vm536, %v4568
    %4606 = vst.msk [vmem:[#allocation3 + $0x84] sm:$0xf] %vm536, %v4570
    %4607 = vst.msk [vmem:[#allocation3 + $0x90] sm:$0xf] %vm536, %v4572
    %4608 = vst.msk [vmem:[#allocation3 + $0x9c] sm:$0xf] %vm536, %v4574
    %4609 = vst.msk [vmem:[#allocation3 + $0xa8] sm:$0xf] %vm536, %v4576
    %4610 = vst.msk [vmem:[#allocation3 + $0xb4] sm:$0xf] %vm536, %v4578
    %v4611 = vld [vmem:[%s148 + $0x1] sm:$0xff]
    %v4612 = vld [vmem:[%s148 + $0x11] sm:$0xff]
    %v4613 = vld [vmem:[%s148 + $0x21] sm:$0xff]
    %v4614 = vld [vmem:[%s148 + $0x31] sm:$0xff]
    %v4615 = vld [vmem:[%s148 + $0x41] sm:$0xff]
    %v4616 = vld [vmem:[%s148 + $0x51] sm:$0xff]
    %v4617 = vld [vmem:[%s148 + $0x61] sm:$0xff]
    %v4618 = vld [vmem:[%s148 + $0x71] sm:$0xff]
    %v4619 = vld [vmem:[%s148 + $0xa1] sm:$0xff]
    %v4620 = vld [vmem:[%s148 + $0xb1] sm:$0xff]
    %v4621 = vld [vmem:[%s148 + $0xc1] sm:$0xff]
    %v4622 = vld [vmem:[%s148 + $0xd1] sm:$0xff]
    %v4623 = vld [vmem:[%s148 + $0xe1] sm:$0xff]
    %v4624 = vld [vmem:[%s148 + $0xf1] sm:$0xff]
    %v4625 = vld [vmem:[%s148 + $0x101] sm:$0xff]
    %v4626 = vld [vmem:[%s148 + $0x111] sm:$0xff]
    %v4627 = vpack.c.bf16 %v4611, %v4611
    %v4628 = vpack.c.bf16 %v4612, %v4612
    %v4629 = vpack.c.bf16 %v4613, %v4613
    %v4630 = vpack.c.bf16 %v4614, %v4614
    %v4631 = vpack.c.bf16 %v4615, %v4615
    %v4632 = vpack.c.bf16 %v4616, %v4616
    %v4633 = vpack.c.bf16 %v4617, %v4617
    %v4634 = vpack.c.bf16 %v4618, %v4618
    %v4635 = vpack.c.bf16 %v4619, %v4619
    %v4636 = vpack.c.bf16 %v4620, %v4620
    %v4637 = vpack.c.bf16 %v4621, %v4621
    %v4638 = vpack.c.bf16 %v4622, %v4622
    %v4639 = vpack.c.bf16 %v4623, %v4623
    %v4640 = vpack.c.bf16 %v4624, %v4624
    %v4641 = vpack.c.bf16 %v4625, %v4625
    %v4642 = vpack.c.bf16 %v4626, %v4626
    %4643 = vst.msk [vmem:[#allocation3 + $0x4] sm:$0xf] %vm197, %v4627
    %4644 = vst.msk [vmem:[#allocation3 + $0x10] sm:$0xf] %vm197, %v4628
    %4645 = vst.msk [vmem:[#allocation3 + $0x1c] sm:$0xf] %vm197, %v4629
    %4646 = vst.msk [vmem:[#allocation3 + $0x28] sm:$0xf] %vm197, %v4630
    %4647 = vst.msk [vmem:[#allocation3 + $0x34] sm:$0xf] %vm197, %v4631
    %4648 = vst.msk [vmem:[#allocation3 + $0x40] sm:$0xf] %vm197, %v4632
    %4649 = vst.msk [vmem:[#allocation3 + $0x4c] sm:$0xf] %vm197, %v4633
    %4650 = vst.msk [vmem:[#allocation3 + $0x58] sm:$0xf] %vm197, %v4634
    %4651 = vst.msk [vmem:[#allocation3 + $0x64] sm:$0xf] %vm197, %v4635
    %4652 = vst.msk [vmem:[#allocation3 + $0x70] sm:$0xf] %vm197, %v4636
    %4653 = vst.msk [vmem:[#allocation3 + $0x7c] sm:$0xf] %vm197, %v4637
    %4654 = vst.msk [vmem:[#allocation3 + $0x88] sm:$0xf] %vm197, %v4638
    %4655 = vst.msk [vmem:[#allocation3 + $0x94] sm:$0xf] %vm197, %v4639
    %4656 = vst.msk [vmem:[#allocation3 + $0xa0] sm:$0xf] %vm197, %v4640
    %4657 = vst.msk [vmem:[#allocation3 + $0xac] sm:$0xf] %vm197, %v4641
    %4658 = vst.msk [vmem:[#allocation3 + $0xb8] sm:$0xf] %vm197, %v4642
    %v4659 = vld [vmem:[%s148 + $0x2] sm:$0xff]
    %v4660 = vld [vmem:[%s148 + $0x12] sm:$0xff]
    %v4661 = vld [vmem:[%s148 + $0x22] sm:$0xff]
    %v4662 = vld [vmem:[%s148 + $0x32] sm:$0xff]
    %v4663 = vld [vmem:[%s148 + $0x42] sm:$0xff]
    %v4664 = vld [vmem:[%s148 + $0x52] sm:$0xff]
    %v4665 = vld [vmem:[%s148 + $0x62] sm:$0xff]
    %v4666 = vld [vmem:[%s148 + $0x72] sm:$0xff]
    %v4667 = vld [vmem:[%s148 + $0xa2] sm:$0xff]
    %v4668 = vld [vmem:[%s148 + $0xb2] sm:$0xff]
    %v4669 = vld [vmem:[%s148 + $0xc2] sm:$0xff]
    %v4670 = vld [vmem:[%s148 + $0xd2] sm:$0xff]
    %v4671 = vld [vmem:[%s148 + $0xe2] sm:$0xff]
    %v4672 = vld [vmem:[%s148 + $0xf2] sm:$0xff]
    %v4673 = vld [vmem:[%s148 + $0x102] sm:$0xff]
    %v4674 = vld [vmem:[%s148 + $0x112] sm:$0xff]
    %v4675 = vpack.c.bf16 %v4659, %v4659
    %v4676 = vpack.c.bf16 %v4660, %v4660
    %v4677 = vpack.c.bf16 %v4661, %v4661
    %v4678 = vpack.c.bf16 %v4662, %v4662
    %v4679 = vpack.c.bf16 %v4663, %v4663
    %v4680 = vpack.c.bf16 %v4664, %v4664
    %v4681 = vpack.c.bf16 %v4665, %v4665
    %v4682 = vpack.c.bf16 %v4666, %v4666
    %v4683 = vpack.c.bf16 %v4667, %v4667
    %v4684 = vpack.c.bf16 %v4668, %v4668
    %v4685 = vpack.c.bf16 %v4669, %v4669
    %v4686 = vpack.c.bf16 %v4670, %v4670
    %v4687 = vpack.c.bf16 %v4671, %v4671
    %v4688 = vpack.c.bf16 %v4672, %v4672
    %v4689 = vpack.c.bf16 %v4673, %v4673
    %v4690 = vpack.c.bf16 %v4674, %v4674
    %4707 = vrot.lane.b32.xlu0 %v4675, 32
    %v4708 = vpop.permute.xlu0 %4707
    %4709 = vrot.lane.b32.xlu0 %v4676, 32
    %v4710 = vpop.permute.xlu0 %4709
    %4711 = vrot.lane.b32.xlu0 %v4677, 32
    %v4712 = vpop.permute.xlu0 %4711
    %4713 = vrot.lane.b32.xlu0 %v4678, 32
    %v4714 = vpop.permute.xlu0 %4713
    %4715 = vrot.lane.b32.xlu0 %v4679, 32
    %v4716 = vpop.permute.xlu0 %4715
    %4717 = vrot.lane.b32.xlu0 %v4680, 32
    %v4718 = vpop.permute.xlu0 %4717
    %4719 = vrot.lane.b32.xlu0 %v4681, 32
    %v4720 = vpop.permute.xlu0 %4719
    %4721 = vrot.lane.b32.xlu0 %v4682, 32
    %v4722 = vpop.permute.xlu0 %4721
    %4723 = vrot.lane.b32.xlu0 %v4683, 32
    %v4724 = vpop.permute.xlu0 %4723
    %4725 = vrot.lane.b32.xlu0 %v4684, 32
    %v4726 = vpop.permute.xlu0 %4725
    %4727 = vrot.lane.b32.xlu0 %v4685, 32
    %v4728 = vpop.permute.xlu0 %4727
    %4729 = vrot.lane.b32.xlu0 %v4686, 32
    %v4730 = vpop.permute.xlu0 %4729
    %4731 = vrot.lane.b32.xlu0 %v4687, 32
    %v4732 = vpop.permute.xlu0 %4731
    %4733 = vrot.lane.b32.xlu0 %v4688, 32
    %v4734 = vpop.permute.xlu0 %4733
    %4735 = vrot.lane.b32.xlu0 %v4689, 32
    %v4736 = vpop.permute.xlu0 %4735
    %4737 = vrot.lane.b32.xlu0 %v4690, 32
    %v4738 = vpop.permute.xlu0 %4737
    %4755 = vst.msk [vmem:[#allocation3 + $0x4] sm:$0xf] %vm310, %v4708
    %4756 = vst.msk [vmem:[#allocation3 + $0x10] sm:$0xf] %vm310, %v4710
    %4757 = vst.msk [vmem:[#allocation3 + $0x1c] sm:$0xf] %vm310, %v4712
    %4758 = vst.msk [vmem:[#allocation3 + $0x28] sm:$0xf] %vm310, %v4714
    %4759 = vst.msk [vmem:[#allocation3 + $0x34] sm:$0xf] %vm310, %v4716
    %4760 = vst.msk [vmem:[#allocation3 + $0x40] sm:$0xf] %vm310, %v4718
    %4761 = vst.msk [vmem:[#allocation3 + $0x4c] sm:$0xf] %vm310, %v4720
    %4762 = vst.msk [vmem:[#allocation3 + $0x58] sm:$0xf] %vm310, %v4722
    %4763 = vst.msk [vmem:[#allocation3 + $0x64] sm:$0xf] %vm310, %v4724
    %4764 = vst.msk [vmem:[#allocation3 + $0x70] sm:$0xf] %vm310, %v4726
    %4765 = vst.msk [vmem:[#allocation3 + $0x7c] sm:$0xf] %vm310, %v4728
    %4766 = vst.msk [vmem:[#allocation3 + $0x88] sm:$0xf] %vm310, %v4730
    %4767 = vst.msk [vmem:[#allocation3 + $0x94] sm:$0xf] %vm310, %v4732
    %4768 = vst.msk [vmem:[#allocation3 + $0xa0] sm:$0xf] %vm310, %v4734
    %4769 = vst.msk [vmem:[#allocation3 + $0xac] sm:$0xf] %vm310, %v4736
    %4770 = vst.msk [vmem:[#allocation3 + $0xb8] sm:$0xf] %vm310, %v4738
    %v4771 = vld [vmem:[%s713] sm:$0xff]
    %v4772 = vld [vmem:[%s713 + $0x10] sm:$0xff]
    %v4773 = vld [vmem:[%s713 + $0x20] sm:$0xff]
    %v4774 = vld [vmem:[%s713 + $0x30] sm:$0xff]
    %v4775 = vld [vmem:[%s713 + $0x40] sm:$0xff]
    %v4776 = vld [vmem:[%s713 + $0x50] sm:$0xff]
    %v4777 = vld [vmem:[%s713 + $0x60] sm:$0xff]
    %v4778 = vld [vmem:[%s713 + $0x70] sm:$0xff]
    %v4779 = vld [vmem:[%s713 + $0xa0] sm:$0xff]
    %v4780 = vld [vmem:[%s713 + $0xb0] sm:$0xff]
    %v4781 = vld [vmem:[%s713 + $0xc0] sm:$0xff]
    %v4782 = vld [vmem:[%s713 + $0xd0] sm:$0xff]
    %v4783 = vld [vmem:[%s713 + $0xe0] sm:$0xff]
    %v4784 = vld [vmem:[%s713 + $0xf0] sm:$0xff]
    %v4785 = vld [vmem:[%s713 + $0x100] sm:$0xff]
    %v4786 = vld [vmem:[%s713 + $0x110] sm:$0xff]
    %v4787 = vpack.c.bf16 %v4771, %v4771
    %v4788 = vpack.c.bf16 %v4772, %v4772
    %v4789 = vpack.c.bf16 %v4773, %v4773
    %v4790 = vpack.c.bf16 %v4774, %v4774
    %v4791 = vpack.c.bf16 %v4775, %v4775
    %v4792 = vpack.c.bf16 %v4776, %v4776
    %v4793 = vpack.c.bf16 %v4777, %v4777
    %v4794 = vpack.c.bf16 %v4778, %v4778
    %v4795 = vpack.c.bf16 %v4779, %v4779
    %v4796 = vpack.c.bf16 %v4780, %v4780
    %v4797 = vpack.c.bf16 %v4781, %v4781
    %v4798 = vpack.c.bf16 %v4782, %v4782
    %v4799 = vpack.c.bf16 %v4783, %v4783
    %v4800 = vpack.c.bf16 %v4784, %v4784
    %v4801 = vpack.c.bf16 %v4785, %v4785
    %v4802 = vpack.c.bf16 %v4786, %v4786
    %4819 = vrot.lane.b32.xlu0 %v4787, 64
    %v4820 = vpop.permute.xlu0 %4819
    %4821 = vrot.lane.b32.xlu0 %v4788, 64
    %v4822 = vpop.permute.xlu0 %4821
    %4823 = vrot.lane.b32.xlu0 %v4789, 64
    %v4824 = vpop.permute.xlu0 %4823
    %4825 = vrot.lane.b32.xlu0 %v4790, 64
    %v4826 = vpop.permute.xlu0 %4825
    %4827 = vrot.lane.b32.xlu0 %v4791, 64
    %v4828 = vpop.permute.xlu0 %4827
    %4829 = vrot.lane.b32.xlu0 %v4792, 64
    %v4830 = vpop.permute.xlu0 %4829
    %4831 = vrot.lane.b32.xlu0 %v4793, 64
    %v4832 = vpop.permute.xlu0 %4831
    %4833 = vrot.lane.b32.xlu0 %v4794, 64
    %v4834 = vpop.permute.xlu0 %4833
    %4835 = vrot.lane.b32.xlu0 %v4795, 64
    %v4836 = vpop.permute.xlu0 %4835
    %4837 = vrot.lane.b32.xlu0 %v4796, 64
    %v4838 = vpop.permute.xlu0 %4837
    %4839 = vrot.lane.b32.xlu0 %v4797, 64
    %v4840 = vpop.permute.xlu0 %4839
    %4841 = vrot.lane.b32.xlu0 %v4798, 64
    %v4842 = vpop.permute.xlu0 %4841
    %4843 = vrot.lane.b32.xlu0 %v4799, 64
    %v4844 = vpop.permute.xlu0 %4843
    %4845 = vrot.lane.b32.xlu0 %v4800, 64
    %v4846 = vpop.permute.xlu0 %4845
    %4847 = vrot.lane.b32.xlu0 %v4801, 64
    %v4848 = vpop.permute.xlu0 %4847
    %4849 = vrot.lane.b32.xlu0 %v4802, 64
    %v4850 = vpop.permute.xlu0 %4849
    %4867 = vst.msk [vmem:[#allocation3 + $0x4] sm:$0xf] %vm423, %v4820
    %4868 = vst.msk [vmem:[#allocation3 + $0x10] sm:$0xf] %vm423, %v4822
    %4869 = vst.msk [vmem:[#allocation3 + $0x1c] sm:$0xf] %vm423, %v4824
    %4870 = vst.msk [vmem:[#allocation3 + $0x28] sm:$0xf] %vm423, %v4826
    %4871 = vst.msk [vmem:[#allocation3 + $0x34] sm:$0xf] %vm423, %v4828
    %4872 = vst.msk [vmem:[#allocation3 + $0x40] sm:$0xf] %vm423, %v4830
    %4873 = vst.msk [vmem:[#allocation3 + $0x4c] sm:$0xf] %vm423, %v4832
    %4874 = vst.msk [vmem:[#allocation3 + $0x58] sm:$0xf] %vm423, %v4834
    %4875 = vst.msk [vmem:[#allocation3 + $0x64] sm:$0xf] %vm423, %v4836
    %4876 = vst.msk [vmem:[#allocation3 + $0x70] sm:$0xf] %vm423, %v4838
    %4877 = vst.msk [vmem:[#allocation3 + $0x7c] sm:$0xf] %vm423, %v4840
    %4878 = vst.msk [vmem:[#allocation3 + $0x88] sm:$0xf] %vm423, %v4842
    %4879 = vst.msk [vmem:[#allocation3 + $0x94] sm:$0xf] %vm423, %v4844
    %4880 = vst.msk [vmem:[#allocation3 + $0xa0] sm:$0xf] %vm423, %v4846
    %4881 = vst.msk [vmem:[#allocation3 + $0xac] sm:$0xf] %vm423, %v4848
    %4882 = vst.msk [vmem:[#allocation3 + $0xb8] sm:$0xf] %vm423, %v4850
    %v4883 = vld [vmem:[%s713 + $0x1] sm:$0xff]
    %v4884 = vld [vmem:[%s713 + $0x11] sm:$0xff]
    %v4885 = vld [vmem:[%s713 + $0x21] sm:$0xff]
    %v4886 = vld [vmem:[%s713 + $0x31] sm:$0xff]
    %v4887 = vld [vmem:[%s713 + $0x41] sm:$0xff]
    %v4888 = vld [vmem:[%s713 + $0x51] sm:$0xff]
    %v4889 = vld [vmem:[%s713 + $0x61] sm:$0xff]
    %v4890 = vld [vmem:[%s713 + $0x71] sm:$0xff]
    %v4891 = vld [vmem:[%s713 + $0xa1] sm:$0xff]
    %v4892 = vld [vmem:[%s713 + $0xb1] sm:$0xff]
    %v4893 = vld [vmem:[%s713 + $0xc1] sm:$0xff]
    %v4894 = vld [vmem:[%s713 + $0xd1] sm:$0xff]
    %v4895 = vld [vmem:[%s713 + $0xe1] sm:$0xff]
    %v4896 = vld [vmem:[%s713 + $0xf1] sm:$0xff]
    %v4897 = vld [vmem:[%s713 + $0x101] sm:$0xff]
    %v4898 = vld [vmem:[%s713 + $0x111] sm:$0xff]
    %v4899 = vpack.c.bf16 %v4883, %v4883
    %v4900 = vpack.c.bf16 %v4884, %v4884
    %v4901 = vpack.c.bf16 %v4885, %v4885
    %v4902 = vpack.c.bf16 %v4886, %v4886
    %v4903 = vpack.c.bf16 %v4887, %v4887
    %v4904 = vpack.c.bf16 %v4888, %v4888
    %v4905 = vpack.c.bf16 %v4889, %v4889
    %v4906 = vpack.c.bf16 %v4890, %v4890
    %v4907 = vpack.c.bf16 %v4891, %v4891
    %v4908 = vpack.c.bf16 %v4892, %v4892
    %v4909 = vpack.c.bf16 %v4893, %v4893
    %v4910 = vpack.c.bf16 %v4894, %v4894
    %v4911 = vpack.c.bf16 %v4895, %v4895
    %v4912 = vpack.c.bf16 %v4896, %v4896
    %v4913 = vpack.c.bf16 %v4897, %v4897
    %v4914 = vpack.c.bf16 %v4898, %v4898
    %4931 = vrot.lane.b32.xlu0 %v4899, 96
    %v4932 = vpop.permute.xlu0 %4931
    %4933 = vrot.lane.b32.xlu0 %v4900, 96
    %v4934 = vpop.permute.xlu0 %4933
    %4935 = vrot.lane.b32.xlu0 %v4901, 96
    %v4936 = vpop.permute.xlu0 %4935
    %4937 = vrot.lane.b32.xlu0 %v4902, 96
    %v4938 = vpop.permute.xlu0 %4937
    %4939 = vrot.lane.b32.xlu0 %v4903, 96
    %v4940 = vpop.permute.xlu0 %4939
    %4941 = vrot.lane.b32.xlu0 %v4904, 96
    %v4942 = vpop.permute.xlu0 %4941
    %4943 = vrot.lane.b32.xlu0 %v4905, 96
    %v4944 = vpop.permute.xlu0 %4943
    %4945 = vrot.lane.b32.xlu0 %v4906, 96
    %v4946 = vpop.permute.xlu0 %4945
    %4947 = vrot.lane.b32.xlu0 %v4907, 96
    %v4948 = vpop.permute.xlu0 %4947
    %4949 = vrot.lane.b32.xlu0 %v4908, 96
    %v4950 = vpop.permute.xlu0 %4949
    %4951 = vrot.lane.b32.xlu0 %v4909, 96
    %v4952 = vpop.permute.xlu0 %4951
    %4953 = vrot.lane.b32.xlu0 %v4910, 96
    %v4954 = vpop.permute.xlu0 %4953
    %4955 = vrot.lane.b32.xlu0 %v4911, 96
    %v4956 = vpop.permute.xlu0 %4955
    %4957 = vrot.lane.b32.xlu0 %v4912, 96
    %v4958 = vpop.permute.xlu0 %4957
    %4959 = vrot.lane.b32.xlu0 %v4913, 96
    %v4960 = vpop.permute.xlu0 %4959
    %4961 = vrot.lane.b32.xlu0 %v4914, 96
    %v4962 = vpop.permute.xlu0 %4961
    %4979 = vst.msk [vmem:[#allocation3 + $0x4] sm:$0xf] %vm536, %v4932
    %4980 = vst.msk [vmem:[#allocation3 + $0x10] sm:$0xf] %vm536, %v4934
    %4981 = vst.msk [vmem:[#allocation3 + $0x1c] sm:$0xf] %vm536, %v4936
    %4982 = vst.msk [vmem:[#allocation3 + $0x28] sm:$0xf] %vm536, %v4938
    %4983 = vst.msk [vmem:[#allocation3 + $0x34] sm:$0xf] %vm536, %v4940
    %4984 = vst.msk [vmem:[#allocation3 + $0x40] sm:$0xf] %vm536, %v4942
    %4985 = vst.msk [vmem:[#allocation3 + $0x4c] sm:$0xf] %vm536, %v4944
    %4986 = vst.msk [vmem:[#allocation3 + $0x58] sm:$0xf] %vm536, %v4946
    %4987 = vst.msk [vmem:[#allocation3 + $0x64] sm:$0xf] %vm536, %v4948
    %4988 = vst.msk [vmem:[#allocation3 + $0x70] sm:$0xf] %vm536, %v4950
    %4989 = vst.msk [vmem:[#allocation3 + $0x7c] sm:$0xf] %vm536, %v4952
    %4990 = vst.msk [vmem:[#allocation3 + $0x88] sm:$0xf] %vm536, %v4954
    %4991 = vst.msk [vmem:[#allocation3 + $0x94] sm:$0xf] %vm536, %v4956
    %4992 = vst.msk [vmem:[#allocation3 + $0xa0] sm:$0xf] %vm536, %v4958
    %4993 = vst.msk [vmem:[#allocation3 + $0xac] sm:$0xf] %vm536, %v4960
    %4994 = vst.msk [vmem:[#allocation3 + $0xb8] sm:$0xf] %vm536, %v4962
    %v4995 = vld [vmem:[%s713 + $0x2] sm:$0xff]
    %v4996 = vld [vmem:[%s713 + $0x12] sm:$0xff]
    %v4997 = vld [vmem:[%s713 + $0x22] sm:$0xff]
    %v4998 = vld [vmem:[%s713 + $0x32] sm:$0xff]
    %v4999 = vld [vmem:[%s713 + $0x42] sm:$0xff]
    %v5000 = vld [vmem:[%s713 + $0x52] sm:$0xff]
    %v5001 = vld [vmem:[%s713 + $0x62] sm:$0xff]
    %v5002 = vld [vmem:[%s713 + $0x72] sm:$0xff]
    %v5003 = vld [vmem:[%s713 + $0xa2] sm:$0xff]
    %v5004 = vld [vmem:[%s713 + $0xb2] sm:$0xff]
    %v5005 = vld [vmem:[%s713 + $0xc2] sm:$0xff]
    %v5006 = vld [vmem:[%s713 + $0xd2] sm:$0xff]
    %v5007 = vld [vmem:[%s713 + $0xe2] sm:$0xff]
    %v5008 = vld [vmem:[%s713 + $0xf2] sm:$0xff]
    %v5009 = vld [vmem:[%s713 + $0x102] sm:$0xff]
    %v5010 = vld [vmem:[%s713 + $0x112] sm:$0xff]
    %v5011 = vpack.c.bf16 %v4995, %v4995
    %v5012 = vpack.c.bf16 %v4996, %v4996
    %v5013 = vpack.c.bf16 %v4997, %v4997
    %v5014 = vpack.c.bf16 %v4998, %v4998
    %v5015 = vpack.c.bf16 %v4999, %v4999
    %v5016 = vpack.c.bf16 %v5000, %v5000
    %v5017 = vpack.c.bf16 %v5001, %v5001
    %v5018 = vpack.c.bf16 %v5002, %v5002
    %v5019 = vpack.c.bf16 %v5003, %v5003
    %v5020 = vpack.c.bf16 %v5004, %v5004
    %v5021 = vpack.c.bf16 %v5005, %v5005
    %v5022 = vpack.c.bf16 %v5006, %v5006
    %v5023 = vpack.c.bf16 %v5007, %v5007
    %v5024 = vpack.c.bf16 %v5008, %v5008
    %v5025 = vpack.c.bf16 %v5009, %v5009
    %v5026 = vpack.c.bf16 %v5010, %v5010
    %5027 = vst.msk [vmem:[#allocation3 + $0x8] sm:$0xf] %vm197, %v5011
    %5028 = vst.msk [vmem:[#allocation3 + $0x14] sm:$0xf] %vm197, %v5012
    %5029 = vst.msk [vmem:[#allocation3 + $0x20] sm:$0xf] %vm197, %v5013
    %5030 = vst.msk [vmem:[#allocation3 + $0x2c] sm:$0xf] %vm197, %v5014
    %5031 = vst.msk [vmem:[#allocation3 + $0x38] sm:$0xf] %vm197, %v5015
    %5032 = vst.msk [vmem:[#allocation3 + $0x44] sm:$0xf] %vm197, %v5016
    %5033 = vst.msk [vmem:[#allocation3 + $0x50] sm:$0xf] %vm197, %v5017
    %5034 = vst.msk [vmem:[#allocation3 + $0x5c] sm:$0xf] %vm197, %v5018
    %5035 = vst.msk [vmem:[#allocation3 + $0x68] sm:$0xf] %vm197, %v5019
    %5036 = vst.msk [vmem:[#allocation3 + $0x74] sm:$0xf] %vm197, %v5020
    %5037 = vst.msk [vmem:[#allocation3 + $0x80] sm:$0xf] %vm197, %v5021
    %5038 = vst.msk [vmem:[#allocation3 + $0x8c] sm:$0xf] %vm197, %v5022
    %5039 = vst.msk [vmem:[#allocation3 + $0x98] sm:$0xf] %vm197, %v5023
    %5040 = vst.msk [vmem:[#allocation3 + $0xa4] sm:$0xf] %vm197, %v5024
    %5041 = vst.msk [vmem:[#allocation3 + $0xb0] sm:$0xf] %vm197, %v5025
    %5042 = vst.msk [vmem:[#allocation3 + $0xbc] sm:$0xf] %vm197, %v5026
    %v5043 = vld [vmem:[#allocation3] sm:$0xff]
    %v5044 = vld [vmem:[#allocation3 + $0x8] sm:$0xf]
    %v5045 = vld [vmem:[#allocation3 + $0xc] sm:$0xff]
    %v5046 = vld [vmem:[#allocation3 + $0x14] sm:$0xf]
    %v5047 = vld [vmem:[#allocation3 + $0x18] sm:$0xff]
    %v5048 = vld [vmem:[#allocation3 + $0x20] sm:$0xf]
    %v5049 = vld [vmem:[#allocation3 + $0x24] sm:$0xff]
    %v5050 = vld [vmem:[#allocation3 + $0x2c] sm:$0xf]
    %v5051 = vld [vmem:[#allocation3 + $0x30] sm:$0xff]
    %v5052 = vld [vmem:[#allocation3 + $0x38] sm:$0xf]
    %v5053 = vld [vmem:[#allocation3 + $0x3c] sm:$0xff]
    %v5054 = vld [vmem:[#allocation3 + $0x44] sm:$0xf]
    %v5055 = vld [vmem:[#allocation3 + $0x48] sm:$0xff]
    %v5056 = vld [vmem:[#allocation3 + $0x50] sm:$0xf]
    %v5057 = vld [vmem:[#allocation3 + $0x54] sm:$0xff]
    %v5058 = vld [vmem:[#allocation3 + $0x5c] sm:$0xf]
    %v5059 = vld [vmem:[#allocation3 + $0x60] sm:$0xff]
    %v5060 = vld [vmem:[#allocation3 + $0x68] sm:$0xf]
    %v5061 = vld [vmem:[#allocation3 + $0x6c] sm:$0xff]
    %v5062 = vld [vmem:[#allocation3 + $0x74] sm:$0xf]
    %v5063 = vld [vmem:[#allocation3 + $0x78] sm:$0xff]
    %v5064 = vld [vmem:[#allocation3 + $0x80] sm:$0xf]
    %v5065 = vld [vmem:[#allocation3 + $0x84] sm:$0xff]
    %v5066 = vld [vmem:[#allocation3 + $0x8c] sm:$0xf]
    %v5067 = vld [vmem:[#allocation3 + $0x90] sm:$0xff]
    %v5068 = vld [vmem:[#allocation3 + $0x98] sm:$0xf]
    %v5069 = vld [vmem:[#allocation3 + $0x9c] sm:$0xff]
    %v5070 = vld [vmem:[#allocation3 + $0xa4] sm:$0xf]
    %v5071 = vld [vmem:[#allocation3 + $0xa8] sm:$0xff]
    %v5072 = vld [vmem:[#allocation3 + $0xb0] sm:$0xf]
    %v5073 = vld [vmem:[#allocation3 + $0xb4] sm:$0xff]
    %v5074 = vld [vmem:[#allocation3 + $0xbc] sm:$0xf]
    %s5075 = scalar_lea.vmem [#allocation6], 432
    %v5076 = vld [vmem:[%s5075] sm:$0xf]
    %v5077 = vld [vmem:[%s5075 + $0x4] sm:$0xf]
    %v5078 = vld [vmem:[%s5075 + $0x8] sm:$0xf]
    %v5079 = vld [vmem:[%s5075 + $0xc] sm:$0xf]
    %v5080 = vld [vmem:[%s5075 + $0x10] sm:$0xf]
    %v5081 = vld [vmem:[%s5075 + $0x14] sm:$0xf]
    %v5082 = vld [vmem:[%s5075 + $0x18] sm:$0xf]
    %v5083 = vld [vmem:[%s5075 + $0x1c] sm:$0xf]
    %v5084 = vld [vmem:[%s5075 + $0x20] sm:$0xf]
    %v5085 = vld [vmem:[%s5075 + $0x24] sm:$0xf]
    %v5086 = vld [vmem:[%s5075 + $0x28] sm:$0xf]
    %v5087 = vld [vmem:[%s5075 + $0x2c] sm:$0xf]
    %v5088 = vld [vmem:[%s5075 + $0x30] sm:$0xf]
    %v5089 = vld [vmem:[%s5075 + $0x34] sm:$0xf]
    %v5090 = vld [vmem:[%s5075 + $0x38] sm:$0xf]
    %v5091 = vld [vmem:[%s5075 + $0x3c] sm:$0xf]
    %v5092 = vld [vmem:[%s5075 + $0x40] sm:$0xf]
    %v5093 = vld [vmem:[%s5075 + $0x44] sm:$0xf]
    %v5094 = vld [vmem:[%s5075 + $0x48] sm:$0xf]
    %v5095 = vld [vmem:[%s5075 + $0x4c] sm:$0xf]
    %v5096 = vld [vmem:[%s5075 + $0x50] sm:$0xf]
    %v5097 = vld [vmem:[%s5075 + $0x54] sm:$0xf]
    %v5098 = vld [vmem:[%s5075 + $0x58] sm:$0xf]
    %v5099 = vld [vmem:[%s5075 + $0x5c] sm:$0xf]
    %v5100 = vld [vmem:[%s5075 + $0x60] sm:$0xf]
    %v5101 = vld [vmem:[%s5075 + $0x64] sm:$0xf]
    %v5102 = vld [vmem:[%s5075 + $0x68] sm:$0xf]
    %v5103 = vld [vmem:[%s5075 + $0x6c] sm:$0xf]
    %v5104 = vld [vmem:[%s5075 + $0x70] sm:$0xf]
    %v5105 = vld [vmem:[%s5075 + $0x74] sm:$0xf]
    %v5106 = vld [vmem:[%s5075 + $0x78] sm:$0xf]
    %v5107 = vld [vmem:[%s5075 + $0x7c] sm:$0xf]
    %v5108 = vld [vmem:[%s5075 + $0x80] sm:$0xf]
    %v5109 = vld [vmem:[%s5075 + $0x84] sm:$0xf]
    %v5110 = vld [vmem:[%s5075 + $0x88] sm:$0xf]
    %v5111 = vld [vmem:[%s5075 + $0x8c] sm:$0xf]
    %s5112 = scalar_lea.vmem %s2, 3
    %v5113 = vld [vmem:[%s5112] sm:$0x1]
    %v5115 = vperm.slane %v5113, 0
    %v5149 = vunpack.c.l.b16 %v5043
    %v5150 = vunpack.c.h.b16 %v5043
    %v5151 = vunpack.c.l.b16 %v5044
    %v5152 = vunpack.c.l.b16 %v5045
    %v5153 = vunpack.c.h.b16 %v5045
    %v5154 = vunpack.c.l.b16 %v5046
    %v5155 = vunpack.c.l.b16 %v5047
    %v5156 = vunpack.c.h.b16 %v5047
    %v5157 = vunpack.c.l.b16 %v5048
    %v5158 = vunpack.c.l.b16 %v5049
    %v5159 = vunpack.c.h.b16 %v5049
    %v5160 = vunpack.c.l.b16 %v5050
    %v5161 = vunpack.c.l.b16 %v5051
    %v5162 = vunpack.c.h.b16 %v5051
    %v5163 = vunpack.c.l.b16 %v5052
    %v5164 = vunpack.c.l.b16 %v5053
    %v5165 = vunpack.c.h.b16 %v5053
    %v5166 = vunpack.c.l.b16 %v5054
    %v5167 = vunpack.c.l.b16 %v5055
    %v5168 = vunpack.c.h.b16 %v5055
    %v5169 = vunpack.c.l.b16 %v5056
    %v5170 = vunpack.c.l.b16 %v5057
    %v5171 = vunpack.c.h.b16 %v5057
    %v5172 = vunpack.c.l.b16 %v5058
    %v5173 = vunpack.c.l.b16 %v5059
    %v5174 = vunpack.c.h.b16 %v5059
    %v5175 = vunpack.c.l.b16 %v5060
    %v5176 = vunpack.c.l.b16 %v5061
    %v5177 = vunpack.c.h.b16 %v5061
    %v5178 = vunpack.c.l.b16 %v5062
    %v5179 = vunpack.c.l.b16 %v5063
    %v5180 = vunpack.c.h.b16 %v5063
    %v5181 = vunpack.c.l.b16 %v5064
    %v5182 = vunpack.c.l.b16 %v5065
    %v5183 = vunpack.c.h.b16 %v5065
    %v5184 = vunpack.c.l.b16 %v5066
    %v5185 = vunpack.c.l.b16 %v5067
    %v5186 = vunpack.c.h.b16 %v5067
    %v5187 = vunpack.c.l.b16 %v5068
    %v5188 = vunpack.c.l.b16 %v5069
    %v5189 = vunpack.c.h.b16 %v5069
    %v5190 = vunpack.c.l.b16 %v5070
    %v5191 = vunpack.c.l.b16 %v5071
    %v5192 = vunpack.c.h.b16 %v5071
    %v5193 = vunpack.c.l.b16 %v5072
    %v5194 = vunpack.c.l.b16 %v5073
    %v5195 = vunpack.c.h.b16 %v5073
    %v5196 = vunpack.c.l.b16 %v5074
    %v5197 = vpack.c.b16 %v5152, %v5149
    %v5198 = vpack.c.b16 %v5153, %v5150
    %v5199 = vpack.c.b16 %v5154, %v5151
    %v5200 = vpack.c.b16 %v5158, %v5155
    %v5201 = vpack.c.b16 %v5159, %v5156
    %v5202 = vpack.c.b16 %v5160, %v5157
    %v5203 = vpack.c.b16 %v5164, %v5161
    %v5204 = vpack.c.b16 %v5165, %v5162
    %v5205 = vpack.c.b16 %v5166, %v5163
    %v5206 = vpack.c.b16 %v5170, %v5167
    %v5207 = vpack.c.b16 %v5171, %v5168
    %v5208 = vpack.c.b16 %v5172, %v5169
    %v5209 = vpack.c.b16 %v5176, %v5173
    %v5210 = vpack.c.b16 %v5177, %v5174
    %v5211 = vpack.c.b16 %v5178, %v5175
    %v5212 = vpack.c.b16 %v5182, %v5179
    %v5213 = vpack.c.b16 %v5183, %v5180
    %v5214 = vpack.c.b16 %v5184, %v5181
    %v5215 = vpack.c.b16 %v5188, %v5185
    %v5216 = vpack.c.b16 %v5189, %v5186
    %v5217 = vpack.c.b16 %v5190, %v5187
    %v5218 = vpack.c.b16 %v5194, %v5191
    %v5219 = vpack.c.b16 %v5195, %v5192
    %v5220 = vpack.c.b16 %v5196, %v5193
    %v5273 = vunpack.c.l.b16 %v5076
    %v5274 = vunpack.c.l.b16 %v5077
    %v5275 = vunpack.c.l.b16 %v5078
    %v5276 = vunpack.c.l.b16 %v5079
    %v5277 = vunpack.c.l.b16 %v5080
    %v5278 = vunpack.c.l.b16 %v5081
    %v5279 = vunpack.c.l.b16 %v5082
    %v5280 = vunpack.c.l.b16 %v5083
    %v5281 = vunpack.c.l.b16 %v5084
    %v5282 = vunpack.c.l.b16 %v5085
    %v5283 = vunpack.c.l.b16 %v5086
    %v5284 = vunpack.c.l.b16 %v5087
    %v5285 = vunpack.c.l.b16 %v5088
    %v5286 = vunpack.c.l.b16 %v5089
    %v5287 = vunpack.c.l.b16 %v5090
    %v5288 = vunpack.c.l.b16 %v5091
    %v5289 = vunpack.c.l.b16 %v5092
    %v5290 = vunpack.c.l.b16 %v5093
    %v5291 = vunpack.c.l.b16 %v5094
    %v5292 = vunpack.c.l.b16 %v5095
    %v5293 = vunpack.c.l.b16 %v5096
    %v5294 = vunpack.c.l.b16 %v5097
    %v5295 = vunpack.c.l.b16 %v5098
    %v5296 = vunpack.c.l.b16 %v5099
    %v5297 = vunpack.c.l.b16 %v5100
    %v5298 = vunpack.c.l.b16 %v5101
    %v5299 = vunpack.c.l.b16 %v5102
    %v5300 = vunpack.c.l.b16 %v5103
    %v5301 = vunpack.c.l.b16 %v5104
    %v5302 = vunpack.c.l.b16 %v5105
    %v5303 = vunpack.c.l.b16 %v5106
    %v5304 = vunpack.c.l.b16 %v5107
    %v5305 = vunpack.c.l.b16 %v5108
    %v5306 = vunpack.c.l.b16 %v5109
    %v5307 = vunpack.c.l.b16 %v5110
    %v5308 = vunpack.c.l.b16 %v5111
    %v5309 = vpack.c.b16 %v5274, %v5273
    %v5310 = vpack.c.b16 %v5276, %v5275
    %v5311 = vpack.c.b16 %v5278, %v5277
    %v5312 = vpack.c.b16 %v5280, %v5279
    %v5313 = vpack.c.b16 %v5282, %v5281
    %v5314 = vpack.c.b16 %v5284, %v5283
    %v5315 = vpack.c.b16 %v5286, %v5285
    %v5316 = vpack.c.b16 %v5288, %v5287
    %v5317 = vpack.c.b16 %v5290, %v5289
    %v5318 = vpack.c.b16 %v5292, %v5291
    %v5319 = vpack.c.b16 %v5294, %v5293
    %v5320 = vpack.c.b16 %v5296, %v5295
    %v5321 = vpack.c.b16 %v5298, %v5297
    %v5322 = vpack.c.b16 %v5300, %v5299
    %v5323 = vpack.c.b16 %v5302, %v5301
    %v5324 = vpack.c.b16 %v5304, %v5303
    %v5325 = vpack.c.b16 %v5306, %v5305
    %v5326 = vpack.c.b16 %v5308, %v5307
    %v5346 = vsel %vm90, %v5199, 0
    %v5349 = vsel %vm90, %v5202, 0
    %v5352 = vsel %vm90, %v5205, 0
    %v5355 = vsel %vm90, %v5208, 0
    %v5358 = vsel %vm90, %v5211, 0
    %v5361 = vsel %vm90, %v5214, 0
    %v5364 = vsel %vm90, %v5217, 0
    %v5367 = vsel %vm90, %v5220, 0
    %5369 = vmatpush.bf16.msra.mxu0 %v5316
    %5370 = vmatpush.bf16.msra.mxu0 %v5315
    %5371 = vmatpush.bf16.msra.mxu0 %v5314
    %5372 = vmatpush.bf16.msra.mxu0 %v5313
    %5373 = vmatpush.bf16.msra.mxu0 %v5312
    %5374 = vmatpush.bf16.msra.mxu0 %v5311
    %5375 = vmatpush.bf16.msra.mxu0 %v5310
    %5376 = vmatpush.bf16.msra.mxu0 %v5309
    %5377 = vmatmul.bf16.gmra.mxu0 %v5197
    %v5378 = vpop.f32.mrf.mxu0
    %v5379 = vadd.f32 %v5115, %v5378
    %v5380 = vpop.f32.mrf.mxu0
    %v5381 = vadd.f32 %v5115, %v5380
    %5382 = vmatmul.bf16.gmra.mxu0 %v5200
    %v5383 = vpop.f32.mrf.mxu0
    %v5384 = vadd.f32 %v5115, %v5383
    %v5385 = vpop.f32.mrf.mxu0
    %v5386 = vadd.f32 %v5115, %v5385
    %5387 = vmatmul.bf16.gmra.mxu0 %v5203
    %v5388 = vpop.f32.mrf.mxu0
    %v5389 = vadd.f32 %v5115, %v5388
    %v5390 = vpop.f32.mrf.mxu0
    %v5391 = vadd.f32 %v5115, %v5390
    %5392 = vmatmul.bf16.gmra.mxu0 %v5206
    %v5393 = vpop.f32.mrf.mxu0
    %v5394 = vadd.f32 %v5115, %v5393
    %v5395 = vpop.f32.mrf.mxu0
    %v5396 = vadd.f32 %v5115, %v5395
    %5397 = vmatmul.bf16.gmra.mxu0 %v5209
    %v5398 = vpop.f32.mrf.mxu0
    %v5399 = vadd.f32 %v5115, %v5398
    %v5400 = vpop.f32.mrf.mxu0
    %v5401 = vadd.f32 %v5115, %v5400
    %5402 = vmatmul.bf16.gmra.mxu0 %v5212
    %v5403 = vpop.f32.mrf.mxu0
    %v5404 = vadd.f32 %v5115, %v5403
    %v5405 = vpop.f32.mrf.mxu0
    %v5406 = vadd.f32 %v5115, %v5405
    %5407 = vmatmul.bf16.gmra.mxu0 %v5215
    %v5408 = vpop.f32.mrf.mxu0
    %v5409 = vadd.f32 %v5115, %v5408
    %v5410 = vpop.f32.mrf.mxu0
    %v5411 = vadd.f32 %v5115, %v5410
    %5412 = vmatmul.bf16.gmra.mxu0 %v5218
    %v5413 = vpop.f32.mrf.mxu0
    %v5414 = vadd.f32 %v5115, %v5413
    %v5415 = vpop.f32.mrf.mxu0
    %v5416 = vadd.f32 %v5115, %v5415
    %5417 = vdwg.mxu0
    %5418 = vmatpush.bf16.msra.mxu0 %v5324
    %5419 = vmatpush.bf16.msra.mxu0 %v5323
    %5420 = vmatpush.bf16.msra.mxu0 %v5322
    %5421 = vmatpush.bf16.msra.mxu0 %v5321
    %5422 = vmatpush.bf16.msra.mxu0 %v5320
    %5423 = vmatpush.bf16.msra.mxu0 %v5319
    %5424 = vmatpush.bf16.msra.mxu0 %v5318
    %5425 = vmatpush.bf16.msra.mxu0 %v5317
    %5426 = vmatmul.bf16.gmra.mxu0 %v5198
    %v5427 = vpop.f32.mrf.mxu0
    %v5428 = vadd.f32 %v5379, %v5427
    %v5429 = vpop.f32.mrf.mxu0
    %v5430 = vadd.f32 %v5381, %v5429
    %5431 = vmatmul.bf16.gmra.mxu0 %v5201
    %v5432 = vpop.f32.mrf.mxu0
    %v5433 = vadd.f32 %v5384, %v5432
    %v5434 = vpop.f32.mrf.mxu0
    %v5435 = vadd.f32 %v5386, %v5434
    %5436 = vmatmul.bf16.gmra.mxu0 %v5204
    %v5437 = vpop.f32.mrf.mxu0
    %v5438 = vadd.f32 %v5389, %v5437
    %v5439 = vpop.f32.mrf.mxu0
    %v5440 = vadd.f32 %v5391, %v5439
    %5441 = vmatmul.bf16.gmra.mxu0 %v5207
    %v5442 = vpop.f32.mrf.mxu0
    %v5443 = vadd.f32 %v5394, %v5442
    %v5444 = vpop.f32.mrf.mxu0
    %v5445 = vadd.f32 %v5396, %v5444
    %5446 = vmatmul.bf16.gmra.mxu0 %v5210
    %v5447 = vpop.f32.mrf.mxu0
    %v5448 = vadd.f32 %v5399, %v5447
    %v5449 = vpop.f32.mrf.mxu0
    %v5450 = vadd.f32 %v5401, %v5449
    %5451 = vmatmul.bf16.gmra.mxu0 %v5213
    %v5452 = vpop.f32.mrf.mxu0
    %v5453 = vadd.f32 %v5404, %v5452
    %v5454 = vpop.f32.mrf.mxu0
    %v5455 = vadd.f32 %v5406, %v5454
    %5456 = vmatmul.bf16.gmra.mxu0 %v5216
    %v5457 = vpop.f32.mrf.mxu0
    %v5458 = vadd.f32 %v5409, %v5457
    %v5459 = vpop.f32.mrf.mxu0
    %v5460 = vadd.f32 %v5411, %v5459
    %5461 = vmatmul.bf16.gmra.mxu0 %v5219
    %v5462 = vpop.f32.mrf.mxu0
    %v5463 = vadd.f32 %v5414, %v5462
    %v5464 = vpop.f32.mrf.mxu0
    %v5465 = vadd.f32 %v5416, %v5464
    %5466 = vdwg.mxu0
    %5467 = vmatpush.bf16.msra.mxu0 0
    %5468 = vmatpush.bf16.msra.mxu0 0
    %5469 = vmatpush.bf16.msra.mxu0 0
    %5470 = vmatpush.bf16.msra.mxu0 0
    %5471 = vmatpush.bf16.msra.mxu0 0
    %5472 = vmatpush.bf16.msra.mxu0 0
    %5473 = vmatpush.bf16.msra.mxu0 %v5326
    %5474 = vmatpush.bf16.msra.mxu0 %v5325
    %5475 = vmatmul.bf16.gmra.mxu0 %v5346
    %v5476 = vpop.f32.mrf.mxu0
    %v5477 = vadd.f32 %v5428, %v5476
    %v5478 = vpop.f32.mrf.mxu0
    %v5479 = vadd.f32 %v5430, %v5478
    %5480 = vmatmul.bf16.gmra.mxu0 %v5349
    %v5481 = vpop.f32.mrf.mxu0
    %v5482 = vadd.f32 %v5433, %v5481
    %v5483 = vpop.f32.mrf.mxu0
    %v5484 = vadd.f32 %v5435, %v5483
    %5485 = vmatmul.bf16.gmra.mxu0 %v5352
    %v5486 = vpop.f32.mrf.mxu0
    %v5487 = vadd.f32 %v5438, %v5486
    %v5488 = vpop.f32.mrf.mxu0
    %v5489 = vadd.f32 %v5440, %v5488
    %5490 = vmatmul.bf16.gmra.mxu0 %v5355
    %v5491 = vpop.f32.mrf.mxu0
    %v5492 = vadd.f32 %v5443, %v5491
    %v5493 = vpop.f32.mrf.mxu0
    %v5494 = vadd.f32 %v5445, %v5493
    %5495 = vmatmul.bf16.gmra.mxu0 %v5358
    %v5496 = vpop.f32.mrf.mxu0
    %v5497 = vadd.f32 %v5448, %v5496
    %v5498 = vpop.f32.mrf.mxu0
    %v5499 = vadd.f32 %v5450, %v5498
    %5500 = vmatmul.bf16.gmra.mxu0 %v5361
    %v5501 = vpop.f32.mrf.mxu0
    %v5502 = vadd.f32 %v5453, %v5501
    %v5503 = vpop.f32.mrf.mxu0
    %v5504 = vadd.f32 %v5455, %v5503
    %5505 = vmatmul.bf16.gmra.mxu0 %v5364
    %v5506 = vpop.f32.mrf.mxu0
    %v5507 = vadd.f32 %v5458, %v5506
    %v5508 = vpop.f32.mrf.mxu0
    %v5509 = vadd.f32 %v5460, %v5508
    %5510 = vmatmul.bf16.gmra.mxu0 %v5367
    %v5511 = vpop.f32.mrf.mxu0
    %v5512 = vadd.f32 %v5463, %v5511
    %v5513 = vpop.f32.mrf.mxu0
    %v5514 = vadd.f32 %v5465, %v5513
    %5515 = vdwg.mxu0
    %v5516 = vmax.f32 %v5477, 0.0
    %v5517 = vmax.f32 %v5479, 0.0
    %v5518 = vmax.f32 %v5482, 0.0
    %v5519 = vmax.f32 %v5484, 0.0
    %v5520 = vmax.f32 %v5487, 0.0
    %v5521 = vmax.f32 %v5489, 0.0
    %v5522 = vmax.f32 %v5492, 0.0
    %v5523 = vmax.f32 %v5494, 0.0
    %v5524 = vmax.f32 %v5497, 0.0
    %v5525 = vmax.f32 %v5499, 0.0
    %v5526 = vmax.f32 %v5502, 0.0
    %v5527 = vmax.f32 %v5504, 0.0
    %v5528 = vmax.f32 %v5507, 0.0
    %v5529 = vmax.f32 %v5509, 0.0
    %v5530 = vmax.f32 %v5512, 0.0
    %v5531 = vmax.f32 %v5514, 0.0
    %5532 = vst.msk [vmem:[%s148 + $0x1] sm:$0xff] %vm90, %v5516
    %5533 = vst.msk [vmem:[%s148 + $0x11] sm:$0xff] %vm90, %v5517
    %5534 = vst.msk [vmem:[%s148 + $0x21] sm:$0xff] %vm90, %v5518
    %5535 = vst.msk [vmem:[%s148 + $0x31] sm:$0xff] %vm90, %v5519
    %5536 = vst.msk [vmem:[%s148 + $0x41] sm:$0xff] %vm90, %v5520
    %5537 = vst.msk [vmem:[%s148 + $0x51] sm:$0xff] %vm90, %v5521
    %5538 = vst.msk [vmem:[%s148 + $0x61] sm:$0xff] %vm90, %v5522
    %5539 = vst.msk [vmem:[%s148 + $0x71] sm:$0xff] %vm90, %v5523
    %5540 = vst.msk [vmem:[%s148 + $0xa1] sm:$0xff] %vm90, %v5524
    %5541 = vst.msk [vmem:[%s148 + $0xb1] sm:$0xff] %vm90, %v5525
    %5542 = vst.msk [vmem:[%s148 + $0xc1] sm:$0xff] %vm90, %v5526
    %5543 = vst.msk [vmem:[%s148 + $0xd1] sm:$0xff] %vm90, %v5527
    %5544 = vst.msk [vmem:[%s148 + $0xe1] sm:$0xff] %vm90, %v5528
    %5545 = vst.msk [vmem:[%s148 + $0xf1] sm:$0xff] %vm90, %v5529
    %5546 = vst.msk [vmem:[%s148 + $0x101] sm:$0xff] %vm90, %v5530
    %5547 = vst.msk [vmem:[%s148 + $0x111] sm:$0xff] %vm90, %v5531
    %v5548 = vld [vmem:[#allocation2] sm:$0xff]
    %v5549 = vld [vmem:[#allocation2 + $0x10] sm:$0xff]
    %v5550 = vld [vmem:[#allocation2 + $0x20] sm:$0xff]
    %v5551 = vld [vmem:[#allocation2 + $0x30] sm:$0xff]
    %v5552 = vld [vmem:[#allocation2 + $0x40] sm:$0xff]
    %v5553 = vld [vmem:[#allocation2 + $0x50] sm:$0xff]
    %v5554 = vld [vmem:[#allocation2 + $0x60] sm:$0xff]
    %v5555 = vld [vmem:[#allocation2 + $0x70] sm:$0xff]
    %v5556 = vld [vmem:[#allocation2 + $0xa0] sm:$0xff]
    %v5557 = vld [vmem:[#allocation2 + $0xb0] sm:$0xff]
    %v5558 = vld [vmem:[#allocation2 + $0xc0] sm:$0xff]
    %v5559 = vld [vmem:[#allocation2 + $0xd0] sm:$0xff]
    %v5560 = vld [vmem:[#allocation2 + $0xe0] sm:$0xff]
    %v5561 = vld [vmem:[#allocation2 + $0xf0] sm:$0xff]
    %v5562 = vld [vmem:[#allocation2 + $0x100] sm:$0xff]
    %v5563 = vld [vmem:[#allocation2 + $0x110] sm:$0xff]
    %v5564 = vpack.c.bf16 %v5548, %v5548
    %v5565 = vpack.c.bf16 %v5549, %v5549
    %v5566 = vpack.c.bf16 %v5550, %v5550
    %v5567 = vpack.c.bf16 %v5551, %v5551
    %v5568 = vpack.c.bf16 %v5552, %v5552
    %v5569 = vpack.c.bf16 %v5553, %v5553
    %v5570 = vpack.c.bf16 %v5554, %v5554
    %v5571 = vpack.c.bf16 %v5555, %v5555
    %v5572 = vpack.c.bf16 %v5556, %v5556
    %v5573 = vpack.c.bf16 %v5557, %v5557
    %v5574 = vpack.c.bf16 %v5558, %v5558
    %v5575 = vpack.c.bf16 %v5559, %v5559
    %v5576 = vpack.c.bf16 %v5560, %v5560
    %v5577 = vpack.c.bf16 %v5561, %v5561
    %v5578 = vpack.c.bf16 %v5562, %v5562
    %v5579 = vpack.c.bf16 %v5563, %v5563
    %5580 = vst.msk [vmem:[#allocation3] sm:$0xf] %vm197, %v5564
    %5581 = vst.msk [vmem:[#allocation3 + $0xc] sm:$0xf] %vm197, %v5565
    %5582 = vst.msk [vmem:[#allocation3 + $0x18] sm:$0xf] %vm197, %v5566
    %5583 = vst.msk [vmem:[#allocation3 + $0x24] sm:$0xf] %vm197, %v5567
    %5584 = vst.msk [vmem:[#allocation3 + $0x30] sm:$0xf] %vm197, %v5568
    %5585 = vst.msk [vmem:[#allocation3 + $0x3c] sm:$0xf] %vm197, %v5569
    %5586 = vst.msk [vmem:[#allocation3 + $0x48] sm:$0xf] %vm197, %v5570
    %5587 = vst.msk [vmem:[#allocation3 + $0x54] sm:$0xf] %vm197, %v5571
    %5588 = vst.msk [vmem:[#allocation3 + $0x60] sm:$0xf] %vm197, %v5572
    %5589 = vst.msk [vmem:[#allocation3 + $0x6c] sm:$0xf] %vm197, %v5573
    %5590 = vst.msk [vmem:[#allocation3 + $0x78] sm:$0xf] %vm197, %v5574
    %5591 = vst.msk [vmem:[#allocation3 + $0x84] sm:$0xf] %vm197, %v5575
    %5592 = vst.msk [vmem:[#allocation3 + $0x90] sm:$0xf] %vm197, %v5576
    %5593 = vst.msk [vmem:[#allocation3 + $0x9c] sm:$0xf] %vm197, %v5577
    %5594 = vst.msk [vmem:[#allocation3 + $0xa8] sm:$0xf] %vm197, %v5578
    %5595 = vst.msk [vmem:[#allocation3 + $0xb4] sm:$0xf] %vm197, %v5579
    %v5596 = vld [vmem:[#allocation2 + $0x1] sm:$0xff]
    %v5597 = vld [vmem:[#allocation2 + $0x11] sm:$0xff]
    %v5598 = vld [vmem:[#allocation2 + $0x21] sm:$0xff]
    %v5599 = vld [vmem:[#allocation2 + $0x31] sm:$0xff]
    %v5600 = vld [vmem:[#allocation2 + $0x41] sm:$0xff]
    %v5601 = vld [vmem:[#allocation2 + $0x51] sm:$0xff]
    %v5602 = vld [vmem:[#allocation2 + $0x61] sm:$0xff]
    %v5603 = vld [vmem:[#allocation2 + $0x71] sm:$0xff]
    %v5604 = vld [vmem:[#allocation2 + $0xa1] sm:$0xff]
    %v5605 = vld [vmem:[#allocation2 + $0xb1] sm:$0xff]
    %v5606 = vld [vmem:[#allocation2 + $0xc1] sm:$0xff]
    %v5607 = vld [vmem:[#allocation2 + $0xd1] sm:$0xff]
    %v5608 = vld [vmem:[#allocation2 + $0xe1] sm:$0xff]
    %v5609 = vld [vmem:[#allocation2 + $0xf1] sm:$0xff]
    %v5610 = vld [vmem:[#allocation2 + $0x101] sm:$0xff]
    %v5611 = vld [vmem:[#allocation2 + $0x111] sm:$0xff]
    %v5612 = vpack.c.bf16 %v5596, %v5596
    %v5613 = vpack.c.bf16 %v5597, %v5597
    %v5614 = vpack.c.bf16 %v5598, %v5598
    %v5615 = vpack.c.bf16 %v5599, %v5599
    %v5616 = vpack.c.bf16 %v5600, %v5600
    %v5617 = vpack.c.bf16 %v5601, %v5601
    %v5618 = vpack.c.bf16 %v5602, %v5602
    %v5619 = vpack.c.bf16 %v5603, %v5603
    %v5620 = vpack.c.bf16 %v5604, %v5604
    %v5621 = vpack.c.bf16 %v5605, %v5605
    %v5622 = vpack.c.bf16 %v5606, %v5606
    %v5623 = vpack.c.bf16 %v5607, %v5607
    %v5624 = vpack.c.bf16 %v5608, %v5608
    %v5625 = vpack.c.bf16 %v5609, %v5609
    %v5626 = vpack.c.bf16 %v5610, %v5610
    %v5627 = vpack.c.bf16 %v5611, %v5611
    %5644 = vrot.lane.b32.xlu0 %v5612, 32
    %v5645 = vpop.permute.xlu0 %5644
    %5646 = vrot.lane.b32.xlu0 %v5613, 32
    %v5647 = vpop.permute.xlu0 %5646
    %5648 = vrot.lane.b32.xlu0 %v5614, 32
    %v5649 = vpop.permute.xlu0 %5648
    %5650 = vrot.lane.b32.xlu0 %v5615, 32
    %v5651 = vpop.permute.xlu0 %5650
    %5652 = vrot.lane.b32.xlu0 %v5616, 32
    %v5653 = vpop.permute.xlu0 %5652
    %5654 = vrot.lane.b32.xlu0 %v5617, 32
    %v5655 = vpop.permute.xlu0 %5654
    %5656 = vrot.lane.b32.xlu0 %v5618, 32
    %v5657 = vpop.permute.xlu0 %5656
    %5658 = vrot.lane.b32.xlu0 %v5619, 32
    %v5659 = vpop.permute.xlu0 %5658
    %5660 = vrot.lane.b32.xlu0 %v5620, 32
    %v5661 = vpop.permute.xlu0 %5660
    %5662 = vrot.lane.b32.xlu0 %v5621, 32
    %v5663 = vpop.permute.xlu0 %5662
    %5664 = vrot.lane.b32.xlu0 %v5622, 32
    %v5665 = vpop.permute.xlu0 %5664
    %5666 = vrot.lane.b32.xlu0 %v5623, 32
    %v5667 = vpop.permute.xlu0 %5666
    %5668 = vrot.lane.b32.xlu0 %v5624, 32
    %v5669 = vpop.permute.xlu0 %5668
    %5670 = vrot.lane.b32.xlu0 %v5625, 32
    %v5671 = vpop.permute.xlu0 %5670
    %5672 = vrot.lane.b32.xlu0 %v5626, 32
    %v5673 = vpop.permute.xlu0 %5672
    %5674 = vrot.lane.b32.xlu0 %v5627, 32
    %v5675 = vpop.permute.xlu0 %5674
    %5692 = vst.msk [vmem:[#allocation3] sm:$0xf] %vm310, %v5645
    %5693 = vst.msk [vmem:[#allocation3 + $0xc] sm:$0xf] %vm310, %v5647
    %5694 = vst.msk [vmem:[#allocation3 + $0x18] sm:$0xf] %vm310, %v5649
    %5695 = vst.msk [vmem:[#allocation3 + $0x24] sm:$0xf] %vm310, %v5651
    %5696 = vst.msk [vmem:[#allocation3 + $0x30] sm:$0xf] %vm310, %v5653
    %5697 = vst.msk [vmem:[#allocation3 + $0x3c] sm:$0xf] %vm310, %v5655
    %5698 = vst.msk [vmem:[#allocation3 + $0x48] sm:$0xf] %vm310, %v5657
    %5699 = vst.msk [vmem:[#allocation3 + $0x54] sm:$0xf] %vm310, %v5659
    %5700 = vst.msk [vmem:[#allocation3 + $0x60] sm:$0xf] %vm310, %v5661
    %5701 = vst.msk [vmem:[#allocation3 + $0x6c] sm:$0xf] %vm310, %v5663
    %5702 = vst.msk [vmem:[#allocation3 + $0x78] sm:$0xf] %vm310, %v5665
    %5703 = vst.msk [vmem:[#allocation3 + $0x84] sm:$0xf] %vm310, %v5667
    %5704 = vst.msk [vmem:[#allocation3 + $0x90] sm:$0xf] %vm310, %v5669
    %5705 = vst.msk [vmem:[#allocation3 + $0x9c] sm:$0xf] %vm310, %v5671
    %5706 = vst.msk [vmem:[#allocation3 + $0xa8] sm:$0xf] %vm310, %v5673
    %5707 = vst.msk [vmem:[#allocation3 + $0xb4] sm:$0xf] %vm310, %v5675
    %v5708 = vld [vmem:[#allocation2 + $0x2] sm:$0xff]
    %v5709 = vld [vmem:[#allocation2 + $0x12] sm:$0xff]
    %v5710 = vld [vmem:[#allocation2 + $0x22] sm:$0xff]
    %v5711 = vld [vmem:[#allocation2 + $0x32] sm:$0xff]
    %v5712 = vld [vmem:[#allocation2 + $0x42] sm:$0xff]
    %v5713 = vld [vmem:[#allocation2 + $0x52] sm:$0xff]
    %v5714 = vld [vmem:[#allocation2 + $0x62] sm:$0xff]
    %v5715 = vld [vmem:[#allocation2 + $0x72] sm:$0xff]
    %v5716 = vld [vmem:[#allocation2 + $0xa2] sm:$0xff]
    %v5717 = vld [vmem:[#allocation2 + $0xb2] sm:$0xff]
    %v5718 = vld [vmem:[#allocation2 + $0xc2] sm:$0xff]
    %v5719 = vld [vmem:[#allocation2 + $0xd2] sm:$0xff]
    %v5720 = vld [vmem:[#allocation2 + $0xe2] sm:$0xff]
    %v5721 = vld [vmem:[#allocation2 + $0xf2] sm:$0xff]
    %v5722 = vld [vmem:[#allocation2 + $0x102] sm:$0xff]
    %v5723 = vld [vmem:[#allocation2 + $0x112] sm:$0xff]
    %v5724 = vpack.c.bf16 %v5708, %v5708
    %v5725 = vpack.c.bf16 %v5709, %v5709
    %v5726 = vpack.c.bf16 %v5710, %v5710
    %v5727 = vpack.c.bf16 %v5711, %v5711
    %v5728 = vpack.c.bf16 %v5712, %v5712
    %v5729 = vpack.c.bf16 %v5713, %v5713
    %v5730 = vpack.c.bf16 %v5714, %v5714
    %v5731 = vpack.c.bf16 %v5715, %v5715
    %v5732 = vpack.c.bf16 %v5716, %v5716
    %v5733 = vpack.c.bf16 %v5717, %v5717
    %v5734 = vpack.c.bf16 %v5718, %v5718
    %v5735 = vpack.c.bf16 %v5719, %v5719
    %v5736 = vpack.c.bf16 %v5720, %v5720
    %v5737 = vpack.c.bf16 %v5721, %v5721
    %v5738 = vpack.c.bf16 %v5722, %v5722
    %v5739 = vpack.c.bf16 %v5723, %v5723
    %5756 = vrot.lane.b32.xlu0 %v5724, 64
    %v5757 = vpop.permute.xlu0 %5756
    %5758 = vrot.lane.b32.xlu0 %v5725, 64
    %v5759 = vpop.permute.xlu0 %5758
    %5760 = vrot.lane.b32.xlu0 %v5726, 64
    %v5761 = vpop.permute.xlu0 %5760
    %5762 = vrot.lane.b32.xlu0 %v5727, 64
    %v5763 = vpop.permute.xlu0 %5762
    %5764 = vrot.lane.b32.xlu0 %v5728, 64
    %v5765 = vpop.permute.xlu0 %5764
    %5766 = vrot.lane.b32.xlu0 %v5729, 64
    %v5767 = vpop.permute.xlu0 %5766
    %5768 = vrot.lane.b32.xlu0 %v5730, 64
    %v5769 = vpop.permute.xlu0 %5768
    %5770 = vrot.lane.b32.xlu0 %v5731, 64
    %v5771 = vpop.permute.xlu0 %5770
    %5772 = vrot.lane.b32.xlu0 %v5732, 64
    %v5773 = vpop.permute.xlu0 %5772
    %5774 = vrot.lane.b32.xlu0 %v5733, 64
    %v5775 = vpop.permute.xlu0 %5774
    %5776 = vrot.lane.b32.xlu0 %v5734, 64
    %v5777 = vpop.permute.xlu0 %5776
    %5778 = vrot.lane.b32.xlu0 %v5735, 64
    %v5779 = vpop.permute.xlu0 %5778
    %5780 = vrot.lane.b32.xlu0 %v5736, 64
    %v5781 = vpop.permute.xlu0 %5780
    %5782 = vrot.lane.b32.xlu0 %v5737, 64
    %v5783 = vpop.permute.xlu0 %5782
    %5784 = vrot.lane.b32.xlu0 %v5738, 64
    %v5785 = vpop.permute.xlu0 %5784
    %5786 = vrot.lane.b32.xlu0 %v5739, 64
    %v5787 = vpop.permute.xlu0 %5786
    %5804 = vst.msk [vmem:[#allocation3] sm:$0xf] %vm423, %v5757
    %5805 = vst.msk [vmem:[#allocation3 + $0xc] sm:$0xf] %vm423, %v5759
    %5806 = vst.msk [vmem:[#allocation3 + $0x18] sm:$0xf] %vm423, %v5761
    %5807 = vst.msk [vmem:[#allocation3 + $0x24] sm:$0xf] %vm423, %v5763
    %5808 = vst.msk [vmem:[#allocation3 + $0x30] sm:$0xf] %vm423, %v5765
    %5809 = vst.msk [vmem:[#allocation3 + $0x3c] sm:$0xf] %vm423, %v5767
    %5810 = vst.msk [vmem:[#allocation3 + $0x48] sm:$0xf] %vm423, %v5769
    %5811 = vst.msk [vmem:[#allocation3 + $0x54] sm:$0xf] %vm423, %v5771
    %5812 = vst.msk [vmem:[#allocation3 + $0x60] sm:$0xf] %vm423, %v5773
    %5813 = vst.msk [vmem:[#allocation3 + $0x6c] sm:$0xf] %vm423, %v5775
    %5814 = vst.msk [vmem:[#allocation3 + $0x78] sm:$0xf] %vm423, %v5777
    %5815 = vst.msk [vmem:[#allocation3 + $0x84] sm:$0xf] %vm423, %v5779
    %5816 = vst.msk [vmem:[#allocation3 + $0x90] sm:$0xf] %vm423, %v5781
    %5817 = vst.msk [vmem:[#allocation3 + $0x9c] sm:$0xf] %vm423, %v5783
    %5818 = vst.msk [vmem:[#allocation3 + $0xa8] sm:$0xf] %vm423, %v5785
    %5819 = vst.msk [vmem:[#allocation3 + $0xb4] sm:$0xf] %vm423, %v5787
    %v5820 = vld [vmem:[%s148] sm:$0xff]
    %v5821 = vld [vmem:[%s148 + $0x10] sm:$0xff]
    %v5822 = vld [vmem:[%s148 + $0x20] sm:$0xff]
    %v5823 = vld [vmem:[%s148 + $0x30] sm:$0xff]
    %v5824 = vld [vmem:[%s148 + $0x40] sm:$0xff]
    %v5825 = vld [vmem:[%s148 + $0x50] sm:$0xff]
    %v5826 = vld [vmem:[%s148 + $0x60] sm:$0xff]
    %v5827 = vld [vmem:[%s148 + $0x70] sm:$0xff]
    %v5828 = vld [vmem:[%s148 + $0xa0] sm:$0xff]
    %v5829 = vld [vmem:[%s148 + $0xb0] sm:$0xff]
    %v5830 = vld [vmem:[%s148 + $0xc0] sm:$0xff]
    %v5831 = vld [vmem:[%s148 + $0xd0] sm:$0xff]
    %v5832 = vld [vmem:[%s148 + $0xe0] sm:$0xff]
    %v5833 = vld [vmem:[%s148 + $0xf0] sm:$0xff]
    %v5834 = vld [vmem:[%s148 + $0x100] sm:$0xff]
    %v5835 = vld [vmem:[%s148 + $0x110] sm:$0xff]
    %v5836 = vpack.c.bf16 %v5820, %v5820
    %v5837 = vpack.c.bf16 %v5821, %v5821
    %v5838 = vpack.c.bf16 %v5822, %v5822
    %v5839 = vpack.c.bf16 %v5823, %v5823
    %v5840 = vpack.c.bf16 %v5824, %v5824
    %v5841 = vpack.c.bf16 %v5825, %v5825
    %v5842 = vpack.c.bf16 %v5826, %v5826
    %v5843 = vpack.c.bf16 %v5827, %v5827
    %v5844 = vpack.c.bf16 %v5828, %v5828
    %v5845 = vpack.c.bf16 %v5829, %v5829
    %v5846 = vpack.c.bf16 %v5830, %v5830
    %v5847 = vpack.c.bf16 %v5831, %v5831
    %v5848 = vpack.c.bf16 %v5832, %v5832
    %v5849 = vpack.c.bf16 %v5833, %v5833
    %v5850 = vpack.c.bf16 %v5834, %v5834
    %v5851 = vpack.c.bf16 %v5835, %v5835
    %5868 = vrot.lane.b32.xlu0 %v5836, 96
    %v5869 = vpop.permute.xlu0 %5868
    %5870 = vrot.lane.b32.xlu0 %v5837, 96
    %v5871 = vpop.permute.xlu0 %5870
    %5872 = vrot.lane.b32.xlu0 %v5838, 96
    %v5873 = vpop.permute.xlu0 %5872
    %5874 = vrot.lane.b32.xlu0 %v5839, 96
    %v5875 = vpop.permute.xlu0 %5874
    %5876 = vrot.lane.b32.xlu0 %v5840, 96
    %v5877 = vpop.permute.xlu0 %5876
    %5878 = vrot.lane.b32.xlu0 %v5841, 96
    %v5879 = vpop.permute.xlu0 %5878
    %5880 = vrot.lane.b32.xlu0 %v5842, 96
    %v5881 = vpop.permute.xlu0 %5880
    %5882 = vrot.lane.b32.xlu0 %v5843, 96
    %v5883 = vpop.permute.xlu0 %5882
    %5884 = vrot.lane.b32.xlu0 %v5844, 96
    %v5885 = vpop.permute.xlu0 %5884
    %5886 = vrot.lane.b32.xlu0 %v5845, 96
    %v5887 = vpop.permute.xlu0 %5886
    %5888 = vrot.lane.b32.xlu0 %v5846, 96
    %v5889 = vpop.permute.xlu0 %5888
    %5890 = vrot.lane.b32.xlu0 %v5847, 96
    %v5891 = vpop.permute.xlu0 %5890
    %5892 = vrot.lane.b32.xlu0 %v5848, 96
    %v5893 = vpop.permute.xlu0 %5892
    %5894 = vrot.lane.b32.xlu0 %v5849, 96
    %v5895 = vpop.permute.xlu0 %5894
    %5896 = vrot.lane.b32.xlu0 %v5850, 96
    %v5897 = vpop.permute.xlu0 %5896
    %5898 = vrot.lane.b32.xlu0 %v5851, 96
    %v5899 = vpop.permute.xlu0 %5898
    %5916 = vst.msk [vmem:[#allocation3] sm:$0xf] %vm536, %v5869
    %5917 = vst.msk [vmem:[#allocation3 + $0xc] sm:$0xf] %vm536, %v5871
    %5918 = vst.msk [vmem:[#allocation3 + $0x18] sm:$0xf] %vm536, %v5873
    %5919 = vst.msk [vmem:[#allocation3 + $0x24] sm:$0xf] %vm536, %v5875
    %5920 = vst.msk [vmem:[#allocation3 + $0x30] sm:$0xf] %vm536, %v5877
    %5921 = vst.msk [vmem:[#allocation3 + $0x3c] sm:$0xf] %vm536, %v5879
    %5922 = vst.msk [vmem:[#allocation3 + $0x48] sm:$0xf] %vm536, %v5881
    %5923 = vst.msk [vmem:[#allocation3 + $0x54] sm:$0xf] %vm536, %v5883
    %5924 = vst.msk [vmem:[#allocation3 + $0x60] sm:$0xf] %vm536, %v5885
    %5925 = vst.msk [vmem:[#allocation3 + $0x6c] sm:$0xf] %vm536, %v5887
    %5926 = vst.msk [vmem:[#allocation3 + $0x78] sm:$0xf] %vm536, %v5889
    %5927 = vst.msk [vmem:[#allocation3 + $0x84] sm:$0xf] %vm536, %v5891
    %5928 = vst.msk [vmem:[#allocation3 + $0x90] sm:$0xf] %vm536, %v5893
    %5929 = vst.msk [vmem:[#allocation3 + $0x9c] sm:$0xf] %vm536, %v5895
    %5930 = vst.msk [vmem:[#allocation3 + $0xa8] sm:$0xf] %vm536, %v5897
    %5931 = vst.msk [vmem:[#allocation3 + $0xb4] sm:$0xf] %vm536, %v5899
    %v5932 = vld [vmem:[%s148 + $0x1] sm:$0xff]
    %v5933 = vld [vmem:[%s148 + $0x11] sm:$0xff]
    %v5934 = vld [vmem:[%s148 + $0x21] sm:$0xff]
    %v5935 = vld [vmem:[%s148 + $0x31] sm:$0xff]
    %v5936 = vld [vmem:[%s148 + $0x41] sm:$0xff]
    %v5937 = vld [vmem:[%s148 + $0x51] sm:$0xff]
    %v5938 = vld [vmem:[%s148 + $0x61] sm:$0xff]
    %v5939 = vld [vmem:[%s148 + $0x71] sm:$0xff]
    %v5940 = vld [vmem:[%s148 + $0xa1] sm:$0xff]
    %v5941 = vld [vmem:[%s148 + $0xb1] sm:$0xff]
    %v5942 = vld [vmem:[%s148 + $0xc1] sm:$0xff]
    %v5943 = vld [vmem:[%s148 + $0xd1] sm:$0xff]
    %v5944 = vld [vmem:[%s148 + $0xe1] sm:$0xff]
    %v5945 = vld [vmem:[%s148 + $0xf1] sm:$0xff]
    %v5946 = vld [vmem:[%s148 + $0x101] sm:$0xff]
    %v5947 = vld [vmem:[%s148 + $0x111] sm:$0xff]
    %v5948 = vpack.c.bf16 %v5932, %v5932
    %v5949 = vpack.c.bf16 %v5933, %v5933
    %v5950 = vpack.c.bf16 %v5934, %v5934
    %v5951 = vpack.c.bf16 %v5935, %v5935
    %v5952 = vpack.c.bf16 %v5936, %v5936
    %v5953 = vpack.c.bf16 %v5937, %v5937
    %v5954 = vpack.c.bf16 %v5938, %v5938
    %v5955 = vpack.c.bf16 %v5939, %v5939
    %v5956 = vpack.c.bf16 %v5940, %v5940
    %v5957 = vpack.c.bf16 %v5941, %v5941
    %v5958 = vpack.c.bf16 %v5942, %v5942
    %v5959 = vpack.c.bf16 %v5943, %v5943
    %v5960 = vpack.c.bf16 %v5944, %v5944
    %v5961 = vpack.c.bf16 %v5945, %v5945
    %v5962 = vpack.c.bf16 %v5946, %v5946
    %v5963 = vpack.c.bf16 %v5947, %v5947
    %5964 = vst.msk [vmem:[#allocation3 + $0x4] sm:$0xf] %vm197, %v5948
    %5965 = vst.msk [vmem:[#allocation3 + $0x10] sm:$0xf] %vm197, %v5949
    %5966 = vst.msk [vmem:[#allocation3 + $0x1c] sm:$0xf] %vm197, %v5950
    %5967 = vst.msk [vmem:[#allocation3 + $0x28] sm:$0xf] %vm197, %v5951
    %5968 = vst.msk [vmem:[#allocation3 + $0x34] sm:$0xf] %vm197, %v5952
    %5969 = vst.msk [vmem:[#allocation3 + $0x40] sm:$0xf] %vm197, %v5953
    %5970 = vst.msk [vmem:[#allocation3 + $0x4c] sm:$0xf] %vm197, %v5954
    %5971 = vst.msk [vmem:[#allocation3 + $0x58] sm:$0xf] %vm197, %v5955
    %5972 = vst.msk [vmem:[#allocation3 + $0x64] sm:$0xf] %vm197, %v5956
    %5973 = vst.msk [vmem:[#allocation3 + $0x70] sm:$0xf] %vm197, %v5957
    %5974 = vst.msk [vmem:[#allocation3 + $0x7c] sm:$0xf] %vm197, %v5958
    %5975 = vst.msk [vmem:[#allocation3 + $0x88] sm:$0xf] %vm197, %v5959
    %5976 = vst.msk [vmem:[#allocation3 + $0x94] sm:$0xf] %vm197, %v5960
    %5977 = vst.msk [vmem:[#allocation3 + $0xa0] sm:$0xf] %vm197, %v5961
    %5978 = vst.msk [vmem:[#allocation3 + $0xac] sm:$0xf] %vm197, %v5962
    %5979 = vst.msk [vmem:[#allocation3 + $0xb8] sm:$0xf] %vm197, %v5963
    %v5980 = vld [vmem:[%s148 + $0x2] sm:$0xff]
    %v5981 = vld [vmem:[%s148 + $0x12] sm:$0xff]
    %v5982 = vld [vmem:[%s148 + $0x22] sm:$0xff]
    %v5983 = vld [vmem:[%s148 + $0x32] sm:$0xff]
    %v5984 = vld [vmem:[%s148 + $0x42] sm:$0xff]
    %v5985 = vld [vmem:[%s148 + $0x52] sm:$0xff]
    %v5986 = vld [vmem:[%s148 + $0x62] sm:$0xff]
    %v5987 = vld [vmem:[%s148 + $0x72] sm:$0xff]
    %v5988 = vld [vmem:[%s148 + $0xa2] sm:$0xff]
    %v5989 = vld [vmem:[%s148 + $0xb2] sm:$0xff]
    %v5990 = vld [vmem:[%s148 + $0xc2] sm:$0xff]
    %v5991 = vld [vmem:[%s148 + $0xd2] sm:$0xff]
    %v5992 = vld [vmem:[%s148 + $0xe2] sm:$0xff]
    %v5993 = vld [vmem:[%s148 + $0xf2] sm:$0xff]
    %v5994 = vld [vmem:[%s148 + $0x102] sm:$0xff]
    %v5995 = vld [vmem:[%s148 + $0x112] sm:$0xff]
    %v5996 = vpack.c.bf16 %v5980, %v5980
    %v5997 = vpack.c.bf16 %v5981, %v5981
    %v5998 = vpack.c.bf16 %v5982, %v5982
    %v5999 = vpack.c.bf16 %v5983, %v5983
    %v6000 = vpack.c.bf16 %v5984, %v5984
    %v6001 = vpack.c.bf16 %v5985, %v5985
    %v6002 = vpack.c.bf16 %v5986, %v5986
    %v6003 = vpack.c.bf16 %v5987, %v5987
    %v6004 = vpack.c.bf16 %v5988, %v5988
    %v6005 = vpack.c.bf16 %v5989, %v5989
    %v6006 = vpack.c.bf16 %v5990, %v5990
    %v6007 = vpack.c.bf16 %v5991, %v5991
    %v6008 = vpack.c.bf16 %v5992, %v5992
    %v6009 = vpack.c.bf16 %v5993, %v5993
    %v6010 = vpack.c.bf16 %v5994, %v5994
    %v6011 = vpack.c.bf16 %v5995, %v5995
    %6028 = vrot.lane.b32.xlu0 %v5996, 32
    %v6029 = vpop.permute.xlu0 %6028
    %6030 = vrot.lane.b32.xlu0 %v5997, 32
    %v6031 = vpop.permute.xlu0 %6030
    %6032 = vrot.lane.b32.xlu0 %v5998, 32
    %v6033 = vpop.permute.xlu0 %6032
    %6034 = vrot.lane.b32.xlu0 %v5999, 32
    %v6035 = vpop.permute.xlu0 %6034
    %6036 = vrot.lane.b32.xlu0 %v6000, 32
    %v6037 = vpop.permute.xlu0 %6036
    %6038 = vrot.lane.b32.xlu0 %v6001, 32
    %v6039 = vpop.permute.xlu0 %6038
    %6040 = vrot.lane.b32.xlu0 %v6002, 32
    %v6041 = vpop.permute.xlu0 %6040
    %6042 = vrot.lane.b32.xlu0 %v6003, 32
    %v6043 = vpop.permute.xlu0 %6042
    %6044 = vrot.lane.b32.xlu0 %v6004, 32
    %v6045 = vpop.permute.xlu0 %6044
    %6046 = vrot.lane.b32.xlu0 %v6005, 32
    %v6047 = vpop.permute.xlu0 %6046
    %6048 = vrot.lane.b32.xlu0 %v6006, 32
    %v6049 = vpop.permute.xlu0 %6048
    %6050 = vrot.lane.b32.xlu0 %v6007, 32
    %v6051 = vpop.permute.xlu0 %6050
    %6052 = vrot.lane.b32.xlu0 %v6008, 32
    %v6053 = vpop.permute.xlu0 %6052
    %6054 = vrot.lane.b32.xlu0 %v6009, 32
    %v6055 = vpop.permute.xlu0 %6054
    %6056 = vrot.lane.b32.xlu0 %v6010, 32
    %v6057 = vpop.permute.xlu0 %6056
    %6058 = vrot.lane.b32.xlu0 %v6011, 32
    %v6059 = vpop.permute.xlu0 %6058
    %6076 = vst.msk [vmem:[#allocation3 + $0x4] sm:$0xf] %vm310, %v6029
    %6077 = vst.msk [vmem:[#allocation3 + $0x10] sm:$0xf] %vm310, %v6031
    %6078 = vst.msk [vmem:[#allocation3 + $0x1c] sm:$0xf] %vm310, %v6033
    %6079 = vst.msk [vmem:[#allocation3 + $0x28] sm:$0xf] %vm310, %v6035
    %6080 = vst.msk [vmem:[#allocation3 + $0x34] sm:$0xf] %vm310, %v6037
    %6081 = vst.msk [vmem:[#allocation3 + $0x40] sm:$0xf] %vm310, %v6039
    %6082 = vst.msk [vmem:[#allocation3 + $0x4c] sm:$0xf] %vm310, %v6041
    %6083 = vst.msk [vmem:[#allocation3 + $0x58] sm:$0xf] %vm310, %v6043
    %6084 = vst.msk [vmem:[#allocation3 + $0x64] sm:$0xf] %vm310, %v6045
    %6085 = vst.msk [vmem:[#allocation3 + $0x70] sm:$0xf] %vm310, %v6047
    %6086 = vst.msk [vmem:[#allocation3 + $0x7c] sm:$0xf] %vm310, %v6049
    %6087 = vst.msk [vmem:[#allocation3 + $0x88] sm:$0xf] %vm310, %v6051
    %6088 = vst.msk [vmem:[#allocation3 + $0x94] sm:$0xf] %vm310, %v6053
    %6089 = vst.msk [vmem:[#allocation3 + $0xa0] sm:$0xf] %vm310, %v6055
    %6090 = vst.msk [vmem:[#allocation3 + $0xac] sm:$0xf] %vm310, %v6057
    %6091 = vst.msk [vmem:[#allocation3 + $0xb8] sm:$0xf] %vm310, %v6059
    %v6092 = vld [vmem:[%s713] sm:$0xff]
    %v6093 = vld [vmem:[%s713 + $0x10] sm:$0xff]
    %v6094 = vld [vmem:[%s713 + $0x20] sm:$0xff]
    %v6095 = vld [vmem:[%s713 + $0x30] sm:$0xff]
    %v6096 = vld [vmem:[%s713 + $0x40] sm:$0xff]
    %v6097 = vld [vmem:[%s713 + $0x50] sm:$0xff]
    %v6098 = vld [vmem:[%s713 + $0x60] sm:$0xff]
    %v6099 = vld [vmem:[%s713 + $0x70] sm:$0xff]
    %v6100 = vld [vmem:[%s713 + $0xa0] sm:$0xff]
    %v6101 = vld [vmem:[%s713 + $0xb0] sm:$0xff]
    %v6102 = vld [vmem:[%s713 + $0xc0] sm:$0xff]
    %v6103 = vld [vmem:[%s713 + $0xd0] sm:$0xff]
    %v6104 = vld [vmem:[%s713 + $0xe0] sm:$0xff]
    %v6105 = vld [vmem:[%s713 + $0xf0] sm:$0xff]
    %v6106 = vld [vmem:[%s713 + $0x100] sm:$0xff]
    %v6107 = vld [vmem:[%s713 + $0x110] sm:$0xff]
    %v6108 = vpack.c.bf16 %v6092, %v6092
    %v6109 = vpack.c.bf16 %v6093, %v6093
    %v6110 = vpack.c.bf16 %v6094, %v6094
    %v6111 = vpack.c.bf16 %v6095, %v6095
    %v6112 = vpack.c.bf16 %v6096, %v6096
    %v6113 = vpack.c.bf16 %v6097, %v6097
    %v6114 = vpack.c.bf16 %v6098, %v6098
    %v6115 = vpack.c.bf16 %v6099, %v6099
    %v6116 = vpack.c.bf16 %v6100, %v6100
    %v6117 = vpack.c.bf16 %v6101, %v6101
    %v6118 = vpack.c.bf16 %v6102, %v6102
    %v6119 = vpack.c.bf16 %v6103, %v6103
    %v6120 = vpack.c.bf16 %v6104, %v6104
    %v6121 = vpack.c.bf16 %v6105, %v6105
    %v6122 = vpack.c.bf16 %v6106, %v6106
    %v6123 = vpack.c.bf16 %v6107, %v6107
    %6140 = vrot.lane.b32.xlu0 %v6108, 64
    %v6141 = vpop.permute.xlu0 %6140
    %6142 = vrot.lane.b32.xlu0 %v6109, 64
    %v6143 = vpop.permute.xlu0 %6142
    %6144 = vrot.lane.b32.xlu0 %v6110, 64
    %v6145 = vpop.permute.xlu0 %6144
    %6146 = vrot.lane.b32.xlu0 %v6111, 64
    %v6147 = vpop.permute.xlu0 %6146
    %6148 = vrot.lane.b32.xlu0 %v6112, 64
    %v6149 = vpop.permute.xlu0 %6148
    %6150 = vrot.lane.b32.xlu0 %v6113, 64
    %v6151 = vpop.permute.xlu0 %6150
    %6152 = vrot.lane.b32.xlu0 %v6114, 64
    %v6153 = vpop.permute.xlu0 %6152
    %6154 = vrot.lane.b32.xlu0 %v6115, 64
    %v6155 = vpop.permute.xlu0 %6154
    %6156 = vrot.lane.b32.xlu0 %v6116, 64
    %v6157 = vpop.permute.xlu0 %6156
    %6158 = vrot.lane.b32.xlu0 %v6117, 64
    %v6159 = vpop.permute.xlu0 %6158
    %6160 = vrot.lane.b32.xlu0 %v6118, 64
    %v6161 = vpop.permute.xlu0 %6160
    %6162 = vrot.lane.b32.xlu0 %v6119, 64
    %v6163 = vpop.permute.xlu0 %6162
    %6164 = vrot.lane.b32.xlu0 %v6120, 64
    %v6165 = vpop.permute.xlu0 %6164
    %6166 = vrot.lane.b32.xlu0 %v6121, 64
    %v6167 = vpop.permute.xlu0 %6166
    %6168 = vrot.lane.b32.xlu0 %v6122, 64
    %v6169 = vpop.permute.xlu0 %6168
    %6170 = vrot.lane.b32.xlu0 %v6123, 64
    %v6171 = vpop.permute.xlu0 %6170
    %6188 = vst.msk [vmem:[#allocation3 + $0x4] sm:$0xf] %vm423, %v6141
    %6189 = vst.msk [vmem:[#allocation3 + $0x10] sm:$0xf] %vm423, %v6143
    %6190 = vst.msk [vmem:[#allocation3 + $0x1c] sm:$0xf] %vm423, %v6145
    %6191 = vst.msk [vmem:[#allocation3 + $0x28] sm:$0xf] %vm423, %v6147
    %6192 = vst.msk [vmem:[#allocation3 + $0x34] sm:$0xf] %vm423, %v6149
    %6193 = vst.msk [vmem:[#allocation3 + $0x40] sm:$0xf] %vm423, %v6151
    %6194 = vst.msk [vmem:[#allocation3 + $0x4c] sm:$0xf] %vm423, %v6153
    %6195 = vst.msk [vmem:[#allocation3 + $0x58] sm:$0xf] %vm423, %v6155
    %6196 = vst.msk [vmem:[#allocation3 + $0x64] sm:$0xf] %vm423, %v6157
    %6197 = vst.msk [vmem:[#allocation3 + $0x70] sm:$0xf] %vm423, %v6159
    %6198 = vst.msk [vmem:[#allocation3 + $0x7c] sm:$0xf] %vm423, %v6161
    %6199 = vst.msk [vmem:[#allocation3 + $0x88] sm:$0xf] %vm423, %v6163
    %6200 = vst.msk [vmem:[#allocation3 + $0x94] sm:$0xf] %vm423, %v6165
    %6201 = vst.msk [vmem:[#allocation3 + $0xa0] sm:$0xf] %vm423, %v6167
    %6202 = vst.msk [vmem:[#allocation3 + $0xac] sm:$0xf] %vm423, %v6169
    %6203 = vst.msk [vmem:[#allocation3 + $0xb8] sm:$0xf] %vm423, %v6171
    %v6204 = vld [vmem:[%s713 + $0x1] sm:$0xff]
    %v6205 = vld [vmem:[%s713 + $0x11] sm:$0xff]
    %v6206 = vld [vmem:[%s713 + $0x21] sm:$0xff]
    %v6207 = vld [vmem:[%s713 + $0x31] sm:$0xff]
    %v6208 = vld [vmem:[%s713 + $0x41] sm:$0xff]
    %v6209 = vld [vmem:[%s713 + $0x51] sm:$0xff]
    %v6210 = vld [vmem:[%s713 + $0x61] sm:$0xff]
    %v6211 = vld [vmem:[%s713 + $0x71] sm:$0xff]
    %v6212 = vld [vmem:[%s713 + $0xa1] sm:$0xff]
    %v6213 = vld [vmem:[%s713 + $0xb1] sm:$0xff]
    %v6214 = vld [vmem:[%s713 + $0xc1] sm:$0xff]
    %v6215 = vld [vmem:[%s713 + $0xd1] sm:$0xff]
    %v6216 = vld [vmem:[%s713 + $0xe1] sm:$0xff]
    %v6217 = vld [vmem:[%s713 + $0xf1] sm:$0xff]
    %v6218 = vld [vmem:[%s713 + $0x101] sm:$0xff]
    %v6219 = vld [vmem:[%s713 + $0x111] sm:$0xff]
    %v6220 = vpack.c.bf16 %v6204, %v6204
    %v6221 = vpack.c.bf16 %v6205, %v6205
    %v6222 = vpack.c.bf16 %v6206, %v6206
    %v6223 = vpack.c.bf16 %v6207, %v6207
    %v6224 = vpack.c.bf16 %v6208, %v6208
    %v6225 = vpack.c.bf16 %v6209, %v6209
    %v6226 = vpack.c.bf16 %v6210, %v6210
    %v6227 = vpack.c.bf16 %v6211, %v6211
    %v6228 = vpack.c.bf16 %v6212, %v6212
    %v6229 = vpack.c.bf16 %v6213, %v6213
    %v6230 = vpack.c.bf16 %v6214, %v6214
    %v6231 = vpack.c.bf16 %v6215, %v6215
    %v6232 = vpack.c.bf16 %v6216, %v6216
    %v6233 = vpack.c.bf16 %v6217, %v6217
    %v6234 = vpack.c.bf16 %v6218, %v6218
    %v6235 = vpack.c.bf16 %v6219, %v6219
    %6252 = vrot.lane.b32.xlu0 %v6220, 96
    %v6253 = vpop.permute.xlu0 %6252
    %6254 = vrot.lane.b32.xlu0 %v6221, 96
    %v6255 = vpop.permute.xlu0 %6254
    %6256 = vrot.lane.b32.xlu0 %v6222, 96
    %v6257 = vpop.permute.xlu0 %6256
    %6258 = vrot.lane.b32.xlu0 %v6223, 96
    %v6259 = vpop.permute.xlu0 %6258
    %6260 = vrot.lane.b32.xlu0 %v6224, 96
    %v6261 = vpop.permute.xlu0 %6260
    %6262 = vrot.lane.b32.xlu0 %v6225, 96
    %v6263 = vpop.permute.xlu0 %6262
    %6264 = vrot.lane.b32.xlu0 %v6226, 96
    %v6265 = vpop.permute.xlu0 %6264
    %6266 = vrot.lane.b32.xlu0 %v6227, 96
    %v6267 = vpop.permute.xlu0 %6266
    %6268 = vrot.lane.b32.xlu0 %v6228, 96
    %v6269 = vpop.permute.xlu0 %6268
    %6270 = vrot.lane.b32.xlu0 %v6229, 96
    %v6271 = vpop.permute.xlu0 %6270
    %6272 = vrot.lane.b32.xlu0 %v6230, 96
    %v6273 = vpop.permute.xlu0 %6272
    %6274 = vrot.lane.b32.xlu0 %v6231, 96
    %v6275 = vpop.permute.xlu0 %6274
    %6276 = vrot.lane.b32.xlu0 %v6232, 96
    %v6277 = vpop.permute.xlu0 %6276
    %6278 = vrot.lane.b32.xlu0 %v6233, 96
    %v6279 = vpop.permute.xlu0 %6278
    %6280 = vrot.lane.b32.xlu0 %v6234, 96
    %v6281 = vpop.permute.xlu0 %6280
    %6282 = vrot.lane.b32.xlu0 %v6235, 96
    %v6283 = vpop.permute.xlu0 %6282
    %6300 = vst.msk [vmem:[#allocation3 + $0x4] sm:$0xf] %vm536, %v6253
    %6301 = vst.msk [vmem:[#allocation3 + $0x10] sm:$0xf] %vm536, %v6255
    %6302 = vst.msk [vmem:[#allocation3 + $0x1c] sm:$0xf] %vm536, %v6257
    %6303 = vst.msk [vmem:[#allocation3 + $0x28] sm:$0xf] %vm536, %v6259
    %6304 = vst.msk [vmem:[#allocation3 + $0x34] sm:$0xf] %vm536, %v6261
    %6305 = vst.msk [vmem:[#allocation3 + $0x40] sm:$0xf] %vm536, %v6263
    %6306 = vst.msk [vmem:[#allocation3 + $0x4c] sm:$0xf] %vm536, %v6265
    %6307 = vst.msk [vmem:[#allocation3 + $0x58] sm:$0xf] %vm536, %v6267
    %6308 = vst.msk [vmem:[#allocation3 + $0x64] sm:$0xf] %vm536, %v6269
    %6309 = vst.msk [vmem:[#allocation3 + $0x70] sm:$0xf] %vm536, %v6271
    %6310 = vst.msk [vmem:[#allocation3 + $0x7c] sm:$0xf] %vm536, %v6273
    %6311 = vst.msk [vmem:[#allocation3 + $0x88] sm:$0xf] %vm536, %v6275
    %6312 = vst.msk [vmem:[#allocation3 + $0x94] sm:$0xf] %vm536, %v6277
    %6313 = vst.msk [vmem:[#allocation3 + $0xa0] sm:$0xf] %vm536, %v6279
    %6314 = vst.msk [vmem:[#allocation3 + $0xac] sm:$0xf] %vm536, %v6281
    %6315 = vst.msk [vmem:[#allocation3 + $0xb8] sm:$0xf] %vm536, %v6283
    %v6316 = vld [vmem:[%s713 + $0x2] sm:$0xff]
    %v6317 = vld [vmem:[%s713 + $0x12] sm:$0xff]
    %v6318 = vld [vmem:[%s713 + $0x22] sm:$0xff]
    %v6319 = vld [vmem:[%s713 + $0x32] sm:$0xff]
    %v6320 = vld [vmem:[%s713 + $0x42] sm:$0xff]
    %v6321 = vld [vmem:[%s713 + $0x52] sm:$0xff]
    %v6322 = vld [vmem:[%s713 + $0x62] sm:$0xff]
    %v6323 = vld [vmem:[%s713 + $0x72] sm:$0xff]
    %v6324 = vld [vmem:[%s713 + $0xa2] sm:$0xff]
    %v6325 = vld [vmem:[%s713 + $0xb2] sm:$0xff]
    %v6326 = vld [vmem:[%s713 + $0xc2] sm:$0xff]
    %v6327 = vld [vmem:[%s713 + $0xd2] sm:$0xff]
    %v6328 = vld [vmem:[%s713 + $0xe2] sm:$0xff]
    %v6329 = vld [vmem:[%s713 + $0xf2] sm:$0xff]
    %v6330 = vld [vmem:[%s713 + $0x102] sm:$0xff]
    %v6331 = vld [vmem:[%s713 + $0x112] sm:$0xff]
    %v6332 = vpack.c.bf16 %v6316, %v6316
    %v6333 = vpack.c.bf16 %v6317, %v6317
    %v6334 = vpack.c.bf16 %v6318, %v6318
    %v6335 = vpack.c.bf16 %v6319, %v6319
    %v6336 = vpack.c.bf16 %v6320, %v6320
    %v6337 = vpack.c.bf16 %v6321, %v6321
    %v6338 = vpack.c.bf16 %v6322, %v6322
    %v6339 = vpack.c.bf16 %v6323, %v6323
    %v6340 = vpack.c.bf16 %v6324, %v6324
    %v6341 = vpack.c.bf16 %v6325, %v6325
    %v6342 = vpack.c.bf16 %v6326, %v6326
    %v6343 = vpack.c.bf16 %v6327, %v6327
    %v6344 = vpack.c.bf16 %v6328, %v6328
    %v6345 = vpack.c.bf16 %v6329, %v6329
    %v6346 = vpack.c.bf16 %v6330, %v6330
    %v6347 = vpack.c.bf16 %v6331, %v6331
    %6348 = vst.msk [vmem:[#allocation3 + $0x8] sm:$0xf] %vm197, %v6332
    %6349 = vst.msk [vmem:[#allocation3 + $0x14] sm:$0xf] %vm197, %v6333
    %6350 = vst.msk [vmem:[#allocation3 + $0x20] sm:$0xf] %vm197, %v6334
    %6351 = vst.msk [vmem:[#allocation3 + $0x2c] sm:$0xf] %vm197, %v6335
    %6352 = vst.msk [vmem:[#allocation3 + $0x38] sm:$0xf] %vm197, %v6336
    %6353 = vst.msk [vmem:[#allocation3 + $0x44] sm:$0xf] %vm197, %v6337
    %6354 = vst.msk [vmem:[#allocation3 + $0x50] sm:$0xf] %vm197, %v6338
    %6355 = vst.msk [vmem:[#allocation3 + $0x5c] sm:$0xf] %vm197, %v6339
    %6356 = vst.msk [vmem:[#allocation3 + $0x68] sm:$0xf] %vm197, %v6340
    %6357 = vst.msk [vmem:[#allocation3 + $0x74] sm:$0xf] %vm197, %v6341
    %6358 = vst.msk [vmem:[#allocation3 + $0x80] sm:$0xf] %vm197, %v6342
    %6359 = vst.msk [vmem:[#allocation3 + $0x8c] sm:$0xf] %vm197, %v6343
    %6360 = vst.msk [vmem:[#allocation3 + $0x98] sm:$0xf] %vm197, %v6344
    %6361 = vst.msk [vmem:[#allocation3 + $0xa4] sm:$0xf] %vm197, %v6345
    %6362 = vst.msk [vmem:[#allocation3 + $0xb0] sm:$0xf] %vm197, %v6346
    %6363 = vst.msk [vmem:[#allocation3 + $0xbc] sm:$0xf] %vm197, %v6347
    %v6364 = vld [vmem:[#allocation3] sm:$0xff]
    %v6365 = vld [vmem:[#allocation3 + $0x8] sm:$0xf]
    %v6366 = vld [vmem:[#allocation3 + $0xc] sm:$0xff]
    %v6367 = vld [vmem:[#allocation3 + $0x14] sm:$0xf]
    %v6368 = vld [vmem:[#allocation3 + $0x18] sm:$0xff]
    %v6369 = vld [vmem:[#allocation3 + $0x20] sm:$0xf]
    %v6370 = vld [vmem:[#allocation3 + $0x24] sm:$0xff]
    %v6371 = vld [vmem:[#allocation3 + $0x2c] sm:$0xf]
    %v6372 = vld [vmem:[#allocation3 + $0x30] sm:$0xff]
    %v6373 = vld [vmem:[#allocation3 + $0x38] sm:$0xf]
    %v6374 = vld [vmem:[#allocation3 + $0x3c] sm:$0xff]
    %v6375 = vld [vmem:[#allocation3 + $0x44] sm:$0xf]
    %v6376 = vld [vmem:[#allocation3 + $0x48] sm:$0xff]
    %v6377 = vld [vmem:[#allocation3 + $0x50] sm:$0xf]
    %v6378 = vld [vmem:[#allocation3 + $0x54] sm:$0xff]
    %v6379 = vld [vmem:[#allocation3 + $0x5c] sm:$0xf]
    %v6380 = vld [vmem:[#allocation3 + $0x60] sm:$0xff]
    %v6381 = vld [vmem:[#allocation3 + $0x68] sm:$0xf]
    %v6382 = vld [vmem:[#allocation3 + $0x6c] sm:$0xff]
    %v6383 = vld [vmem:[#allocation3 + $0x74] sm:$0xf]
    %v6384 = vld [vmem:[#allocation3 + $0x78] sm:$0xff]
    %v6385 = vld [vmem:[#allocation3 + $0x80] sm:$0xf]
    %v6386 = vld [vmem:[#allocation3 + $0x84] sm:$0xff]
    %v6387 = vld [vmem:[#allocation3 + $0x8c] sm:$0xf]
    %v6388 = vld [vmem:[#allocation3 + $0x90] sm:$0xff]
    %v6389 = vld [vmem:[#allocation3 + $0x98] sm:$0xf]
    %v6390 = vld [vmem:[#allocation3 + $0x9c] sm:$0xff]
    %v6391 = vld [vmem:[#allocation3 + $0xa4] sm:$0xf]
    %v6392 = vld [vmem:[#allocation3 + $0xa8] sm:$0xff]
    %v6393 = vld [vmem:[#allocation3 + $0xb0] sm:$0xf]
    %v6394 = vld [vmem:[#allocation3 + $0xb4] sm:$0xff]
    %v6395 = vld [vmem:[#allocation3 + $0xbc] sm:$0xf]
    %s6396 = scalar_lea.vmem [#allocation6], 576
    %v6397 = vld [vmem:[%s6396] sm:$0xf]
    %v6398 = vld [vmem:[%s6396 + $0x4] sm:$0xf]
    %v6399 = vld [vmem:[%s6396 + $0x8] sm:$0xf]
    %v6400 = vld [vmem:[%s6396 + $0xc] sm:$0xf]
    %v6401 = vld [vmem:[%s6396 + $0x10] sm:$0xf]
    %v6402 = vld [vmem:[%s6396 + $0x14] sm:$0xf]
    %v6403 = vld [vmem:[%s6396 + $0x18] sm:$0xf]
    %v6404 = vld [vmem:[%s6396 + $0x1c] sm:$0xf]
    %v6405 = vld [vmem:[%s6396 + $0x20] sm:$0xf]
    %v6406 = vld [vmem:[%s6396 + $0x24] sm:$0xf]
    %v6407 = vld [vmem:[%s6396 + $0x28] sm:$0xf]
    %v6408 = vld [vmem:[%s6396 + $0x2c] sm:$0xf]
    %v6409 = vld [vmem:[%s6396 + $0x30] sm:$0xf]
    %v6410 = vld [vmem:[%s6396 + $0x34] sm:$0xf]
    %v6411 = vld [vmem:[%s6396 + $0x38] sm:$0xf]
    %v6412 = vld [vmem:[%s6396 + $0x3c] sm:$0xf]
    %v6413 = vld [vmem:[%s6396 + $0x40] sm:$0xf]
    %v6414 = vld [vmem:[%s6396 + $0x44] sm:$0xf]
    %v6415 = vld [vmem:[%s6396 + $0x48] sm:$0xf]
    %v6416 = vld [vmem:[%s6396 + $0x4c] sm:$0xf]
    %v6417 = vld [vmem:[%s6396 + $0x50] sm:$0xf]
    %v6418 = vld [vmem:[%s6396 + $0x54] sm:$0xf]
    %v6419 = vld [vmem:[%s6396 + $0x58] sm:$0xf]
    %v6420 = vld [vmem:[%s6396 + $0x5c] sm:$0xf]
    %v6421 = vld [vmem:[%s6396 + $0x60] sm:$0xf]
    %v6422 = vld [vmem:[%s6396 + $0x64] sm:$0xf]
    %v6423 = vld [vmem:[%s6396 + $0x68] sm:$0xf]
    %v6424 = vld [vmem:[%s6396 + $0x6c] sm:$0xf]
    %v6425 = vld [vmem:[%s6396 + $0x70] sm:$0xf]
    %v6426 = vld [vmem:[%s6396 + $0x74] sm:$0xf]
    %v6427 = vld [vmem:[%s6396 + $0x78] sm:$0xf]
    %v6428 = vld [vmem:[%s6396 + $0x7c] sm:$0xf]
    %v6429 = vld [vmem:[%s6396 + $0x80] sm:$0xf]
    %v6430 = vld [vmem:[%s6396 + $0x84] sm:$0xf]
    %v6431 = vld [vmem:[%s6396 + $0x88] sm:$0xf]
    %v6432 = vld [vmem:[%s6396 + $0x8c] sm:$0xf]
    %s6433 = scalar_lea.vmem %s2, 4
    %v6434 = vld [vmem:[%s6433] sm:$0x1]
    %v6436 = vperm.slane %v6434, 0
    %v6470 = vunpack.c.l.b16 %v6364
    %v6471 = vunpack.c.h.b16 %v6364
    %v6472 = vunpack.c.l.b16 %v6365
    %v6473 = vunpack.c.l.b16 %v6366
    %v6474 = vunpack.c.h.b16 %v6366
    %v6475 = vunpack.c.l.b16 %v6367
    %v6476 = vunpack.c.l.b16 %v6368
    %v6477 = vunpack.c.h.b16 %v6368
    %v6478 = vunpack.c.l.b16 %v6369
    %v6479 = vunpack.c.l.b16 %v6370
    %v6480 = vunpack.c.h.b16 %v6370
    %v6481 = vunpack.c.l.b16 %v6371
    %v6482 = vunpack.c.l.b16 %v6372
    %v6483 = vunpack.c.h.b16 %v6372
    %v6484 = vunpack.c.l.b16 %v6373
    %v6485 = vunpack.c.l.b16 %v6374
    %v6486 = vunpack.c.h.b16 %v6374
    %v6487 = vunpack.c.l.b16 %v6375
    %v6488 = vunpack.c.l.b16 %v6376
    %v6489 = vunpack.c.h.b16 %v6376
    %v6490 = vunpack.c.l.b16 %v6377
    %v6491 = vunpack.c.l.b16 %v6378
    %v6492 = vunpack.c.h.b16 %v6378
    %v6493 = vunpack.c.l.b16 %v6379
    %v6494 = vunpack.c.l.b16 %v6380
    %v6495 = vunpack.c.h.b16 %v6380
    %v6496 = vunpack.c.l.b16 %v6381
    %v6497 = vunpack.c.l.b16 %v6382
    %v6498 = vunpack.c.h.b16 %v6382
    %v6499 = vunpack.c.l.b16 %v6383
    %v6500 = vunpack.c.l.b16 %v6384
    %v6501 = vunpack.c.h.b16 %v6384
    %v6502 = vunpack.c.l.b16 %v6385
    %v6503 = vunpack.c.l.b16 %v6386
    %v6504 = vunpack.c.h.b16 %v6386
    %v6505 = vunpack.c.l.b16 %v6387
    %v6506 = vunpack.c.l.b16 %v6388
    %v6507 = vunpack.c.h.b16 %v6388
    %v6508 = vunpack.c.l.b16 %v6389
    %v6509 = vunpack.c.l.b16 %v6390
    %v6510 = vunpack.c.h.b16 %v6390
    %v6511 = vunpack.c.l.b16 %v6391
    %v6512 = vunpack.c.l.b16 %v6392
    %v6513 = vunpack.c.h.b16 %v6392
    %v6514 = vunpack.c.l.b16 %v6393
    %v6515 = vunpack.c.l.b16 %v6394
    %v6516 = vunpack.c.h.b16 %v6394
    %v6517 = vunpack.c.l.b16 %v6395
    %v6518 = vpack.c.b16 %v6473, %v6470
    %v6519 = vpack.c.b16 %v6474, %v6471
    %v6520 = vpack.c.b16 %v6475, %v6472
    %v6521 = vpack.c.b16 %v6479, %v6476
    %v6522 = vpack.c.b16 %v6480, %v6477
    %v6523 = vpack.c.b16 %v6481, %v6478
    %v6524 = vpack.c.b16 %v6485, %v6482
    %v6525 = vpack.c.b16 %v6486, %v6483
    %v6526 = vpack.c.b16 %v6487, %v6484
    %v6527 = vpack.c.b16 %v6491, %v6488
    %v6528 = vpack.c.b16 %v6492, %v6489
    %v6529 = vpack.c.b16 %v6493, %v6490
    %v6530 = vpack.c.b16 %v6497, %v6494
    %v6531 = vpack.c.b16 %v6498, %v6495
    %v6532 = vpack.c.b16 %v6499, %v6496
    %v6533 = vpack.c.b16 %v6503, %v6500
    %v6534 = vpack.c.b16 %v6504, %v6501
    %v6535 = vpack.c.b16 %v6505, %v6502
    %v6536 = vpack.c.b16 %v6509, %v6506
    %v6537 = vpack.c.b16 %v6510, %v6507
    %v6538 = vpack.c.b16 %v6511, %v6508
    %v6539 = vpack.c.b16 %v6515, %v6512
    %v6540 = vpack.c.b16 %v6516, %v6513
    %v6541 = vpack.c.b16 %v6517, %v6514
    %v6594 = vunpack.c.l.b16 %v6397
    %v6595 = vunpack.c.l.b16 %v6398
    %v6596 = vunpack.c.l.b16 %v6399
    %v6597 = vunpack.c.l.b16 %v6400
    %v6598 = vunpack.c.l.b16 %v6401
    %v6599 = vunpack.c.l.b16 %v6402
    %v6600 = vunpack.c.l.b16 %v6403
    %v6601 = vunpack.c.l.b16 %v6404
    %v6602 = vunpack.c.l.b16 %v6405
    %v6603 = vunpack.c.l.b16 %v6406
    %v6604 = vunpack.c.l.b16 %v6407
    %v6605 = vunpack.c.l.b16 %v6408
    %v6606 = vunpack.c.l.b16 %v6409
    %v6607 = vunpack.c.l.b16 %v6410
    %v6608 = vunpack.c.l.b16 %v6411
    %v6609 = vunpack.c.l.b16 %v6412
    %v6610 = vunpack.c.l.b16 %v6413
    %v6611 = vunpack.c.l.b16 %v6414
    %v6612 = vunpack.c.l.b16 %v6415
    %v6613 = vunpack.c.l.b16 %v6416
    %v6614 = vunpack.c.l.b16 %v6417
    %v6615 = vunpack.c.l.b16 %v6418
    %v6616 = vunpack.c.l.b16 %v6419
    %v6617 = vunpack.c.l.b16 %v6420
    %v6618 = vunpack.c.l.b16 %v6421
    %v6619 = vunpack.c.l.b16 %v6422
    %v6620 = vunpack.c.l.b16 %v6423
    %v6621 = vunpack.c.l.b16 %v6424
    %v6622 = vunpack.c.l.b16 %v6425
    %v6623 = vunpack.c.l.b16 %v6426
    %v6624 = vunpack.c.l.b16 %v6427
    %v6625 = vunpack.c.l.b16 %v6428
    %v6626 = vunpack.c.l.b16 %v6429
    %v6627 = vunpack.c.l.b16 %v6430
    %v6628 = vunpack.c.l.b16 %v6431
    %v6629 = vunpack.c.l.b16 %v6432
    %v6630 = vpack.c.b16 %v6595, %v6594
    %v6631 = vpack.c.b16 %v6597, %v6596
    %v6632 = vpack.c.b16 %v6599, %v6598
    %v6633 = vpack.c.b16 %v6601, %v6600
    %v6634 = vpack.c.b16 %v6603, %v6602
    %v6635 = vpack.c.b16 %v6605, %v6604
    %v6636 = vpack.c.b16 %v6607, %v6606
    %v6637 = vpack.c.b16 %v6609, %v6608
    %v6638 = vpack.c.b16 %v6611, %v6610
    %v6639 = vpack.c.b16 %v6613, %v6612
    %v6640 = vpack.c.b16 %v6615, %v6614
    %v6641 = vpack.c.b16 %v6617, %v6616
    %v6642 = vpack.c.b16 %v6619, %v6618
    %v6643 = vpack.c.b16 %v6621, %v6620
    %v6644 = vpack.c.b16 %v6623, %v6622
    %v6645 = vpack.c.b16 %v6625, %v6624
    %v6646 = vpack.c.b16 %v6627, %v6626
    %v6647 = vpack.c.b16 %v6629, %v6628
    %v6667 = vsel %vm90, %v6520, 0
    %v6670 = vsel %vm90, %v6523, 0
    %v6673 = vsel %vm90, %v6526, 0
    %v6676 = vsel %vm90, %v6529, 0
    %v6679 = vsel %vm90, %v6532, 0
    %v6682 = vsel %vm90, %v6535, 0
    %v6685 = vsel %vm90, %v6538, 0
    %v6688 = vsel %vm90, %v6541, 0
    %6690 = vmatpush.bf16.msra.mxu0 %v6637
    %6691 = vmatpush.bf16.msra.mxu0 %v6636
    %6692 = vmatpush.bf16.msra.mxu0 %v6635
    %6693 = vmatpush.bf16.msra.mxu0 %v6634
    %6694 = vmatpush.bf16.msra.mxu0 %v6633
    %6695 = vmatpush.bf16.msra.mxu0 %v6632
    %6696 = vmatpush.bf16.msra.mxu0 %v6631
    %6697 = vmatpush.bf16.msra.mxu0 %v6630
    %6698 = vmatmul.bf16.gmra.mxu0 %v6518
    %v6699 = vpop.f32.mrf.mxu0
    %v6700 = vadd.f32 %v6436, %v6699
    %v6701 = vpop.f32.mrf.mxu0
    %v6702 = vadd.f32 %v6436, %v6701
    %6703 = vmatmul.bf16.gmra.mxu0 %v6521
    %v6704 = vpop.f32.mrf.mxu0
    %v6705 = vadd.f32 %v6436, %v6704
    %v6706 = vpop.f32.mrf.mxu0
    %v6707 = vadd.f32 %v6436, %v6706
    %6708 = vmatmul.bf16.gmra.mxu0 %v6524
    %v6709 = vpop.f32.mrf.mxu0
    %v6710 = vadd.f32 %v6436, %v6709
    %v6711 = vpop.f32.mrf.mxu0
    %v6712 = vadd.f32 %v6436, %v6711
    %6713 = vmatmul.bf16.gmra.mxu0 %v6527
    %v6714 = vpop.f32.mrf.mxu0
    %v6715 = vadd.f32 %v6436, %v6714
    %v6716 = vpop.f32.mrf.mxu0
    %v6717 = vadd.f32 %v6436, %v6716
    %6718 = vmatmul.bf16.gmra.mxu0 %v6530
    %v6719 = vpop.f32.mrf.mxu0
    %v6720 = vadd.f32 %v6436, %v6719
    %v6721 = vpop.f32.mrf.mxu0
    %v6722 = vadd.f32 %v6436, %v6721
    %6723 = vmatmul.bf16.gmra.mxu0 %v6533
    %v6724 = vpop.f32.mrf.mxu0
    %v6725 = vadd.f32 %v6436, %v6724
    %v6726 = vpop.f32.mrf.mxu0
    %v6727 = vadd.f32 %v6436, %v6726
    %6728 = vmatmul.bf16.gmra.mxu0 %v6536
    %v6729 = vpop.f32.mrf.mxu0
    %v6730 = vadd.f32 %v6436, %v6729
    %v6731 = vpop.f32.mrf.mxu0
    %v6732 = vadd.f32 %v6436, %v6731
    %6733 = vmatmul.bf16.gmra.mxu0 %v6539
    %v6734 = vpop.f32.mrf.mxu0
    %v6735 = vadd.f32 %v6436, %v6734
    %v6736 = vpop.f32.mrf.mxu0
    %v6737 = vadd.f32 %v6436, %v6736
    %6738 = vdwg.mxu0
    %6739 = vmatpush.bf16.msra.mxu0 %v6645
    %6740 = vmatpush.bf16.msra.mxu0 %v6644
    %6741 = vmatpush.bf16.msra.mxu0 %v6643
    %6742 = vmatpush.bf16.msra.mxu0 %v6642
    %6743 = vmatpush.bf16.msra.mxu0 %v6641
    %6744 = vmatpush.bf16.msra.mxu0 %v6640
    %6745 = vmatpush.bf16.msra.mxu0 %v6639
    %6746 = vmatpush.bf16.msra.mxu0 %v6638
    %6747 = vmatmul.bf16.gmra.mxu0 %v6519
    %v6748 = vpop.f32.mrf.mxu0
    %v6749 = vadd.f32 %v6700, %v6748
    %v6750 = vpop.f32.mrf.mxu0
    %v6751 = vadd.f32 %v6702, %v6750
    %6752 = vmatmul.bf16.gmra.mxu0 %v6522
    %v6753 = vpop.f32.mrf.mxu0
    %v6754 = vadd.f32 %v6705, %v6753
    %v6755 = vpop.f32.mrf.mxu0
    %v6756 = vadd.f32 %v6707, %v6755
    %6757 = vmatmul.bf16.gmra.mxu0 %v6525
    %v6758 = vpop.f32.mrf.mxu0
    %v6759 = vadd.f32 %v6710, %v6758
    %v6760 = vpop.f32.mrf.mxu0
    %v6761 = vadd.f32 %v6712, %v6760
    %6762 = vmatmul.bf16.gmra.mxu0 %v6528
    %v6763 = vpop.f32.mrf.mxu0
    %v6764 = vadd.f32 %v6715, %v6763
    %v6765 = vpop.f32.mrf.mxu0
    %v6766 = vadd.f32 %v6717, %v6765
    %6767 = vmatmul.bf16.gmra.mxu0 %v6531
    %v6768 = vpop.f32.mrf.mxu0
    %v6769 = vadd.f32 %v6720, %v6768
    %v6770 = vpop.f32.mrf.mxu0
    %v6771 = vadd.f32 %v6722, %v6770
    %6772 = vmatmul.bf16.gmra.mxu0 %v6534
    %v6773 = vpop.f32.mrf.mxu0
    %v6774 = vadd.f32 %v6725, %v6773
    %v6775 = vpop.f32.mrf.mxu0
    %v6776 = vadd.f32 %v6727, %v6775
    %6777 = vmatmul.bf16.gmra.mxu0 %v6537
    %v6778 = vpop.f32.mrf.mxu0
    %v6779 = vadd.f32 %v6730, %v6778
    %v6780 = vpop.f32.mrf.mxu0
    %v6781 = vadd.f32 %v6732, %v6780
    %6782 = vmatmul.bf16.gmra.mxu0 %v6540
    %v6783 = vpop.f32.mrf.mxu0
    %v6784 = vadd.f32 %v6735, %v6783
    %v6785 = vpop.f32.mrf.mxu0
    %v6786 = vadd.f32 %v6737, %v6785
    %6787 = vdwg.mxu0
    %6788 = vmatpush.bf16.msra.mxu0 0
    %6789 = vmatpush.bf16.msra.mxu0 0
    %6790 = vmatpush.bf16.msra.mxu0 0
    %6791 = vmatpush.bf16.msra.mxu0 0
    %6792 = vmatpush.bf16.msra.mxu0 0
    %6793 = vmatpush.bf16.msra.mxu0 0
    %6794 = vmatpush.bf16.msra.mxu0 %v6647
    %6795 = vmatpush.bf16.msra.mxu0 %v6646
    %6796 = vmatmul.bf16.gmra.mxu0 %v6667
    %v6797 = vpop.f32.mrf.mxu0
    %v6798 = vadd.f32 %v6749, %v6797
    %v6799 = vpop.f32.mrf.mxu0
    %v6800 = vadd.f32 %v6751, %v6799
    %6801 = vmatmul.bf16.gmra.mxu0 %v6670
    %v6802 = vpop.f32.mrf.mxu0
    %v6803 = vadd.f32 %v6754, %v6802
    %v6804 = vpop.f32.mrf.mxu0
    %v6805 = vadd.f32 %v6756, %v6804
    %6806 = vmatmul.bf16.gmra.mxu0 %v6673
    %v6807 = vpop.f32.mrf.mxu0
    %v6808 = vadd.f32 %v6759, %v6807
    %v6809 = vpop.f32.mrf.mxu0
    %v6810 = vadd.f32 %v6761, %v6809
    %6811 = vmatmul.bf16.gmra.mxu0 %v6676
    %v6812 = vpop.f32.mrf.mxu0
    %v6813 = vadd.f32 %v6764, %v6812
    %v6814 = vpop.f32.mrf.mxu0
    %v6815 = vadd.f32 %v6766, %v6814
    %6816 = vmatmul.bf16.gmra.mxu0 %v6679
    %v6817 = vpop.f32.mrf.mxu0
    %v6818 = vadd.f32 %v6769, %v6817
    %v6819 = vpop.f32.mrf.mxu0
    %v6820 = vadd.f32 %v6771, %v6819
    %6821 = vmatmul.bf16.gmra.mxu0 %v6682
    %v6822 = vpop.f32.mrf.mxu0
    %v6823 = vadd.f32 %v6774, %v6822
    %v6824 = vpop.f32.mrf.mxu0
    %v6825 = vadd.f32 %v6776, %v6824
    %6826 = vmatmul.bf16.gmra.mxu0 %v6685
    %v6827 = vpop.f32.mrf.mxu0
    %v6828 = vadd.f32 %v6779, %v6827
    %v6829 = vpop.f32.mrf.mxu0
    %v6830 = vadd.f32 %v6781, %v6829
    %6831 = vmatmul.bf16.gmra.mxu0 %v6688
    %v6832 = vpop.f32.mrf.mxu0
    %v6833 = vadd.f32 %v6784, %v6832
    %v6834 = vpop.f32.mrf.mxu0
    %v6835 = vadd.f32 %v6786, %v6834
    %6836 = vdwg.mxu0
    %v6837 = vld [vmem:[#allocation4] sm:$0xff]
    %v6838 = vld [vmem:[#allocation4 + $0x8] sm:$0xff]
    %v6839 = vld [vmem:[#allocation4 + $0x10] sm:$0xff]
    %v6840 = vld [vmem:[#allocation4 + $0x18] sm:$0xff]
    %v6841 = vld [vmem:[#allocation4 + $0x20] sm:$0xff]
    %v6842 = vld [vmem:[#allocation4 + $0x28] sm:$0xff]
    %v6843 = vld [vmem:[#allocation4 + $0x30] sm:$0xff]
    %v6844 = vld [vmem:[#allocation4 + $0x38] sm:$0xff]
    %v6845 = vld [vmem:[#allocation4 + $0x40] sm:$0xff]
    %v6846 = vld [vmem:[#allocation4 + $0x48] sm:$0xff]
    %v6847 = vld [vmem:[#allocation4 + $0x50] sm:$0xff]
    %v6848 = vld [vmem:[#allocation4 + $0x58] sm:$0xff]
    %v6849 = vld [vmem:[#allocation4 + $0x60] sm:$0xff]
    %v6850 = vld [vmem:[#allocation4 + $0x68] sm:$0xff]
    %v6851 = vld [vmem:[#allocation4 + $0x70] sm:$0xff]
    %v6852 = vld [vmem:[#allocation4 + $0x78] sm:$0xff]
    %v6853 = vadd.f32 %v6798, %v6837
    %v6854 = vadd.f32 %v6800, %v6838
    %v6855 = vadd.f32 %v6803, %v6839
    %v6856 = vadd.f32 %v6805, %v6840
    %v6857 = vadd.f32 %v6808, %v6841
    %v6858 = vadd.f32 %v6810, %v6842
    %v6859 = vadd.f32 %v6813, %v6843
    %v6860 = vadd.f32 %v6815, %v6844
    %v6861 = vadd.f32 %v6818, %v6845
    %v6862 = vadd.f32 %v6820, %v6846
    %v6863 = vadd.f32 %v6823, %v6847
    %v6864 = vadd.f32 %v6825, %v6848
    %v6865 = vadd.f32 %v6828, %v6849
    %v6866 = vadd.f32 %v6830, %v6850
    %v6867 = vadd.f32 %v6833, %v6851
    %v6868 = vadd.f32 %v6835, %v6852
    %v6869 = vmax.f32 %v6853, 0.0
    %v6870 = vmax.f32 %v6854, 0.0
    %v6871 = vmax.f32 %v6855, 0.0
    %v6872 = vmax.f32 %v6856, 0.0
    %v6873 = vmax.f32 %v6857, 0.0
    %v6874 = vmax.f32 %v6858, 0.0
    %v6875 = vmax.f32 %v6859, 0.0
    %v6876 = vmax.f32 %v6860, 0.0
    %v6877 = vmax.f32 %v6861, 0.0
    %v6878 = vmax.f32 %v6862, 0.0
    %v6879 = vmax.f32 %v6863, 0.0
    %v6880 = vmax.f32 %v6864, 0.0
    %v6881 = vmax.f32 %v6865, 0.0
    %v6882 = vmax.f32 %v6866, 0.0
    %v6883 = vmax.f32 %v6867, 0.0
    %v6884 = vmax.f32 %v6868, 0.0
    %6885 = vst.msk [vmem:[%s148 + $0x1] sm:$0xff] %vm90, %v6869
    %6886 = vst.msk [vmem:[%s148 + $0x11] sm:$0xff] %vm90, %v6870
    %6887 = vst.msk [vmem:[%s148 + $0x21] sm:$0xff] %vm90, %v6871
    %6888 = vst.msk [vmem:[%s148 + $0x31] sm:$0xff] %vm90, %v6872
    %6889 = vst.msk [vmem:[%s148 + $0x41] sm:$0xff] %vm90, %v6873
    %6890 = vst.msk [vmem:[%s148 + $0x51] sm:$0xff] %vm90, %v6874
    %6891 = vst.msk [vmem:[%s148 + $0x61] sm:$0xff] %vm90, %v6875
    %6892 = vst.msk [vmem:[%s148 + $0x71] sm:$0xff] %vm90, %v6876
    %6893 = vst.msk [vmem:[%s148 + $0xa1] sm:$0xff] %vm90, %v6877
    %6894 = vst.msk [vmem:[%s148 + $0xb1] sm:$0xff] %vm90, %v6878
    %6895 = vst.msk [vmem:[%s148 + $0xc1] sm:$0xff] %vm90, %v6879
    %6896 = vst.msk [vmem:[%s148 + $0xd1] sm:$0xff] %vm90, %v6880
    %6897 = vst.msk [vmem:[%s148 + $0xe1] sm:$0xff] %vm90, %v6881
    %6898 = vst.msk [vmem:[%s148 + $0xf1] sm:$0xff] %vm90, %v6882
    %6899 = vst.msk [vmem:[%s148 + $0x101] sm:$0xff] %vm90, %v6883
    %6900 = vst.msk [vmem:[%s148 + $0x111] sm:$0xff] %vm90, %v6884
    %v6901 = vld [vmem:[%s148 + $0x1] sm:$0xff]
    %v6902 = vld [vmem:[%s148 + $0x11] sm:$0xff]
    %v6903 = vld [vmem:[%s148 + $0x21] sm:$0xff]
    %v6904 = vld [vmem:[%s148 + $0x31] sm:$0xff]
    %v6905 = vld [vmem:[%s148 + $0x41] sm:$0xff]
    %v6906 = vld [vmem:[%s148 + $0x51] sm:$0xff]
    %v6907 = vld [vmem:[%s148 + $0x61] sm:$0xff]
    %v6908 = vld [vmem:[%s148 + $0x71] sm:$0xff]
    %v6909 = vld [vmem:[%s148 + $0xa1] sm:$0xff]
    %v6910 = vld [vmem:[%s148 + $0xb1] sm:$0xff]
    %v6911 = vld [vmem:[%s148 + $0xc1] sm:$0xff]
    %v6912 = vld [vmem:[%s148 + $0xd1] sm:$0xff]
    %v6913 = vld [vmem:[%s148 + $0xe1] sm:$0xff]
    %v6914 = vld [vmem:[%s148 + $0xf1] sm:$0xff]
    %v6915 = vld [vmem:[%s148 + $0x101] sm:$0xff]
    %v6916 = vld [vmem:[%s148 + $0x111] sm:$0xff]
    %v6917 = vld [vmem:[%s3] sm:$0xff]
    %v6918 = vld [vmem:[%s3 + $0x8] sm:$0xff]
    %v6919 = vld [vmem:[%s3 + $0x10] sm:$0xff]
    %v6920 = vld [vmem:[%s3 + $0x18] sm:$0xff]
    %v6921 = vld [vmem:[#allocation9] sm:$0x1]
    %v6923 = vperm.slane %v6921, 0
    %v6926 = vsel %vm90, %v6901, 0
    %v6929 = vsel %vm90, %v6902, 0
    %v6932 = vsel %vm90, %v6903, 0
    %v6935 = vsel %vm90, %v6904, 0
    %v6938 = vsel %vm90, %v6905, 0
    %v6941 = vsel %vm90, %v6906, 0
    %v6944 = vsel %vm90, %v6907, 0
    %v6947 = vsel %vm90, %v6908, 0
    %v6950 = vsel %vm90, %v6909, 0
    %v6953 = vsel %vm90, %v6910, 0
    %v6956 = vsel %vm90, %v6911, 0
    %v6959 = vsel %vm90, %v6912, 0
    %v6962 = vsel %vm90, %v6913, 0
    %v6965 = vsel %vm90, %v6914, 0
    %v6968 = vsel %vm90, %v6915, 0
    %v6971 = vsel %vm90, %v6916, 0
    %6973 = vmatpush.msra.mxu0 0.0
    %6974 = vmatpush.msra.mxu0 0.0
    %6975 = vmatpush.msra.mxu0 0.0
    %6976 = vmatpush.msra.mxu0 0.0
    %6977 = vmatpush.msra.mxu0 0.0
    %6978 = vmatpush.msra.mxu0 0.0
    %6979 = vmatpush.msra.mxu0 0.0
    %6980 = vmatpush.msra.mxu0 0.0
    %6981 = vmatpush.msra.mxu0 0.0
    %6982 = vmatpush.msra.mxu0 0.0
    %6983 = vmatpush.msra.mxu0 0.0
    %6984 = vmatpush.msra.mxu0 0.0
    %6985 = vmatpush.msra.mxu0 %v6920
    %6986 = vmatpush.msra.mxu0 %v6919
    %6987 = vmatpush.msra.mxu0 %v6918
    %6988 = vmatpush.msra.mxu0 %v6917
    %6989 = vmatmul.f32.gmra.mxu0 %v6926
    %v6990 = vpop.f32.mrf.mxu0
    %v6991 = vadd.f32 %v6923, %v6990
    %6992 = vmatmul.f32.gmra.mxu0 %v6929
    %v6993 = vpop.f32.mrf.mxu0
    %v6994 = vadd.f32 %v6923, %v6993
    %6995 = vmatmul.f32.gmra.mxu0 %v6932
    %v6996 = vpop.f32.mrf.mxu0
    %v6997 = vadd.f32 %v6923, %v6996
    %6998 = vmatmul.f32.gmra.mxu0 %v6935
    %v6999 = vpop.f32.mrf.mxu0
    %v7000 = vadd.f32 %v6923, %v6999
    %7001 = vmatmul.f32.gmra.mxu0 %v6938
    %v7002 = vpop.f32.mrf.mxu0
    %v7003 = vadd.f32 %v6923, %v7002
    %7004 = vmatmul.f32.gmra.mxu0 %v6941
    %v7005 = vpop.f32.mrf.mxu0
    %v7006 = vadd.f32 %v6923, %v7005
    %7007 = vmatmul.f32.gmra.mxu0 %v6944
    %v7008 = vpop.f32.mrf.mxu0
    %v7009 = vadd.f32 %v6923, %v7008
    %7010 = vmatmul.f32.gmra.mxu0 %v6947
    %v7011 = vpop.f32.mrf.mxu0
    %v7012 = vadd.f32 %v6923, %v7011
    %7013 = vmatmul.f32.gmra.mxu0 %v6950
    %v7014 = vpop.f32.mrf.mxu0
    %v7015 = vadd.f32 %v6923, %v7014
    %7016 = vmatmul.f32.gmra.mxu0 %v6953
    %v7017 = vpop.f32.mrf.mxu0
    %v7018 = vadd.f32 %v6923, %v7017
    %7019 = vmatmul.f32.gmra.mxu0 %v6956
    %v7020 = vpop.f32.mrf.mxu0
    %v7021 = vadd.f32 %v6923, %v7020
    %7022 = vmatmul.f32.gmra.mxu0 %v6959
    %v7023 = vpop.f32.mrf.mxu0
    %v7024 = vadd.f32 %v6923, %v7023
    %7025 = vmatmul.f32.gmra.mxu0 %v6962
    %v7026 = vpop.f32.mrf.mxu0
    %v7027 = vadd.f32 %v6923, %v7026
    %7028 = vmatmul.f32.gmra.mxu0 %v6965
    %v7029 = vpop.f32.mrf.mxu0
    %v7030 = vadd.f32 %v6923, %v7029
    %7031 = vmatmul.f32.gmra.mxu0 %v6968
    %v7032 = vpop.f32.mrf.mxu0
    %v7033 = vadd.f32 %v6923, %v7032
    %7034 = vmatmul.f32.gmra.mxu0 %v6971
    %v7035 = vpop.f32.mrf.mxu0
    %v7036 = vadd.f32 %v6923, %v7035
    %7037 = vdwg.mxu0
    %v7038 = vmax.f32 %v6991, 0.0
    %v7039 = vmax.f32 %v6994, 0.0
    %v7040 = vmax.f32 %v6997, 0.0
    %v7041 = vmax.f32 %v7000, 0.0
    %v7042 = vmax.f32 %v7003, 0.0
    %v7043 = vmax.f32 %v7006, 0.0
    %v7044 = vmax.f32 %v7009, 0.0
    %v7045 = vmax.f32 %v7012, 0.0
    %v7046 = vmax.f32 %v7015, 0.0
    %v7047 = vmax.f32 %v7018, 0.0
    %v7048 = vmax.f32 %v7021, 0.0
    %v7049 = vmax.f32 %v7024, 0.0
    %v7050 = vmax.f32 %v7027, 0.0
    %v7051 = vmax.f32 %v7030, 0.0
    %v7052 = vmax.f32 %v7033, 0.0
    %v7053 = vmax.f32 %v7036, 0.0
    %v7054 = vld [vmem:[%s11] sm:$0x3]
    %v7055 = vld [vmem:[%s5] sm:$0xff]
    %v7056 = vld [vmem:[%s5 + $0x8] sm:$0xff]
    %v7057 = vld [vmem:[%s5 + $0x10] sm:$0xff]
    %v7058 = vld [vmem:[%s5 + $0x18] sm:$0xff]
    %v7059 = vld [vmem:[%s5 + $0x20] sm:$0xff]
    %v7060 = vld [vmem:[%s5 + $0x28] sm:$0xff]
    %v7061 = vld [vmem:[%s5 + $0x30] sm:$0xff]
    %v7062 = vld [vmem:[%s5 + $0x38] sm:$0xff]
    %v7063 = vld [vmem:[%s5 + $0x40] sm:$0xff]
    %v7064 = vld [vmem:[%s5 + $0x48] sm:$0xff]
    %v7065 = vld [vmem:[%s5 + $0x50] sm:$0xff]
    %v7066 = vld [vmem:[%s5 + $0x58] sm:$0xff]
    %v7067 = vld [vmem:[%s5 + $0x60] sm:$0xff]
    %v7068 = vld [vmem:[%s5 + $0x68] sm:$0xff]
    %v7069 = vld [vmem:[%s5 + $0x70] sm:$0xff]
    %v7070 = vld [vmem:[%s5 + $0x78] sm:$0xff]
    %7072 = vset.pattern.permute.xlu0 0
    %7073 = vperm.xlu0 %7072, %v7038
    %v7074 = vpop.permute.xlu0 %7073
    %7077 = vset.pattern.permute.xlu0 0
    %7078 = vperm.xlu0 %7077, %v7039
    %v7079 = vpop.permute.xlu0 %7078
    %7082 = vset.pattern.permute.xlu0 0
    %7083 = vperm.xlu0 %7082, %v7040
    %v7084 = vpop.permute.xlu0 %7083
    %7087 = vset.pattern.permute.xlu0 0
    %7088 = vperm.xlu0 %7087, %v7041
    %v7089 = vpop.permute.xlu0 %7088
    %7092 = vset.pattern.permute.xlu0 0
    %7093 = vperm.xlu0 %7092, %v7042
    %v7094 = vpop.permute.xlu0 %7093
    %7097 = vset.pattern.permute.xlu0 0
    %7098 = vperm.xlu0 %7097, %v7043
    %v7099 = vpop.permute.xlu0 %7098
    %7102 = vset.pattern.permute.xlu0 0
    %7103 = vperm.xlu0 %7102, %v7044
    %v7104 = vpop.permute.xlu0 %7103
    %7107 = vset.pattern.permute.xlu0 0
    %7108 = vperm.xlu0 %7107, %v7045
    %v7109 = vpop.permute.xlu0 %7108
    %7112 = vset.pattern.permute.xlu0 0
    %7113 = vperm.xlu0 %7112, %v7046
    %v7114 = vpop.permute.xlu0 %7113
    %7117 = vset.pattern.permute.xlu0 0
    %7118 = vperm.xlu0 %7117, %v7047
    %v7119 = vpop.permute.xlu0 %7118
    %7122 = vset.pattern.permute.xlu0 0
    %7123 = vperm.xlu0 %7122, %v7048
    %v7124 = vpop.permute.xlu0 %7123
    %7127 = vset.pattern.permute.xlu0 0
    %7128 = vperm.xlu0 %7127, %v7049
    %v7129 = vpop.permute.xlu0 %7128
    %7132 = vset.pattern.permute.xlu0 0
    %7133 = vperm.xlu0 %7132, %v7050
    %v7134 = vpop.permute.xlu0 %7133
    %7137 = vset.pattern.permute.xlu0 0
    %7138 = vperm.xlu0 %7137, %v7051
    %v7139 = vpop.permute.xlu0 %7138
    %7142 = vset.pattern.permute.xlu0 0
    %7143 = vperm.xlu0 %7142, %v7052
    %v7144 = vpop.permute.xlu0 %7143
    %7147 = vset.pattern.permute.xlu0 0
    %7148 = vperm.xlu0 %7147, %v7053
    %v7149 = vpop.permute.xlu0 %7148
    %v7151 = vmul.f32 %v7074, %v7055
    %v7152 = vmul.f32 %v7079, %v7056
    %v7153 = vmul.f32 %v7084, %v7057
    %v7154 = vmul.f32 %v7089, %v7058
    %v7155 = vmul.f32 %v7094, %v7059
    %v7156 = vmul.f32 %v7099, %v7060
    %v7157 = vmul.f32 %v7104, %v7061
    %v7158 = vmul.f32 %v7109, %v7062
    %v7159 = vmul.f32 %v7114, %v7063
    %v7160 = vmul.f32 %v7119, %v7064
    %v7161 = vmul.f32 %v7124, %v7065
    %v7162 = vmul.f32 %v7129, %v7066
    %v7163 = vmul.f32 %v7134, %v7067
    %v7164 = vmul.f32 %v7139, %v7068
    %v7165 = vmul.f32 %v7144, %v7069
    %v7166 = vmul.f32 %v7149, %v7070
    %s7167 = scalar_lea.vmem %s5, 128
    %v7168 = vld [vmem:[%s7167] sm:$0xff]
    %v7169 = vld [vmem:[%s7167 + $0x8] sm:$0xff]
    %v7170 = vld [vmem:[%s7167 + $0x10] sm:$0xff]
    %v7171 = vld [vmem:[%s7167 + $0x18] sm:$0xff]
    %v7172 = vld [vmem:[%s7167 + $0x20] sm:$0xff]
    %v7173 = vld [vmem:[%s7167 + $0x28] sm:$0xff]
    %v7174 = vld [vmem:[%s7167 + $0x30] sm:$0xff]
    %v7175 = vld [vmem:[%s7167 + $0x38] sm:$0xff]
    %v7176 = vld [vmem:[%s7167 + $0x40] sm:$0xff]
    %v7177 = vld [vmem:[%s7167 + $0x48] sm:$0xff]
    %v7178 = vld [vmem:[%s7167 + $0x50] sm:$0xff]
    %v7179 = vld [vmem:[%s7167 + $0x58] sm:$0xff]
    %v7180 = vld [vmem:[%s7167 + $0x60] sm:$0xff]
    %v7181 = vld [vmem:[%s7167 + $0x68] sm:$0xff]
    %v7182 = vld [vmem:[%s7167 + $0x70] sm:$0xff]
    %v7183 = vld [vmem:[%s7167 + $0x78] sm:$0xff]
    %7184 = vset.pattern.permute.xlu0 1
    %7185 = vperm.xlu0 %7184, %v7038
    %v7186 = vpop.permute.xlu0 %7185
    %7188 = vset.pattern.permute.xlu0 1
    %7189 = vperm.xlu0 %7188, %v7039
    %v7190 = vpop.permute.xlu0 %7189
    %7192 = vset.pattern.permute.xlu0 1
    %7193 = vperm.xlu0 %7192, %v7040
    %v7194 = vpop.permute.xlu0 %7193
    %7196 = vset.pattern.permute.xlu0 1
    %7197 = vperm.xlu0 %7196, %v7041
    %v7198 = vpop.permute.xlu0 %7197
    %7200 = vset.pattern.permute.xlu0 1
    %7201 = vperm.xlu0 %7200, %v7042
    %v7202 = vpop.permute.xlu0 %7201
    %7204 = vset.pattern.permute.xlu0 1
    %7205 = vperm.xlu0 %7204, %v7043
    %v7206 = vpop.permute.xlu0 %7205
    %7208 = vset.pattern.permute.xlu0 1
    %7209 = vperm.xlu0 %7208, %v7044
    %v7210 = vpop.permute.xlu0 %7209
    %7212 = vset.pattern.permute.xlu0 1
    %7213 = vperm.xlu0 %7212, %v7045
    %v7214 = vpop.permute.xlu0 %7213
    %7216 = vset.pattern.permute.xlu0 1
    %7217 = vperm.xlu0 %7216, %v7046
    %v7218 = vpop.permute.xlu0 %7217
    %7220 = vset.pattern.permute.xlu0 1
    %7221 = vperm.xlu0 %7220, %v7047
    %v7222 = vpop.permute.xlu0 %7221
    %7224 = vset.pattern.permute.xlu0 1
    %7225 = vperm.xlu0 %7224, %v7048
    %v7226 = vpop.permute.xlu0 %7225
    %7228 = vset.pattern.permute.xlu0 1
    %7229 = vperm.xlu0 %7228, %v7049
    %v7230 = vpop.permute.xlu0 %7229
    %7232 = vset.pattern.permute.xlu0 1
    %7233 = vperm.xlu0 %7232, %v7050
    %v7234 = vpop.permute.xlu0 %7233
    %7236 = vset.pattern.permute.xlu0 1
    %7237 = vperm.xlu0 %7236, %v7051
    %v7238 = vpop.permute.xlu0 %7237
    %7240 = vset.pattern.permute.xlu0 1
    %7241 = vperm.xlu0 %7240, %v7052
    %v7242 = vpop.permute.xlu0 %7241
    %7244 = vset.pattern.permute.xlu0 1
    %7245 = vperm.xlu0 %7244, %v7053
    %v7246 = vpop.permute.xlu0 %7245
    %v7248 = vmul.f32 %v7186, %v7168
    %v7249 = vmul.f32 %v7190, %v7169
    %v7250 = vmul.f32 %v7194, %v7170
    %v7251 = vmul.f32 %v7198, %v7171
    %v7252 = vmul.f32 %v7202, %v7172
    %v7253 = vmul.f32 %v7206, %v7173
    %v7254 = vmul.f32 %v7210, %v7174
    %v7255 = vmul.f32 %v7214, %v7175
    %v7256 = vmul.f32 %v7218, %v7176
    %v7257 = vmul.f32 %v7222, %v7177
    %v7258 = vmul.f32 %v7226, %v7178
    %v7259 = vmul.f32 %v7230, %v7179
    %v7260 = vmul.f32 %v7234, %v7180
    %v7261 = vmul.f32 %v7238, %v7181
    %v7262 = vmul.f32 %v7242, %v7182
    %v7263 = vmul.f32 %v7246, %v7183
    %v7264 = vadd.f32 %v7151, %v7248
    %v7265 = vadd.f32 %v7152, %v7249
    %v7266 = vadd.f32 %v7153, %v7250
    %v7267 = vadd.f32 %v7154, %v7251
    %v7268 = vadd.f32 %v7155, %v7252
    %v7269 = vadd.f32 %v7156, %v7253
    %v7270 = vadd.f32 %v7157, %v7254
    %v7271 = vadd.f32 %v7158, %v7255
    %v7272 = vadd.f32 %v7159, %v7256
    %v7273 = vadd.f32 %v7160, %v7257
    %v7274 = vadd.f32 %v7161, %v7258
    %v7275 = vadd.f32 %v7162, %v7259
    %v7276 = vadd.f32 %v7163, %v7260
    %v7277 = vadd.f32 %v7164, %v7261
    %v7278 = vadd.f32 %v7165, %v7262
    %v7279 = vadd.f32 %v7166, %v7263
    %v7280 = vld [vmem:[#allocation11] sm:$0x1]
    %v7282 = vperm.slane %v7280, 0
    %7284 = vmatpush.msra.mxu0 %v7279
    %7285 = vmatpush.msra.mxu0 %v7278
    %7286 = vmatpush.msra.mxu0 %v7277
    %7287 = vmatpush.msra.mxu0 %v7276
    %7288 = vmatpush.msra.mxu0 %v7275
    %7289 = vmatpush.msra.mxu0 %v7274
    %7290 = vmatpush.msra.mxu0 %v7273
    %7291 = vmatpush.msra.mxu0 %v7272
    %7292 = vmatpush.msra.mxu0 %v7271
    %7293 = vmatpush.msra.mxu0 %v7270
    %7294 = vmatpush.msra.mxu0 %v7269
    %7295 = vmatpush.msra.mxu0 %v7268
    %7296 = vmatpush.msra.mxu0 %v7267
    %7297 = vmatpush.msra.mxu0 %v7266
    %7298 = vmatpush.msra.mxu0 %v7265
    %7299 = vmatpush.msra.mxu0 %v7264
    %7300 = vmatmul.f32.gmra.mxu0 %v7054
    %v7301 = vpop.f32.mrf.mxu0
    %v7302 = vadd.f32 %v7282, %v7301
    %7303 = vdwg.mxu0
    %vm7304 = vcmask 17408
    %v7305 = vsel %vm7304, %v7302, -inf
    %7306 = vmax.xlane.f32.xlu0 %v7305
    %v7307 = vpop.xlane.xlu0 %7306
    %v7308 = vsub.f32 %v7302, %v7307
    %v7309 = vmul.f32 %v7308, 1.442695
    %v7310 = vpow.pop %v7309
    %v7311 = vsel %vm7304, %v7310, 0.0
    %7312 = vadd.xlane.f32.xlu0 %v7311
    %v7313 = vpop.xlane.xlu0 %7312
    %v7314 = vrcp.pop %v7313
    %v7315 = vmul.f32 %v7313, %v7314
    %v7316 = vsub.f32 1.0, %v7315
    %v7317 = vmul.f32 %v7314, %v7316
    %v7318 = vadd.f32 %v7314, %v7317
    %vm7319 = vweird.f32 %v7313
    %vm7320 = vweird.f32 %v7314
    %vm7321 = vmor %vm7319, %vm7320
    %v7322 = vsel %vm7321, %v7314, %v7318
    %v7323 = vand.u32 2147483647, %v7313
    %vm7324 = vcmp.eq.f32.partialorder %v7323, 8.507059e+37
    %v7325 = vand.u32 %v7313, 2147483648
    %v7326 = vor.u32 1.1754944e-38, %v7325
    %v7327 = vsel %vm7324, %v7326, %v7322
    %v7328 = vmul.f32 %v7310, %v7327
    %7329 = vst.msk [vmem:[#allocation12] sm:$0x3] %vm7304, %v7328
    %v7330 = vld [vmem:[%s7] sm:$0xff]
    %v7331 = vld [vmem:[%s7 + $0x8] sm:$0xff]
    %v7332 = vld [vmem:[%s7 + $0x10] sm:$0xff]
    %v7333 = vld [vmem:[%s7 + $0x18] sm:$0xff]
    %v7334 = vld [vmem:[%s7 + $0x20] sm:$0xff]
    %v7335 = vld [vmem:[%s7 + $0x28] sm:$0xff]
    %v7336 = vld [vmem:[%s7 + $0x30] sm:$0xff]
    %v7337 = vld [vmem:[%s7 + $0x38] sm:$0xff]
    %v7338 = vld [vmem:[%s7 + $0x40] sm:$0xff]
    %v7339 = vld [vmem:[%s7 + $0x48] sm:$0xff]
    %v7340 = vld [vmem:[%s7 + $0x50] sm:$0xff]
    %v7341 = vld [vmem:[%s7 + $0x58] sm:$0xff]
    %v7342 = vld [vmem:[%s7 + $0x60] sm:$0xff]
    %v7343 = vld [vmem:[%s7 + $0x68] sm:$0xff]
    %v7344 = vld [vmem:[%s7 + $0x70] sm:$0xff]
    %v7345 = vld [vmem:[%s7 + $0x78] sm:$0xff]
    %7346 = vset.pattern.permute.xlu0 2
    %7347 = vperm.xlu0 %7346, %v7038
    %v7348 = vpop.permute.xlu0 %7347
    %7350 = vset.pattern.permute.xlu0 2
    %7351 = vperm.xlu0 %7350, %v7039
    %v7352 = vpop.permute.xlu0 %7351
    %7354 = vset.pattern.permute.xlu0 2
    %7355 = vperm.xlu0 %7354, %v7040
    %v7356 = vpop.permute.xlu0 %7355
    %7358 = vset.pattern.permute.xlu0 2
    %7359 = vperm.xlu0 %7358, %v7041
    %v7360 = vpop.permute.xlu0 %7359
    %7362 = vset.pattern.permute.xlu0 2
    %7363 = vperm.xlu0 %7362, %v7042
    %v7364 = vpop.permute.xlu0 %7363
    %7366 = vset.pattern.permute.xlu0 2
    %7367 = vperm.xlu0 %7366, %v7043
    %v7368 = vpop.permute.xlu0 %7367
    %7370 = vset.pattern.permute.xlu0 2
    %7371 = vperm.xlu0 %7370, %v7044
    %v7372 = vpop.permute.xlu0 %7371
    %7374 = vset.pattern.permute.xlu0 2
    %7375 = vperm.xlu0 %7374, %v7045
    %v7376 = vpop.permute.xlu0 %7375
    %7378 = vset.pattern.permute.xlu0 2
    %7379 = vperm.xlu0 %7378, %v7046
    %v7380 = vpop.permute.xlu0 %7379
    %7382 = vset.pattern.permute.xlu0 2
    %7383 = vperm.xlu0 %7382, %v7047
    %v7384 = vpop.permute.xlu0 %7383
    %7386 = vset.pattern.permute.xlu0 2
    %7387 = vperm.xlu0 %7386, %v7048
    %v7388 = vpop.permute.xlu0 %7387
    %7390 = vset.pattern.permute.xlu0 2
    %7391 = vperm.xlu0 %7390, %v7049
    %v7392 = vpop.permute.xlu0 %7391
    %7394 = vset.pattern.permute.xlu0 2
    %7395 = vperm.xlu0 %7394, %v7050
    %v7396 = vpop.permute.xlu0 %7395
    %7398 = vset.pattern.permute.xlu0 2
    %7399 = vperm.xlu0 %7398, %v7051
    %v7400 = vpop.permute.xlu0 %7399
    %7402 = vset.pattern.permute.xlu0 2
    %7403 = vperm.xlu0 %7402, %v7052
    %v7404 = vpop.permute.xlu0 %7403
    %7406 = vset.pattern.permute.xlu0 2
    %7407 = vperm.xlu0 %7406, %v7053
    %v7408 = vpop.permute.xlu0 %7407
    %v7410 = vmul.f32 %v7348, %v7330
    %v7411 = vmul.f32 %v7352, %v7331
    %v7412 = vmul.f32 %v7356, %v7332
    %v7413 = vmul.f32 %v7360, %v7333
    %v7414 = vmul.f32 %v7364, %v7334
    %v7415 = vmul.f32 %v7368, %v7335
    %v7416 = vmul.f32 %v7372, %v7336
    %v7417 = vmul.f32 %v7376, %v7337
    %v7418 = vmul.f32 %v7380, %v7338
    %v7419 = vmul.f32 %v7384, %v7339
    %v7420 = vmul.f32 %v7388, %v7340
    %v7421 = vmul.f32 %v7392, %v7341
    %v7422 = vmul.f32 %v7396, %v7342
    %v7423 = vmul.f32 %v7400, %v7343
    %v7424 = vmul.f32 %v7404, %v7344
    %v7425 = vmul.f32 %v7408, %v7345
    %v7426 = vld [vmem:[%s8] sm:$0x1]
    %v7428 = vperm.slane %v7426, 0
    %7430 = vmatpush.msra.mxu0 %v7425
    %7431 = vmatpush.msra.mxu0 %v7424
    %7432 = vmatpush.msra.mxu0 %v7423
    %7433 = vmatpush.msra.mxu0 %v7422
    %7434 = vmatpush.msra.mxu0 %v7421
    %7435 = vmatpush.msra.mxu0 %v7420
    %7436 = vmatpush.msra.mxu0 %v7419
    %7437 = vmatpush.msra.mxu0 %v7418
    %7438 = vmatpush.msra.mxu0 %v7417
    %7439 = vmatpush.msra.mxu0 %v7416
    %7440 = vmatpush.msra.mxu0 %v7415
    %7441 = vmatpush.msra.mxu0 %v7414
    %7442 = vmatpush.msra.mxu0 %v7413
    %7443 = vmatpush.msra.mxu0 %v7412
    %7444 = vmatpush.msra.mxu0 %v7411
    %7445 = vmatpush.msra.mxu0 %v7410
    %7446 = vmatmul.f32.gmra.mxu0 %v7054
    %v7447 = vpop.f32.mrf.mxu0
    %v7448 = vadd.f32 %v7428, %v7447
    %7449 = vdwg.mxu0
    %v7450 = vmax.f32 %v7448, 0.0
    %v7451 = vld [vmem:[%s9] sm:$0xff]
    %v7452 = vld [vmem:[%s9 + $0x8] sm:$0xff]
    %v7453 = vld [vmem:[%s9 + $0x10] sm:$0xff]
    %v7454 = vld [vmem:[%s9 + $0x18] sm:$0xff]
    %v7455 = vld [vmem:[#allocation5] sm:$0x1]
    %v7457 = vperm.slane %v7455, 0
    %v7460 = vsel %vm90, %v7450, 0
    %7462 = vmatpush.msra.mxu0 0.0
    %7463 = vmatpush.msra.mxu0 0.0
    %7464 = vmatpush.msra.mxu0 0.0
    %7465 = vmatpush.msra.mxu0 0.0
    %7466 = vmatpush.msra.mxu0 0.0
    %7467 = vmatpush.msra.mxu0 0.0
    %7468 = vmatpush.msra.mxu0 0.0
    %7469 = vmatpush.msra.mxu0 0.0
    %7470 = vmatpush.msra.mxu0 0.0
    %7471 = vmatpush.msra.mxu0 0.0
    %7472 = vmatpush.msra.mxu0 0.0
    %7473 = vmatpush.msra.mxu0 0.0
    %7474 = vmatpush.msra.mxu0 %v7454
    %7475 = vmatpush.msra.mxu0 %v7453
    %7476 = vmatpush.msra.mxu0 %v7452
    %7477 = vmatpush.msra.mxu0 %v7451
    %7478 = vmatmul.f32.gmra.mxu0 %v7460
    %v7479 = vpop.f32.mrf.mxu0
    %v7480 = vadd.f32 %v7457, %v7479
    %7481 = vdwg.mxu0
    %vm7482 = vcmask 1024
    %7483 = vst.msk [vmem:[%s13] sm:$0x3] %vm7482, %v7480
    // Predicated region
    $region62: #{forward.1} parent=1 // pred_check
      _
    $region63: #{forward.1} parent=1 // pred_check_branch
      %7485 = sbr.rel (0) target = $region65
    $region64: #{forward.1} parent=1 // pred_region
      %7487 = vsyncadd [#allocation8], 0
      %s7489 = sshll.u32 [#allocation12], 4
      %s7490 = int_to_ptr.vmem [resolvable:$true] %s7489
      %s7491 = sshll.u32 %s12, 4
      %s7492 = int_to_ptr.hbm [resolvable:$true] %s7491
      %7494 = dma.vmem_to_hbm [thread:$0]  %s7490, 32, %s7492, [#allocation8]
    $region65: #{forward.1} parent=1 // pred_fallthru
      _
    // Predicated region
    $region66: #{forward.1} parent=1 // pred_check
      _
    $region67: #{forward.1} parent=1 // pred_check_branch
      %7496 = sbr.rel (0) target = $region69
    $region68: #{forward.1} parent=1 // pred_region
      _
    $region69: #{forward.1} parent=1 // pred_fallthru
      _
    // Predicated region
    $region70: #{forward.1} parent=1 // pred_check
      _
    $region71: #{forward.1} parent=1 // pred_check_branch
      %7498 = sbr.rel (0) target = $region73
    $region72: #{forward.1} parent=1 // pred_region
      %7500 = dma.done [#allocation8], 32
    $region73: #{forward.1} parent=1 // pred_fallthru
      _
    // Predicated region
    $region74: #{forward.1} parent=1 // pred_check
      _
    $region75: #{forward.1} parent=1 // pred_check_branch
      %7502 = sbr.rel (0) target = $region77
    $region76: #{forward.1} parent=1 // pred_region
      _
    $region77: #{forward.1} parent=1 // pred_fallthru
      _
    %7503 = vsyncpa [#allocation7], 1
    %7504 = vsyncpa [#allocation10], 1
    %7505 = vsyncpa [#allocation8], 1

</llo_original>
